<compile_context>
chip_gen: v6e
topology: v6e:2x2x1
jax: 0.10.0
libtpu: 0.0.40
codegen_flags: <defaults>
</compile_context>

<pallas_src>
import numpy as np
import jax
import jax.numpy as jnp
from jax.experimental import pallas as pl
from jax.experimental.pallas import tpu as pltpu

# ---- small, deterministic problem sizes -------------------------------------
VOCAB = 50      # args.vocab_size
E     = 32      # args.embedding_dim  (in_dim of ChildSumTreeLSTM)
MEM   = 32      # args.memory_size    (mem_dim)
HID   = 32      # args.hidden_size
B     = 2       # batch of (tree, sentence) pairs
N     = 8       # tokens / tree nodes per sentence
MAXC  = 3       # max children per node (padded)
PAD   = 0       # constants.PAD
NT    = 2 * B   # independent trees processed together per kernel call (L/R x batch)


# ====================== fused TreeLSTM (all trees) + Similarity kernel ========
def _make_fused_kernel(N, E, MEM, MAXC, HID, NT, B):
    IOU = 3 * MEM          # width of the i/o/u block
    FUSE = 4 * MEM         # fused [iou | f] width = 128 lanes
    SENT = N * NT          # sentinel scratch row = permanent zero child state

    def kernel(child_ref,                                   # scalar prefetch (SMEM, int32)
               x_ref, wx_ref, bx_ref, wh_ref,               # tree inputs / weights (VMEM)
               swh_ref, sbh_ref, swp_ref, sbp_ref,          # similarity weights
               o_ref, croot_ref, hroot_ref, pred_ref,       # outputs (VMEM)
               xproj_scr, hrec_scr, c_scr, gath_scr, cgath_scr):  # scratch (VMEM)
        wh = wh_ref[...]                                    # (MEM, 4*MEM) [Wh_iou | Wh_f]

        # Only the sentinel rows need zero-init: leaves / padded child slots all
        # point here; every real row is written before any parent reads it.
        hrec_scr[pl.ds(SENT, 1), :] = jnp.zeros((1, FUSE), jnp.float32)
        c_scr[pl.ds(SENT, 1), :] = jnp.zeros((1, MEM), jnp.float32)

        # One fused input projection for ALL trees and ALL nodes (topo-permuted):
        #   xproj[t*NT+s] = x[s, order[s,t]] @ [Wx_iou | Wx_f] + [b_ioux+b_iouh | b_fx+b_fh]
        xproj_scr[...] = (jnp.dot(x_ref[...], wx_ref[...],
                                  preferred_element_type=jnp.float32) + bx_ref[...])

        c_n = None
        h_n = None
        for t in range(N):                         # static, fully unrolled topo steps
            r0 = t * NT
            # Gather the MAXC child states of every tree's step-t node.
            # child_ref entries are precomputed scratch rows (sentinel for pads),
            # read at compile-time-constant SMEM offsets.
            for j in range(MAXC):
                for s in range(NT):
                    ci = child_ref[(r0 + s) * MAXC + j]
                    gath_scr[j, pl.ds(s, 1), :] = hrec_scr[pl.ds(ci, 1), :]
                    cgath_scr[j, pl.ds(s, 1), :] = c_scr[pl.ds(ci, 1), :]

            G = gath_scr[...]                       # (MAXC, NT, 4*MEM) child h @ [Whi|Whf]
            Ck = cgath_scr[...]                     # (MAXC, NT, MEM)   child c
            xp = xproj_scr[pl.ds(r0, NT), :]        # (NT, 4*MEM) [iou_x+b | fx+b]
            fx = xp[:, IOU:]                        # (NT, MEM)

            # ONE sigmoid over every (tree, child) forget gate.
            f = jax.nn.sigmoid(G[:, :, IOU:] + fx[None, :, :])
            fcsum = jnp.sum(f * Ck, axis=0)         # (NT, MEM)
            hsum = jnp.sum(G[:, :, :IOU], axis=0)   # (NT, 3*MEM) = (sum child h) @ Wh_iou

            gates = jax.nn.sigmoid(xp[:, :IOU] + hsum)   # i, o, u all sigmoid (as in source)
            i_g = gates[:, :MEM]
            o_g = gates[:, MEM:2 * MEM]
            u_g = gates[:, 2 * MEM:]
            c_n = i_g * u_g + fcsum
            h_n = o_g * jnp.tanh(c_n)

            o_ref[pl.ds(r0, NT), :] = h_n           # per-node hidden states (topo order)
            c_scr[pl.ds(r0, NT), :] = c_n
            # Single (NT,MEM)@(MEM,4*MEM) recurrent projection for all trees, cached
            # so parents only do elementwise work per edge.
            # TODO(synk): hold wh resident with pltpu.matmul_push_rhs/acc_lhs/pop.
            hrec_scr[pl.ds(r0, NT), :] = jnp.dot(
                h_n, wh, preferred_element_type=jnp.float32)

        # Roots sit at topo position N-1 for every tree -> last iteration's values.
        croot_ref[...] = c_n
        hroot_ref[...] = h_n

        # ------- Similarity head (fused epilogue; weights are tiny in VMEM) -------
        # TODO(synk): source passes per-node o_states into Similarity, which is
        # shape-inconsistent with nn.Linear(2*mem_dim, hid); we use root hidden states.
        lvec = h_n[:B, :]
        rvec = h_n[B:, :]
        mul = lvec * rvec
        ad = jnp.abs(lvec - rvec)
        # cat((mul, abs), 1) @ Wh^T == mul @ Wh^T[:MEM] + abs @ Wh^T[MEM:]
        pre = (jnp.dot(mul, swh_ref[:MEM, :], preferred_element_type=jnp.float32)
               + jnp.dot(ad, swh_ref[MEM:, :], preferred_element_type=jnp.float32)
               + sbh_ref[...])
        hid = jax.nn.sigmoid(pre)
        pred_ref[...] = jax.nn.sigmoid(
            jnp.dot(hid, swp_ref[...], preferred_element_type=jnp.float32) + sbp_ref[...])

    return kernel


def fused_forward(x_perm, child_flat, tree_p, sim_p):
    kernel = _make_fused_kernel(N, E, MEM, MAXC, HID, NT, B)

    # Fuse the four tree Linear layers into one input and one recurrent weight,
    # folding the recurrent biases into the input-projection bias (plain JAX glue).
    wx = jnp.concatenate([tree_p["wxi"], tree_p["wxf"]], axis=1)       # (E, 4*MEM)
    bx = jnp.concatenate([tree_p["bxi"] + tree_p["bhi"],
                          tree_p["bxf"] + tree_p["bhf"]], axis=1)      # (1, 4*MEM)
    wh = jnp.concatenate([tree_p["whi"], tree_p["whf"]], axis=1)       # (MEM, 4*MEM)

    grid_spec = pltpu.PrefetchScalarGridSpec(
        num_scalar_prefetch=1,
        grid=(1,),                       # whole batch (all 2*B trees) in one grid step
        in_specs=[
            pl.BlockSpec((N * NT, E), lambda i, *_: (0, 0)),       # topo-permuted tokens
            pl.BlockSpec((E, 4 * MEM), lambda i, *_: (0, 0)),      # [Wx_iou | Wx_f]
            pl.BlockSpec((1, 4 * MEM), lambda i, *_: (0, 0)),      # fused input bias
            pl.BlockSpec((MEM, 4 * MEM), lambda i, *_: (0, 0)),    # [Wh_iou | Wh_f]
            pl.BlockSpec((2 * MEM, HID), lambda i, *_: (0, 0)),    # sim Wh^T
            pl.BlockSpec((1, HID), lambda i, *_: (0, 0)),          # sim bh
            pl.BlockSpec((HID, 1), lambda i, *_: (0, 0)),          # sim Wp^T
            pl.BlockSpec((1, 1), lambda i, *_: (0, 0)),            # sim bp
        ],
        out_specs=[
            pl.BlockSpec((N * NT, MEM), lambda i, *_: (0, 0)),     # per-node h (topo order)
            pl.BlockSpec((NT, MEM), lambda i, *_: (0, 0)),         # root c per tree
            pl.BlockSpec((NT, MEM), lambda i, *_: (0, 0)),         # root h per tree
            pl.BlockSpec((B, 1), lambda i, *_: (0, 0)),            # similarity pred
        ],
        scratch_shapes=[
            pltpu.VMEM((N * NT, 4 * MEM), jnp.float32),            # fused x projections
            pltpu.VMEM((N * NT + 1, 4 * MEM), jnp.float32),        # h@Wh cache + sentinel
            pltpu.VMEM((N * NT + 1, MEM), jnp.float32),            # c per node + sentinel
            pltpu.VMEM((MAXC, NT, 4 * MEM), jnp.float32),          # gathered child h@Wh rows
            pltpu.VMEM((MAXC, NT, MEM), jnp.float32),              # gathered child c rows
        ],
    )
    o_topo, c_root, h_root, pred = pl.pallas_call(
        kernel,
        grid_spec=grid_spec,
        out_shape=(
            jax.ShapeDtypeStruct((N * NT, MEM), jnp.float32),
            jax.ShapeDtypeStruct((NT, MEM), jnp.float32),
            jax.ShapeDtypeStruct((NT, MEM), jnp.float32),
            jax.ShapeDtypeStruct((B, 1), jnp.float32),
        ),
        compiler_params=pltpu.CompilerParams(
            dimension_semantics=("arbitrary",)),
    )(child_flat, x_perm, wx, bx, wh,
      sim_p["wh"], sim_p["bh"], sim_p["wp"], sim_p["bp"])
    return o_topo, c_root, h_root, pred


# ============================== Full model forward ============================
def similarity_tree_lstm_forward(params, l_ids, l_meta, r_ids, r_meta):
    emb = params["emb"]
    # embedding lookup is a gather (glue, plain JAX)
    l_x = jnp.take(emb, l_ids, axis=0)                      # (B, N, E)
    # TODO(synk): source has `self.emn(rinputs)` (typo); it must be `self.embedding`.
    r_x = jnp.take(emb, r_ids, axis=0)

    # Tree index s = side*B + b  (all left trees first, then all right trees).
    x_all = jnp.concatenate([l_x, r_x], axis=0)             # (NT, N, E)
    l_order, l_child, l_nc = l_meta
    r_order, r_child, r_nc = r_meta
    order = jnp.concatenate([l_order, r_order], axis=0)                     # (NT, N)
    child = jnp.concatenate([l_child, r_child], axis=0).reshape(NT, N, MAXC)
    nc = jnp.concatenate([l_nc, r_nc], axis=0)                              # (NT, N)

    # Host-side linearization: permute inputs/metadata into topological order and
    # bake validity + node-id indirection into sentinel-padded scratch row ids so
    # the kernel has no dependent scalar loads and no masking.
    rows = jnp.arange(NT)[:, None]
    inv = jnp.argsort(order, axis=1)                        # inv[s, n] = topo position of n
    # TODO(synk): assumes `order` is a full topological permutation of 0..N-1
    # (children strictly before parents, root last), as in the source traversal.
    x_topo = x_all[rows, order]                             # (NT, N, E)
    x_perm = jnp.transpose(x_topo, (1, 0, 2)).reshape(N * NT, E)    # row = t*NT + s

    child_topo = child[rows, order]                         # (NT, N, MAXC) child node-ids
    nc_topo = nc[rows, order]                               # (NT, N)
    child_pos = inv[jnp.arange(NT)[:, None, None], child_topo]      # child topo positions
    child_row = child_pos * NT + jnp.arange(NT)[:, None, None]      # scratch row p*NT + s
    valid = jnp.arange(MAXC)[None, None, :] < nc_topo[:, :, None]
    child_row = jnp.where(valid, child_row, N * NT).astype(jnp.int32)   # sentinel pad
    child_flat = jnp.transpose(child_row, (1, 0, 2)).reshape(N * NT * MAXC)

    o_topo, c_root, h_root, pred = fused_forward(
        x_perm, child_flat, params["tree"], params["sim"])

    # Un-permute per-node hidden states back to node-id order (host glue).
    o_t = jnp.transpose(o_topo.reshape(N, NT, MEM), (1, 0, 2))      # (NT, N_topo, MEM)
    o_node = o_t[rows, inv]                                         # (NT, N, MEM)
    lo, ro = o_node[:B], o_node[B:]
    lc, rc = c_root[:B], c_root[B:]
    lh, rh = h_root[:B], h_root[B:]
    return pred, (lo, ro, lc, rc, lh, rh)


# ================================ NumPy reference =============================
def _sig(x):
    return 1.0 / (1.0 + np.exp(-x))


def ref_tree_lstm(x, order, children, num_children, p):
    x = np.asarray(x, np.float64)
    wxi, bxi = np.asarray(p["wxi"]), np.asarray(p["bxi"])
    whi, bhi = np.asarray(p["whi"]), np.asarray(p["bhi"])
    wxf, bxf = np.asarray(p["wxf"]), np.asarray(p["bxf"])
    whf, bhf = np.asarray(p["whf"]), np.asarray(p["bhf"])
    Nn = x.shape[0]
    h = np.zeros((Nn, MEM))
    c = np.zeros((Nn, MEM))
    for t in range(Nn):
        n = int(order[t]); nc = int(num_children[n])
        if nc == 0:
            ch = np.zeros((1, MEM)); cc = np.zeros((1, MEM))
        else:
            idx = children[n, :nc]
            ch = h[idx]; cc = c[idx]
        xn = x[n:n + 1]
        iou = xn @ wxi + bxi + ch.sum(0, keepdims=True) @ whi + bhi
        i_g, o_g, u_g = _sig(iou[:, :MEM]), _sig(iou[:, MEM:2 * MEM]), _sig(iou[:, 2 * MEM:])
        f = _sig(ch @ whf + bhf + (xn @ wxf + bxf))
        cn = i_g * u_g + (f * cc).sum(0, keepdims=True)
        hn = o_g * np.tanh(cn)
        c[n] = cn; h[n] = hn
    root = int(order[-1])
    return h, c[root:root + 1], h[root:root + 1]


def ref_similarity(l, r, p):
    vec = np.concatenate([l * r, np.abs(l - r)], axis=1)
    hid = _sig(vec @ np.asarray(p["wh"]) + np.asarray(p["bh"]))
    return _sig(hid @ np.asarray(p["wp"]) + np.asarray(p["bp"]))


# ===================================== main ===================================
if __name__ == "__main__":
    key = jax.random.PRNGKey(0)
    ks = jax.random.split(key, 9)

    def linear(k, fin, fout):
        kw, kb = jax.random.split(k)
        bound = 1.0 / np.sqrt(fin)
        w = jax.random.uniform(kw, (fin, fout), jnp.float32, -bound, bound)  # pre-transposed
        b = jax.random.uniform(kb, (1, fout), jnp.float32, -bound, bound)
        return w, b

    emb = jax.random.normal(ks[0], (VOCAB, E), jnp.float32) * 0.1
    emb = emb.at[PAD].set(0.0)                                     # padding_idx = PAD

    wxi, bxi = linear(ks[1], E, 3 * MEM)
    whi, bhi = linear(ks[2], MEM, 3 * MEM)
    wxf, bxf = linear(ks[3], E, MEM)
    whf, bhf = linear(ks[4], MEM, MEM)
    wh, bh = linear(ks[5], 2 * MEM, HID)
    wp, bp = linear(ks[6], HID, 1)

    params = {
        "emb": emb,
        "tree": {"wxi": wxi, "bxi": bxi, "whi": whi, "bhi": bhi,
                 "wxf": wxf, "bxf": bxf, "whf": whf, "bhf": bhf},
        "sim": {"wh": wh, "bh": bh, "wp": wp, "bp": bp},
    }

    l_ids = jax.random.randint(ks[7], (B, N), 1, VOCAB, dtype=jnp.int32)
    r_ids = jax.random.randint(ks[8], (B, N), 1, VOCAB, dtype=jnp.int32)

    # Deterministic trees, linearized (children strictly before parents, root last).
    children = np.zeros((B, N, MAXC), np.int32)
    num_children = np.zeros((B, N), np.int32)
    order = np.tile(np.arange(N, dtype=np.int32), (B, 1))
    # tree 0: 3<-{0,1,2}, 6<-{4,5}, 7<-{3,6}
    children[0, 3, :3] = [0, 1, 2]; num_children[0, 3] = 3
    children[0, 6, :2] = [4, 5];    num_children[0, 6] = 2
    children[0, 7, :2] = [3, 6];    num_children[0, 7] = 2
    # tree 1: left-branching chain, root = 7
    for i in range(1, N):
        children[1, i, 0] = i - 1
        num_children[1, i] = 1

    order_j = jnp.asarray(order)
    children_flat_j = jnp.asarray(children.reshape(B, N * MAXC))
    nc_j = jnp.asarray(num_children)
    meta = (order_j, children_flat_j, nc_j)

    pred, (lo, ro, lc, rc, lh, rh) = similarity_tree_lstm_forward(
        params, l_ids, meta, r_ids, meta)
    jax.block_until_ready(pred)

    # ------------------------- reference check -------------------------------
    l_x = np.asarray(jnp.take(emb, l_ids, axis=0))
    r_x = np.asarray(jnp.take(emb, r_ids, axis=0))
    lh_ref = np.zeros((B, MEM)); rh_ref = np.zeros((B, MEM))
    lo_ref = np.zeros((B, N, MEM)); ro_ref = np.zeros((B, N, MEM))
    for b in range(B):
        ho, _, hr = ref_tree_lstm(l_x[b], order[b], children[b], num_children[b], params["tree"])
        lo_ref[b], lh_ref[b] = ho, hr[0]
        ho, _, hr = ref_tree_lstm(r_x[b], order[b], children[b], num_children[b], params["tree"])
        ro_ref[b], rh_ref[b] = ho, hr[0]
    pred_ref = ref_similarity(lh_ref, rh_ref, params["sim"])

    assert np.allclose(np.asarray(lo), lo_ref, atol=5e-2, rtol=5e-2)
    assert np.allclose(np.asarray(ro), ro_ref, atol=5e-2, rtol=5e-2)
    assert np.allclose(np.asarray(lh), lh_ref, atol=5e-2, rtol=5e-2)
    assert np.allclose(np.asarray(rh), rh_ref, atol=5e-2, rtol=5e-2)
    assert np.allclose(np.asarray(pred), pred_ref, atol=5e-2, rtol=5e-2)
    assert pred.shape == (B, 1)
    print("KERNEL_OK")
</pallas_src>

<mosaic_0001>
module attributes {stable_mosaic.version = 11 : i64} {
  func.func @kernel(%arg0: i32, %arg1: memref<96xi32, #tpu.memory_space<smem>>, %arg2: memref<32x32xf32, #tpu.memory_space<vmem>>, %arg3: memref<32x128xf32, #tpu.memory_space<vmem>>, %arg4: memref<1x128xf32, #tpu.memory_space<vmem>>, %arg5: memref<32x128xf32, #tpu.memory_space<vmem>>, %arg6: memref<64x32xf32, #tpu.memory_space<vmem>>, %arg7: memref<1x32xf32, #tpu.memory_space<vmem>>, %arg8: memref<32x1xf32, #tpu.memory_space<vmem>>, %arg9: memref<1x1xf32, #tpu.memory_space<vmem>>, %arg10: memref<32x32xf32, #tpu.memory_space<vmem>>, %arg11: memref<4x32xf32, #tpu.memory_space<vmem>>, %arg12: memref<4x32xf32, #tpu.memory_space<vmem>>, %arg13: memref<2x1xf32, #tpu.memory_space<vmem>>, %arg14: memref<32x128xf32, #tpu.memory_space<vmem>>, %arg15: memref<33x128xf32, #tpu.memory_space<vmem>>, %arg16: memref<33x32xf32, #tpu.memory_space<vmem>>, %arg17: memref<3x4x128xf32, #tpu.memory_space<vmem>>, %arg18: memref<3x4x32xf32, #tpu.memory_space<vmem>>) attributes {dimension_semantics = [#tpu.dimension_semantics<arbitrary>], iteration_bounds = array<i64: 1>, scalar_prefetch = 1 : i64, scratch_operands = 5 : i64, tpu.core_type = #tpu.core_type<tc>, window_params = [{pipeline_mode = #tpu.pipeline_mode<synchronous>, transform_indices = @transform_0, window_bounds = array<i64: 32, 32>}, {pipeline_mode = #tpu.pipeline_mode<synchronous>, transform_indices = @transform_1, window_bounds = array<i64: 32, 128>}, {pipeline_mode = #tpu.pipeline_mode<synchronous>, transform_indices = @transform_2, window_bounds = array<i64: 1, 128>}, {pipeline_mode = #tpu.pipeline_mode<synchronous>, transform_indices = @transform_3, window_bounds = array<i64: 32, 128>}, {pipeline_mode = #tpu.pipeline_mode<synchronous>, transform_indices = @transform_4, window_bounds = array<i64: 64, 32>}, {pipeline_mode = #tpu.pipeline_mode<synchronous>, transform_indices = @transform_5, window_bounds = array<i64: 1, 32>}, {pipeline_mode = #tpu.pipeline_mode<synchronous>, transform_indices = @transform_6, window_bounds = array<i64: 32, 1>}, {pipeline_mode = #tpu.pipeline_mode<synchronous>, transform_indices = @transform_7, window_bounds = array<i64: 1, 1>}, {pipeline_mode = #tpu.pipeline_mode<synchronous>, transform_indices = @transform_8, window_bounds = array<i64: 32, 32>}, {pipeline_mode = #tpu.pipeline_mode<synchronous>, transform_indices = @transform_9, window_bounds = array<i64: 4, 32>}, {pipeline_mode = #tpu.pipeline_mode<synchronous>, transform_indices = @transform_10, window_bounds = array<i64: 4, 32>}, {pipeline_mode = #tpu.pipeline_mode<synchronous>, transform_indices = @transform_11, window_bounds = array<i64: 2, 1>}]} {
    %c0 = arith.constant 0 : index
    %c0_0 = arith.constant 0 : index
    %0 = vector.load %arg5[%c0, %c0_0] : memref<32x128xf32, #tpu.memory_space<vmem>>, vector<32x128xf32>
    %cst = arith.constant 0.000000e+00 : f32
    %1 = vector.broadcast %cst : f32 to vector<1x128xf32>
    %c32 = arith.constant 32 : index
    %c0_1 = arith.constant 0 : index
    %2 = vector.load %arg15[%c32, %c0_1] : memref<33x128xf32, #tpu.memory_space<vmem>>, vector<1x128xf32>
    tpu.vector_store %arg15[%c32, %c0_1], %1 {strides = array<i32>} : memref<33x128xf32, #tpu.memory_space<vmem>>, vector<1x128xf32>,
    %cst_2 = arith.constant 0.000000e+00 : f32
    %3 = vector.broadcast %cst_2 : f32 to vector<1x32xf32>
    %c32_3 = arith.constant 32 : index
    %c0_4 = arith.constant 0 : index
    %4 = vector.load %arg16[%c32_3, %c0_4] : memref<33x32xf32, #tpu.memory_space<vmem>>, vector<1x32xf32>
    tpu.vector_store %arg16[%c32_3, %c0_4], %3 {strides = array<i32>} : memref<33x32xf32, #tpu.memory_space<vmem>>, vector<1x32xf32>,
    %c0_5 = arith.constant 0 : index
    %c0_6 = arith.constant 0 : index
    %5 = vector.load %arg2[%c0_5, %c0_6] : memref<32x32xf32, #tpu.memory_space<vmem>>, vector<32x32xf32>
    %c0_7 = arith.constant 0 : index
    %c0_8 = arith.constant 0 : index
    %6 = vector.load %arg3[%c0_7, %c0_8] : memref<32x128xf32, #tpu.memory_space<vmem>>, vector<32x128xf32>
    %cst_9 = arith.constant dense<0.000000e+00> : vector<32x128xf32>
    %7 = tpu.matmul %5, %6, %cst_9 {dimension_numbers = #tpu.dot_dimension_numbers<[1], [0], [0], [1], [0, 0, 1, 1], [], []>} : vector<32x32xf32>, vector<32x128xf32>, vector<32x128xf32> -> vector<32x128xf32>
    %c0_10 = arith.constant 0 : index
    %c0_11 = arith.constant 0 : index
    %8 = vector.load %arg4[%c0_10, %c0_11] : memref<1x128xf32, #tpu.memory_space<vmem>>, vector<1x128xf32>
    %9 = vector.broadcast %8 : vector<1x128xf32> to vector<32x128xf32>
    %10 = arith.addf %7, %9 : vector<32x128xf32>
    %c0_12 = arith.constant 0 : index
    %c0_13 = arith.constant 0 : index
    %11 = vector.load %arg14[%c0_12, %c0_13] : memref<32x128xf32, #tpu.memory_space<vmem>>, vector<32x128xf32>
    tpu.vector_store %arg14[%c0_12, %c0_13], %10 {strides = array<i32>} : memref<32x128xf32, #tpu.memory_space<vmem>>, vector<32x128xf32>,
    %c0_14 = arith.constant 0 : index
    %12 = memref.load %arg1[%c0_14] : memref<96xi32, #tpu.memory_space<smem>>
    %13 = arith.index_cast %12 : i32 to index
    %c0_15 = arith.constant 0 : index
    %14 = vector.load %arg15[%13, %c0_15] : memref<33x128xf32, #tpu.memory_space<vmem>>, vector<1x128xf32>
    %c0_16 = arith.constant 0 : index
    %c0_17 = arith.constant 0 : index
    %c0_18 = arith.constant 0 : index
    %15 = vector.load %arg17[%c0_16, %c0_17, %c0_18] : memref<3x4x128xf32, #tpu.memory_space<vmem>>, vector<1x1x128xf32>
    %16 = vector.shape_cast %15 : vector<1x1x128xf32> to vector<1x128xf32>
    %17 = vector.shape_cast %14 : vector<1x128xf32> to vector<1x1x128xf32>
    tpu.vector_store %arg17[%c0_16, %c0_17, %c0_18], %17 {strides = array<i32>} : memref<3x4x128xf32, #tpu.memory_space<vmem>>, vector<1x1x128xf32>,
    %18 = arith.index_cast %12 : i32 to index
    %c0_19 = arith.constant 0 : index
    %19 = vector.load %arg16[%18, %c0_19] : memref<33x32xf32, #tpu.memory_space<vmem>>, vector<1x32xf32>
    %c0_20 = arith.constant 0 : index
    %c0_21 = arith.constant 0 : index
    %c0_22 = arith.constant 0 : index
    %20 = vector.load %arg18[%c0_20, %c0_21, %c0_22] : memref<3x4x32xf32, #tpu.memory_space<vmem>>, vector<1x1x32xf32>
    %21 = vector.shape_cast %20 : vector<1x1x32xf32> to vector<1x32xf32>
    %22 = vector.shape_cast %19 : vector<1x32xf32> to vector<1x1x32xf32>
    tpu.vector_store %arg18[%c0_20, %c0_21, %c0_22], %22 {strides = array<i32>} : memref<3x4x32xf32, #tpu.memory_space<vmem>>, vector<1x1x32xf32>,
    %c3 = arith.constant 3 : index
    %23 = memref.load %arg1[%c3] : memref<96xi32, #tpu.memory_space<smem>>
    %24 = arith.index_cast %23 : i32 to index
    %c0_23 = arith.constant 0 : index
    %25 = vector.load %arg15[%24, %c0_23] : memref<33x128xf32, #tpu.memory_space<vmem>>, vector<1x128xf32>
    %c0_24 = arith.constant 0 : index
    %c1 = arith.constant 1 : index
    %c0_25 = arith.constant 0 : index
    %26 = vector.load %arg17[%c0_24, %c1, %c0_25] : memref<3x4x128xf32, #tpu.memory_space<vmem>>, vector<1x1x128xf32>
    %27 = vector.shape_cast %26 : vector<1x1x128xf32> to vector<1x128xf32>
    %28 = vector.shape_cast %25 : vector<1x128xf32> to vector<1x1x128xf32>
    tpu.vector_store %arg17[%c0_24, %c1, %c0_25], %28 {strides = array<i32>} : memref<3x4x128xf32, #tpu.memory_space<vmem>>, vector<1x1x128xf32>,
    %29 = arith.index_cast %23 : i32 to index
    %c0_26 = arith.constant 0 : index
    %30 = vector.load %arg16[%29, %c0_26] : memref<33x32xf32, #tpu.memory_space<vmem>>, vector<1x32xf32>
    %c0_27 = arith.constant 0 : index
    %c1_28 = arith.constant 1 : index
    %c0_29 = arith.constant 0 : index
    %31 = vector.load %arg18[%c0_27, %c1_28, %c0_29] : memref<3x4x32xf32, #tpu.memory_space<vmem>>, vector<1x1x32xf32>
    %32 = vector.shape_cast %31 : vector<1x1x32xf32> to vector<1x32xf32>
    %33 = vector.shape_cast %30 : vector<1x32xf32> to vector<1x1x32xf32>
    tpu.vector_store %arg18[%c0_27, %c1_28, %c0_29], %33 {strides = array<i32>} : memref<3x4x32xf32, #tpu.memory_space<vmem>>, vector<1x1x32xf32>,
    %c6 = arith.constant 6 : index
    %34 = memref.load %arg1[%c6] : memref<96xi32, #tpu.memory_space<smem>>
    %35 = arith.index_cast %34 : i32 to index
    %c0_30 = arith.constant 0 : index
    %36 = vector.load %arg15[%35, %c0_30] : memref<33x128xf32, #tpu.memory_space<vmem>>, vector<1x128xf32>
    %c0_31 = arith.constant 0 : index
    %c2 = arith.constant 2 : index
    %c0_32 = arith.constant 0 : index
    %37 = vector.load %arg17[%c0_31, %c2, %c0_32] : memref<3x4x128xf32, #tpu.memory_space<vmem>>, vector<1x1x128xf32>
    %38 = vector.shape_cast %37 : vector<1x1x128xf32> to vector<1x128xf32>
    %39 = vector.shape_cast %36 : vector<1x128xf32> to vector<1x1x128xf32>
    tpu.vector_store %arg17[%c0_31, %c2, %c0_32], %39 {strides = array<i32>} : memref<3x4x128xf32, #tpu.memory_space<vmem>>, vector<1x1x128xf32>,
    %40 = arith.index_cast %34 : i32 to index
    %c0_33 = arith.constant 0 : index
    %41 = vector.load %arg16[%40, %c0_33] : memref<33x32xf32, #tpu.memory_space<vmem>>, vector<1x32xf32>
    %c0_34 = arith.constant 0 : index
    %c2_35 = arith.constant 2 : index
    %c0_36 = arith.constant 0 : index
    %42 = vector.load %arg18[%c0_34, %c2_35, %c0_36] : memref<3x4x32xf32, #tpu.memory_space<vmem>>, vector<1x1x32xf32>
    %43 = vector.shape_cast %42 : vector<1x1x32xf32> to vector<1x32xf32>
    %44 = vector.shape_cast %41 : vector<1x32xf32> to vector<1x1x32xf32>
    tpu.vector_store %arg18[%c0_34, %c2_35, %c0_36], %44 {strides = array<i32>} : memref<3x4x32xf32, #tpu.memory_space<vmem>>, vector<1x1x32xf32>,
    %c9 = arith.constant 9 : index
    %45 = memref.load %arg1[%c9] : memref<96xi32, #tpu.memory_space<smem>>
    %46 = arith.index_cast %45 : i32 to index
    %c0_37 = arith.constant 0 : index
    %47 = vector.load %arg15[%46, %c0_37] : memref<33x128xf32, #tpu.memory_space<vmem>>, vector<1x128xf32>
    %c0_38 = arith.constant 0 : index
    %c3_39 = arith.constant 3 : index
    %c0_40 = arith.constant 0 : index
    %48 = vector.load %arg17[%c0_38, %c3_39, %c0_40] : memref<3x4x128xf32, #tpu.memory_space<vmem>>, vector<1x1x128xf32>
    %49 = vector.shape_cast %48 : vector<1x1x128xf32> to vector<1x128xf32>
    %50 = vector.shape_cast %47 : vector<1x128xf32> to vector<1x1x128xf32>
    tpu.vector_store %arg17[%c0_38, %c3_39, %c0_40], %50 {strides = array<i32>} : memref<3x4x128xf32, #tpu.memory_space<vmem>>, vector<1x1x128xf32>,
    %51 = arith.index_cast %45 : i32 to index
    %c0_41 = arith.constant 0 : index
    %52 = vector.load %arg16[%51, %c0_41] : memref<33x32xf32, #tpu.memory_space<vmem>>, vector<1x32xf32>
    %c0_42 = arith.constant 0 : index
    %c3_43 = arith.constant 3 : index
    %c0_44 = arith.constant 0 : index
    %53 = vector.load %arg18[%c0_42, %c3_43, %c0_44] : memref<3x4x32xf32, #tpu.memory_space<vmem>>, vector<1x1x32xf32>
    %54 = vector.shape_cast %53 : vector<1x1x32xf32> to vector<1x32xf32>
    %55 = vector.shape_cast %52 : vector<1x32xf32> to vector<1x1x32xf32>
    tpu.vector_store %arg18[%c0_42, %c3_43, %c0_44], %55 {strides = array<i32>} : memref<3x4x32xf32, #tpu.memory_space<vmem>>, vector<1x1x32xf32>,
    %c1_45 = arith.constant 1 : index
    %56 = memref.load %arg1[%c1_45] : memref<96xi32, #tpu.memory_space<smem>>
    %57 = arith.index_cast %56 : i32 to index
    %c0_46 = arith.constant 0 : index
    %58 = vector.load %arg15[%57, %c0_46] : memref<33x128xf32, #tpu.memory_space<vmem>>, vector<1x128xf32>
    %c1_47 = arith.constant 1 : index
    %c0_48 = arith.constant 0 : index
    %c0_49 = arith.constant 0 : index
    %59 = vector.load %arg17[%c1_47, %c0_48, %c0_49] : memref<3x4x128xf32, #tpu.memory_space<vmem>>, vector<1x1x128xf32>
    %60 = vector.shape_cast %59 : vector<1x1x128xf32> to vector<1x128xf32>
    %61 = vector.shape_cast %58 : vector<1x128xf32> to vector<1x1x128xf32>
    tpu.vector_store %arg17[%c1_47, %c0_48, %c0_49], %61 {strides = array<i32>} : memref<3x4x128xf32, #tpu.memory_space<vmem>>, vector<1x1x128xf32>,
    %62 = arith.index_cast %56 : i32 to index
    %c0_50 = arith.constant 0 : index
    %63 = vector.load %arg16[%62, %c0_50] : memref<33x32xf32, #tpu.memory_space<vmem>>, vector<1x32xf32>
    %c1_51 = arith.constant 1 : index
    %c0_52 = arith.constant 0 : index
    %c0_53 = arith.constant 0 : index
    %64 = vector.load %arg18[%c1_51, %c0_52, %c0_53] : memref<3x4x32xf32, #tpu.memory_space<vmem>>, vector<1x1x32xf32>
    %65 = vector.shape_cast %64 : vector<1x1x32xf32> to vector<1x32xf32>
    %66 = vector.shape_cast %63 : vector<1x32xf32> to vector<1x1x32xf32>
    tpu.vector_store %arg18[%c1_51, %c0_52, %c0_53], %66 {strides = array<i32>} : memref<3x4x32xf32, #tpu.memory_space<vmem>>, vector<1x1x32xf32>,
    %c4 = arith.constant 4 : index
    %67 = memref.load %arg1[%c4] : memref<96xi32, #tpu.memory_space<smem>>
    %68 = arith.index_cast %67 : i32 to index
    %c0_54 = arith.constant 0 : index
    %69 = vector.load %arg15[%68, %c0_54] : memref<33x128xf32, #tpu.memory_space<vmem>>, vector<1x128xf32>
    %c1_55 = arith.constant 1 : index
    %c1_56 = arith.constant 1 : index
    %c0_57 = arith.constant 0 : index
    %70 = vector.load %arg17[%c1_55, %c1_56, %c0_57] : memref<3x4x128xf32, #tpu.memory_space<vmem>>, vector<1x1x128xf32>
    %71 = vector.shape_cast %70 : vector<1x1x128xf32> to vector<1x128xf32>
    %72 = vector.shape_cast %69 : vector<1x128xf32> to vector<1x1x128xf32>
    tpu.vector_store %arg17[%c1_55, %c1_56, %c0_57], %72 {strides = array<i32>} : memref<3x4x128xf32, #tpu.memory_space<vmem>>, vector<1x1x128xf32>,
    %73 = arith.index_cast %67 : i32 to index
    %c0_58 = arith.constant 0 : index
    %74 = vector.load %arg16[%73, %c0_58] : memref<33x32xf32, #tpu.memory_space<vmem>>, vector<1x32xf32>
    %c1_59 = arith.constant 1 : index
    %c1_60 = arith.constant 1 : index
    %c0_61 = arith.constant 0 : index
    %75 = vector.load %arg18[%c1_59, %c1_60, %c0_61] : memref<3x4x32xf32, #tpu.memory_space<vmem>>, vector<1x1x32xf32>
    %76 = vector.shape_cast %75 : vector<1x1x32xf32> to vector<1x32xf32>
    %77 = vector.shape_cast %74 : vector<1x32xf32> to vector<1x1x32xf32>
    tpu.vector_store %arg18[%c1_59, %c1_60, %c0_61], %77 {strides = array<i32>} : memref<3x4x32xf32, #tpu.memory_space<vmem>>, vector<1x1x32xf32>,
    %c7 = arith.constant 7 : index
    %78 = memref.load %arg1[%c7] : memref<96xi32, #tpu.memory_space<smem>>
    %79 = arith.index_cast %78 : i32 to index
    %c0_62 = arith.constant 0 : index
    %80 = vector.load %arg15[%79, %c0_62] : memref<33x128xf32, #tpu.memory_space<vmem>>, vector<1x128xf32>
    %c1_63 = arith.constant 1 : index
    %c2_64 = arith.constant 2 : index
    %c0_65 = arith.constant 0 : index
    %81 = vector.load %arg17[%c1_63, %c2_64, %c0_65] : memref<3x4x128xf32, #tpu.memory_space<vmem>>, vector<1x1x128xf32>
    %82 = vector.shape_cast %81 : vector<1x1x128xf32> to vector<1x128xf32>
    %83 = vector.shape_cast %80 : vector<1x128xf32> to vector<1x1x128xf32>
    tpu.vector_store %arg17[%c1_63, %c2_64, %c0_65], %83 {strides = array<i32>} : memref<3x4x128xf32, #tpu.memory_space<vmem>>, vector<1x1x128xf32>,
    %84 = arith.index_cast %78 : i32 to index
    %c0_66 = arith.constant 0 : index
    %85 = vector.load %arg16[%84, %c0_66] : memref<33x32xf32, #tpu.memory_space<vmem>>, vector<1x32xf32>
    %c1_67 = arith.constant 1 : index
    %c2_68 = arith.constant 2 : index
    %c0_69 = arith.constant 0 : index
    %86 = vector.load %arg18[%c1_67, %c2_68, %c0_69] : memref<3x4x32xf32, #tpu.memory_space<vmem>>, vector<1x1x32xf32>
    %87 = vector.shape_cast %86 : vector<1x1x32xf32> to vector<1x32xf32>
    %88 = vector.shape_cast %85 : vector<1x32xf32> to vector<1x1x32xf32>
    tpu.vector_store %arg18[%c1_67, %c2_68, %c0_69], %88 {strides = array<i32>} : memref<3x4x32xf32, #tpu.memory_space<vmem>>, vector<1x1x32xf32>,
    %c10 = arith.constant 10 : index
    %89 = memref.load %arg1[%c10] : memref<96xi32, #tpu.memory_space<smem>>
    %90 = arith.index_cast %89 : i32 to index
    %c0_70 = arith.constant 0 : index
    %91 = vector.load %arg15[%90, %c0_70] : memref<33x128xf32, #tpu.memory_space<vmem>>, vector<1x128xf32>
    %c1_71 = arith.constant 1 : index
    %c3_72 = arith.constant 3 : index
    %c0_73 = arith.constant 0 : index
    %92 = vector.load %arg17[%c1_71, %c3_72, %c0_73] : memref<3x4x128xf32, #tpu.memory_space<vmem>>, vector<1x1x128xf32>
    %93 = vector.shape_cast %92 : vector<1x1x128xf32> to vector<1x128xf32>
    %94 = vector.shape_cast %91 : vector<1x128xf32> to vector<1x1x128xf32>
    tpu.vector_store %arg17[%c1_71, %c3_72, %c0_73], %94 {strides = array<i32>} : memref<3x4x128xf32, #tpu.memory_space<vmem>>, vector<1x1x128xf32>,
    %95 = arith.index_cast %89 : i32 to index
    %c0_74 = arith.constant 0 : index
    %96 = vector.load %arg16[%95, %c0_74] : memref<33x32xf32, #tpu.memory_space<vmem>>, vector<1x32xf32>
    %c1_75 = arith.constant 1 : index
    %c3_76 = arith.constant 3 : index
    %c0_77 = arith.constant 0 : index
    %97 = vector.load %arg18[%c1_75, %c3_76, %c0_77] : memref<3x4x32xf32, #tpu.memory_space<vmem>>, vector<1x1x32xf32>
    %98 = vector.shape_cast %97 : vector<1x1x32xf32> to vector<1x32xf32>
    %99 = vector.shape_cast %96 : vector<1x32xf32> to vector<1x1x32xf32>
    tpu.vector_store %arg18[%c1_75, %c3_76, %c0_77], %99 {strides = array<i32>} : memref<3x4x32xf32, #tpu.memory_space<vmem>>, vector<1x1x32xf32>,
    %c2_78 = arith.constant 2 : index
    %100 = memref.load %arg1[%c2_78] : memref<96xi32, #tpu.memory_space<smem>>
    %101 = arith.index_cast %100 : i32 to index
    %c0_79 = arith.constant 0 : index
    %102 = vector.load %arg15[%101, %c0_79] : memref<33x128xf32, #tpu.memory_space<vmem>>, vector<1x128xf32>
    %c2_80 = arith.constant 2 : index
    %c0_81 = arith.constant 0 : index
    %c0_82 = arith.constant 0 : index
    %103 = vector.load %arg17[%c2_80, %c0_81, %c0_82] : memref<3x4x128xf32, #tpu.memory_space<vmem>>, vector<1x1x128xf32>
    %104 = vector.shape_cast %103 : vector<1x1x128xf32> to vector<1x128xf32>
    %105 = vector.shape_cast %102 : vector<1x128xf32> to vector<1x1x128xf32>
    tpu.vector_store %arg17[%c2_80, %c0_81, %c0_82], %105 {strides = array<i32>} : memref<3x4x128xf32, #tpu.memory_space<vmem>>, vector<1x1x128xf32>,
    %106 = arith.index_cast %100 : i32 to index
    %c0_83 = arith.constant 0 : index
    %107 = vector.load %arg16[%106, %c0_83] : memref<33x32xf32, #tpu.memory_space<vmem>>, vector<1x32xf32>
    %c2_84 = arith.constant 2 : index
    %c0_85 = arith.constant 0 : index
    %c0_86 = arith.constant 0 : index
    %108 = vector.load %arg18[%c2_84, %c0_85, %c0_86] : memref<3x4x32xf32, #tpu.memory_space<vmem>>, vector<1x1x32xf32>
    %109 = vector.shape_cast %108 : vector<1x1x32xf32> to vector<1x32xf32>
    %110 = vector.shape_cast %107 : vector<1x32xf32> to vector<1x1x32xf32>
    tpu.vector_store %arg18[%c2_84, %c0_85, %c0_86], %110 {strides = array<i32>} : memref<3x4x32xf32, #tpu.memory_space<vmem>>, vector<1x1x32xf32>,
    %c5 = arith.constant 5 : index
    %111 = memref.load %arg1[%c5] : memref<96xi32, #tpu.memory_space<smem>>
    %112 = arith.index_cast %111 : i32 to index
    %c0_87 = arith.constant 0 : index
    %113 = vector.load %arg15[%112, %c0_87] : memref<33x128xf32, #tpu.memory_space<vmem>>, vector<1x128xf32>
    %c2_88 = arith.constant 2 : index
    %c1_89 = arith.constant 1 : index
    %c0_90 = arith.constant 0 : index
    %114 = vector.load %arg17[%c2_88, %c1_89, %c0_90] : memref<3x4x128xf32, #tpu.memory_space<vmem>>, vector<1x1x128xf32>
    %115 = vector.shape_cast %114 : vector<1x1x128xf32> to vector<1x128xf32>
    %116 = vector.shape_cast %113 : vector<1x128xf32> to vector<1x1x128xf32>
    tpu.vector_store %arg17[%c2_88, %c1_89, %c0_90], %116 {strides = array<i32>} : memref<3x4x128xf32, #tpu.memory_space<vmem>>, vector<1x1x128xf32>,
    %117 = arith.index_cast %111 : i32 to index
    %c0_91 = arith.constant 0 : index
    %118 = vector.load %arg16[%117, %c0_91] : memref<33x32xf32, #tpu.memory_space<vmem>>, vector<1x32xf32>
    %c2_92 = arith.constant 2 : index
    %c1_93 = arith.constant 1 : index
    %c0_94 = arith.constant 0 : index
    %119 = vector.load %arg18[%c2_92, %c1_93, %c0_94] : memref<3x4x32xf32, #tpu.memory_space<vmem>>, vector<1x1x32xf32>
    %120 = vector.shape_cast %119 : vector<1x1x32xf32> to vector<1x32xf32>
    %121 = vector.shape_cast %118 : vector<1x32xf32> to vector<1x1x32xf32>
    tpu.vector_store %arg18[%c2_92, %c1_93, %c0_94], %121 {strides = array<i32>} : memref<3x4x32xf32, #tpu.memory_space<vmem>>, vector<1x1x32xf32>,
    %c8 = arith.constant 8 : index
    %122 = memref.load %arg1[%c8] : memref<96xi32, #tpu.memory_space<smem>>
    %123 = arith.index_cast %122 : i32 to index
    %c0_95 = arith.constant 0 : index
    %124 = vector.load %arg15[%123, %c0_95] : memref<33x128xf32, #tpu.memory_space<vmem>>, vector<1x128xf32>
    %c2_96 = arith.constant 2 : index
    %c2_97 = arith.constant 2 : index
    %c0_98 = arith.constant 0 : index
    %125 = vector.load %arg17[%c2_96, %c2_97, %c0_98] : memref<3x4x128xf32, #tpu.memory_space<vmem>>, vector<1x1x128xf32>
    %126 = vector.shape_cast %125 : vector<1x1x128xf32> to vector<1x128xf32>
    %127 = vector.shape_cast %124 : vector<1x128xf32> to vector<1x1x128xf32>
    tpu.vector_store %arg17[%c2_96, %c2_97, %c0_98], %127 {strides = array<i32>} : memref<3x4x128xf32, #tpu.memory_space<vmem>>, vector<1x1x128xf32>,
    %128 = arith.index_cast %122 : i32 to index
    %c0_99 = arith.constant 0 : index
    %129 = vector.load %arg16[%128, %c0_99] : memref<33x32xf32, #tpu.memory_space<vmem>>, vector<1x32xf32>
    %c2_100 = arith.constant 2 : index
    %c2_101 = arith.constant 2 : index
    %c0_102 = arith.constant 0 : index
    %130 = vector.load %arg18[%c2_100, %c2_101, %c0_102] : memref<3x4x32xf32, #tpu.memory_space<vmem>>, vector<1x1x32xf32>
    %131 = vector.shape_cast %130 : vector<1x1x32xf32> to vector<1x32xf32>
    %132 = vector.shape_cast %129 : vector<1x32xf32> to vector<1x1x32xf32>
    tpu.vector_store %arg18[%c2_100, %c2_101, %c0_102], %132 {strides = array<i32>} : memref<3x4x32xf32, #tpu.memory_space<vmem>>, vector<1x1x32xf32>,
    %c11 = arith.constant 11 : index
    %133 = memref.load %arg1[%c11] : memref<96xi32, #tpu.memory_space<smem>>
    %134 = arith.index_cast %133 : i32 to index
    %c0_103 = arith.constant 0 : index
    %135 = vector.load %arg15[%134, %c0_103] : memref<33x128xf32, #tpu.memory_space<vmem>>, vector<1x128xf32>
    %c2_104 = arith.constant 2 : index
    %c3_105 = arith.constant 3 : index
    %c0_106 = arith.constant 0 : index
    %136 = vector.load %arg17[%c2_104, %c3_105, %c0_106] : memref<3x4x128xf32, #tpu.memory_space<vmem>>, vector<1x1x128xf32>
    %137 = vector.shape_cast %136 : vector<1x1x128xf32> to vector<1x128xf32>
    %138 = vector.shape_cast %135 : vector<1x128xf32> to vector<1x1x128xf32>
    tpu.vector_store %arg17[%c2_104, %c3_105, %c0_106], %138 {strides = array<i32>} : memref<3x4x128xf32, #tpu.memory_space<vmem>>, vector<1x1x128xf32>,
    %139 = arith.index_cast %133 : i32 to index
    %c0_107 = arith.constant 0 : index
    %140 = vector.load %arg16[%139, %c0_107] : memref<33x32xf32, #tpu.memory_space<vmem>>, vector<1x32xf32>
    %c2_108 = arith.constant 2 : index
    %c3_109 = arith.constant 3 : index
    %c0_110 = arith.constant 0 : index
    %141 = vector.load %arg18[%c2_108, %c3_109, %c0_110] : memref<3x4x32xf32, #tpu.memory_space<vmem>>, vector<1x1x32xf32>
    %142 = vector.shape_cast %141 : vector<1x1x32xf32> to vector<1x32xf32>
    %143 = vector.shape_cast %140 : vector<1x32xf32> to vector<1x1x32xf32>
    tpu.vector_store %arg18[%c2_108, %c3_109, %c0_110], %143 {strides = array<i32>} : memref<3x4x32xf32, #tpu.memory_space<vmem>>, vector<1x1x32xf32>,
    %c0_111 = arith.constant 0 : index
    %c0_112 = arith.constant 0 : index
    %c0_113 = arith.constant 0 : index
    %144 = vector.load %arg17[%c0_111, %c0_112, %c0_113] : memref<3x4x128xf32, #tpu.memory_space<vmem>>, vector<3x4x128xf32>
    %c0_114 = arith.constant 0 : index
    %c0_115 = arith.constant 0 : index
    %c0_116 = arith.constant 0 : index
    %145 = vector.load %arg18[%c0_114, %c0_115, %c0_116] : memref<3x4x32xf32, #tpu.memory_space<vmem>>, vector<3x4x32xf32>
    %c0_117 = arith.constant 0 : index
    %c0_118 = arith.constant 0 : index
    %146 = vector.load %arg14[%c0_117, %c0_118] : memref<32x128xf32, #tpu.memory_space<vmem>>, vector<4x128xf32>
    %147 = vector.extract_strided_slice %146 {offsets = [0, 96], sizes = [4, 32], strides = [1, 1]} : vector<4x128xf32> to vector<4x32xf32>
    %148 = vector.extract_strided_slice %144 {offsets = [0, 0, 96], sizes = [3, 4, 32], strides = [1, 1, 1]} : vector<3x4x128xf32> to vector<3x4x32xf32>
    %149 = vector.shape_cast %147 : vector<4x32xf32> to vector<1x4x32xf32>
    %150 = vector.broadcast %149 : vector<1x4x32xf32> to vector<3x4x32xf32>
    %151 = arith.addf %148, %150 : vector<3x4x32xf32>
    %152 = arith.negf %151 : vector<3x4x32xf32>
    %153 = math.exp %152 : vector<3x4x32xf32>
    %cst_119 = arith.constant 1.000000e+00 : f32
    %154 = vector.broadcast %cst_119 : f32 to vector<3x4x32xf32>
    %155 = arith.addf %154, %153 : vector<3x4x32xf32>
    %156 = arith.divf %154, %155 : vector<3x4x32xf32>
    %157 = arith.mulf %156, %145 : vector<3x4x32xf32>
    %cst_120 = arith.constant dense<0.000000e+00> : vector<4x32xf32>
    %158 = vector.multi_reduction <add>, %157, %cst_120 [0] : vector<3x4x32xf32> to vector<4x32xf32>
    %159 = vector.extract_strided_slice %144 {offsets = [0, 0, 0], sizes = [3, 4, 96], strides = [1, 1, 1]} : vector<3x4x128xf32> to vector<3x4x96xf32>
    %cst_121 = arith.constant dense<0.000000e+00> : vector<4x96xf32>
    %160 = vector.multi_reduction <add>, %159, %cst_121 [0] : vector<3x4x96xf32> to vector<4x96xf32>
    %161 = vector.extract_strided_slice %146 {offsets = [0, 0], sizes = [4, 96], strides = [1, 1]} : vector<4x128xf32> to vector<4x96xf32>
    %162 = arith.addf %161, %160 : vector<4x96xf32>
    %163 = arith.negf %162 : vector<4x96xf32>
    %164 = math.exp %163 : vector<4x96xf32>
    %cst_122 = arith.constant 1.000000e+00 : f32
    %165 = vector.broadcast %cst_122 : f32 to vector<4x96xf32>
    %166 = arith.addf %165, %164 : vector<4x96xf32>
    %167 = arith.divf %165, %166 : vector<4x96xf32>
    %168 = vector.extract_strided_slice %167 {offsets = [0, 0], sizes = [4, 32], strides = [1, 1]} : vector<4x96xf32> to vector<4x32xf32>
    %169 = vector.extract_strided_slice %167 {offsets = [0, 32], sizes = [4, 32], strides = [1, 1]} : vector<4x96xf32> to vector<4x32xf32>
    %170 = vector.extract_strided_slice %167 {offsets = [0, 64], sizes = [4, 32], strides = [1, 1]} : vector<4x96xf32> to vector<4x32xf32>
    %171 = arith.mulf %168, %170 : vector<4x32xf32>
    %172 = arith.addf %171, %158 : vector<4x32xf32>
    %173 = math.tanh %172 : vector<4x32xf32>
    %174 = arith.mulf %169, %173 : vector<4x32xf32>
    %c0_123 = arith.constant 0 : index
    %c0_124 = arith.constant 0 : index
    %175 = vector.load %arg10[%c0_123, %c0_124] : memref<32x32xf32, #tpu.memory_space<vmem>>, vector<4x32xf32>
    tpu.vector_store %arg10[%c0_123, %c0_124], %174 {strides = array<i32>} : memref<32x32xf32, #tpu.memory_space<vmem>>, vector<4x32xf32>,
    %c0_125 = arith.constant 0 : index
    %c0_126 = arith.constant 0 : index
    %176 = vector.load %arg16[%c0_125, %c0_126] : memref<33x32xf32, #tpu.memory_space<vmem>>, vector<4x32xf32>
    tpu.vector_store %arg16[%c0_125, %c0_126], %172 {strides = array<i32>} : memref<33x32xf32, #tpu.memory_space<vmem>>, vector<4x32xf32>,
    %cst_127 = arith.constant dense<0.000000e+00> : vector<4x128xf32>
    %177 = tpu.matmul %174, %0, %cst_127 {dimension_numbers = #tpu.dot_dimension_numbers<[1], [0], [0], [1], [0, 0, 1, 1], [], []>} : vector<4x32xf32>, vector<32x128xf32>, vector<4x128xf32> -> vector<4x128xf32>
    %c0_128 = arith.constant 0 : index
    %c0_129 = arith.constant 0 : index
    %178 = vector.load %arg15[%c0_128, %c0_129] : memref<33x128xf32, #tpu.memory_space<vmem>>, vector<4x128xf32>
    tpu.vector_store %arg15[%c0_128, %c0_129], %177 {strides = array<i32>} : memref<33x128xf32, #tpu.memory_space<vmem>>, vector<4x128xf32>,
    %c12 = arith.constant 12 : index
    %179 = memref.load %arg1[%c12] : memref<96xi32, #tpu.memory_space<smem>>
    %180 = arith.index_cast %179 : i32 to index
    %c0_130 = arith.constant 0 : index
    %181 = vector.load %arg15[%180, %c0_130] : memref<33x128xf32, #tpu.memory_space<vmem>>, vector<1x128xf32>
    %c0_131 = arith.constant 0 : index
    %c0_132 = arith.constant 0 : index
    %c0_133 = arith.constant 0 : index
    %182 = vector.load %arg17[%c0_131, %c0_132, %c0_133] : memref<3x4x128xf32, #tpu.memory_space<vmem>>, vector<1x1x128xf32>
    %183 = vector.shape_cast %182 : vector<1x1x128xf32> to vector<1x128xf32>
    %184 = vector.shape_cast %181 : vector<1x128xf32> to vector<1x1x128xf32>
    tpu.vector_store %arg17[%c0_131, %c0_132, %c0_133], %184 {strides = array<i32>} : memref<3x4x128xf32, #tpu.memory_space<vmem>>, vector<1x1x128xf32>,
    %185 = arith.index_cast %179 : i32 to index
    %c0_134 = arith.constant 0 : index
    %186 = vector.load %arg16[%185, %c0_134] : memref<33x32xf32, #tpu.memory_space<vmem>>, vector<1x32xf32>
    %c0_135 = arith.constant 0 : index
    %c0_136 = arith.constant 0 : index
    %c0_137 = arith.constant 0 : index
    %187 = vector.load %arg18[%c0_135, %c0_136, %c0_137] : memref<3x4x32xf32, #tpu.memory_space<vmem>>, vector<1x1x32xf32>
    %188 = vector.shape_cast %187 : vector<1x1x32xf32> to vector<1x32xf32>
    %189 = vector.shape_cast %186 : vector<1x32xf32> to vector<1x1x32xf32>
    tpu.vector_store %arg18[%c0_135, %c0_136, %c0_137], %189 {strides = array<i32>} : memref<3x4x32xf32, #tpu.memory_space<vmem>>, vector<1x1x32xf32>,
    %c15 = arith.constant 15 : index
    %190 = memref.load %arg1[%c15] : memref<96xi32, #tpu.memory_space<smem>>
    %191 = arith.index_cast %190 : i32 to index
    %c0_138 = arith.constant 0 : index
    %192 = vector.load %arg15[%191, %c0_138] : memref<33x128xf32, #tpu.memory_space<vmem>>, vector<1x128xf32>
    %c0_139 = arith.constant 0 : index
    %c1_140 = arith.constant 1 : index
    %c0_141 = arith.constant 0 : index
    %193 = vector.load %arg17[%c0_139, %c1_140, %c0_141] : memref<3x4x128xf32, #tpu.memory_space<vmem>>, vector<1x1x128xf32>
    %194 = vector.shape_cast %193 : vector<1x1x128xf32> to vector<1x128xf32>
    %195 = vector.shape_cast %192 : vector<1x128xf32> to vector<1x1x128xf32>
    tpu.vector_store %arg17[%c0_139, %c1_140, %c0_141], %195 {strides = array<i32>} : memref<3x4x128xf32, #tpu.memory_space<vmem>>, vector<1x1x128xf32>,
    %196 = arith.index_cast %190 : i32 to index
    %c0_142 = arith.constant 0 : index
    %197 = vector.load %arg16[%196, %c0_142] : memref<33x32xf32, #tpu.memory_space<vmem>>, vector<1x32xf32>
    %c0_143 = arith.constant 0 : index
    %c1_144 = arith.constant 1 : index
    %c0_145 = arith.constant 0 : index
    %198 = vector.load %arg18[%c0_143, %c1_144, %c0_145] : memref<3x4x32xf32, #tpu.memory_space<vmem>>, vector<1x1x32xf32>
    %199 = vector.shape_cast %198 : vector<1x1x32xf32> to vector<1x32xf32>
    %200 = vector.shape_cast %197 : vector<1x32xf32> to vector<1x1x32xf32>
    tpu.vector_store %arg18[%c0_143, %c1_144, %c0_145], %200 {strides = array<i32>} : memref<3x4x32xf32, #tpu.memory_space<vmem>>, vector<1x1x32xf32>,
    %c18 = arith.constant 18 : index
    %201 = memref.load %arg1[%c18] : memref<96xi32, #tpu.memory_space<smem>>
    %202 = arith.index_cast %201 : i32 to index
    %c0_146 = arith.constant 0 : index
    %203 = vector.load %arg15[%202, %c0_146] : memref<33x128xf32, #tpu.memory_space<vmem>>, vector<1x128xf32>
    %c0_147 = arith.constant 0 : index
    %c2_148 = arith.constant 2 : index
    %c0_149 = arith.constant 0 : index
    %204 = vector.load %arg17[%c0_147, %c2_148, %c0_149] : memref<3x4x128xf32, #tpu.memory_space<vmem>>, vector<1x1x128xf32>
    %205 = vector.shape_cast %204 : vector<1x1x128xf32> to vector<1x128xf32>
    %206 = vector.shape_cast %203 : vector<1x128xf32> to vector<1x1x128xf32>
    tpu.vector_store %arg17[%c0_147, %c2_148, %c0_149], %206 {strides = array<i32>} : memref<3x4x128xf32, #tpu.memory_space<vmem>>, vector<1x1x128xf32>,
    %207 = arith.index_cast %201 : i32 to index
    %c0_150 = arith.constant 0 : index
    %208 = vector.load %arg16[%207, %c0_150] : memref<33x32xf32, #tpu.memory_space<vmem>>, vector<1x32xf32>
    %c0_151 = arith.constant 0 : index
    %c2_152 = arith.constant 2 : index
    %c0_153 = arith.constant 0 : index
    %209 = vector.load %arg18[%c0_151, %c2_152, %c0_153] : memref<3x4x32xf32, #tpu.memory_space<vmem>>, vector<1x1x32xf32>
    %210 = vector.shape_cast %209 : vector<1x1x32xf32> to vector<1x32xf32>
    %211 = vector.shape_cast %208 : vector<1x32xf32> to vector<1x1x32xf32>
    tpu.vector_store %arg18[%c0_151, %c2_152, %c0_153], %211 {strides = array<i32>} : memref<3x4x32xf32, #tpu.memory_space<vmem>>, vector<1x1x32xf32>,
    %c21 = arith.constant 21 : index
    %212 = memref.load %arg1[%c21] : memref<96xi32, #tpu.memory_space<smem>>
    %213 = arith.index_cast %212 : i32 to index
    %c0_154 = arith.constant 0 : index
    %214 = vector.load %arg15[%213, %c0_154] : memref<33x128xf32, #tpu.memory_space<vmem>>, vector<1x128xf32>
    %c0_155 = arith.constant 0 : index
    %c3_156 = arith.constant 3 : index
    %c0_157 = arith.constant 0 : index
    %215 = vector.load %arg17[%c0_155, %c3_156, %c0_157] : memref<3x4x128xf32, #tpu.memory_space<vmem>>, vector<1x1x128xf32>
    %216 = vector.shape_cast %215 : vector<1x1x128xf32> to vector<1x128xf32>
    %217 = vector.shape_cast %214 : vector<1x128xf32> to vector<1x1x128xf32>
    tpu.vector_store %arg17[%c0_155, %c3_156, %c0_157], %217 {strides = array<i32>} : memref<3x4x128xf32, #tpu.memory_space<vmem>>, vector<1x1x128xf32>,
    %218 = arith.index_cast %212 : i32 to index
    %c0_158 = arith.constant 0 : index
    %219 = vector.load %arg16[%218, %c0_158] : memref<33x32xf32, #tpu.memory_space<vmem>>, vector<1x32xf32>
    %c0_159 = arith.constant 0 : index
    %c3_160 = arith.constant 3 : index
    %c0_161 = arith.constant 0 : index
    %220 = vector.load %arg18[%c0_159, %c3_160, %c0_161] : memref<3x4x32xf32, #tpu.memory_space<vmem>>, vector<1x1x32xf32>
    %221 = vector.shape_cast %220 : vector<1x1x32xf32> to vector<1x32xf32>
    %222 = vector.shape_cast %219 : vector<1x32xf32> to vector<1x1x32xf32>
    tpu.vector_store %arg18[%c0_159, %c3_160, %c0_161], %222 {strides = array<i32>} : memref<3x4x32xf32, #tpu.memory_space<vmem>>, vector<1x1x32xf32>,
    %c13 = arith.constant 13 : index
    %223 = memref.load %arg1[%c13] : memref<96xi32, #tpu.memory_space<smem>>
    %224 = arith.index_cast %223 : i32 to index
    %c0_162 = arith.constant 0 : index
    %225 = vector.load %arg15[%224, %c0_162] : memref<33x128xf32, #tpu.memory_space<vmem>>, vector<1x128xf32>
    %c1_163 = arith.constant 1 : index
    %c0_164 = arith.constant 0 : index
    %c0_165 = arith.constant 0 : index
    %226 = vector.load %arg17[%c1_163, %c0_164, %c0_165] : memref<3x4x128xf32, #tpu.memory_space<vmem>>, vector<1x1x128xf32>
    %227 = vector.shape_cast %226 : vector<1x1x128xf32> to vector<1x128xf32>
    %228 = vector.shape_cast %225 : vector<1x128xf32> to vector<1x1x128xf32>
    tpu.vector_store %arg17[%c1_163, %c0_164, %c0_165], %228 {strides = array<i32>} : memref<3x4x128xf32, #tpu.memory_space<vmem>>, vector<1x1x128xf32>,
    %229 = arith.index_cast %223 : i32 to index
    %c0_166 = arith.constant 0 : index
    %230 = vector.load %arg16[%229, %c0_166] : memref<33x32xf32, #tpu.memory_space<vmem>>, vector<1x32xf32>
    %c1_167 = arith.constant 1 : index
    %c0_168 = arith.constant 0 : index
    %c0_169 = arith.constant 0 : index
    %231 = vector.load %arg18[%c1_167, %c0_168, %c0_169] : memref<3x4x32xf32, #tpu.memory_space<vmem>>, vector<1x1x32xf32>
    %232 = vector.shape_cast %231 : vector<1x1x32xf32> to vector<1x32xf32>
    %233 = vector.shape_cast %230 : vector<1x32xf32> to vector<1x1x32xf32>
    tpu.vector_store %arg18[%c1_167, %c0_168, %c0_169], %233 {strides = array<i32>} : memref<3x4x32xf32, #tpu.memory_space<vmem>>, vector<1x1x32xf32>,
    %c16 = arith.constant 16 : index
    %234 = memref.load %arg1[%c16] : memref<96xi32, #tpu.memory_space<smem>>
    %235 = arith.index_cast %234 : i32 to index
    %c0_170 = arith.constant 0 : index
    %236 = vector.load %arg15[%235, %c0_170] : memref<33x128xf32, #tpu.memory_space<vmem>>, vector<1x128xf32>
    %c1_171 = arith.constant 1 : index
    %c1_172 = arith.constant 1 : index
    %c0_173 = arith.constant 0 : index
    %237 = vector.load %arg17[%c1_171, %c1_172, %c0_173] : memref<3x4x128xf32, #tpu.memory_space<vmem>>, vector<1x1x128xf32>
    %238 = vector.shape_cast %237 : vector<1x1x128xf32> to vector<1x128xf32>
    %239 = vector.shape_cast %236 : vector<1x128xf32> to vector<1x1x128xf32>
    tpu.vector_store %arg17[%c1_171, %c1_172, %c0_173], %239 {strides = array<i32>} : memref<3x4x128xf32, #tpu.memory_space<vmem>>, vector<1x1x128xf32>,
    %240 = arith.index_cast %234 : i32 to index
    %c0_174 = arith.constant 0 : index
    %241 = vector.load %arg16[%240, %c0_174] : memref<33x32xf32, #tpu.memory_space<vmem>>, vector<1x32xf32>
    %c1_175 = arith.constant 1 : index
    %c1_176 = arith.constant 1 : index
    %c0_177 = arith.constant 0 : index
    %242 = vector.load %arg18[%c1_175, %c1_176, %c0_177] : memref<3x4x32xf32, #tpu.memory_space<vmem>>, vector<1x1x32xf32>
    %243 = vector.shape_cast %242 : vector<1x1x32xf32> to vector<1x32xf32>
    %244 = vector.shape_cast %241 : vector<1x32xf32> to vector<1x1x32xf32>
    tpu.vector_store %arg18[%c1_175, %c1_176, %c0_177], %244 {strides = array<i32>} : memref<3x4x32xf32, #tpu.memory_space<vmem>>, vector<1x1x32xf32>,
    %c19 = arith.constant 19 : index
    %245 = memref.load %arg1[%c19] : memref<96xi32, #tpu.memory_space<smem>>
    %246 = arith.index_cast %245 : i32 to index
    %c0_178 = arith.constant 0 : index
    %247 = vector.load %arg15[%246, %c0_178] : memref<33x128xf32, #tpu.memory_space<vmem>>, vector<1x128xf32>
    %c1_179 = arith.constant 1 : index
    %c2_180 = arith.constant 2 : index
    %c0_181 = arith.constant 0 : index
    %248 = vector.load %arg17[%c1_179, %c2_180, %c0_181] : memref<3x4x128xf32, #tpu.memory_space<vmem>>, vector<1x1x128xf32>
    %249 = vector.shape_cast %248 : vector<1x1x128xf32> to vector<1x128xf32>
    %250 = vector.shape_cast %247 : vector<1x128xf32> to vector<1x1x128xf32>
    tpu.vector_store %arg17[%c1_179, %c2_180, %c0_181], %250 {strides = array<i32>} : memref<3x4x128xf32, #tpu.memory_space<vmem>>, vector<1x1x128xf32>,
    %251 = arith.index_cast %245 : i32 to index
    %c0_182 = arith.constant 0 : index
    %252 = vector.load %arg16[%251, %c0_182] : memref<33x32xf32, #tpu.memory_space<vmem>>, vector<1x32xf32>
    %c1_183 = arith.constant 1 : index
    %c2_184 = arith.constant 2 : index
    %c0_185 = arith.constant 0 : index
    %253 = vector.load %arg18[%c1_183, %c2_184, %c0_185] : memref<3x4x32xf32, #tpu.memory_space<vmem>>, vector<1x1x32xf32>
    %254 = vector.shape_cast %253 : vector<1x1x32xf32> to vector<1x32xf32>
    %255 = vector.shape_cast %252 : vector<1x32xf32> to vector<1x1x32xf32>
    tpu.vector_store %arg18[%c1_183, %c2_184, %c0_185], %255 {strides = array<i32>} : memref<3x4x32xf32, #tpu.memory_space<vmem>>, vector<1x1x32xf32>,
    %c22 = arith.constant 22 : index
    %256 = memref.load %arg1[%c22] : memref<96xi32, #tpu.memory_space<smem>>
    %257 = arith.index_cast %256 : i32 to index
    %c0_186 = arith.constant 0 : index
    %258 = vector.load %arg15[%257, %c0_186] : memref<33x128xf32, #tpu.memory_space<vmem>>, vector<1x128xf32>
    %c1_187 = arith.constant 1 : index
    %c3_188 = arith.constant 3 : index
    %c0_189 = arith.constant 0 : index
    %259 = vector.load %arg17[%c1_187, %c3_188, %c0_189] : memref<3x4x128xf32, #tpu.memory_space<vmem>>, vector<1x1x128xf32>
    %260 = vector.shape_cast %259 : vector<1x1x128xf32> to vector<1x128xf32>
    %261 = vector.shape_cast %258 : vector<1x128xf32> to vector<1x1x128xf32>
    tpu.vector_store %arg17[%c1_187, %c3_188, %c0_189], %261 {strides = array<i32>} : memref<3x4x128xf32, #tpu.memory_space<vmem>>, vector<1x1x128xf32>,
    %262 = arith.index_cast %256 : i32 to index
    %c0_190 = arith.constant 0 : index
    %263 = vector.load %arg16[%262, %c0_190] : memref<33x32xf32, #tpu.memory_space<vmem>>, vector<1x32xf32>
    %c1_191 = arith.constant 1 : index
    %c3_192 = arith.constant 3 : index
    %c0_193 = arith.constant 0 : index
    %264 = vector.load %arg18[%c1_191, %c3_192, %c0_193] : memref<3x4x32xf32, #tpu.memory_space<vmem>>, vector<1x1x32xf32>
    %265 = vector.shape_cast %264 : vector<1x1x32xf32> to vector<1x32xf32>
    %266 = vector.shape_cast %263 : vector<1x32xf32> to vector<1x1x32xf32>
    tpu.vector_store %arg18[%c1_191, %c3_192, %c0_193], %266 {strides = array<i32>} : memref<3x4x32xf32, #tpu.memory_space<vmem>>, vector<1x1x32xf32>,
    %c14 = arith.constant 14 : index
    %267 = memref.load %arg1[%c14] : memref<96xi32, #tpu.memory_space<smem>>
    %268 = arith.index_cast %267 : i32 to index
    %c0_194 = arith.constant 0 : index
    %269 = vector.load %arg15[%268, %c0_194] : memref<33x128xf32, #tpu.memory_space<vmem>>, vector<1x128xf32>
    %c2_195 = arith.constant 2 : index
    %c0_196 = arith.constant 0 : index
    %c0_197 = arith.constant 0 : index
    %270 = vector.load %arg17[%c2_195, %c0_196, %c0_197] : memref<3x4x128xf32, #tpu.memory_space<vmem>>, vector<1x1x128xf32>
    %271 = vector.shape_cast %270 : vector<1x1x128xf32> to vector<1x128xf32>
    %272 = vector.shape_cast %269 : vector<1x128xf32> to vector<1x1x128xf32>
    tpu.vector_store %arg17[%c2_195, %c0_196, %c0_197], %272 {strides = array<i32>} : memref<3x4x128xf32, #tpu.memory_space<vmem>>, vector<1x1x128xf32>,
    %273 = arith.index_cast %267 : i32 to index
    %c0_198 = arith.constant 0 : index
    %274 = vector.load %arg16[%273, %c0_198] : memref<33x32xf32, #tpu.memory_space<vmem>>, vector<1x32xf32>
    %c2_199 = arith.constant 2 : index
    %c0_200 = arith.constant 0 : index
    %c0_201 = arith.constant 0 : index
    %275 = vector.load %arg18[%c2_199, %c0_200, %c0_201] : memref<3x4x32xf32, #tpu.memory_space<vmem>>, vector<1x1x32xf32>
    %276 = vector.shape_cast %275 : vector<1x1x32xf32> to vector<1x32xf32>
    %277 = vector.shape_cast %274 : vector<1x32xf32> to vector<1x1x32xf32>
    tpu.vector_store %arg18[%c2_199, %c0_200, %c0_201], %277 {strides = array<i32>} : memref<3x4x32xf32, #tpu.memory_space<vmem>>, vector<1x1x32xf32>,
    %c17 = arith.constant 17 : index
    %278 = memref.load %arg1[%c17] : memref<96xi32, #tpu.memory_space<smem>>
    %279 = arith.index_cast %278 : i32 to index
    %c0_202 = arith.constant 0 : index
    %280 = vector.load %arg15[%279, %c0_202] : memref<33x128xf32, #tpu.memory_space<vmem>>, vector<1x128xf32>
    %c2_203 = arith.constant 2 : index
    %c1_204 = arith.constant 1 : index
    %c0_205 = arith.constant 0 : index
    %281 = vector.load %arg17[%c2_203, %c1_204, %c0_205] : memref<3x4x128xf32, #tpu.memory_space<vmem>>, vector<1x1x128xf32>
    %282 = vector.shape_cast %281 : vector<1x1x128xf32> to vector<1x128xf32>
    %283 = vector.shape_cast %280 : vector<1x128xf32> to vector<1x1x128xf32>
    tpu.vector_store %arg17[%c2_203, %c1_204, %c0_205], %283 {strides = array<i32>} : memref<3x4x128xf32, #tpu.memory_space<vmem>>, vector<1x1x128xf32>,
    %284 = arith.index_cast %278 : i32 to index
    %c0_206 = arith.constant 0 : index
    %285 = vector.load %arg16[%284, %c0_206] : memref<33x32xf32, #tpu.memory_space<vmem>>, vector<1x32xf32>
    %c2_207 = arith.constant 2 : index
    %c1_208 = arith.constant 1 : index
    %c0_209 = arith.constant 0 : index
    %286 = vector.load %arg18[%c2_207, %c1_208, %c0_209] : memref<3x4x32xf32, #tpu.memory_space<vmem>>, vector<1x1x32xf32>
    %287 = vector.shape_cast %286 : vector<1x1x32xf32> to vector<1x32xf32>
    %288 = vector.shape_cast %285 : vector<1x32xf32> to vector<1x1x32xf32>
    tpu.vector_store %arg18[%c2_207, %c1_208, %c0_209], %288 {strides = array<i32>} : memref<3x4x32xf32, #tpu.memory_space<vmem>>, vector<1x1x32xf32>,
    %c20 = arith.constant 20 : index
    %289 = memref.load %arg1[%c20] : memref<96xi32, #tpu.memory_space<smem>>
    %290 = arith.index_cast %289 : i32 to index
    %c0_210 = arith.constant 0 : index
    %291 = vector.load %arg15[%290, %c0_210] : memref<33x128xf32, #tpu.memory_space<vmem>>, vector<1x128xf32>
    %c2_211 = arith.constant 2 : index
    %c2_212 = arith.constant 2 : index
    %c0_213 = arith.constant 0 : index
    %292 = vector.load %arg17[%c2_211, %c2_212, %c0_213] : memref<3x4x128xf32, #tpu.memory_space<vmem>>, vector<1x1x128xf32>
    %293 = vector.shape_cast %292 : vector<1x1x128xf32> to vector<1x128xf32>
    %294 = vector.shape_cast %291 : vector<1x128xf32> to vector<1x1x128xf32>
    tpu.vector_store %arg17[%c2_211, %c2_212, %c0_213], %294 {strides = array<i32>} : memref<3x4x128xf32, #tpu.memory_space<vmem>>, vector<1x1x128xf32>,
    %295 = arith.index_cast %289 : i32 to index
    %c0_214 = arith.constant 0 : index
    %296 = vector.load %arg16[%295, %c0_214] : memref<33x32xf32, #tpu.memory_space<vmem>>, vector<1x32xf32>
    %c2_215 = arith.constant 2 : index
    %c2_216 = arith.constant 2 : index
    %c0_217 = arith.constant 0 : index
    %297 = vector.load %arg18[%c2_215, %c2_216, %c0_217] : memref<3x4x32xf32, #tpu.memory_space<vmem>>, vector<1x1x32xf32>
    %298 = vector.shape_cast %297 : vector<1x1x32xf32> to vector<1x32xf32>
    %299 = vector.shape_cast %296 : vector<1x32xf32> to vector<1x1x32xf32>
    tpu.vector_store %arg18[%c2_215, %c2_216, %c0_217], %299 {strides = array<i32>} : memref<3x4x32xf32, #tpu.memory_space<vmem>>, vector<1x1x32xf32>,
    %c23 = arith.constant 23 : index
    %300 = memref.load %arg1[%c23] : memref<96xi32, #tpu.memory_space<smem>>
    %301 = arith.index_cast %300 : i32 to index
    %c0_218 = arith.constant 0 : index
    %302 = vector.load %arg15[%301, %c0_218] : memref<33x128xf32, #tpu.memory_space<vmem>>, vector<1x128xf32>
    %c2_219 = arith.constant 2 : index
    %c3_220 = arith.constant 3 : index
    %c0_221 = arith.constant 0 : index
    %303 = vector.load %arg17[%c2_219, %c3_220, %c0_221] : memref<3x4x128xf32, #tpu.memory_space<vmem>>, vector<1x1x128xf32>
    %304 = vector.shape_cast %303 : vector<1x1x128xf32> to vector<1x128xf32>
    %305 = vector.shape_cast %302 : vector<1x128xf32> to vector<1x1x128xf32>
    tpu.vector_store %arg17[%c2_219, %c3_220, %c0_221], %305 {strides = array<i32>} : memref<3x4x128xf32, #tpu.memory_space<vmem>>, vector<1x1x128xf32>,
    %306 = arith.index_cast %300 : i32 to index
    %c0_222 = arith.constant 0 : index
    %307 = vector.load %arg16[%306, %c0_222] : memref<33x32xf32, #tpu.memory_space<vmem>>, vector<1x32xf32>
    %c2_223 = arith.constant 2 : index
    %c3_224 = arith.constant 3 : index
    %c0_225 = arith.constant 0 : index
    %308 = vector.load %arg18[%c2_223, %c3_224, %c0_225] : memref<3x4x32xf32, #tpu.memory_space<vmem>>, vector<1x1x32xf32>
    %309 = vector.shape_cast %308 : vector<1x1x32xf32> to vector<1x32xf32>
    %310 = vector.shape_cast %307 : vector<1x32xf32> to vector<1x1x32xf32>
    tpu.vector_store %arg18[%c2_223, %c3_224, %c0_225], %310 {strides = array<i32>} : memref<3x4x32xf32, #tpu.memory_space<vmem>>, vector<1x1x32xf32>,
    %c0_226 = arith.constant 0 : index
    %c0_227 = arith.constant 0 : index
    %c0_228 = arith.constant 0 : index
    %311 = vector.load %arg17[%c0_226, %c0_227, %c0_228] : memref<3x4x128xf32, #tpu.memory_space<vmem>>, vector<3x4x128xf32>
    %c0_229 = arith.constant 0 : index
    %c0_230 = arith.constant 0 : index
    %c0_231 = arith.constant 0 : index
    %312 = vector.load %arg18[%c0_229, %c0_230, %c0_231] : memref<3x4x32xf32, #tpu.memory_space<vmem>>, vector<3x4x32xf32>
    %c4_232 = arith.constant 4 : index
    %c0_233 = arith.constant 0 : index
    %313 = vector.load %arg14[%c4_232, %c0_233] : memref<32x128xf32, #tpu.memory_space<vmem>>, vector<4x128xf32>
    %314 = vector.extract_strided_slice %313 {offsets = [0, 96], sizes = [4, 32], strides = [1, 1]} : vector<4x128xf32> to vector<4x32xf32>
    %315 = vector.extract_strided_slice %311 {offsets = [0, 0, 96], sizes = [3, 4, 32], strides = [1, 1, 1]} : vector<3x4x128xf32> to vector<3x4x32xf32>
    %316 = vector.shape_cast %314 : vector<4x32xf32> to vector<1x4x32xf32>
    %317 = vector.broadcast %316 : vector<1x4x32xf32> to vector<3x4x32xf32>
    %318 = arith.addf %315, %317 : vector<3x4x32xf32>
    %319 = arith.negf %318 : vector<3x4x32xf32>
    %320 = math.exp %319 : vector<3x4x32xf32>
    %cst_234 = arith.constant 1.000000e+00 : f32
    %321 = vector.broadcast %cst_234 : f32 to vector<3x4x32xf32>
    %322 = arith.addf %321, %320 : vector<3x4x32xf32>
    %323 = arith.divf %321, %322 : vector<3x4x32xf32>
    %324 = arith.mulf %323, %312 : vector<3x4x32xf32>
    %cst_235 = arith.constant dense<0.000000e+00> : vector<4x32xf32>
    %325 = vector.multi_reduction <add>, %324, %cst_235 [0] : vector<3x4x32xf32> to vector<4x32xf32>
    %326 = vector.extract_strided_slice %311 {offsets = [0, 0, 0], sizes = [3, 4, 96], strides = [1, 1, 1]} : vector<3x4x128xf32> to vector<3x4x96xf32>
    %cst_236 = arith.constant dense<0.000000e+00> : vector<4x96xf32>
    %327 = vector.multi_reduction <add>, %326, %cst_236 [0] : vector<3x4x96xf32> to vector<4x96xf32>
    %328 = vector.extract_strided_slice %313 {offsets = [0, 0], sizes = [4, 96], strides = [1, 1]} : vector<4x128xf32> to vector<4x96xf32>
    %329 = arith.addf %328, %327 : vector<4x96xf32>
    %330 = arith.negf %329 : vector<4x96xf32>
    %331 = math.exp %330 : vector<4x96xf32>
    %cst_237 = arith.constant 1.000000e+00 : f32
    %332 = vector.broadcast %cst_237 : f32 to vector<4x96xf32>
    %333 = arith.addf %332, %331 : vector<4x96xf32>
    %334 = arith.divf %332, %333 : vector<4x96xf32>
    %335 = vector.extract_strided_slice %334 {offsets = [0, 0], sizes = [4, 32], strides = [1, 1]} : vector<4x96xf32> to vector<4x32xf32>
    %336 = vector.extract_strided_slice %334 {offsets = [0, 32], sizes = [4, 32], strides = [1, 1]} : vector<4x96xf32> to vector<4x32xf32>
    %337 = vector.extract_strided_slice %334 {offsets = [0, 64], sizes = [4, 32], strides = [1, 1]} : vector<4x96xf32> to vector<4x32xf32>
    %338 = arith.mulf %335, %337 : vector<4x32xf32>
    %339 = arith.addf %338, %325 : vector<4x32xf32>
    %340 = math.tanh %339 : vector<4x32xf32>
    %341 = arith.mulf %336, %340 : vector<4x32xf32>
    %c4_238 = arith.constant 4 : index
    %c0_239 = arith.constant 0 : index
    %342 = vector.load %arg10[%c4_238, %c0_239] : memref<32x32xf32, #tpu.memory_space<vmem>>, vector<4x32xf32>
    tpu.vector_store %arg10[%c4_238, %c0_239], %341 {strides = array<i32>} : memref<32x32xf32, #tpu.memory_space<vmem>>, vector<4x32xf32>,
    %c4_240 = arith.constant 4 : index
    %c0_241 = arith.constant 0 : index
    %343 = vector.load %arg16[%c4_240, %c0_241] : memref<33x32xf32, #tpu.memory_space<vmem>>, vector<4x32xf32>
    tpu.vector_store %arg16[%c4_240, %c0_241], %339 {strides = array<i32>} : memref<33x32xf32, #tpu.memory_space<vmem>>, vector<4x32xf32>,
    %cst_242 = arith.constant dense<0.000000e+00> : vector<4x128xf32>
    %344 = tpu.matmul %341, %0, %cst_242 {dimension_numbers = #tpu.dot_dimension_numbers<[1], [0], [0], [1], [0, 0, 1, 1], [], []>} : vector<4x32xf32>, vector<32x128xf32>, vector<4x128xf32> -> vector<4x128xf32>
    %c4_243 = arith.constant 4 : index
    %c0_244 = arith.constant 0 : index
    %345 = vector.load %arg15[%c4_243, %c0_244] : memref<33x128xf32, #tpu.memory_space<vmem>>, vector<4x128xf32>
    tpu.vector_store %arg15[%c4_243, %c0_244], %344 {strides = array<i32>} : memref<33x128xf32, #tpu.memory_space<vmem>>, vector<4x128xf32>,
    %c24 = arith.constant 24 : index
    %346 = memref.load %arg1[%c24] : memref<96xi32, #tpu.memory_space<smem>>
    %347 = arith.index_cast %346 : i32 to index
    %c0_245 = arith.constant 0 : index
    %348 = vector.load %arg15[%347, %c0_245] : memref<33x128xf32, #tpu.memory_space<vmem>>, vector<1x128xf32>
    %c0_246 = arith.constant 0 : index
    %c0_247 = arith.constant 0 : index
    %c0_248 = arith.constant 0 : index
    %349 = vector.load %arg17[%c0_246, %c0_247, %c0_248] : memref<3x4x128xf32, #tpu.memory_space<vmem>>, vector<1x1x128xf32>
    %350 = vector.shape_cast %349 : vector<1x1x128xf32> to vector<1x128xf32>
    %351 = vector.shape_cast %348 : vector<1x128xf32> to vector<1x1x128xf32>
    tpu.vector_store %arg17[%c0_246, %c0_247, %c0_248], %351 {strides = array<i32>} : memref<3x4x128xf32, #tpu.memory_space<vmem>>, vector<1x1x128xf32>,
    %352 = arith.index_cast %346 : i32 to index
    %c0_249 = arith.constant 0 : index
    %353 = vector.load %arg16[%352, %c0_249] : memref<33x32xf32, #tpu.memory_space<vmem>>, vector<1x32xf32>
    %c0_250 = arith.constant 0 : index
    %c0_251 = arith.constant 0 : index
    %c0_252 = arith.constant 0 : index
    %354 = vector.load %arg18[%c0_250, %c0_251, %c0_252] : memref<3x4x32xf32, #tpu.memory_space<vmem>>, vector<1x1x32xf32>
    %355 = vector.shape_cast %354 : vector<1x1x32xf32> to vector<1x32xf32>
    %356 = vector.shape_cast %353 : vector<1x32xf32> to vector<1x1x32xf32>
    tpu.vector_store %arg18[%c0_250, %c0_251, %c0_252], %356 {strides = array<i32>} : memref<3x4x32xf32, #tpu.memory_space<vmem>>, vector<1x1x32xf32>,
    %c27 = arith.constant 27 : index
    %357 = memref.load %arg1[%c27] : memref<96xi32, #tpu.memory_space<smem>>
    %358 = arith.index_cast %357 : i32 to index
    %c0_253 = arith.constant 0 : index
    %359 = vector.load %arg15[%358, %c0_253] : memref<33x128xf32, #tpu.memory_space<vmem>>, vector<1x128xf32>
    %c0_254 = arith.constant 0 : index
    %c1_255 = arith.constant 1 : index
    %c0_256 = arith.constant 0 : index
    %360 = vector.load %arg17[%c0_254, %c1_255, %c0_256] : memref<3x4x128xf32, #tpu.memory_space<vmem>>, vector<1x1x128xf32>
    %361 = vector.shape_cast %360 : vector<1x1x128xf32> to vector<1x128xf32>
    %362 = vector.shape_cast %359 : vector<1x128xf32> to vector<1x1x128xf32>
    tpu.vector_store %arg17[%c0_254, %c1_255, %c0_256], %362 {strides = array<i32>} : memref<3x4x128xf32, #tpu.memory_space<vmem>>, vector<1x1x128xf32>,
    %363 = arith.index_cast %357 : i32 to index
    %c0_257 = arith.constant 0 : index
    %364 = vector.load %arg16[%363, %c0_257] : memref<33x32xf32, #tpu.memory_space<vmem>>, vector<1x32xf32>
    %c0_258 = arith.constant 0 : index
    %c1_259 = arith.constant 1 : index
    %c0_260 = arith.constant 0 : index
    %365 = vector.load %arg18[%c0_258, %c1_259, %c0_260] : memref<3x4x32xf32, #tpu.memory_space<vmem>>, vector<1x1x32xf32>
    %366 = vector.shape_cast %365 : vector<1x1x32xf32> to vector<1x32xf32>
    %367 = vector.shape_cast %364 : vector<1x32xf32> to vector<1x1x32xf32>
    tpu.vector_store %arg18[%c0_258, %c1_259, %c0_260], %367 {strides = array<i32>} : memref<3x4x32xf32, #tpu.memory_space<vmem>>, vector<1x1x32xf32>,
    %c30 = arith.constant 30 : index
    %368 = memref.load %arg1[%c30] : memref<96xi32, #tpu.memory_space<smem>>
    %369 = arith.index_cast %368 : i32 to index
    %c0_261 = arith.constant 0 : index
    %370 = vector.load %arg15[%369, %c0_261] : memref<33x128xf32, #tpu.memory_space<vmem>>, vector<1x128xf32>
    %c0_262 = arith.constant 0 : index
    %c2_263 = arith.constant 2 : index
    %c0_264 = arith.constant 0 : index
    %371 = vector.load %arg17[%c0_262, %c2_263, %c0_264] : memref<3x4x128xf32, #tpu.memory_space<vmem>>, vector<1x1x128xf32>
    %372 = vector.shape_cast %371 : vector<1x1x128xf32> to vector<1x128xf32>
    %373 = vector.shape_cast %370 : vector<1x128xf32> to vector<1x1x128xf32>
    tpu.vector_store %arg17[%c0_262, %c2_263, %c0_264], %373 {strides = array<i32>} : memref<3x4x128xf32, #tpu.memory_space<vmem>>, vector<1x1x128xf32>,
    %374 = arith.index_cast %368 : i32 to index
    %c0_265 = arith.constant 0 : index
    %375 = vector.load %arg16[%374, %c0_265] : memref<33x32xf32, #tpu.memory_space<vmem>>, vector<1x32xf32>
    %c0_266 = arith.constant 0 : index
    %c2_267 = arith.constant 2 : index
    %c0_268 = arith.constant 0 : index
    %376 = vector.load %arg18[%c0_266, %c2_267, %c0_268] : memref<3x4x32xf32, #tpu.memory_space<vmem>>, vector<1x1x32xf32>
    %377 = vector.shape_cast %376 : vector<1x1x32xf32> to vector<1x32xf32>
    %378 = vector.shape_cast %375 : vector<1x32xf32> to vector<1x1x32xf32>
    tpu.vector_store %arg18[%c0_266, %c2_267, %c0_268], %378 {strides = array<i32>} : memref<3x4x32xf32, #tpu.memory_space<vmem>>, vector<1x1x32xf32>,
    %c33 = arith.constant 33 : index
    %379 = memref.load %arg1[%c33] : memref<96xi32, #tpu.memory_space<smem>>
    %380 = arith.index_cast %379 : i32 to index
    %c0_269 = arith.constant 0 : index
    %381 = vector.load %arg15[%380, %c0_269] : memref<33x128xf32, #tpu.memory_space<vmem>>, vector<1x128xf32>
    %c0_270 = arith.constant 0 : index
    %c3_271 = arith.constant 3 : index
    %c0_272 = arith.constant 0 : index
    %382 = vector.load %arg17[%c0_270, %c3_271, %c0_272] : memref<3x4x128xf32, #tpu.memory_space<vmem>>, vector<1x1x128xf32>
    %383 = vector.shape_cast %382 : vector<1x1x128xf32> to vector<1x128xf32>
    %384 = vector.shape_cast %381 : vector<1x128xf32> to vector<1x1x128xf32>
    tpu.vector_store %arg17[%c0_270, %c3_271, %c0_272], %384 {strides = array<i32>} : memref<3x4x128xf32, #tpu.memory_space<vmem>>, vector<1x1x128xf32>,
    %385 = arith.index_cast %379 : i32 to index
    %c0_273 = arith.constant 0 : index
    %386 = vector.load %arg16[%385, %c0_273] : memref<33x32xf32, #tpu.memory_space<vmem>>, vector<1x32xf32>
    %c0_274 = arith.constant 0 : index
    %c3_275 = arith.constant 3 : index
    %c0_276 = arith.constant 0 : index
    %387 = vector.load %arg18[%c0_274, %c3_275, %c0_276] : memref<3x4x32xf32, #tpu.memory_space<vmem>>, vector<1x1x32xf32>
    %388 = vector.shape_cast %387 : vector<1x1x32xf32> to vector<1x32xf32>
    %389 = vector.shape_cast %386 : vector<1x32xf32> to vector<1x1x32xf32>
    tpu.vector_store %arg18[%c0_274, %c3_275, %c0_276], %389 {strides = array<i32>} : memref<3x4x32xf32, #tpu.memory_space<vmem>>, vector<1x1x32xf32>,
    %c25 = arith.constant 25 : index
    %390 = memref.load %arg1[%c25] : memref<96xi32, #tpu.memory_space<smem>>
    %391 = arith.index_cast %390 : i32 to index
    %c0_277 = arith.constant 0 : index
    %392 = vector.load %arg15[%391, %c0_277] : memref<33x128xf32, #tpu.memory_space<vmem>>, vector<1x128xf32>
    %c1_278 = arith.constant 1 : index
    %c0_279 = arith.constant 0 : index
    %c0_280 = arith.constant 0 : index
    %393 = vector.load %arg17[%c1_278, %c0_279, %c0_280] : memref<3x4x128xf32, #tpu.memory_space<vmem>>, vector<1x1x128xf32>
    %394 = vector.shape_cast %393 : vector<1x1x128xf32> to vector<1x128xf32>
    %395 = vector.shape_cast %392 : vector<1x128xf32> to vector<1x1x128xf32>
    tpu.vector_store %arg17[%c1_278, %c0_279, %c0_280], %395 {strides = array<i32>} : memref<3x4x128xf32, #tpu.memory_space<vmem>>, vector<1x1x128xf32>,
    %396 = arith.index_cast %390 : i32 to index
    %c0_281 = arith.constant 0 : index
    %397 = vector.load %arg16[%396, %c0_281] : memref<33x32xf32, #tpu.memory_space<vmem>>, vector<1x32xf32>
    %c1_282 = arith.constant 1 : index
    %c0_283 = arith.constant 0 : index
    %c0_284 = arith.constant 0 : index
    %398 = vector.load %arg18[%c1_282, %c0_283, %c0_284] : memref<3x4x32xf32, #tpu.memory_space<vmem>>, vector<1x1x32xf32>
    %399 = vector.shape_cast %398 : vector<1x1x32xf32> to vector<1x32xf32>
    %400 = vector.shape_cast %397 : vector<1x32xf32> to vector<1x1x32xf32>
    tpu.vector_store %arg18[%c1_282, %c0_283, %c0_284], %400 {strides = array<i32>} : memref<3x4x32xf32, #tpu.memory_space<vmem>>, vector<1x1x32xf32>,
    %c28 = arith.constant 28 : index
    %401 = memref.load %arg1[%c28] : memref<96xi32, #tpu.memory_space<smem>>
    %402 = arith.index_cast %401 : i32 to index
    %c0_285 = arith.constant 0 : index
    %403 = vector.load %arg15[%402, %c0_285] : memref<33x128xf32, #tpu.memory_space<vmem>>, vector<1x128xf32>
    %c1_286 = arith.constant 1 : index
    %c1_287 = arith.constant 1 : index
    %c0_288 = arith.constant 0 : index
    %404 = vector.load %arg17[%c1_286, %c1_287, %c0_288] : memref<3x4x128xf32, #tpu.memory_space<vmem>>, vector<1x1x128xf32>
    %405 = vector.shape_cast %404 : vector<1x1x128xf32> to vector<1x128xf32>
    %406 = vector.shape_cast %403 : vector<1x128xf32> to vector<1x1x128xf32>
    tpu.vector_store %arg17[%c1_286, %c1_287, %c0_288], %406 {strides = array<i32>} : memref<3x4x128xf32, #tpu.memory_space<vmem>>, vector<1x1x128xf32>,
    %407 = arith.index_cast %401 : i32 to index
    %c0_289 = arith.constant 0 : index
    %408 = vector.load %arg16[%407, %c0_289] : memref<33x32xf32, #tpu.memory_space<vmem>>, vector<1x32xf32>
    %c1_290 = arith.constant 1 : index
    %c1_291 = arith.constant 1 : index
    %c0_292 = arith.constant 0 : index
    %409 = vector.load %arg18[%c1_290, %c1_291, %c0_292] : memref<3x4x32xf32, #tpu.memory_space<vmem>>, vector<1x1x32xf32>
    %410 = vector.shape_cast %409 : vector<1x1x32xf32> to vector<1x32xf32>
    %411 = vector.shape_cast %408 : vector<1x32xf32> to vector<1x1x32xf32>
    tpu.vector_store %arg18[%c1_290, %c1_291, %c0_292], %411 {strides = array<i32>} : memref<3x4x32xf32, #tpu.memory_space<vmem>>, vector<1x1x32xf32>,
    %c31 = arith.constant 31 : index
    %412 = memref.load %arg1[%c31] : memref<96xi32, #tpu.memory_space<smem>>
    %413 = arith.index_cast %412 : i32 to index
    %c0_293 = arith.constant 0 : index
    %414 = vector.load %arg15[%413, %c0_293] : memref<33x128xf32, #tpu.memory_space<vmem>>, vector<1x128xf32>
    %c1_294 = arith.constant 1 : index
    %c2_295 = arith.constant 2 : index
    %c0_296 = arith.constant 0 : index
    %415 = vector.load %arg17[%c1_294, %c2_295, %c0_296] : memref<3x4x128xf32, #tpu.memory_space<vmem>>, vector<1x1x128xf32>
    %416 = vector.shape_cast %415 : vector<1x1x128xf32> to vector<1x128xf32>
    %417 = vector.shape_cast %414 : vector<1x128xf32> to vector<1x1x128xf32>
    tpu.vector_store %arg17[%c1_294, %c2_295, %c0_296], %417 {strides = array<i32>} : memref<3x4x128xf32, #tpu.memory_space<vmem>>, vector<1x1x128xf32>,
    %418 = arith.index_cast %412 : i32 to index
    %c0_297 = arith.constant 0 : index
    %419 = vector.load %arg16[%418, %c0_297] : memref<33x32xf32, #tpu.memory_space<vmem>>, vector<1x32xf32>
    %c1_298 = arith.constant 1 : index
    %c2_299 = arith.constant 2 : index
    %c0_300 = arith.constant 0 : index
    %420 = vector.load %arg18[%c1_298, %c2_299, %c0_300] : memref<3x4x32xf32, #tpu.memory_space<vmem>>, vector<1x1x32xf32>
    %421 = vector.shape_cast %420 : vector<1x1x32xf32> to vector<1x32xf32>
    %422 = vector.shape_cast %419 : vector<1x32xf32> to vector<1x1x32xf32>
    tpu.vector_store %arg18[%c1_298, %c2_299, %c0_300], %422 {strides = array<i32>} : memref<3x4x32xf32, #tpu.memory_space<vmem>>, vector<1x1x32xf32>,
    %c34 = arith.constant 34 : index
    %423 = memref.load %arg1[%c34] : memref<96xi32, #tpu.memory_space<smem>>
    %424 = arith.index_cast %423 : i32 to index
    %c0_301 = arith.constant 0 : index
    %425 = vector.load %arg15[%424, %c0_301] : memref<33x128xf32, #tpu.memory_space<vmem>>, vector<1x128xf32>
    %c1_302 = arith.constant 1 : index
    %c3_303 = arith.constant 3 : index
    %c0_304 = arith.constant 0 : index
    %426 = vector.load %arg17[%c1_302, %c3_303, %c0_304] : memref<3x4x128xf32, #tpu.memory_space<vmem>>, vector<1x1x128xf32>
    %427 = vector.shape_cast %426 : vector<1x1x128xf32> to vector<1x128xf32>
    %428 = vector.shape_cast %425 : vector<1x128xf32> to vector<1x1x128xf32>
    tpu.vector_store %arg17[%c1_302, %c3_303, %c0_304], %428 {strides = array<i32>} : memref<3x4x128xf32, #tpu.memory_space<vmem>>, vector<1x1x128xf32>,
    %429 = arith.index_cast %423 : i32 to index
    %c0_305 = arith.constant 0 : index
    %430 = vector.load %arg16[%429, %c0_305] : memref<33x32xf32, #tpu.memory_space<vmem>>, vector<1x32xf32>
    %c1_306 = arith.constant 1 : index
    %c3_307 = arith.constant 3 : index
    %c0_308 = arith.constant 0 : index
    %431 = vector.load %arg18[%c1_306, %c3_307, %c0_308] : memref<3x4x32xf32, #tpu.memory_space<vmem>>, vector<1x1x32xf32>
    %432 = vector.shape_cast %431 : vector<1x1x32xf32> to vector<1x32xf32>
    %433 = vector.shape_cast %430 : vector<1x32xf32> to vector<1x1x32xf32>
    tpu.vector_store %arg18[%c1_306, %c3_307, %c0_308], %433 {strides = array<i32>} : memref<3x4x32xf32, #tpu.memory_space<vmem>>, vector<1x1x32xf32>,
    %c26 = arith.constant 26 : index
    %434 = memref.load %arg1[%c26] : memref<96xi32, #tpu.memory_space<smem>>
    %435 = arith.index_cast %434 : i32 to index
    %c0_309 = arith.constant 0 : index
    %436 = vector.load %arg15[%435, %c0_309] : memref<33x128xf32, #tpu.memory_space<vmem>>, vector<1x128xf32>
    %c2_310 = arith.constant 2 : index
    %c0_311 = arith.constant 0 : index
    %c0_312 = arith.constant 0 : index
    %437 = vector.load %arg17[%c2_310, %c0_311, %c0_312] : memref<3x4x128xf32, #tpu.memory_space<vmem>>, vector<1x1x128xf32>
    %438 = vector.shape_cast %437 : vector<1x1x128xf32> to vector<1x128xf32>
    %439 = vector.shape_cast %436 : vector<1x128xf32> to vector<1x1x128xf32>
    tpu.vector_store %arg17[%c2_310, %c0_311, %c0_312], %439 {strides = array<i32>} : memref<3x4x128xf32, #tpu.memory_space<vmem>>, vector<1x1x128xf32>,
    %440 = arith.index_cast %434 : i32 to index
    %c0_313 = arith.constant 0 : index
    %441 = vector.load %arg16[%440, %c0_313] : memref<33x32xf32, #tpu.memory_space<vmem>>, vector<1x32xf32>
    %c2_314 = arith.constant 2 : index
    %c0_315 = arith.constant 0 : index
    %c0_316 = arith.constant 0 : index
    %442 = vector.load %arg18[%c2_314, %c0_315, %c0_316] : memref<3x4x32xf32, #tpu.memory_space<vmem>>, vector<1x1x32xf32>
    %443 = vector.shape_cast %442 : vector<1x1x32xf32> to vector<1x32xf32>
    %444 = vector.shape_cast %441 : vector<1x32xf32> to vector<1x1x32xf32>
    tpu.vector_store %arg18[%c2_314, %c0_315, %c0_316], %444 {strides = array<i32>} : memref<3x4x32xf32, #tpu.memory_space<vmem>>, vector<1x1x32xf32>,
    %c29 = arith.constant 29 : index
    %445 = memref.load %arg1[%c29] : memref<96xi32, #tpu.memory_space<smem>>
    %446 = arith.index_cast %445 : i32 to index
    %c0_317 = arith.constant 0 : index
    %447 = vector.load %arg15[%446, %c0_317] : memref<33x128xf32, #tpu.memory_space<vmem>>, vector<1x128xf32>
    %c2_318 = arith.constant 2 : index
    %c1_319 = arith.constant 1 : index
    %c0_320 = arith.constant 0 : index
    %448 = vector.load %arg17[%c2_318, %c1_319, %c0_320] : memref<3x4x128xf32, #tpu.memory_space<vmem>>, vector<1x1x128xf32>
    %449 = vector.shape_cast %448 : vector<1x1x128xf32> to vector<1x128xf32>
    %450 = vector.shape_cast %447 : vector<1x128xf32> to vector<1x1x128xf32>
    tpu.vector_store %arg17[%c2_318, %c1_319, %c0_320], %450 {strides = array<i32>} : memref<3x4x128xf32, #tpu.memory_space<vmem>>, vector<1x1x128xf32>,
    %451 = arith.index_cast %445 : i32 to index
    %c0_321 = arith.constant 0 : index
    %452 = vector.load %arg16[%451, %c0_321] : memref<33x32xf32, #tpu.memory_space<vmem>>, vector<1x32xf32>
    %c2_322 = arith.constant 2 : index
    %c1_323 = arith.constant 1 : index
    %c0_324 = arith.constant 0 : index
    %453 = vector.load %arg18[%c2_322, %c1_323, %c0_324] : memref<3x4x32xf32, #tpu.memory_space<vmem>>, vector<1x1x32xf32>
    %454 = vector.shape_cast %453 : vector<1x1x32xf32> to vector<1x32xf32>
    %455 = vector.shape_cast %452 : vector<1x32xf32> to vector<1x1x32xf32>
    tpu.vector_store %arg18[%c2_322, %c1_323, %c0_324], %455 {strides = array<i32>} : memref<3x4x32xf32, #tpu.memory_space<vmem>>, vector<1x1x32xf32>,
    %c32_325 = arith.constant 32 : index
    %456 = memref.load %arg1[%c32_325] : memref<96xi32, #tpu.memory_space<smem>>
    %457 = arith.index_cast %456 : i32 to index
    %c0_326 = arith.constant 0 : index
    %458 = vector.load %arg15[%457, %c0_326] : memref<33x128xf32, #tpu.memory_space<vmem>>, vector<1x128xf32>
    %c2_327 = arith.constant 2 : index
    %c2_328 = arith.constant 2 : index
    %c0_329 = arith.constant 0 : index
    %459 = vector.load %arg17[%c2_327, %c2_328, %c0_329] : memref<3x4x128xf32, #tpu.memory_space<vmem>>, vector<1x1x128xf32>
    %460 = vector.shape_cast %459 : vector<1x1x128xf32> to vector<1x128xf32>
    %461 = vector.shape_cast %458 : vector<1x128xf32> to vector<1x1x128xf32>
    tpu.vector_store %arg17[%c2_327, %c2_328, %c0_329], %461 {strides = array<i32>} : memref<3x4x128xf32, #tpu.memory_space<vmem>>, vector<1x1x128xf32>,
    %462 = arith.index_cast %456 : i32 to index
    %c0_330 = arith.constant 0 : index
    %463 = vector.load %arg16[%462, %c0_330] : memref<33x32xf32, #tpu.memory_space<vmem>>, vector<1x32xf32>
    %c2_331 = arith.constant 2 : index
    %c2_332 = arith.constant 2 : index
    %c0_333 = arith.constant 0 : index
    %464 = vector.load %arg18[%c2_331, %c2_332, %c0_333] : memref<3x4x32xf32, #tpu.memory_space<vmem>>, vector<1x1x32xf32>
    %465 = vector.shape_cast %464 : vector<1x1x32xf32> to vector<1x32xf32>
    %466 = vector.shape_cast %463 : vector<1x32xf32> to vector<1x1x32xf32>
    tpu.vector_store %arg18[%c2_331, %c2_332, %c0_333], %466 {strides = array<i32>} : memref<3x4x32xf32, #tpu.memory_space<vmem>>, vector<1x1x32xf32>,
    %c35 = arith.constant 35 : index
    %467 = memref.load %arg1[%c35] : memref<96xi32, #tpu.memory_space<smem>>
    %468 = arith.index_cast %467 : i32 to index
    %c0_334 = arith.constant 0 : index
    %469 = vector.load %arg15[%468, %c0_334] : memref<33x128xf32, #tpu.memory_space<vmem>>, vector<1x128xf32>
    %c2_335 = arith.constant 2 : index
    %c3_336 = arith.constant 3 : index
    %c0_337 = arith.constant 0 : index
    %470 = vector.load %arg17[%c2_335, %c3_336, %c0_337] : memref<3x4x128xf32, #tpu.memory_space<vmem>>, vector<1x1x128xf32>
    %471 = vector.shape_cast %470 : vector<1x1x128xf32> to vector<1x128xf32>
    %472 = vector.shape_cast %469 : vector<1x128xf32> to vector<1x1x128xf32>
    tpu.vector_store %arg17[%c2_335, %c3_336, %c0_337], %472 {strides = array<i32>} : memref<3x4x128xf32, #tpu.memory_space<vmem>>, vector<1x1x128xf32>,
    %473 = arith.index_cast %467 : i32 to index
    %c0_338 = arith.constant 0 : index
    %474 = vector.load %arg16[%473, %c0_338] : memref<33x32xf32, #tpu.memory_space<vmem>>, vector<1x32xf32>
    %c2_339 = arith.constant 2 : index
    %c3_340 = arith.constant 3 : index
    %c0_341 = arith.constant 0 : index
    %475 = vector.load %arg18[%c2_339, %c3_340, %c0_341] : memref<3x4x32xf32, #tpu.memory_space<vmem>>, vector<1x1x32xf32>
    %476 = vector.shape_cast %475 : vector<1x1x32xf32> to vector<1x32xf32>
    %477 = vector.shape_cast %474 : vector<1x32xf32> to vector<1x1x32xf32>
    tpu.vector_store %arg18[%c2_339, %c3_340, %c0_341], %477 {strides = array<i32>} : memref<3x4x32xf32, #tpu.memory_space<vmem>>, vector<1x1x32xf32>,
    %c0_342 = arith.constant 0 : index
    %c0_343 = arith.constant 0 : index
    %c0_344 = arith.constant 0 : index
    %478 = vector.load %arg17[%c0_342, %c0_343, %c0_344] : memref<3x4x128xf32, #tpu.memory_space<vmem>>, vector<3x4x128xf32>
    %c0_345 = arith.constant 0 : index
    %c0_346 = arith.constant 0 : index
    %c0_347 = arith.constant 0 : index
    %479 = vector.load %arg18[%c0_345, %c0_346, %c0_347] : memref<3x4x32xf32, #tpu.memory_space<vmem>>, vector<3x4x32xf32>
    %c8_348 = arith.constant 8 : index
    %c0_349 = arith.constant 0 : index
    %480 = vector.load %arg14[%c8_348, %c0_349] : memref<32x128xf32, #tpu.memory_space<vmem>>, vector<4x128xf32>
    %481 = vector.extract_strided_slice %480 {offsets = [0, 96], sizes = [4, 32], strides = [1, 1]} : vector<4x128xf32> to vector<4x32xf32>
    %482 = vector.extract_strided_slice %478 {offsets = [0, 0, 96], sizes = [3, 4, 32], strides = [1, 1, 1]} : vector<3x4x128xf32> to vector<3x4x32xf32>
    %483 = vector.shape_cast %481 : vector<4x32xf32> to vector<1x4x32xf32>
    %484 = vector.broadcast %483 : vector<1x4x32xf32> to vector<3x4x32xf32>
    %485 = arith.addf %482, %484 : vector<3x4x32xf32>
    %486 = arith.negf %485 : vector<3x4x32xf32>
    %487 = math.exp %486 : vector<3x4x32xf32>
    %cst_350 = arith.constant 1.000000e+00 : f32
    %488 = vector.broadcast %cst_350 : f32 to vector<3x4x32xf32>
    %489 = arith.addf %488, %487 : vector<3x4x32xf32>
    %490 = arith.divf %488, %489 : vector<3x4x32xf32>
    %491 = arith.mulf %490, %479 : vector<3x4x32xf32>
    %cst_351 = arith.constant dense<0.000000e+00> : vector<4x32xf32>
    %492 = vector.multi_reduction <add>, %491, %cst_351 [0] : vector<3x4x32xf32> to vector<4x32xf32>
    %493 = vector.extract_strided_slice %478 {offsets = [0, 0, 0], sizes = [3, 4, 96], strides = [1, 1, 1]} : vector<3x4x128xf32> to vector<3x4x96xf32>
    %cst_352 = arith.constant dense<0.000000e+00> : vector<4x96xf32>
    %494 = vector.multi_reduction <add>, %493, %cst_352 [0] : vector<3x4x96xf32> to vector<4x96xf32>
    %495 = vector.extract_strided_slice %480 {offsets = [0, 0], sizes = [4, 96], strides = [1, 1]} : vector<4x128xf32> to vector<4x96xf32>
    %496 = arith.addf %495, %494 : vector<4x96xf32>
    %497 = arith.negf %496 : vector<4x96xf32>
    %498 = math.exp %497 : vector<4x96xf32>
    %cst_353 = arith.constant 1.000000e+00 : f32
    %499 = vector.broadcast %cst_353 : f32 to vector<4x96xf32>
    %500 = arith.addf %499, %498 : vector<4x96xf32>
    %501 = arith.divf %499, %500 : vector<4x96xf32>
    %502 = vector.extract_strided_slice %501 {offsets = [0, 0], sizes = [4, 32], strides = [1, 1]} : vector<4x96xf32> to vector<4x32xf32>
    %503 = vector.extract_strided_slice %501 {offsets = [0, 32], sizes = [4, 32], strides = [1, 1]} : vector<4x96xf32> to vector<4x32xf32>
    %504 = vector.extract_strided_slice %501 {offsets = [0, 64], sizes = [4, 32], strides = [1, 1]} : vector<4x96xf32> to vector<4x32xf32>
    %505 = arith.mulf %502, %504 : vector<4x32xf32>
    %506 = arith.addf %505, %492 : vector<4x32xf32>
    %507 = math.tanh %506 : vector<4x32xf32>
    %508 = arith.mulf %503, %507 : vector<4x32xf32>
    %c8_354 = arith.constant 8 : index
    %c0_355 = arith.constant 0 : index
    %509 = vector.load %arg10[%c8_354, %c0_355] : memref<32x32xf32, #tpu.memory_space<vmem>>, vector<4x32xf32>
    tpu.vector_store %arg10[%c8_354, %c0_355], %508 {strides = array<i32>} : memref<32x32xf32, #tpu.memory_space<vmem>>, vector<4x32xf32>,
    %c8_356 = arith.constant 8 : index
    %c0_357 = arith.constant 0 : index
    %510 = vector.load %arg16[%c8_356, %c0_357] : memref<33x32xf32, #tpu.memory_space<vmem>>, vector<4x32xf32>
    tpu.vector_store %arg16[%c8_356, %c0_357], %506 {strides = array<i32>} : memref<33x32xf32, #tpu.memory_space<vmem>>, vector<4x32xf32>,
    %cst_358 = arith.constant dense<0.000000e+00> : vector<4x128xf32>
    %511 = tpu.matmul %508, %0, %cst_358 {dimension_numbers = #tpu.dot_dimension_numbers<[1], [0], [0], [1], [0, 0, 1, 1], [], []>} : vector<4x32xf32>, vector<32x128xf32>, vector<4x128xf32> -> vector<4x128xf32>
    %c8_359 = arith.constant 8 : index
    %c0_360 = arith.constant 0 : index
    %512 = vector.load %arg15[%c8_359, %c0_360] : memref<33x128xf32, #tpu.memory_space<vmem>>, vector<4x128xf32>
    tpu.vector_store %arg15[%c8_359, %c0_360], %511 {strides = array<i32>} : memref<33x128xf32, #tpu.memory_space<vmem>>, vector<4x128xf32>,
    %c36 = arith.constant 36 : index
    %513 = memref.load %arg1[%c36] : memref<96xi32, #tpu.memory_space<smem>>
    %514 = arith.index_cast %513 : i32 to index
    %c0_361 = arith.constant 0 : index
    %515 = vector.load %arg15[%514, %c0_361] : memref<33x128xf32, #tpu.memory_space<vmem>>, vector<1x128xf32>
    %c0_362 = arith.constant 0 : index
    %c0_363 = arith.constant 0 : index
    %c0_364 = arith.constant 0 : index
    %516 = vector.load %arg17[%c0_362, %c0_363, %c0_364] : memref<3x4x128xf32, #tpu.memory_space<vmem>>, vector<1x1x128xf32>
    %517 = vector.shape_cast %516 : vector<1x1x128xf32> to vector<1x128xf32>
    %518 = vector.shape_cast %515 : vector<1x128xf32> to vector<1x1x128xf32>
    tpu.vector_store %arg17[%c0_362, %c0_363, %c0_364], %518 {strides = array<i32>} : memref<3x4x128xf32, #tpu.memory_space<vmem>>, vector<1x1x128xf32>,
    %519 = arith.index_cast %513 : i32 to index
    %c0_365 = arith.constant 0 : index
    %520 = vector.load %arg16[%519, %c0_365] : memref<33x32xf32, #tpu.memory_space<vmem>>, vector<1x32xf32>
    %c0_366 = arith.constant 0 : index
    %c0_367 = arith.constant 0 : index
    %c0_368 = arith.constant 0 : index
    %521 = vector.load %arg18[%c0_366, %c0_367, %c0_368] : memref<3x4x32xf32, #tpu.memory_space<vmem>>, vector<1x1x32xf32>
    %522 = vector.shape_cast %521 : vector<1x1x32xf32> to vector<1x32xf32>
    %523 = vector.shape_cast %520 : vector<1x32xf32> to vector<1x1x32xf32>
    tpu.vector_store %arg18[%c0_366, %c0_367, %c0_368], %523 {strides = array<i32>} : memref<3x4x32xf32, #tpu.memory_space<vmem>>, vector<1x1x32xf32>,
    %c39 = arith.constant 39 : index
    %524 = memref.load %arg1[%c39] : memref<96xi32, #tpu.memory_space<smem>>
    %525 = arith.index_cast %524 : i32 to index
    %c0_369 = arith.constant 0 : index
    %526 = vector.load %arg15[%525, %c0_369] : memref<33x128xf32, #tpu.memory_space<vmem>>, vector<1x128xf32>
    %c0_370 = arith.constant 0 : index
    %c1_371 = arith.constant 1 : index
    %c0_372 = arith.constant 0 : index
    %527 = vector.load %arg17[%c0_370, %c1_371, %c0_372] : memref<3x4x128xf32, #tpu.memory_space<vmem>>, vector<1x1x128xf32>
    %528 = vector.shape_cast %527 : vector<1x1x128xf32> to vector<1x128xf32>
    %529 = vector.shape_cast %526 : vector<1x128xf32> to vector<1x1x128xf32>
    tpu.vector_store %arg17[%c0_370, %c1_371, %c0_372], %529 {strides = array<i32>} : memref<3x4x128xf32, #tpu.memory_space<vmem>>, vector<1x1x128xf32>,
    %530 = arith.index_cast %524 : i32 to index
    %c0_373 = arith.constant 0 : index
    %531 = vector.load %arg16[%530, %c0_373] : memref<33x32xf32, #tpu.memory_space<vmem>>, vector<1x32xf32>
    %c0_374 = arith.constant 0 : index
    %c1_375 = arith.constant 1 : index
    %c0_376 = arith.constant 0 : index
    %532 = vector.load %arg18[%c0_374, %c1_375, %c0_376] : memref<3x4x32xf32, #tpu.memory_space<vmem>>, vector<1x1x32xf32>
    %533 = vector.shape_cast %532 : vector<1x1x32xf32> to vector<1x32xf32>
    %534 = vector.shape_cast %531 : vector<1x32xf32> to vector<1x1x32xf32>
    tpu.vector_store %arg18[%c0_374, %c1_375, %c0_376], %534 {strides = array<i32>} : memref<3x4x32xf32, #tpu.memory_space<vmem>>, vector<1x1x32xf32>,
    %c42 = arith.constant 42 : index
    %535 = memref.load %arg1[%c42] : memref<96xi32, #tpu.memory_space<smem>>
    %536 = arith.index_cast %535 : i32 to index
    %c0_377 = arith.constant 0 : index
    %537 = vector.load %arg15[%536, %c0_377] : memref<33x128xf32, #tpu.memory_space<vmem>>, vector<1x128xf32>
    %c0_378 = arith.constant 0 : index
    %c2_379 = arith.constant 2 : index
    %c0_380 = arith.constant 0 : index
    %538 = vector.load %arg17[%c0_378, %c2_379, %c0_380] : memref<3x4x128xf32, #tpu.memory_space<vmem>>, vector<1x1x128xf32>
    %539 = vector.shape_cast %538 : vector<1x1x128xf32> to vector<1x128xf32>
    %540 = vector.shape_cast %537 : vector<1x128xf32> to vector<1x1x128xf32>
    tpu.vector_store %arg17[%c0_378, %c2_379, %c0_380], %540 {strides = array<i32>} : memref<3x4x128xf32, #tpu.memory_space<vmem>>, vector<1x1x128xf32>,
    %541 = arith.index_cast %535 : i32 to index
    %c0_381 = arith.constant 0 : index
    %542 = vector.load %arg16[%541, %c0_381] : memref<33x32xf32, #tpu.memory_space<vmem>>, vector<1x32xf32>
    %c0_382 = arith.constant 0 : index
    %c2_383 = arith.constant 2 : index
    %c0_384 = arith.constant 0 : index
    %543 = vector.load %arg18[%c0_382, %c2_383, %c0_384] : memref<3x4x32xf32, #tpu.memory_space<vmem>>, vector<1x1x32xf32>
    %544 = vector.shape_cast %543 : vector<1x1x32xf32> to vector<1x32xf32>
    %545 = vector.shape_cast %542 : vector<1x32xf32> to vector<1x1x32xf32>
    tpu.vector_store %arg18[%c0_382, %c2_383, %c0_384], %545 {strides = array<i32>} : memref<3x4x32xf32, #tpu.memory_space<vmem>>, vector<1x1x32xf32>,
    %c45 = arith.constant 45 : index
    %546 = memref.load %arg1[%c45] : memref<96xi32, #tpu.memory_space<smem>>
    %547 = arith.index_cast %546 : i32 to index
    %c0_385 = arith.constant 0 : index
    %548 = vector.load %arg15[%547, %c0_385] : memref<33x128xf32, #tpu.memory_space<vmem>>, vector<1x128xf32>
    %c0_386 = arith.constant 0 : index
    %c3_387 = arith.constant 3 : index
    %c0_388 = arith.constant 0 : index
    %549 = vector.load %arg17[%c0_386, %c3_387, %c0_388] : memref<3x4x128xf32, #tpu.memory_space<vmem>>, vector<1x1x128xf32>
    %550 = vector.shape_cast %549 : vector<1x1x128xf32> to vector<1x128xf32>
    %551 = vector.shape_cast %548 : vector<1x128xf32> to vector<1x1x128xf32>
    tpu.vector_store %arg17[%c0_386, %c3_387, %c0_388], %551 {strides = array<i32>} : memref<3x4x128xf32, #tpu.memory_space<vmem>>, vector<1x1x128xf32>,
    %552 = arith.index_cast %546 : i32 to index
    %c0_389 = arith.constant 0 : index
    %553 = vector.load %arg16[%552, %c0_389] : memref<33x32xf32, #tpu.memory_space<vmem>>, vector<1x32xf32>
    %c0_390 = arith.constant 0 : index
    %c3_391 = arith.constant 3 : index
    %c0_392 = arith.constant 0 : index
    %554 = vector.load %arg18[%c0_390, %c3_391, %c0_392] : memref<3x4x32xf32, #tpu.memory_space<vmem>>, vector<1x1x32xf32>
    %555 = vector.shape_cast %554 : vector<1x1x32xf32> to vector<1x32xf32>
    %556 = vector.shape_cast %553 : vector<1x32xf32> to vector<1x1x32xf32>
    tpu.vector_store %arg18[%c0_390, %c3_391, %c0_392], %556 {strides = array<i32>} : memref<3x4x32xf32, #tpu.memory_space<vmem>>, vector<1x1x32xf32>,
    %c37 = arith.constant 37 : index
    %557 = memref.load %arg1[%c37] : memref<96xi32, #tpu.memory_space<smem>>
    %558 = arith.index_cast %557 : i32 to index
    %c0_393 = arith.constant 0 : index
    %559 = vector.load %arg15[%558, %c0_393] : memref<33x128xf32, #tpu.memory_space<vmem>>, vector<1x128xf32>
    %c1_394 = arith.constant 1 : index
    %c0_395 = arith.constant 0 : index
    %c0_396 = arith.constant 0 : index
    %560 = vector.load %arg17[%c1_394, %c0_395, %c0_396] : memref<3x4x128xf32, #tpu.memory_space<vmem>>, vector<1x1x128xf32>
    %561 = vector.shape_cast %560 : vector<1x1x128xf32> to vector<1x128xf32>
    %562 = vector.shape_cast %559 : vector<1x128xf32> to vector<1x1x128xf32>
    tpu.vector_store %arg17[%c1_394, %c0_395, %c0_396], %562 {strides = array<i32>} : memref<3x4x128xf32, #tpu.memory_space<vmem>>, vector<1x1x128xf32>,
    %563 = arith.index_cast %557 : i32 to index
    %c0_397 = arith.constant 0 : index
    %564 = vector.load %arg16[%563, %c0_397] : memref<33x32xf32, #tpu.memory_space<vmem>>, vector<1x32xf32>
    %c1_398 = arith.constant 1 : index
    %c0_399 = arith.constant 0 : index
    %c0_400 = arith.constant 0 : index
    %565 = vector.load %arg18[%c1_398, %c0_399, %c0_400] : memref<3x4x32xf32, #tpu.memory_space<vmem>>, vector<1x1x32xf32>
    %566 = vector.shape_cast %565 : vector<1x1x32xf32> to vector<1x32xf32>
    %567 = vector.shape_cast %564 : vector<1x32xf32> to vector<1x1x32xf32>
    tpu.vector_store %arg18[%c1_398, %c0_399, %c0_400], %567 {strides = array<i32>} : memref<3x4x32xf32, #tpu.memory_space<vmem>>, vector<1x1x32xf32>,
    %c40 = arith.constant 40 : index
    %568 = memref.load %arg1[%c40] : memref<96xi32, #tpu.memory_space<smem>>
    %569 = arith.index_cast %568 : i32 to index
    %c0_401 = arith.constant 0 : index
    %570 = vector.load %arg15[%569, %c0_401] : memref<33x128xf32, #tpu.memory_space<vmem>>, vector<1x128xf32>
    %c1_402 = arith.constant 1 : index
    %c1_403 = arith.constant 1 : index
    %c0_404 = arith.constant 0 : index
    %571 = vector.load %arg17[%c1_402, %c1_403, %c0_404] : memref<3x4x128xf32, #tpu.memory_space<vmem>>, vector<1x1x128xf32>
    %572 = vector.shape_cast %571 : vector<1x1x128xf32> to vector<1x128xf32>
    %573 = vector.shape_cast %570 : vector<1x128xf32> to vector<1x1x128xf32>
    tpu.vector_store %arg17[%c1_402, %c1_403, %c0_404], %573 {strides = array<i32>} : memref<3x4x128xf32, #tpu.memory_space<vmem>>, vector<1x1x128xf32>,
    %574 = arith.index_cast %568 : i32 to index
    %c0_405 = arith.constant 0 : index
    %575 = vector.load %arg16[%574, %c0_405] : memref<33x32xf32, #tpu.memory_space<vmem>>, vector<1x32xf32>
    %c1_406 = arith.constant 1 : index
    %c1_407 = arith.constant 1 : index
    %c0_408 = arith.constant 0 : index
    %576 = vector.load %arg18[%c1_406, %c1_407, %c0_408] : memref<3x4x32xf32, #tpu.memory_space<vmem>>, vector<1x1x32xf32>
    %577 = vector.shape_cast %576 : vector<1x1x32xf32> to vector<1x32xf32>
    %578 = vector.shape_cast %575 : vector<1x32xf32> to vector<1x1x32xf32>
    tpu.vector_store %arg18[%c1_406, %c1_407, %c0_408], %578 {strides = array<i32>} : memref<3x4x32xf32, #tpu.memory_space<vmem>>, vector<1x1x32xf32>,
    %c43 = arith.constant 43 : index
    %579 = memref.load %arg1[%c43] : memref<96xi32, #tpu.memory_space<smem>>
    %580 = arith.index_cast %579 : i32 to index
    %c0_409 = arith.constant 0 : index
    %581 = vector.load %arg15[%580, %c0_409] : memref<33x128xf32, #tpu.memory_space<vmem>>, vector<1x128xf32>
    %c1_410 = arith.constant 1 : index
    %c2_411 = arith.constant 2 : index
    %c0_412 = arith.constant 0 : index
    %582 = vector.load %arg17[%c1_410, %c2_411, %c0_412] : memref<3x4x128xf32, #tpu.memory_space<vmem>>, vector<1x1x128xf32>
    %583 = vector.shape_cast %582 : vector<1x1x128xf32> to vector<1x128xf32>
    %584 = vector.shape_cast %581 : vector<1x128xf32> to vector<1x1x128xf32>
    tpu.vector_store %arg17[%c1_410, %c2_411, %c0_412], %584 {strides = array<i32>} : memref<3x4x128xf32, #tpu.memory_space<vmem>>, vector<1x1x128xf32>,
    %585 = arith.index_cast %579 : i32 to index
    %c0_413 = arith.constant 0 : index
    %586 = vector.load %arg16[%585, %c0_413] : memref<33x32xf32, #tpu.memory_space<vmem>>, vector<1x32xf32>
    %c1_414 = arith.constant 1 : index
    %c2_415 = arith.constant 2 : index
    %c0_416 = arith.constant 0 : index
    %587 = vector.load %arg18[%c1_414, %c2_415, %c0_416] : memref<3x4x32xf32, #tpu.memory_space<vmem>>, vector<1x1x32xf32>
    %588 = vector.shape_cast %587 : vector<1x1x32xf32> to vector<1x32xf32>
    %589 = vector.shape_cast %586 : vector<1x32xf32> to vector<1x1x32xf32>
    tpu.vector_store %arg18[%c1_414, %c2_415, %c0_416], %589 {strides = array<i32>} : memref<3x4x32xf32, #tpu.memory_space<vmem>>, vector<1x1x32xf32>,
    %c46 = arith.constant 46 : index
    %590 = memref.load %arg1[%c46] : memref<96xi32, #tpu.memory_space<smem>>
    %591 = arith.index_cast %590 : i32 to index
    %c0_417 = arith.constant 0 : index
    %592 = vector.load %arg15[%591, %c0_417] : memref<33x128xf32, #tpu.memory_space<vmem>>, vector<1x128xf32>
    %c1_418 = arith.constant 1 : index
    %c3_419 = arith.constant 3 : index
    %c0_420 = arith.constant 0 : index
    %593 = vector.load %arg17[%c1_418, %c3_419, %c0_420] : memref<3x4x128xf32, #tpu.memory_space<vmem>>, vector<1x1x128xf32>
    %594 = vector.shape_cast %593 : vector<1x1x128xf32> to vector<1x128xf32>
    %595 = vector.shape_cast %592 : vector<1x128xf32> to vector<1x1x128xf32>
    tpu.vector_store %arg17[%c1_418, %c3_419, %c0_420], %595 {strides = array<i32>} : memref<3x4x128xf32, #tpu.memory_space<vmem>>, vector<1x1x128xf32>,
    %596 = arith.index_cast %590 : i32 to index
    %c0_421 = arith.constant 0 : index
    %597 = vector.load %arg16[%596, %c0_421] : memref<33x32xf32, #tpu.memory_space<vmem>>, vector<1x32xf32>
    %c1_422 = arith.constant 1 : index
    %c3_423 = arith.constant 3 : index
    %c0_424 = arith.constant 0 : index
    %598 = vector.load %arg18[%c1_422, %c3_423, %c0_424] : memref<3x4x32xf32, #tpu.memory_space<vmem>>, vector<1x1x32xf32>
    %599 = vector.shape_cast %598 : vector<1x1x32xf32> to vector<1x32xf32>
    %600 = vector.shape_cast %597 : vector<1x32xf32> to vector<1x1x32xf32>
    tpu.vector_store %arg18[%c1_422, %c3_423, %c0_424], %600 {strides = array<i32>} : memref<3x4x32xf32, #tpu.memory_space<vmem>>, vector<1x1x32xf32>,
    %c38 = arith.constant 38 : index
    %601 = memref.load %arg1[%c38] : memref<96xi32, #tpu.memory_space<smem>>
    %602 = arith.index_cast %601 : i32 to index
    %c0_425 = arith.constant 0 : index
    %603 = vector.load %arg15[%602, %c0_425] : memref<33x128xf32, #tpu.memory_space<vmem>>, vector<1x128xf32>
    %c2_426 = arith.constant 2 : index
    %c0_427 = arith.constant 0 : index
    %c0_428 = arith.constant 0 : index
    %604 = vector.load %arg17[%c2_426, %c0_427, %c0_428] : memref<3x4x128xf32, #tpu.memory_space<vmem>>, vector<1x1x128xf32>
    %605 = vector.shape_cast %604 : vector<1x1x128xf32> to vector<1x128xf32>
    %606 = vector.shape_cast %603 : vector<1x128xf32> to vector<1x1x128xf32>
    tpu.vector_store %arg17[%c2_426, %c0_427, %c0_428], %606 {strides = array<i32>} : memref<3x4x128xf32, #tpu.memory_space<vmem>>, vector<1x1x128xf32>,
    %607 = arith.index_cast %601 : i32 to index
    %c0_429 = arith.constant 0 : index
    %608 = vector.load %arg16[%607, %c0_429] : memref<33x32xf32, #tpu.memory_space<vmem>>, vector<1x32xf32>
    %c2_430 = arith.constant 2 : index
    %c0_431 = arith.constant 0 : index
    %c0_432 = arith.constant 0 : index
    %609 = vector.load %arg18[%c2_430, %c0_431, %c0_432] : memref<3x4x32xf32, #tpu.memory_space<vmem>>, vector<1x1x32xf32>
    %610 = vector.shape_cast %609 : vector<1x1x32xf32> to vector<1x32xf32>
    %611 = vector.shape_cast %608 : vector<1x32xf32> to vector<1x1x32xf32>
    tpu.vector_store %arg18[%c2_430, %c0_431, %c0_432], %611 {strides = array<i32>} : memref<3x4x32xf32, #tpu.memory_space<vmem>>, vector<1x1x32xf32>,
    %c41 = arith.constant 41 : index
    %612 = memref.load %arg1[%c41] : memref<96xi32, #tpu.memory_space<smem>>
    %613 = arith.index_cast %612 : i32 to index
    %c0_433 = arith.constant 0 : index
    %614 = vector.load %arg15[%613, %c0_433] : memref<33x128xf32, #tpu.memory_space<vmem>>, vector<1x128xf32>
    %c2_434 = arith.constant 2 : index
    %c1_435 = arith.constant 1 : index
    %c0_436 = arith.constant 0 : index
    %615 = vector.load %arg17[%c2_434, %c1_435, %c0_436] : memref<3x4x128xf32, #tpu.memory_space<vmem>>, vector<1x1x128xf32>
    %616 = vector.shape_cast %615 : vector<1x1x128xf32> to vector<1x128xf32>
    %617 = vector.shape_cast %614 : vector<1x128xf32> to vector<1x1x128xf32>
    tpu.vector_store %arg17[%c2_434, %c1_435, %c0_436], %617 {strides = array<i32>} : memref<3x4x128xf32, #tpu.memory_space<vmem>>, vector<1x1x128xf32>,
    %618 = arith.index_cast %612 : i32 to index
    %c0_437 = arith.constant 0 : index
    %619 = vector.load %arg16[%618, %c0_437] : memref<33x32xf32, #tpu.memory_space<vmem>>, vector<1x32xf32>
    %c2_438 = arith.constant 2 : index
    %c1_439 = arith.constant 1 : index
    %c0_440 = arith.constant 0 : index
    %620 = vector.load %arg18[%c2_438, %c1_439, %c0_440] : memref<3x4x32xf32, #tpu.memory_space<vmem>>, vector<1x1x32xf32>
    %621 = vector.shape_cast %620 : vector<1x1x32xf32> to vector<1x32xf32>
    %622 = vector.shape_cast %619 : vector<1x32xf32> to vector<1x1x32xf32>
    tpu.vector_store %arg18[%c2_438, %c1_439, %c0_440], %622 {strides = array<i32>} : memref<3x4x32xf32, #tpu.memory_space<vmem>>, vector<1x1x32xf32>,
    %c44 = arith.constant 44 : index
    %623 = memref.load %arg1[%c44] : memref<96xi32, #tpu.memory_space<smem>>
    %624 = arith.index_cast %623 : i32 to index
    %c0_441 = arith.constant 0 : index
    %625 = vector.load %arg15[%624, %c0_441] : memref<33x128xf32, #tpu.memory_space<vmem>>, vector<1x128xf32>
    %c2_442 = arith.constant 2 : index
    %c2_443 = arith.constant 2 : index
    %c0_444 = arith.constant 0 : index
    %626 = vector.load %arg17[%c2_442, %c2_443, %c0_444] : memref<3x4x128xf32, #tpu.memory_space<vmem>>, vector<1x1x128xf32>
    %627 = vector.shape_cast %626 : vector<1x1x128xf32> to vector<1x128xf32>
    %628 = vector.shape_cast %625 : vector<1x128xf32> to vector<1x1x128xf32>
    tpu.vector_store %arg17[%c2_442, %c2_443, %c0_444], %628 {strides = array<i32>} : memref<3x4x128xf32, #tpu.memory_space<vmem>>, vector<1x1x128xf32>,
    %629 = arith.index_cast %623 : i32 to index
    %c0_445 = arith.constant 0 : index
    %630 = vector.load %arg16[%629, %c0_445] : memref<33x32xf32, #tpu.memory_space<vmem>>, vector<1x32xf32>
    %c2_446 = arith.constant 2 : index
    %c2_447 = arith.constant 2 : index
    %c0_448 = arith.constant 0 : index
    %631 = vector.load %arg18[%c2_446, %c2_447, %c0_448] : memref<3x4x32xf32, #tpu.memory_space<vmem>>, vector<1x1x32xf32>
    %632 = vector.shape_cast %631 : vector<1x1x32xf32> to vector<1x32xf32>
    %633 = vector.shape_cast %630 : vector<1x32xf32> to vector<1x1x32xf32>
    tpu.vector_store %arg18[%c2_446, %c2_447, %c0_448], %633 {strides = array<i32>} : memref<3x4x32xf32, #tpu.memory_space<vmem>>, vector<1x1x32xf32>,
    %c47 = arith.constant 47 : index
    %634 = memref.load %arg1[%c47] : memref<96xi32, #tpu.memory_space<smem>>
    %635 = arith.index_cast %634 : i32 to index
    %c0_449 = arith.constant 0 : index
    %636 = vector.load %arg15[%635, %c0_449] : memref<33x128xf32, #tpu.memory_space<vmem>>, vector<1x128xf32>
    %c2_450 = arith.constant 2 : index
    %c3_451 = arith.constant 3 : index
    %c0_452 = arith.constant 0 : index
    %637 = vector.load %arg17[%c2_450, %c3_451, %c0_452] : memref<3x4x128xf32, #tpu.memory_space<vmem>>, vector<1x1x128xf32>
    %638 = vector.shape_cast %637 : vector<1x1x128xf32> to vector<1x128xf32>
    %639 = vector.shape_cast %636 : vector<1x128xf32> to vector<1x1x128xf32>
    tpu.vector_store %arg17[%c2_450, %c3_451, %c0_452], %639 {strides = array<i32>} : memref<3x4x128xf32, #tpu.memory_space<vmem>>, vector<1x1x128xf32>,
    %640 = arith.index_cast %634 : i32 to index
    %c0_453 = arith.constant 0 : index
    %641 = vector.load %arg16[%640, %c0_453] : memref<33x32xf32, #tpu.memory_space<vmem>>, vector<1x32xf32>
    %c2_454 = arith.constant 2 : index
    %c3_455 = arith.constant 3 : index
    %c0_456 = arith.constant 0 : index
    %642 = vector.load %arg18[%c2_454, %c3_455, %c0_456] : memref<3x4x32xf32, #tpu.memory_space<vmem>>, vector<1x1x32xf32>
    %643 = vector.shape_cast %642 : vector<1x1x32xf32> to vector<1x32xf32>
    %644 = vector.shape_cast %641 : vector<1x32xf32> to vector<1x1x32xf32>
    tpu.vector_store %arg18[%c2_454, %c3_455, %c0_456], %644 {strides = array<i32>} : memref<3x4x32xf32, #tpu.memory_space<vmem>>, vector<1x1x32xf32>,
    %c0_457 = arith.constant 0 : index
    %c0_458 = arith.constant 0 : index
    %c0_459 = arith.constant 0 : index
    %645 = vector.load %arg17[%c0_457, %c0_458, %c0_459] : memref<3x4x128xf32, #tpu.memory_space<vmem>>, vector<3x4x128xf32>
    %c0_460 = arith.constant 0 : index
    %c0_461 = arith.constant 0 : index
    %c0_462 = arith.constant 0 : index
    %646 = vector.load %arg18[%c0_460, %c0_461, %c0_462] : memref<3x4x32xf32, #tpu.memory_space<vmem>>, vector<3x4x32xf32>
    %c12_463 = arith.constant 12 : index
    %c0_464 = arith.constant 0 : index
    %647 = vector.load %arg14[%c12_463, %c0_464] : memref<32x128xf32, #tpu.memory_space<vmem>>, vector<4x128xf32>
    %648 = vector.extract_strided_slice %647 {offsets = [0, 96], sizes = [4, 32], strides = [1, 1]} : vector<4x128xf32> to vector<4x32xf32>
    %649 = vector.extract_strided_slice %645 {offsets = [0, 0, 96], sizes = [3, 4, 32], strides = [1, 1, 1]} : vector<3x4x128xf32> to vector<3x4x32xf32>
    %650 = vector.shape_cast %648 : vector<4x32xf32> to vector<1x4x32xf32>
    %651 = vector.broadcast %650 : vector<1x4x32xf32> to vector<3x4x32xf32>
    %652 = arith.addf %649, %651 : vector<3x4x32xf32>
    %653 = arith.negf %652 : vector<3x4x32xf32>
    %654 = math.exp %653 : vector<3x4x32xf32>
    %cst_465 = arith.constant 1.000000e+00 : f32
    %655 = vector.broadcast %cst_465 : f32 to vector<3x4x32xf32>
    %656 = arith.addf %655, %654 : vector<3x4x32xf32>
    %657 = arith.divf %655, %656 : vector<3x4x32xf32>
    %658 = arith.mulf %657, %646 : vector<3x4x32xf32>
    %cst_466 = arith.constant dense<0.000000e+00> : vector<4x32xf32>
    %659 = vector.multi_reduction <add>, %658, %cst_466 [0] : vector<3x4x32xf32> to vector<4x32xf32>
    %660 = vector.extract_strided_slice %645 {offsets = [0, 0, 0], sizes = [3, 4, 96], strides = [1, 1, 1]} : vector<3x4x128xf32> to vector<3x4x96xf32>
    %cst_467 = arith.constant dense<0.000000e+00> : vector<4x96xf32>
    %661 = vector.multi_reduction <add>, %660, %cst_467 [0] : vector<3x4x96xf32> to vector<4x96xf32>
    %662 = vector.extract_strided_slice %647 {offsets = [0, 0], sizes = [4, 96], strides = [1, 1]} : vector<4x128xf32> to vector<4x96xf32>
    %663 = arith.addf %662, %661 : vector<4x96xf32>
    %664 = arith.negf %663 : vector<4x96xf32>
    %665 = math.exp %664 : vector<4x96xf32>
    %cst_468 = arith.constant 1.000000e+00 : f32
    %666 = vector.broadcast %cst_468 : f32 to vector<4x96xf32>
    %667 = arith.addf %666, %665 : vector<4x96xf32>
    %668 = arith.divf %666, %667 : vector<4x96xf32>
    %669 = vector.extract_strided_slice %668 {offsets = [0, 0], sizes = [4, 32], strides = [1, 1]} : vector<4x96xf32> to vector<4x32xf32>
    %670 = vector.extract_strided_slice %668 {offsets = [0, 32], sizes = [4, 32], strides = [1, 1]} : vector<4x96xf32> to vector<4x32xf32>
    %671 = vector.extract_strided_slice %668 {offsets = [0, 64], sizes = [4, 32], strides = [1, 1]} : vector<4x96xf32> to vector<4x32xf32>
    %672 = arith.mulf %669, %671 : vector<4x32xf32>
    %673 = arith.addf %672, %659 : vector<4x32xf32>
    %674 = math.tanh %673 : vector<4x32xf32>
    %675 = arith.mulf %670, %674 : vector<4x32xf32>
    %c12_469 = arith.constant 12 : index
    %c0_470 = arith.constant 0 : index
    %676 = vector.load %arg10[%c12_469, %c0_470] : memref<32x32xf32, #tpu.memory_space<vmem>>, vector<4x32xf32>
    tpu.vector_store %arg10[%c12_469, %c0_470], %675 {strides = array<i32>} : memref<32x32xf32, #tpu.memory_space<vmem>>, vector<4x32xf32>,
    %c12_471 = arith.constant 12 : index
    %c0_472 = arith.constant 0 : index
    %677 = vector.load %arg16[%c12_471, %c0_472] : memref<33x32xf32, #tpu.memory_space<vmem>>, vector<4x32xf32>
    tpu.vector_store %arg16[%c12_471, %c0_472], %673 {strides = array<i32>} : memref<33x32xf32, #tpu.memory_space<vmem>>, vector<4x32xf32>,
    %cst_473 = arith.constant dense<0.000000e+00> : vector<4x128xf32>
    %678 = tpu.matmul %675, %0, %cst_473 {dimension_numbers = #tpu.dot_dimension_numbers<[1], [0], [0], [1], [0, 0, 1, 1], [], []>} : vector<4x32xf32>, vector<32x128xf32>, vector<4x128xf32> -> vector<4x128xf32>
    %c12_474 = arith.constant 12 : index
    %c0_475 = arith.constant 0 : index
    %679 = vector.load %arg15[%c12_474, %c0_475] : memref<33x128xf32, #tpu.memory_space<vmem>>, vector<4x128xf32>
    tpu.vector_store %arg15[%c12_474, %c0_475], %678 {strides = array<i32>} : memref<33x128xf32, #tpu.memory_space<vmem>>, vector<4x128xf32>,
    %c48 = arith.constant 48 : index
    %680 = memref.load %arg1[%c48] : memref<96xi32, #tpu.memory_space<smem>>
    %681 = arith.index_cast %680 : i32 to index
    %c0_476 = arith.constant 0 : index
    %682 = vector.load %arg15[%681, %c0_476] : memref<33x128xf32, #tpu.memory_space<vmem>>, vector<1x128xf32>
    %c0_477 = arith.constant 0 : index
    %c0_478 = arith.constant 0 : index
    %c0_479 = arith.constant 0 : index
    %683 = vector.load %arg17[%c0_477, %c0_478, %c0_479] : memref<3x4x128xf32, #tpu.memory_space<vmem>>, vector<1x1x128xf32>
    %684 = vector.shape_cast %683 : vector<1x1x128xf32> to vector<1x128xf32>
    %685 = vector.shape_cast %682 : vector<1x128xf32> to vector<1x1x128xf32>
    tpu.vector_store %arg17[%c0_477, %c0_478, %c0_479], %685 {strides = array<i32>} : memref<3x4x128xf32, #tpu.memory_space<vmem>>, vector<1x1x128xf32>,
    %686 = arith.index_cast %680 : i32 to index
    %c0_480 = arith.constant 0 : index
    %687 = vector.load %arg16[%686, %c0_480] : memref<33x32xf32, #tpu.memory_space<vmem>>, vector<1x32xf32>
    %c0_481 = arith.constant 0 : index
    %c0_482 = arith.constant 0 : index
    %c0_483 = arith.constant 0 : index
    %688 = vector.load %arg18[%c0_481, %c0_482, %c0_483] : memref<3x4x32xf32, #tpu.memory_space<vmem>>, vector<1x1x32xf32>
    %689 = vector.shape_cast %688 : vector<1x1x32xf32> to vector<1x32xf32>
    %690 = vector.shape_cast %687 : vector<1x32xf32> to vector<1x1x32xf32>
    tpu.vector_store %arg18[%c0_481, %c0_482, %c0_483], %690 {strides = array<i32>} : memref<3x4x32xf32, #tpu.memory_space<vmem>>, vector<1x1x32xf32>,
    %c51 = arith.constant 51 : index
    %691 = memref.load %arg1[%c51] : memref<96xi32, #tpu.memory_space<smem>>
    %692 = arith.index_cast %691 : i32 to index
    %c0_484 = arith.constant 0 : index
    %693 = vector.load %arg15[%692, %c0_484] : memref<33x128xf32, #tpu.memory_space<vmem>>, vector<1x128xf32>
    %c0_485 = arith.constant 0 : index
    %c1_486 = arith.constant 1 : index
    %c0_487 = arith.constant 0 : index
    %694 = vector.load %arg17[%c0_485, %c1_486, %c0_487] : memref<3x4x128xf32, #tpu.memory_space<vmem>>, vector<1x1x128xf32>
    %695 = vector.shape_cast %694 : vector<1x1x128xf32> to vector<1x128xf32>
    %696 = vector.shape_cast %693 : vector<1x128xf32> to vector<1x1x128xf32>
    tpu.vector_store %arg17[%c0_485, %c1_486, %c0_487], %696 {strides = array<i32>} : memref<3x4x128xf32, #tpu.memory_space<vmem>>, vector<1x1x128xf32>,
    %697 = arith.index_cast %691 : i32 to index
    %c0_488 = arith.constant 0 : index
    %698 = vector.load %arg16[%697, %c0_488] : memref<33x32xf32, #tpu.memory_space<vmem>>, vector<1x32xf32>
    %c0_489 = arith.constant 0 : index
    %c1_490 = arith.constant 1 : index
    %c0_491 = arith.constant 0 : index
    %699 = vector.load %arg18[%c0_489, %c1_490, %c0_491] : memref<3x4x32xf32, #tpu.memory_space<vmem>>, vector<1x1x32xf32>
    %700 = vector.shape_cast %699 : vector<1x1x32xf32> to vector<1x32xf32>
    %701 = vector.shape_cast %698 : vector<1x32xf32> to vector<1x1x32xf32>
    tpu.vector_store %arg18[%c0_489, %c1_490, %c0_491], %701 {strides = array<i32>} : memref<3x4x32xf32, #tpu.memory_space<vmem>>, vector<1x1x32xf32>,
    %c54 = arith.constant 54 : index
    %702 = memref.load %arg1[%c54] : memref<96xi32, #tpu.memory_space<smem>>
    %703 = arith.index_cast %702 : i32 to index
    %c0_492 = arith.constant 0 : index
    %704 = vector.load %arg15[%703, %c0_492] : memref<33x128xf32, #tpu.memory_space<vmem>>, vector<1x128xf32>
    %c0_493 = arith.constant 0 : index
    %c2_494 = arith.constant 2 : index
    %c0_495 = arith.constant 0 : index
    %705 = vector.load %arg17[%c0_493, %c2_494, %c0_495] : memref<3x4x128xf32, #tpu.memory_space<vmem>>, vector<1x1x128xf32>
    %706 = vector.shape_cast %705 : vector<1x1x128xf32> to vector<1x128xf32>
    %707 = vector.shape_cast %704 : vector<1x128xf32> to vector<1x1x128xf32>
    tpu.vector_store %arg17[%c0_493, %c2_494, %c0_495], %707 {strides = array<i32>} : memref<3x4x128xf32, #tpu.memory_space<vmem>>, vector<1x1x128xf32>,
    %708 = arith.index_cast %702 : i32 to index
    %c0_496 = arith.constant 0 : index
    %709 = vector.load %arg16[%708, %c0_496] : memref<33x32xf32, #tpu.memory_space<vmem>>, vector<1x32xf32>
    %c0_497 = arith.constant 0 : index
    %c2_498 = arith.constant 2 : index
    %c0_499 = arith.constant 0 : index
    %710 = vector.load %arg18[%c0_497, %c2_498, %c0_499] : memref<3x4x32xf32, #tpu.memory_space<vmem>>, vector<1x1x32xf32>
    %711 = vector.shape_cast %710 : vector<1x1x32xf32> to vector<1x32xf32>
    %712 = vector.shape_cast %709 : vector<1x32xf32> to vector<1x1x32xf32>
    tpu.vector_store %arg18[%c0_497, %c2_498, %c0_499], %712 {strides = array<i32>} : memref<3x4x32xf32, #tpu.memory_space<vmem>>, vector<1x1x32xf32>,
    %c57 = arith.constant 57 : index
    %713 = memref.load %arg1[%c57] : memref<96xi32, #tpu.memory_space<smem>>
    %714 = arith.index_cast %713 : i32 to index
    %c0_500 = arith.constant 0 : index
    %715 = vector.load %arg15[%714, %c0_500] : memref<33x128xf32, #tpu.memory_space<vmem>>, vector<1x128xf32>
    %c0_501 = arith.constant 0 : index
    %c3_502 = arith.constant 3 : index
    %c0_503 = arith.constant 0 : index
    %716 = vector.load %arg17[%c0_501, %c3_502, %c0_503] : memref<3x4x128xf32, #tpu.memory_space<vmem>>, vector<1x1x128xf32>
    %717 = vector.shape_cast %716 : vector<1x1x128xf32> to vector<1x128xf32>
    %718 = vector.shape_cast %715 : vector<1x128xf32> to vector<1x1x128xf32>
    tpu.vector_store %arg17[%c0_501, %c3_502, %c0_503], %718 {strides = array<i32>} : memref<3x4x128xf32, #tpu.memory_space<vmem>>, vector<1x1x128xf32>,
    %719 = arith.index_cast %713 : i32 to index
    %c0_504 = arith.constant 0 : index
    %720 = vector.load %arg16[%719, %c0_504] : memref<33x32xf32, #tpu.memory_space<vmem>>, vector<1x32xf32>
    %c0_505 = arith.constant 0 : index
    %c3_506 = arith.constant 3 : index
    %c0_507 = arith.constant 0 : index
    %721 = vector.load %arg18[%c0_505, %c3_506, %c0_507] : memref<3x4x32xf32, #tpu.memory_space<vmem>>, vector<1x1x32xf32>
    %722 = vector.shape_cast %721 : vector<1x1x32xf32> to vector<1x32xf32>
    %723 = vector.shape_cast %720 : vector<1x32xf32> to vector<1x1x32xf32>
    tpu.vector_store %arg18[%c0_505, %c3_506, %c0_507], %723 {strides = array<i32>} : memref<3x4x32xf32, #tpu.memory_space<vmem>>, vector<1x1x32xf32>,
    %c49 = arith.constant 49 : index
    %724 = memref.load %arg1[%c49] : memref<96xi32, #tpu.memory_space<smem>>
    %725 = arith.index_cast %724 : i32 to index
    %c0_508 = arith.constant 0 : index
    %726 = vector.load %arg15[%725, %c0_508] : memref<33x128xf32, #tpu.memory_space<vmem>>, vector<1x128xf32>
    %c1_509 = arith.constant 1 : index
    %c0_510 = arith.constant 0 : index
    %c0_511 = arith.constant 0 : index
    %727 = vector.load %arg17[%c1_509, %c0_510, %c0_511] : memref<3x4x128xf32, #tpu.memory_space<vmem>>, vector<1x1x128xf32>
    %728 = vector.shape_cast %727 : vector<1x1x128xf32> to vector<1x128xf32>
    %729 = vector.shape_cast %726 : vector<1x128xf32> to vector<1x1x128xf32>
    tpu.vector_store %arg17[%c1_509, %c0_510, %c0_511], %729 {strides = array<i32>} : memref<3x4x128xf32, #tpu.memory_space<vmem>>, vector<1x1x128xf32>,
    %730 = arith.index_cast %724 : i32 to index
    %c0_512 = arith.constant 0 : index
    %731 = vector.load %arg16[%730, %c0_512] : memref<33x32xf32, #tpu.memory_space<vmem>>, vector<1x32xf32>
    %c1_513 = arith.constant 1 : index
    %c0_514 = arith.constant 0 : index
    %c0_515 = arith.constant 0 : index
    %732 = vector.load %arg18[%c1_513, %c0_514, %c0_515] : memref<3x4x32xf32, #tpu.memory_space<vmem>>, vector<1x1x32xf32>
    %733 = vector.shape_cast %732 : vector<1x1x32xf32> to vector<1x32xf32>
    %734 = vector.shape_cast %731 : vector<1x32xf32> to vector<1x1x32xf32>
    tpu.vector_store %arg18[%c1_513, %c0_514, %c0_515], %734 {strides = array<i32>} : memref<3x4x32xf32, #tpu.memory_space<vmem>>, vector<1x1x32xf32>,
    %c52 = arith.constant 52 : index
    %735 = memref.load %arg1[%c52] : memref<96xi32, #tpu.memory_space<smem>>
    %736 = arith.index_cast %735 : i32 to index
    %c0_516 = arith.constant 0 : index
    %737 = vector.load %arg15[%736, %c0_516] : memref<33x128xf32, #tpu.memory_space<vmem>>, vector<1x128xf32>
    %c1_517 = arith.constant 1 : index
    %c1_518 = arith.constant 1 : index
    %c0_519 = arith.constant 0 : index
    %738 = vector.load %arg17[%c1_517, %c1_518, %c0_519] : memref<3x4x128xf32, #tpu.memory_space<vmem>>, vector<1x1x128xf32>
    %739 = vector.shape_cast %738 : vector<1x1x128xf32> to vector<1x128xf32>
    %740 = vector.shape_cast %737 : vector<1x128xf32> to vector<1x1x128xf32>
    tpu.vector_store %arg17[%c1_517, %c1_518, %c0_519], %740 {strides = array<i32>} : memref<3x4x128xf32, #tpu.memory_space<vmem>>, vector<1x1x128xf32>,
    %741 = arith.index_cast %735 : i32 to index
    %c0_520 = arith.constant 0 : index
    %742 = vector.load %arg16[%741, %c0_520] : memref<33x32xf32, #tpu.memory_space<vmem>>, vector<1x32xf32>
    %c1_521 = arith.constant 1 : index
    %c1_522 = arith.constant 1 : index
    %c0_523 = arith.constant 0 : index
    %743 = vector.load %arg18[%c1_521, %c1_522, %c0_523] : memref<3x4x32xf32, #tpu.memory_space<vmem>>, vector<1x1x32xf32>
    %744 = vector.shape_cast %743 : vector<1x1x32xf32> to vector<1x32xf32>
    %745 = vector.shape_cast %742 : vector<1x32xf32> to vector<1x1x32xf32>
    tpu.vector_store %arg18[%c1_521, %c1_522, %c0_523], %745 {strides = array<i32>} : memref<3x4x32xf32, #tpu.memory_space<vmem>>, vector<1x1x32xf32>,
    %c55 = arith.constant 55 : index
    %746 = memref.load %arg1[%c55] : memref<96xi32, #tpu.memory_space<smem>>
    %747 = arith.index_cast %746 : i32 to index
    %c0_524 = arith.constant 0 : index
    %748 = vector.load %arg15[%747, %c0_524] : memref<33x128xf32, #tpu.memory_space<vmem>>, vector<1x128xf32>
    %c1_525 = arith.constant 1 : index
    %c2_526 = arith.constant 2 : index
    %c0_527 = arith.constant 0 : index
    %749 = vector.load %arg17[%c1_525, %c2_526, %c0_527] : memref<3x4x128xf32, #tpu.memory_space<vmem>>, vector<1x1x128xf32>
    %750 = vector.shape_cast %749 : vector<1x1x128xf32> to vector<1x128xf32>
    %751 = vector.shape_cast %748 : vector<1x128xf32> to vector<1x1x128xf32>
    tpu.vector_store %arg17[%c1_525, %c2_526, %c0_527], %751 {strides = array<i32>} : memref<3x4x128xf32, #tpu.memory_space<vmem>>, vector<1x1x128xf32>,
    %752 = arith.index_cast %746 : i32 to index
    %c0_528 = arith.constant 0 : index
    %753 = vector.load %arg16[%752, %c0_528] : memref<33x32xf32, #tpu.memory_space<vmem>>, vector<1x32xf32>
    %c1_529 = arith.constant 1 : index
    %c2_530 = arith.constant 2 : index
    %c0_531 = arith.constant 0 : index
    %754 = vector.load %arg18[%c1_529, %c2_530, %c0_531] : memref<3x4x32xf32, #tpu.memory_space<vmem>>, vector<1x1x32xf32>
    %755 = vector.shape_cast %754 : vector<1x1x32xf32> to vector<1x32xf32>
    %756 = vector.shape_cast %753 : vector<1x32xf32> to vector<1x1x32xf32>
    tpu.vector_store %arg18[%c1_529, %c2_530, %c0_531], %756 {strides = array<i32>} : memref<3x4x32xf32, #tpu.memory_space<vmem>>, vector<1x1x32xf32>,
    %c58 = arith.constant 58 : index
    %757 = memref.load %arg1[%c58] : memref<96xi32, #tpu.memory_space<smem>>
    %758 = arith.index_cast %757 : i32 to index
    %c0_532 = arith.constant 0 : index
    %759 = vector.load %arg15[%758, %c0_532] : memref<33x128xf32, #tpu.memory_space<vmem>>, vector<1x128xf32>
    %c1_533 = arith.constant 1 : index
    %c3_534 = arith.constant 3 : index
    %c0_535 = arith.constant 0 : index
    %760 = vector.load %arg17[%c1_533, %c3_534, %c0_535] : memref<3x4x128xf32, #tpu.memory_space<vmem>>, vector<1x1x128xf32>
    %761 = vector.shape_cast %760 : vector<1x1x128xf32> to vector<1x128xf32>
    %762 = vector.shape_cast %759 : vector<1x128xf32> to vector<1x1x128xf32>
    tpu.vector_store %arg17[%c1_533, %c3_534, %c0_535], %762 {strides = array<i32>} : memref<3x4x128xf32, #tpu.memory_space<vmem>>, vector<1x1x128xf32>,
    %763 = arith.index_cast %757 : i32 to index
    %c0_536 = arith.constant 0 : index
    %764 = vector.load %arg16[%763, %c0_536] : memref<33x32xf32, #tpu.memory_space<vmem>>, vector<1x32xf32>
    %c1_537 = arith.constant 1 : index
    %c3_538 = arith.constant 3 : index
    %c0_539 = arith.constant 0 : index
    %765 = vector.load %arg18[%c1_537, %c3_538, %c0_539] : memref<3x4x32xf32, #tpu.memory_space<vmem>>, vector<1x1x32xf32>
    %766 = vector.shape_cast %765 : vector<1x1x32xf32> to vector<1x32xf32>
    %767 = vector.shape_cast %764 : vector<1x32xf32> to vector<1x1x32xf32>
    tpu.vector_store %arg18[%c1_537, %c3_538, %c0_539], %767 {strides = array<i32>} : memref<3x4x32xf32, #tpu.memory_space<vmem>>, vector<1x1x32xf32>,
    %c50 = arith.constant 50 : index
    %768 = memref.load %arg1[%c50] : memref<96xi32, #tpu.memory_space<smem>>
    %769 = arith.index_cast %768 : i32 to index
    %c0_540 = arith.constant 0 : index
    %770 = vector.load %arg15[%769, %c0_540] : memref<33x128xf32, #tpu.memory_space<vmem>>, vector<1x128xf32>
    %c2_541 = arith.constant 2 : index
    %c0_542 = arith.constant 0 : index
    %c0_543 = arith.constant 0 : index
    %771 = vector.load %arg17[%c2_541, %c0_542, %c0_543] : memref<3x4x128xf32, #tpu.memory_space<vmem>>, vector<1x1x128xf32>
    %772 = vector.shape_cast %771 : vector<1x1x128xf32> to vector<1x128xf32>
    %773 = vector.shape_cast %770 : vector<1x128xf32> to vector<1x1x128xf32>
    tpu.vector_store %arg17[%c2_541, %c0_542, %c0_543], %773 {strides = array<i32>} : memref<3x4x128xf32, #tpu.memory_space<vmem>>, vector<1x1x128xf32>,
    %774 = arith.index_cast %768 : i32 to index
    %c0_544 = arith.constant 0 : index
    %775 = vector.load %arg16[%774, %c0_544] : memref<33x32xf32, #tpu.memory_space<vmem>>, vector<1x32xf32>
    %c2_545 = arith.constant 2 : index
    %c0_546 = arith.constant 0 : index
    %c0_547 = arith.constant 0 : index
    %776 = vector.load %arg18[%c2_545, %c0_546, %c0_547] : memref<3x4x32xf32, #tpu.memory_space<vmem>>, vector<1x1x32xf32>
    %777 = vector.shape_cast %776 : vector<1x1x32xf32> to vector<1x32xf32>
    %778 = vector.shape_cast %775 : vector<1x32xf32> to vector<1x1x32xf32>
    tpu.vector_store %arg18[%c2_545, %c0_546, %c0_547], %778 {strides = array<i32>} : memref<3x4x32xf32, #tpu.memory_space<vmem>>, vector<1x1x32xf32>,
    %c53 = arith.constant 53 : index
    %779 = memref.load %arg1[%c53] : memref<96xi32, #tpu.memory_space<smem>>
    %780 = arith.index_cast %779 : i32 to index
    %c0_548 = arith.constant 0 : index
    %781 = vector.load %arg15[%780, %c0_548] : memref<33x128xf32, #tpu.memory_space<vmem>>, vector<1x128xf32>
    %c2_549 = arith.constant 2 : index
    %c1_550 = arith.constant 1 : index
    %c0_551 = arith.constant 0 : index
    %782 = vector.load %arg17[%c2_549, %c1_550, %c0_551] : memref<3x4x128xf32, #tpu.memory_space<vmem>>, vector<1x1x128xf32>
    %783 = vector.shape_cast %782 : vector<1x1x128xf32> to vector<1x128xf32>
    %784 = vector.shape_cast %781 : vector<1x128xf32> to vector<1x1x128xf32>
    tpu.vector_store %arg17[%c2_549, %c1_550, %c0_551], %784 {strides = array<i32>} : memref<3x4x128xf32, #tpu.memory_space<vmem>>, vector<1x1x128xf32>,
    %785 = arith.index_cast %779 : i32 to index
    %c0_552 = arith.constant 0 : index
    %786 = vector.load %arg16[%785, %c0_552] : memref<33x32xf32, #tpu.memory_space<vmem>>, vector<1x32xf32>
    %c2_553 = arith.constant 2 : index
    %c1_554 = arith.constant 1 : index
    %c0_555 = arith.constant 0 : index
    %787 = vector.load %arg18[%c2_553, %c1_554, %c0_555] : memref<3x4x32xf32, #tpu.memory_space<vmem>>, vector<1x1x32xf32>
    %788 = vector.shape_cast %787 : vector<1x1x32xf32> to vector<1x32xf32>
    %789 = vector.shape_cast %786 : vector<1x32xf32> to vector<1x1x32xf32>
    tpu.vector_store %arg18[%c2_553, %c1_554, %c0_555], %789 {strides = array<i32>} : memref<3x4x32xf32, #tpu.memory_space<vmem>>, vector<1x1x32xf32>,
    %c56 = arith.constant 56 : index
    %790 = memref.load %arg1[%c56] : memref<96xi32, #tpu.memory_space<smem>>
    %791 = arith.index_cast %790 : i32 to index
    %c0_556 = arith.constant 0 : index
    %792 = vector.load %arg15[%791, %c0_556] : memref<33x128xf32, #tpu.memory_space<vmem>>, vector<1x128xf32>
    %c2_557 = arith.constant 2 : index
    %c2_558 = arith.constant 2 : index
    %c0_559 = arith.constant 0 : index
    %793 = vector.load %arg17[%c2_557, %c2_558, %c0_559] : memref<3x4x128xf32, #tpu.memory_space<vmem>>, vector<1x1x128xf32>
    %794 = vector.shape_cast %793 : vector<1x1x128xf32> to vector<1x128xf32>
    %795 = vector.shape_cast %792 : vector<1x128xf32> to vector<1x1x128xf32>
    tpu.vector_store %arg17[%c2_557, %c2_558, %c0_559], %795 {strides = array<i32>} : memref<3x4x128xf32, #tpu.memory_space<vmem>>, vector<1x1x128xf32>,
    %796 = arith.index_cast %790 : i32 to index
    %c0_560 = arith.constant 0 : index
    %797 = vector.load %arg16[%796, %c0_560] : memref<33x32xf32, #tpu.memory_space<vmem>>, vector<1x32xf32>
    %c2_561 = arith.constant 2 : index
    %c2_562 = arith.constant 2 : index
    %c0_563 = arith.constant 0 : index
    %798 = vector.load %arg18[%c2_561, %c2_562, %c0_563] : memref<3x4x32xf32, #tpu.memory_space<vmem>>, vector<1x1x32xf32>
    %799 = vector.shape_cast %798 : vector<1x1x32xf32> to vector<1x32xf32>
    %800 = vector.shape_cast %797 : vector<1x32xf32> to vector<1x1x32xf32>
    tpu.vector_store %arg18[%c2_561, %c2_562, %c0_563], %800 {strides = array<i32>} : memref<3x4x32xf32, #tpu.memory_space<vmem>>, vector<1x1x32xf32>,
    %c59 = arith.constant 59 : index
    %801 = memref.load %arg1[%c59] : memref<96xi32, #tpu.memory_space<smem>>
    %802 = arith.index_cast %801 : i32 to index
    %c0_564 = arith.constant 0 : index
    %803 = vector.load %arg15[%802, %c0_564] : memref<33x128xf32, #tpu.memory_space<vmem>>, vector<1x128xf32>
    %c2_565 = arith.constant 2 : index
    %c3_566 = arith.constant 3 : index
    %c0_567 = arith.constant 0 : index
    %804 = vector.load %arg17[%c2_565, %c3_566, %c0_567] : memref<3x4x128xf32, #tpu.memory_space<vmem>>, vector<1x1x128xf32>
    %805 = vector.shape_cast %804 : vector<1x1x128xf32> to vector<1x128xf32>
    %806 = vector.shape_cast %803 : vector<1x128xf32> to vector<1x1x128xf32>
    tpu.vector_store %arg17[%c2_565, %c3_566, %c0_567], %806 {strides = array<i32>} : memref<3x4x128xf32, #tpu.memory_space<vmem>>, vector<1x1x128xf32>,
    %807 = arith.index_cast %801 : i32 to index
    %c0_568 = arith.constant 0 : index
    %808 = vector.load %arg16[%807, %c0_568] : memref<33x32xf32, #tpu.memory_space<vmem>>, vector<1x32xf32>
    %c2_569 = arith.constant 2 : index
    %c3_570 = arith.constant 3 : index
    %c0_571 = arith.constant 0 : index
    %809 = vector.load %arg18[%c2_569, %c3_570, %c0_571] : memref<3x4x32xf32, #tpu.memory_space<vmem>>, vector<1x1x32xf32>
    %810 = vector.shape_cast %809 : vector<1x1x32xf32> to vector<1x32xf32>
    %811 = vector.shape_cast %808 : vector<1x32xf32> to vector<1x1x32xf32>
    tpu.vector_store %arg18[%c2_569, %c3_570, %c0_571], %811 {strides = array<i32>} : memref<3x4x32xf32, #tpu.memory_space<vmem>>, vector<1x1x32xf32>,
    %c0_572 = arith.constant 0 : index
    %c0_573 = arith.constant 0 : index
    %c0_574 = arith.constant 0 : index
    %812 = vector.load %arg17[%c0_572, %c0_573, %c0_574] : memref<3x4x128xf32, #tpu.memory_space<vmem>>, vector<3x4x128xf32>
    %c0_575 = arith.constant 0 : index
    %c0_576 = arith.constant 0 : index
    %c0_577 = arith.constant 0 : index
    %813 = vector.load %arg18[%c0_575, %c0_576, %c0_577] : memref<3x4x32xf32, #tpu.memory_space<vmem>>, vector<3x4x32xf32>
    %c16_578 = arith.constant 16 : index
    %c0_579 = arith.constant 0 : index
    %814 = vector.load %arg14[%c16_578, %c0_579] : memref<32x128xf32, #tpu.memory_space<vmem>>, vector<4x128xf32>
    %815 = vector.extract_strided_slice %814 {offsets = [0, 96], sizes = [4, 32], strides = [1, 1]} : vector<4x128xf32> to vector<4x32xf32>
    %816 = vector.extract_strided_slice %812 {offsets = [0, 0, 96], sizes = [3, 4, 32], strides = [1, 1, 1]} : vector<3x4x128xf32> to vector<3x4x32xf32>
    %817 = vector.shape_cast %815 : vector<4x32xf32> to vector<1x4x32xf32>
    %818 = vector.broadcast %817 : vector<1x4x32xf32> to vector<3x4x32xf32>
    %819 = arith.addf %816, %818 : vector<3x4x32xf32>
    %820 = arith.negf %819 : vector<3x4x32xf32>
    %821 = math.exp %820 : vector<3x4x32xf32>
    %cst_580 = arith.constant 1.000000e+00 : f32
    %822 = vector.broadcast %cst_580 : f32 to vector<3x4x32xf32>
    %823 = arith.addf %822, %821 : vector<3x4x32xf32>
    %824 = arith.divf %822, %823 : vector<3x4x32xf32>
    %825 = arith.mulf %824, %813 : vector<3x4x32xf32>
    %cst_581 = arith.constant dense<0.000000e+00> : vector<4x32xf32>
    %826 = vector.multi_reduction <add>, %825, %cst_581 [0] : vector<3x4x32xf32> to vector<4x32xf32>
    %827 = vector.extract_strided_slice %812 {offsets = [0, 0, 0], sizes = [3, 4, 96], strides = [1, 1, 1]} : vector<3x4x128xf32> to vector<3x4x96xf32>
    %cst_582 = arith.constant dense<0.000000e+00> : vector<4x96xf32>
    %828 = vector.multi_reduction <add>, %827, %cst_582 [0] : vector<3x4x96xf32> to vector<4x96xf32>
    %829 = vector.extract_strided_slice %814 {offsets = [0, 0], sizes = [4, 96], strides = [1, 1]} : vector<4x128xf32> to vector<4x96xf32>
    %830 = arith.addf %829, %828 : vector<4x96xf32>
    %831 = arith.negf %830 : vector<4x96xf32>
    %832 = math.exp %831 : vector<4x96xf32>
    %cst_583 = arith.constant 1.000000e+00 : f32
    %833 = vector.broadcast %cst_583 : f32 to vector<4x96xf32>
    %834 = arith.addf %833, %832 : vector<4x96xf32>
    %835 = arith.divf %833, %834 : vector<4x96xf32>
    %836 = vector.extract_strided_slice %835 {offsets = [0, 0], sizes = [4, 32], strides = [1, 1]} : vector<4x96xf32> to vector<4x32xf32>
    %837 = vector.extract_strided_slice %835 {offsets = [0, 32], sizes = [4, 32], strides = [1, 1]} : vector<4x96xf32> to vector<4x32xf32>
    %838 = vector.extract_strided_slice %835 {offsets = [0, 64], sizes = [4, 32], strides = [1, 1]} : vector<4x96xf32> to vector<4x32xf32>
    %839 = arith.mulf %836, %838 : vector<4x32xf32>
    %840 = arith.addf %839, %826 : vector<4x32xf32>
    %841 = math.tanh %840 : vector<4x32xf32>
    %842 = arith.mulf %837, %841 : vector<4x32xf32>
    %c16_584 = arith.constant 16 : index
    %c0_585 = arith.constant 0 : index
    %843 = vector.load %arg10[%c16_584, %c0_585] : memref<32x32xf32, #tpu.memory_space<vmem>>, vector<4x32xf32>
    tpu.vector_store %arg10[%c16_584, %c0_585], %842 {strides = array<i32>} : memref<32x32xf32, #tpu.memory_space<vmem>>, vector<4x32xf32>,
    %c16_586 = arith.constant 16 : index
    %c0_587 = arith.constant 0 : index
    %844 = vector.load %arg16[%c16_586, %c0_587] : memref<33x32xf32, #tpu.memory_space<vmem>>, vector<4x32xf32>
    tpu.vector_store %arg16[%c16_586, %c0_587], %840 {strides = array<i32>} : memref<33x32xf32, #tpu.memory_space<vmem>>, vector<4x32xf32>,
    %cst_588 = arith.constant dense<0.000000e+00> : vector<4x128xf32>
    %845 = tpu.matmul %842, %0, %cst_588 {dimension_numbers = #tpu.dot_dimension_numbers<[1], [0], [0], [1], [0, 0, 1, 1], [], []>} : vector<4x32xf32>, vector<32x128xf32>, vector<4x128xf32> -> vector<4x128xf32>
    %c16_589 = arith.constant 16 : index
    %c0_590 = arith.constant 0 : index
    %846 = vector.load %arg15[%c16_589, %c0_590] : memref<33x128xf32, #tpu.memory_space<vmem>>, vector<4x128xf32>
    tpu.vector_store %arg15[%c16_589, %c0_590], %845 {strides = array<i32>} : memref<33x128xf32, #tpu.memory_space<vmem>>, vector<4x128xf32>,
    %c60 = arith.constant 60 : index
    %847 = memref.load %arg1[%c60] : memref<96xi32, #tpu.memory_space<smem>>
    %848 = arith.index_cast %847 : i32 to index
    %c0_591 = arith.constant 0 : index
    %849 = vector.load %arg15[%848, %c0_591] : memref<33x128xf32, #tpu.memory_space<vmem>>, vector<1x128xf32>
    %c0_592 = arith.constant 0 : index
    %c0_593 = arith.constant 0 : index
    %c0_594 = arith.constant 0 : index
    %850 = vector.load %arg17[%c0_592, %c0_593, %c0_594] : memref<3x4x128xf32, #tpu.memory_space<vmem>>, vector<1x1x128xf32>
    %851 = vector.shape_cast %850 : vector<1x1x128xf32> to vector<1x128xf32>
    %852 = vector.shape_cast %849 : vector<1x128xf32> to vector<1x1x128xf32>
    tpu.vector_store %arg17[%c0_592, %c0_593, %c0_594], %852 {strides = array<i32>} : memref<3x4x128xf32, #tpu.memory_space<vmem>>, vector<1x1x128xf32>,
    %853 = arith.index_cast %847 : i32 to index
    %c0_595 = arith.constant 0 : index
    %854 = vector.load %arg16[%853, %c0_595] : memref<33x32xf32, #tpu.memory_space<vmem>>, vector<1x32xf32>
    %c0_596 = arith.constant 0 : index
    %c0_597 = arith.constant 0 : index
    %c0_598 = arith.constant 0 : index
    %855 = vector.load %arg18[%c0_596, %c0_597, %c0_598] : memref<3x4x32xf32, #tpu.memory_space<vmem>>, vector<1x1x32xf32>
    %856 = vector.shape_cast %855 : vector<1x1x32xf32> to vector<1x32xf32>
    %857 = vector.shape_cast %854 : vector<1x32xf32> to vector<1x1x32xf32>
    tpu.vector_store %arg18[%c0_596, %c0_597, %c0_598], %857 {strides = array<i32>} : memref<3x4x32xf32, #tpu.memory_space<vmem>>, vector<1x1x32xf32>,
    %c63 = arith.constant 63 : index
    %858 = memref.load %arg1[%c63] : memref<96xi32, #tpu.memory_space<smem>>
    %859 = arith.index_cast %858 : i32 to index
    %c0_599 = arith.constant 0 : index
    %860 = vector.load %arg15[%859, %c0_599] : memref<33x128xf32, #tpu.memory_space<vmem>>, vector<1x128xf32>
    %c0_600 = arith.constant 0 : index
    %c1_601 = arith.constant 1 : index
    %c0_602 = arith.constant 0 : index
    %861 = vector.load %arg17[%c0_600, %c1_601, %c0_602] : memref<3x4x128xf32, #tpu.memory_space<vmem>>, vector<1x1x128xf32>
    %862 = vector.shape_cast %861 : vector<1x1x128xf32> to vector<1x128xf32>
    %863 = vector.shape_cast %860 : vector<1x128xf32> to vector<1x1x128xf32>
    tpu.vector_store %arg17[%c0_600, %c1_601, %c0_602], %863 {strides = array<i32>} : memref<3x4x128xf32, #tpu.memory_space<vmem>>, vector<1x1x128xf32>,
    %864 = arith.index_cast %858 : i32 to index
    %c0_603 = arith.constant 0 : index
    %865 = vector.load %arg16[%864, %c0_603] : memref<33x32xf32, #tpu.memory_space<vmem>>, vector<1x32xf32>
    %c0_604 = arith.constant 0 : index
    %c1_605 = arith.constant 1 : index
    %c0_606 = arith.constant 0 : index
    %866 = vector.load %arg18[%c0_604, %c1_605, %c0_606] : memref<3x4x32xf32, #tpu.memory_space<vmem>>, vector<1x1x32xf32>
    %867 = vector.shape_cast %866 : vector<1x1x32xf32> to vector<1x32xf32>
    %868 = vector.shape_cast %865 : vector<1x32xf32> to vector<1x1x32xf32>
    tpu.vector_store %arg18[%c0_604, %c1_605, %c0_606], %868 {strides = array<i32>} : memref<3x4x32xf32, #tpu.memory_space<vmem>>, vector<1x1x32xf32>,
    %c66 = arith.constant 66 : index
    %869 = memref.load %arg1[%c66] : memref<96xi32, #tpu.memory_space<smem>>
    %870 = arith.index_cast %869 : i32 to index
    %c0_607 = arith.constant 0 : index
    %871 = vector.load %arg15[%870, %c0_607] : memref<33x128xf32, #tpu.memory_space<vmem>>, vector<1x128xf32>
    %c0_608 = arith.constant 0 : index
    %c2_609 = arith.constant 2 : index
    %c0_610 = arith.constant 0 : index
    %872 = vector.load %arg17[%c0_608, %c2_609, %c0_610] : memref<3x4x128xf32, #tpu.memory_space<vmem>>, vector<1x1x128xf32>
    %873 = vector.shape_cast %872 : vector<1x1x128xf32> to vector<1x128xf32>
    %874 = vector.shape_cast %871 : vector<1x128xf32> to vector<1x1x128xf32>
    tpu.vector_store %arg17[%c0_608, %c2_609, %c0_610], %874 {strides = array<i32>} : memref<3x4x128xf32, #tpu.memory_space<vmem>>, vector<1x1x128xf32>,
    %875 = arith.index_cast %869 : i32 to index
    %c0_611 = arith.constant 0 : index
    %876 = vector.load %arg16[%875, %c0_611] : memref<33x32xf32, #tpu.memory_space<vmem>>, vector<1x32xf32>
    %c0_612 = arith.constant 0 : index
    %c2_613 = arith.constant 2 : index
    %c0_614 = arith.constant 0 : index
    %877 = vector.load %arg18[%c0_612, %c2_613, %c0_614] : memref<3x4x32xf32, #tpu.memory_space<vmem>>, vector<1x1x32xf32>
    %878 = vector.shape_cast %877 : vector<1x1x32xf32> to vector<1x32xf32>
    %879 = vector.shape_cast %876 : vector<1x32xf32> to vector<1x1x32xf32>
    tpu.vector_store %arg18[%c0_612, %c2_613, %c0_614], %879 {strides = array<i32>} : memref<3x4x32xf32, #tpu.memory_space<vmem>>, vector<1x1x32xf32>,
    %c69 = arith.constant 69 : index
    %880 = memref.load %arg1[%c69] : memref<96xi32, #tpu.memory_space<smem>>
    %881 = arith.index_cast %880 : i32 to index
    %c0_615 = arith.constant 0 : index
    %882 = vector.load %arg15[%881, %c0_615] : memref<33x128xf32, #tpu.memory_space<vmem>>, vector<1x128xf32>
    %c0_616 = arith.constant 0 : index
    %c3_617 = arith.constant 3 : index
    %c0_618 = arith.constant 0 : index
    %883 = vector.load %arg17[%c0_616, %c3_617, %c0_618] : memref<3x4x128xf32, #tpu.memory_space<vmem>>, vector<1x1x128xf32>
    %884 = vector.shape_cast %883 : vector<1x1x128xf32> to vector<1x128xf32>
    %885 = vector.shape_cast %882 : vector<1x128xf32> to vector<1x1x128xf32>
    tpu.vector_store %arg17[%c0_616, %c3_617, %c0_618], %885 {strides = array<i32>} : memref<3x4x128xf32, #tpu.memory_space<vmem>>, vector<1x1x128xf32>,
    %886 = arith.index_cast %880 : i32 to index
    %c0_619 = arith.constant 0 : index
    %887 = vector.load %arg16[%886, %c0_619] : memref<33x32xf32, #tpu.memory_space<vmem>>, vector<1x32xf32>
    %c0_620 = arith.constant 0 : index
    %c3_621 = arith.constant 3 : index
    %c0_622 = arith.constant 0 : index
    %888 = vector.load %arg18[%c0_620, %c3_621, %c0_622] : memref<3x4x32xf32, #tpu.memory_space<vmem>>, vector<1x1x32xf32>
    %889 = vector.shape_cast %888 : vector<1x1x32xf32> to vector<1x32xf32>
    %890 = vector.shape_cast %887 : vector<1x32xf32> to vector<1x1x32xf32>
    tpu.vector_store %arg18[%c0_620, %c3_621, %c0_622], %890 {strides = array<i32>} : memref<3x4x32xf32, #tpu.memory_space<vmem>>, vector<1x1x32xf32>,
    %c61 = arith.constant 61 : index
    %891 = memref.load %arg1[%c61] : memref<96xi32, #tpu.memory_space<smem>>
    %892 = arith.index_cast %891 : i32 to index
    %c0_623 = arith.constant 0 : index
    %893 = vector.load %arg15[%892, %c0_623] : memref<33x128xf32, #tpu.memory_space<vmem>>, vector<1x128xf32>
    %c1_624 = arith.constant 1 : index
    %c0_625 = arith.constant 0 : index
    %c0_626 = arith.constant 0 : index
    %894 = vector.load %arg17[%c1_624, %c0_625, %c0_626] : memref<3x4x128xf32, #tpu.memory_space<vmem>>, vector<1x1x128xf32>
    %895 = vector.shape_cast %894 : vector<1x1x128xf32> to vector<1x128xf32>
    %896 = vector.shape_cast %893 : vector<1x128xf32> to vector<1x1x128xf32>
    tpu.vector_store %arg17[%c1_624, %c0_625, %c0_626], %896 {strides = array<i32>} : memref<3x4x128xf32, #tpu.memory_space<vmem>>, vector<1x1x128xf32>,
    %897 = arith.index_cast %891 : i32 to index
    %c0_627 = arith.constant 0 : index
    %898 = vector.load %arg16[%897, %c0_627] : memref<33x32xf32, #tpu.memory_space<vmem>>, vector<1x32xf32>
    %c1_628 = arith.constant 1 : index
    %c0_629 = arith.constant 0 : index
    %c0_630 = arith.constant 0 : index
    %899 = vector.load %arg18[%c1_628, %c0_629, %c0_630] : memref<3x4x32xf32, #tpu.memory_space<vmem>>, vector<1x1x32xf32>
    %900 = vector.shape_cast %899 : vector<1x1x32xf32> to vector<1x32xf32>
    %901 = vector.shape_cast %898 : vector<1x32xf32> to vector<1x1x32xf32>
    tpu.vector_store %arg18[%c1_628, %c0_629, %c0_630], %901 {strides = array<i32>} : memref<3x4x32xf32, #tpu.memory_space<vmem>>, vector<1x1x32xf32>,
    %c64 = arith.constant 64 : index
    %902 = memref.load %arg1[%c64] : memref<96xi32, #tpu.memory_space<smem>>
    %903 = arith.index_cast %902 : i32 to index
    %c0_631 = arith.constant 0 : index
    %904 = vector.load %arg15[%903, %c0_631] : memref<33x128xf32, #tpu.memory_space<vmem>>, vector<1x128xf32>
    %c1_632 = arith.constant 1 : index
    %c1_633 = arith.constant 1 : index
    %c0_634 = arith.constant 0 : index
    %905 = vector.load %arg17[%c1_632, %c1_633, %c0_634] : memref<3x4x128xf32, #tpu.memory_space<vmem>>, vector<1x1x128xf32>
    %906 = vector.shape_cast %905 : vector<1x1x128xf32> to vector<1x128xf32>
    %907 = vector.shape_cast %904 : vector<1x128xf32> to vector<1x1x128xf32>
    tpu.vector_store %arg17[%c1_632, %c1_633, %c0_634], %907 {strides = array<i32>} : memref<3x4x128xf32, #tpu.memory_space<vmem>>, vector<1x1x128xf32>,
    %908 = arith.index_cast %902 : i32 to index
    %c0_635 = arith.constant 0 : index
    %909 = vector.load %arg16[%908, %c0_635] : memref<33x32xf32, #tpu.memory_space<vmem>>, vector<1x32xf32>
    %c1_636 = arith.constant 1 : index
    %c1_637 = arith.constant 1 : index
    %c0_638 = arith.constant 0 : index
    %910 = vector.load %arg18[%c1_636, %c1_637, %c0_638] : memref<3x4x32xf32, #tpu.memory_space<vmem>>, vector<1x1x32xf32>
    %911 = vector.shape_cast %910 : vector<1x1x32xf32> to vector<1x32xf32>
    %912 = vector.shape_cast %909 : vector<1x32xf32> to vector<1x1x32xf32>
    tpu.vector_store %arg18[%c1_636, %c1_637, %c0_638], %912 {strides = array<i32>} : memref<3x4x32xf32, #tpu.memory_space<vmem>>, vector<1x1x32xf32>,
    %c67 = arith.constant 67 : index
    %913 = memref.load %arg1[%c67] : memref<96xi32, #tpu.memory_space<smem>>
    %914 = arith.index_cast %913 : i32 to index
    %c0_639 = arith.constant 0 : index
    %915 = vector.load %arg15[%914, %c0_639] : memref<33x128xf32, #tpu.memory_space<vmem>>, vector<1x128xf32>
    %c1_640 = arith.constant 1 : index
    %c2_641 = arith.constant 2 : index
    %c0_642 = arith.constant 0 : index
    %916 = vector.load %arg17[%c1_640, %c2_641, %c0_642] : memref<3x4x128xf32, #tpu.memory_space<vmem>>, vector<1x1x128xf32>
    %917 = vector.shape_cast %916 : vector<1x1x128xf32> to vector<1x128xf32>
    %918 = vector.shape_cast %915 : vector<1x128xf32> to vector<1x1x128xf32>
    tpu.vector_store %arg17[%c1_640, %c2_641, %c0_642], %918 {strides = array<i32>} : memref<3x4x128xf32, #tpu.memory_space<vmem>>, vector<1x1x128xf32>,
    %919 = arith.index_cast %913 : i32 to index
    %c0_643 = arith.constant 0 : index
    %920 = vector.load %arg16[%919, %c0_643] : memref<33x32xf32, #tpu.memory_space<vmem>>, vector<1x32xf32>
    %c1_644 = arith.constant 1 : index
    %c2_645 = arith.constant 2 : index
    %c0_646 = arith.constant 0 : index
    %921 = vector.load %arg18[%c1_644, %c2_645, %c0_646] : memref<3x4x32xf32, #tpu.memory_space<vmem>>, vector<1x1x32xf32>
    %922 = vector.shape_cast %921 : vector<1x1x32xf32> to vector<1x32xf32>
    %923 = vector.shape_cast %920 : vector<1x32xf32> to vector<1x1x32xf32>
    tpu.vector_store %arg18[%c1_644, %c2_645, %c0_646], %923 {strides = array<i32>} : memref<3x4x32xf32, #tpu.memory_space<vmem>>, vector<1x1x32xf32>,
    %c70 = arith.constant 70 : index
    %924 = memref.load %arg1[%c70] : memref<96xi32, #tpu.memory_space<smem>>
    %925 = arith.index_cast %924 : i32 to index
    %c0_647 = arith.constant 0 : index
    %926 = vector.load %arg15[%925, %c0_647] : memref<33x128xf32, #tpu.memory_space<vmem>>, vector<1x128xf32>
    %c1_648 = arith.constant 1 : index
    %c3_649 = arith.constant 3 : index
    %c0_650 = arith.constant 0 : index
    %927 = vector.load %arg17[%c1_648, %c3_649, %c0_650] : memref<3x4x128xf32, #tpu.memory_space<vmem>>, vector<1x1x128xf32>
    %928 = vector.shape_cast %927 : vector<1x1x128xf32> to vector<1x128xf32>
    %929 = vector.shape_cast %926 : vector<1x128xf32> to vector<1x1x128xf32>
    tpu.vector_store %arg17[%c1_648, %c3_649, %c0_650], %929 {strides = array<i32>} : memref<3x4x128xf32, #tpu.memory_space<vmem>>, vector<1x1x128xf32>,
    %930 = arith.index_cast %924 : i32 to index
    %c0_651 = arith.constant 0 : index
    %931 = vector.load %arg16[%930, %c0_651] : memref<33x32xf32, #tpu.memory_space<vmem>>, vector<1x32xf32>
    %c1_652 = arith.constant 1 : index
    %c3_653 = arith.constant 3 : index
    %c0_654 = arith.constant 0 : index
    %932 = vector.load %arg18[%c1_652, %c3_653, %c0_654] : memref<3x4x32xf32, #tpu.memory_space<vmem>>, vector<1x1x32xf32>
    %933 = vector.shape_cast %932 : vector<1x1x32xf32> to vector<1x32xf32>
    %934 = vector.shape_cast %931 : vector<1x32xf32> to vector<1x1x32xf32>
    tpu.vector_store %arg18[%c1_652, %c3_653, %c0_654], %934 {strides = array<i32>} : memref<3x4x32xf32, #tpu.memory_space<vmem>>, vector<1x1x32xf32>,
    %c62 = arith.constant 62 : index
    %935 = memref.load %arg1[%c62] : memref<96xi32, #tpu.memory_space<smem>>
    %936 = arith.index_cast %935 : i32 to index
    %c0_655 = arith.constant 0 : index
    %937 = vector.load %arg15[%936, %c0_655] : memref<33x128xf32, #tpu.memory_space<vmem>>, vector<1x128xf32>
    %c2_656 = arith.constant 2 : index
    %c0_657 = arith.constant 0 : index
    %c0_658 = arith.constant 0 : index
    %938 = vector.load %arg17[%c2_656, %c0_657, %c0_658] : memref<3x4x128xf32, #tpu.memory_space<vmem>>, vector<1x1x128xf32>
    %939 = vector.shape_cast %938 : vector<1x1x128xf32> to vector<1x128xf32>
    %940 = vector.shape_cast %937 : vector<1x128xf32> to vector<1x1x128xf32>
    tpu.vector_store %arg17[%c2_656, %c0_657, %c0_658], %940 {strides = array<i32>} : memref<3x4x128xf32, #tpu.memory_space<vmem>>, vector<1x1x128xf32>,
    %941 = arith.index_cast %935 : i32 to index
    %c0_659 = arith.constant 0 : index
    %942 = vector.load %arg16[%941, %c0_659] : memref<33x32xf32, #tpu.memory_space<vmem>>, vector<1x32xf32>
    %c2_660 = arith.constant 2 : index
    %c0_661 = arith.constant 0 : index
    %c0_662 = arith.constant 0 : index
    %943 = vector.load %arg18[%c2_660, %c0_661, %c0_662] : memref<3x4x32xf32, #tpu.memory_space<vmem>>, vector<1x1x32xf32>
    %944 = vector.shape_cast %943 : vector<1x1x32xf32> to vector<1x32xf32>
    %945 = vector.shape_cast %942 : vector<1x32xf32> to vector<1x1x32xf32>
    tpu.vector_store %arg18[%c2_660, %c0_661, %c0_662], %945 {strides = array<i32>} : memref<3x4x32xf32, #tpu.memory_space<vmem>>, vector<1x1x32xf32>,
    %c65 = arith.constant 65 : index
    %946 = memref.load %arg1[%c65] : memref<96xi32, #tpu.memory_space<smem>>
    %947 = arith.index_cast %946 : i32 to index
    %c0_663 = arith.constant 0 : index
    %948 = vector.load %arg15[%947, %c0_663] : memref<33x128xf32, #tpu.memory_space<vmem>>, vector<1x128xf32>
    %c2_664 = arith.constant 2 : index
    %c1_665 = arith.constant 1 : index
    %c0_666 = arith.constant 0 : index
    %949 = vector.load %arg17[%c2_664, %c1_665, %c0_666] : memref<3x4x128xf32, #tpu.memory_space<vmem>>, vector<1x1x128xf32>
    %950 = vector.shape_cast %949 : vector<1x1x128xf32> to vector<1x128xf32>
    %951 = vector.shape_cast %948 : vector<1x128xf32> to vector<1x1x128xf32>
    tpu.vector_store %arg17[%c2_664, %c1_665, %c0_666], %951 {strides = array<i32>} : memref<3x4x128xf32, #tpu.memory_space<vmem>>, vector<1x1x128xf32>,
    %952 = arith.index_cast %946 : i32 to index
    %c0_667 = arith.constant 0 : index
    %953 = vector.load %arg16[%952, %c0_667] : memref<33x32xf32, #tpu.memory_space<vmem>>, vector<1x32xf32>
    %c2_668 = arith.constant 2 : index
    %c1_669 = arith.constant 1 : index
    %c0_670 = arith.constant 0 : index
    %954 = vector.load %arg18[%c2_668, %c1_669, %c0_670] : memref<3x4x32xf32, #tpu.memory_space<vmem>>, vector<1x1x32xf32>
    %955 = vector.shape_cast %954 : vector<1x1x32xf32> to vector<1x32xf32>
    %956 = vector.shape_cast %953 : vector<1x32xf32> to vector<1x1x32xf32>
    tpu.vector_store %arg18[%c2_668, %c1_669, %c0_670], %956 {strides = array<i32>} : memref<3x4x32xf32, #tpu.memory_space<vmem>>, vector<1x1x32xf32>,
    %c68 = arith.constant 68 : index
    %957 = memref.load %arg1[%c68] : memref<96xi32, #tpu.memory_space<smem>>
    %958 = arith.index_cast %957 : i32 to index
    %c0_671 = arith.constant 0 : index
    %959 = vector.load %arg15[%958, %c0_671] : memref<33x128xf32, #tpu.memory_space<vmem>>, vector<1x128xf32>
    %c2_672 = arith.constant 2 : index
    %c2_673 = arith.constant 2 : index
    %c0_674 = arith.constant 0 : index
    %960 = vector.load %arg17[%c2_672, %c2_673, %c0_674] : memref<3x4x128xf32, #tpu.memory_space<vmem>>, vector<1x1x128xf32>
    %961 = vector.shape_cast %960 : vector<1x1x128xf32> to vector<1x128xf32>
    %962 = vector.shape_cast %959 : vector<1x128xf32> to vector<1x1x128xf32>
    tpu.vector_store %arg17[%c2_672, %c2_673, %c0_674], %962 {strides = array<i32>} : memref<3x4x128xf32, #tpu.memory_space<vmem>>, vector<1x1x128xf32>,
    %963 = arith.index_cast %957 : i32 to index
    %c0_675 = arith.constant 0 : index
    %964 = vector.load %arg16[%963, %c0_675] : memref<33x32xf32, #tpu.memory_space<vmem>>, vector<1x32xf32>
    %c2_676 = arith.constant 2 : index
    %c2_677 = arith.constant 2 : index
    %c0_678 = arith.constant 0 : index
    %965 = vector.load %arg18[%c2_676, %c2_677, %c0_678] : memref<3x4x32xf32, #tpu.memory_space<vmem>>, vector<1x1x32xf32>
    %966 = vector.shape_cast %965 : vector<1x1x32xf32> to vector<1x32xf32>
    %967 = vector.shape_cast %964 : vector<1x32xf32> to vector<1x1x32xf32>
    tpu.vector_store %arg18[%c2_676, %c2_677, %c0_678], %967 {strides = array<i32>} : memref<3x4x32xf32, #tpu.memory_space<vmem>>, vector<1x1x32xf32>,
    %c71 = arith.constant 71 : index
    %968 = memref.load %arg1[%c71] : memref<96xi32, #tpu.memory_space<smem>>
    %969 = arith.index_cast %968 : i32 to index
    %c0_679 = arith.constant 0 : index
    %970 = vector.load %arg15[%969, %c0_679] : memref<33x128xf32, #tpu.memory_space<vmem>>, vector<1x128xf32>
    %c2_680 = arith.constant 2 : index
    %c3_681 = arith.constant 3 : index
    %c0_682 = arith.constant 0 : index
    %971 = vector.load %arg17[%c2_680, %c3_681, %c0_682] : memref<3x4x128xf32, #tpu.memory_space<vmem>>, vector<1x1x128xf32>
    %972 = vector.shape_cast %971 : vector<1x1x128xf32> to vector<1x128xf32>
    %973 = vector.shape_cast %970 : vector<1x128xf32> to vector<1x1x128xf32>
    tpu.vector_store %arg17[%c2_680, %c3_681, %c0_682], %973 {strides = array<i32>} : memref<3x4x128xf32, #tpu.memory_space<vmem>>, vector<1x1x128xf32>,
    %974 = arith.index_cast %968 : i32 to index
    %c0_683 = arith.constant 0 : index
    %975 = vector.load %arg16[%974, %c0_683] : memref<33x32xf32, #tpu.memory_space<vmem>>, vector<1x32xf32>
    %c2_684 = arith.constant 2 : index
    %c3_685 = arith.constant 3 : index
    %c0_686 = arith.constant 0 : index
    %976 = vector.load %arg18[%c2_684, %c3_685, %c0_686] : memref<3x4x32xf32, #tpu.memory_space<vmem>>, vector<1x1x32xf32>
    %977 = vector.shape_cast %976 : vector<1x1x32xf32> to vector<1x32xf32>
    %978 = vector.shape_cast %975 : vector<1x32xf32> to vector<1x1x32xf32>
    tpu.vector_store %arg18[%c2_684, %c3_685, %c0_686], %978 {strides = array<i32>} : memref<3x4x32xf32, #tpu.memory_space<vmem>>, vector<1x1x32xf32>,
    %c0_687 = arith.constant 0 : index
    %c0_688 = arith.constant 0 : index
    %c0_689 = arith.constant 0 : index
    %979 = vector.load %arg17[%c0_687, %c0_688, %c0_689] : memref<3x4x128xf32, #tpu.memory_space<vmem>>, vector<3x4x128xf32>
    %c0_690 = arith.constant 0 : index
    %c0_691 = arith.constant 0 : index
    %c0_692 = arith.constant 0 : index
    %980 = vector.load %arg18[%c0_690, %c0_691, %c0_692] : memref<3x4x32xf32, #tpu.memory_space<vmem>>, vector<3x4x32xf32>
    %c20_693 = arith.constant 20 : index
    %c0_694 = arith.constant 0 : index
    %981 = vector.load %arg14[%c20_693, %c0_694] : memref<32x128xf32, #tpu.memory_space<vmem>>, vector<4x128xf32>
    %982 = vector.extract_strided_slice %981 {offsets = [0, 96], sizes = [4, 32], strides = [1, 1]} : vector<4x128xf32> to vector<4x32xf32>
    %983 = vector.extract_strided_slice %979 {offsets = [0, 0, 96], sizes = [3, 4, 32], strides = [1, 1, 1]} : vector<3x4x128xf32> to vector<3x4x32xf32>
    %984 = vector.shape_cast %982 : vector<4x32xf32> to vector<1x4x32xf32>
    %985 = vector.broadcast %984 : vector<1x4x32xf32> to vector<3x4x32xf32>
    %986 = arith.addf %983, %985 : vector<3x4x32xf32>
    %987 = arith.negf %986 : vector<3x4x32xf32>
    %988 = math.exp %987 : vector<3x4x32xf32>
    %cst_695 = arith.constant 1.000000e+00 : f32
    %989 = vector.broadcast %cst_695 : f32 to vector<3x4x32xf32>
    %990 = arith.addf %989, %988 : vector<3x4x32xf32>
    %991 = arith.divf %989, %990 : vector<3x4x32xf32>
    %992 = arith.mulf %991, %980 : vector<3x4x32xf32>
    %cst_696 = arith.constant dense<0.000000e+00> : vector<4x32xf32>
    %993 = vector.multi_reduction <add>, %992, %cst_696 [0] : vector<3x4x32xf32> to vector<4x32xf32>
    %994 = vector.extract_strided_slice %979 {offsets = [0, 0, 0], sizes = [3, 4, 96], strides = [1, 1, 1]} : vector<3x4x128xf32> to vector<3x4x96xf32>
    %cst_697 = arith.constant dense<0.000000e+00> : vector<4x96xf32>
    %995 = vector.multi_reduction <add>, %994, %cst_697 [0] : vector<3x4x96xf32> to vector<4x96xf32>
    %996 = vector.extract_strided_slice %981 {offsets = [0, 0], sizes = [4, 96], strides = [1, 1]} : vector<4x128xf32> to vector<4x96xf32>
    %997 = arith.addf %996, %995 : vector<4x96xf32>
    %998 = arith.negf %997 : vector<4x96xf32>
    %999 = math.exp %998 : vector<4x96xf32>
    %cst_698 = arith.constant 1.000000e+00 : f32
    %1000 = vector.broadcast %cst_698 : f32 to vector<4x96xf32>
    %1001 = arith.addf %1000, %999 : vector<4x96xf32>
    %1002 = arith.divf %1000, %1001 : vector<4x96xf32>
    %1003 = vector.extract_strided_slice %1002 {offsets = [0, 0], sizes = [4, 32], strides = [1, 1]} : vector<4x96xf32> to vector<4x32xf32>
    %1004 = vector.extract_strided_slice %1002 {offsets = [0, 32], sizes = [4, 32], strides = [1, 1]} : vector<4x96xf32> to vector<4x32xf32>
    %1005 = vector.extract_strided_slice %1002 {offsets = [0, 64], sizes = [4, 32], strides = [1, 1]} : vector<4x96xf32> to vector<4x32xf32>
    %1006 = arith.mulf %1003, %1005 : vector<4x32xf32>
    %1007 = arith.addf %1006, %993 : vector<4x32xf32>
    %1008 = math.tanh %1007 : vector<4x32xf32>
    %1009 = arith.mulf %1004, %1008 : vector<4x32xf32>
    %c20_699 = arith.constant 20 : index
    %c0_700 = arith.constant 0 : index
    %1010 = vector.load %arg10[%c20_699, %c0_700] : memref<32x32xf32, #tpu.memory_space<vmem>>, vector<4x32xf32>
    tpu.vector_store %arg10[%c20_699, %c0_700], %1009 {strides = array<i32>} : memref<32x32xf32, #tpu.memory_space<vmem>>, vector<4x32xf32>,
    %c20_701 = arith.constant 20 : index
    %c0_702 = arith.constant 0 : index
    %1011 = vector.load %arg16[%c20_701, %c0_702] : memref<33x32xf32, #tpu.memory_space<vmem>>, vector<4x32xf32>
    tpu.vector_store %arg16[%c20_701, %c0_702], %1007 {strides = array<i32>} : memref<33x32xf32, #tpu.memory_space<vmem>>, vector<4x32xf32>,
    %cst_703 = arith.constant dense<0.000000e+00> : vector<4x128xf32>
    %1012 = tpu.matmul %1009, %0, %cst_703 {dimension_numbers = #tpu.dot_dimension_numbers<[1], [0], [0], [1], [0, 0, 1, 1], [], []>} : vector<4x32xf32>, vector<32x128xf32>, vector<4x128xf32> -> vector<4x128xf32>
    %c20_704 = arith.constant 20 : index
    %c0_705 = arith.constant 0 : index
    %1013 = vector.load %arg15[%c20_704, %c0_705] : memref<33x128xf32, #tpu.memory_space<vmem>>, vector<4x128xf32>
    tpu.vector_store %arg15[%c20_704, %c0_705], %1012 {strides = array<i32>} : memref<33x128xf32, #tpu.memory_space<vmem>>, vector<4x128xf32>,
    %c72 = arith.constant 72 : index
    %1014 = memref.load %arg1[%c72] : memref<96xi32, #tpu.memory_space<smem>>
    %1015 = arith.index_cast %1014 : i32 to index
    %c0_706 = arith.constant 0 : index
    %1016 = vector.load %arg15[%1015, %c0_706] : memref<33x128xf32, #tpu.memory_space<vmem>>, vector<1x128xf32>
    %c0_707 = arith.constant 0 : index
    %c0_708 = arith.constant 0 : index
    %c0_709 = arith.constant 0 : index
    %1017 = vector.load %arg17[%c0_707, %c0_708, %c0_709] : memref<3x4x128xf32, #tpu.memory_space<vmem>>, vector<1x1x128xf32>
    %1018 = vector.shape_cast %1017 : vector<1x1x128xf32> to vector<1x128xf32>
    %1019 = vector.shape_cast %1016 : vector<1x128xf32> to vector<1x1x128xf32>
    tpu.vector_store %arg17[%c0_707, %c0_708, %c0_709], %1019 {strides = array<i32>} : memref<3x4x128xf32, #tpu.memory_space<vmem>>, vector<1x1x128xf32>,
    %1020 = arith.index_cast %1014 : i32 to index
    %c0_710 = arith.constant 0 : index
    %1021 = vector.load %arg16[%1020, %c0_710] : memref<33x32xf32, #tpu.memory_space<vmem>>, vector<1x32xf32>
    %c0_711 = arith.constant 0 : index
    %c0_712 = arith.constant 0 : index
    %c0_713 = arith.constant 0 : index
    %1022 = vector.load %arg18[%c0_711, %c0_712, %c0_713] : memref<3x4x32xf32, #tpu.memory_space<vmem>>, vector<1x1x32xf32>
    %1023 = vector.shape_cast %1022 : vector<1x1x32xf32> to vector<1x32xf32>
    %1024 = vector.shape_cast %1021 : vector<1x32xf32> to vector<1x1x32xf32>
    tpu.vector_store %arg18[%c0_711, %c0_712, %c0_713], %1024 {strides = array<i32>} : memref<3x4x32xf32, #tpu.memory_space<vmem>>, vector<1x1x32xf32>,
    %c75 = arith.constant 75 : index
    %1025 = memref.load %arg1[%c75] : memref<96xi32, #tpu.memory_space<smem>>
    %1026 = arith.index_cast %1025 : i32 to index
    %c0_714 = arith.constant 0 : index
    %1027 = vector.load %arg15[%1026, %c0_714] : memref<33x128xf32, #tpu.memory_space<vmem>>, vector<1x128xf32>
    %c0_715 = arith.constant 0 : index
    %c1_716 = arith.constant 1 : index
    %c0_717 = arith.constant 0 : index
    %1028 = vector.load %arg17[%c0_715, %c1_716, %c0_717] : memref<3x4x128xf32, #tpu.memory_space<vmem>>, vector<1x1x128xf32>
    %1029 = vector.shape_cast %1028 : vector<1x1x128xf32> to vector<1x128xf32>
    %1030 = vector.shape_cast %1027 : vector<1x128xf32> to vector<1x1x128xf32>
    tpu.vector_store %arg17[%c0_715, %c1_716, %c0_717], %1030 {strides = array<i32>} : memref<3x4x128xf32, #tpu.memory_space<vmem>>, vector<1x1x128xf32>,
    %1031 = arith.index_cast %1025 : i32 to index
    %c0_718 = arith.constant 0 : index
    %1032 = vector.load %arg16[%1031, %c0_718] : memref<33x32xf32, #tpu.memory_space<vmem>>, vector<1x32xf32>
    %c0_719 = arith.constant 0 : index
    %c1_720 = arith.constant 1 : index
    %c0_721 = arith.constant 0 : index
    %1033 = vector.load %arg18[%c0_719, %c1_720, %c0_721] : memref<3x4x32xf32, #tpu.memory_space<vmem>>, vector<1x1x32xf32>
    %1034 = vector.shape_cast %1033 : vector<1x1x32xf32> to vector<1x32xf32>
    %1035 = vector.shape_cast %1032 : vector<1x32xf32> to vector<1x1x32xf32>
    tpu.vector_store %arg18[%c0_719, %c1_720, %c0_721], %1035 {strides = array<i32>} : memref<3x4x32xf32, #tpu.memory_space<vmem>>, vector<1x1x32xf32>,
    %c78 = arith.constant 78 : index
    %1036 = memref.load %arg1[%c78] : memref<96xi32, #tpu.memory_space<smem>>
    %1037 = arith.index_cast %1036 : i32 to index
    %c0_722 = arith.constant 0 : index
    %1038 = vector.load %arg15[%1037, %c0_722] : memref<33x128xf32, #tpu.memory_space<vmem>>, vector<1x128xf32>
    %c0_723 = arith.constant 0 : index
    %c2_724 = arith.constant 2 : index
    %c0_725 = arith.constant 0 : index
    %1039 = vector.load %arg17[%c0_723, %c2_724, %c0_725] : memref<3x4x128xf32, #tpu.memory_space<vmem>>, vector<1x1x128xf32>
    %1040 = vector.shape_cast %1039 : vector<1x1x128xf32> to vector<1x128xf32>
    %1041 = vector.shape_cast %1038 : vector<1x128xf32> to vector<1x1x128xf32>
    tpu.vector_store %arg17[%c0_723, %c2_724, %c0_725], %1041 {strides = array<i32>} : memref<3x4x128xf32, #tpu.memory_space<vmem>>, vector<1x1x128xf32>,
    %1042 = arith.index_cast %1036 : i32 to index
    %c0_726 = arith.constant 0 : index
    %1043 = vector.load %arg16[%1042, %c0_726] : memref<33x32xf32, #tpu.memory_space<vmem>>, vector<1x32xf32>
    %c0_727 = arith.constant 0 : index
    %c2_728 = arith.constant 2 : index
    %c0_729 = arith.constant 0 : index
    %1044 = vector.load %arg18[%c0_727, %c2_728, %c0_729] : memref<3x4x32xf32, #tpu.memory_space<vmem>>, vector<1x1x32xf32>
    %1045 = vector.shape_cast %1044 : vector<1x1x32xf32> to vector<1x32xf32>
    %1046 = vector.shape_cast %1043 : vector<1x32xf32> to vector<1x1x32xf32>
    tpu.vector_store %arg18[%c0_727, %c2_728, %c0_729], %1046 {strides = array<i32>} : memref<3x4x32xf32, #tpu.memory_space<vmem>>, vector<1x1x32xf32>,
    %c81 = arith.constant 81 : index
    %1047 = memref.load %arg1[%c81] : memref<96xi32, #tpu.memory_space<smem>>
    %1048 = arith.index_cast %1047 : i32 to index
    %c0_730 = arith.constant 0 : index
    %1049 = vector.load %arg15[%1048, %c0_730] : memref<33x128xf32, #tpu.memory_space<vmem>>, vector<1x128xf32>
    %c0_731 = arith.constant 0 : index
    %c3_732 = arith.constant 3 : index
    %c0_733 = arith.constant 0 : index
    %1050 = vector.load %arg17[%c0_731, %c3_732, %c0_733] : memref<3x4x128xf32, #tpu.memory_space<vmem>>, vector<1x1x128xf32>
    %1051 = vector.shape_cast %1050 : vector<1x1x128xf32> to vector<1x128xf32>
    %1052 = vector.shape_cast %1049 : vector<1x128xf32> to vector<1x1x128xf32>
    tpu.vector_store %arg17[%c0_731, %c3_732, %c0_733], %1052 {strides = array<i32>} : memref<3x4x128xf32, #tpu.memory_space<vmem>>, vector<1x1x128xf32>,
    %1053 = arith.index_cast %1047 : i32 to index
    %c0_734 = arith.constant 0 : index
    %1054 = vector.load %arg16[%1053, %c0_734] : memref<33x32xf32, #tpu.memory_space<vmem>>, vector<1x32xf32>
    %c0_735 = arith.constant 0 : index
    %c3_736 = arith.constant 3 : index
    %c0_737 = arith.constant 0 : index
    %1055 = vector.load %arg18[%c0_735, %c3_736, %c0_737] : memref<3x4x32xf32, #tpu.memory_space<vmem>>, vector<1x1x32xf32>
    %1056 = vector.shape_cast %1055 : vector<1x1x32xf32> to vector<1x32xf32>
    %1057 = vector.shape_cast %1054 : vector<1x32xf32> to vector<1x1x32xf32>
    tpu.vector_store %arg18[%c0_735, %c3_736, %c0_737], %1057 {strides = array<i32>} : memref<3x4x32xf32, #tpu.memory_space<vmem>>, vector<1x1x32xf32>,
    %c73 = arith.constant 73 : index
    %1058 = memref.load %arg1[%c73] : memref<96xi32, #tpu.memory_space<smem>>
    %1059 = arith.index_cast %1058 : i32 to index
    %c0_738 = arith.constant 0 : index
    %1060 = vector.load %arg15[%1059, %c0_738] : memref<33x128xf32, #tpu.memory_space<vmem>>, vector<1x128xf32>
    %c1_739 = arith.constant 1 : index
    %c0_740 = arith.constant 0 : index
    %c0_741 = arith.constant 0 : index
    %1061 = vector.load %arg17[%c1_739, %c0_740, %c0_741] : memref<3x4x128xf32, #tpu.memory_space<vmem>>, vector<1x1x128xf32>
    %1062 = vector.shape_cast %1061 : vector<1x1x128xf32> to vector<1x128xf32>
    %1063 = vector.shape_cast %1060 : vector<1x128xf32> to vector<1x1x128xf32>
    tpu.vector_store %arg17[%c1_739, %c0_740, %c0_741], %1063 {strides = array<i32>} : memref<3x4x128xf32, #tpu.memory_space<vmem>>, vector<1x1x128xf32>,
    %1064 = arith.index_cast %1058 : i32 to index
    %c0_742 = arith.constant 0 : index
    %1065 = vector.load %arg16[%1064, %c0_742] : memref<33x32xf32, #tpu.memory_space<vmem>>, vector<1x32xf32>
    %c1_743 = arith.constant 1 : index
    %c0_744 = arith.constant 0 : index
    %c0_745 = arith.constant 0 : index
    %1066 = vector.load %arg18[%c1_743, %c0_744, %c0_745] : memref<3x4x32xf32, #tpu.memory_space<vmem>>, vector<1x1x32xf32>
    %1067 = vector.shape_cast %1066 : vector<1x1x32xf32> to vector<1x32xf32>
    %1068 = vector.shape_cast %1065 : vector<1x32xf32> to vector<1x1x32xf32>
    tpu.vector_store %arg18[%c1_743, %c0_744, %c0_745], %1068 {strides = array<i32>} : memref<3x4x32xf32, #tpu.memory_space<vmem>>, vector<1x1x32xf32>,
    %c76 = arith.constant 76 : index
    %1069 = memref.load %arg1[%c76] : memref<96xi32, #tpu.memory_space<smem>>
    %1070 = arith.index_cast %1069 : i32 to index
    %c0_746 = arith.constant 0 : index
    %1071 = vector.load %arg15[%1070, %c0_746] : memref<33x128xf32, #tpu.memory_space<vmem>>, vector<1x128xf32>
    %c1_747 = arith.constant 1 : index
    %c1_748 = arith.constant 1 : index
    %c0_749 = arith.constant 0 : index
    %1072 = vector.load %arg17[%c1_747, %c1_748, %c0_749] : memref<3x4x128xf32, #tpu.memory_space<vmem>>, vector<1x1x128xf32>
    %1073 = vector.shape_cast %1072 : vector<1x1x128xf32> to vector<1x128xf32>
    %1074 = vector.shape_cast %1071 : vector<1x128xf32> to vector<1x1x128xf32>
    tpu.vector_store %arg17[%c1_747, %c1_748, %c0_749], %1074 {strides = array<i32>} : memref<3x4x128xf32, #tpu.memory_space<vmem>>, vector<1x1x128xf32>,
    %1075 = arith.index_cast %1069 : i32 to index
    %c0_750 = arith.constant 0 : index
    %1076 = vector.load %arg16[%1075, %c0_750] : memref<33x32xf32, #tpu.memory_space<vmem>>, vector<1x32xf32>
    %c1_751 = arith.constant 1 : index
    %c1_752 = arith.constant 1 : index
    %c0_753 = arith.constant 0 : index
    %1077 = vector.load %arg18[%c1_751, %c1_752, %c0_753] : memref<3x4x32xf32, #tpu.memory_space<vmem>>, vector<1x1x32xf32>
    %1078 = vector.shape_cast %1077 : vector<1x1x32xf32> to vector<1x32xf32>
    %1079 = vector.shape_cast %1076 : vector<1x32xf32> to vector<1x1x32xf32>
    tpu.vector_store %arg18[%c1_751, %c1_752, %c0_753], %1079 {strides = array<i32>} : memref<3x4x32xf32, #tpu.memory_space<vmem>>, vector<1x1x32xf32>,
    %c79 = arith.constant 79 : index
    %1080 = memref.load %arg1[%c79] : memref<96xi32, #tpu.memory_space<smem>>
    %1081 = arith.index_cast %1080 : i32 to index
    %c0_754 = arith.constant 0 : index
    %1082 = vector.load %arg15[%1081, %c0_754] : memref<33x128xf32, #tpu.memory_space<vmem>>, vector<1x128xf32>
    %c1_755 = arith.constant 1 : index
    %c2_756 = arith.constant 2 : index
    %c0_757 = arith.constant 0 : index
    %1083 = vector.load %arg17[%c1_755, %c2_756, %c0_757] : memref<3x4x128xf32, #tpu.memory_space<vmem>>, vector<1x1x128xf32>
    %1084 = vector.shape_cast %1083 : vector<1x1x128xf32> to vector<1x128xf32>
    %1085 = vector.shape_cast %1082 : vector<1x128xf32> to vector<1x1x128xf32>
    tpu.vector_store %arg17[%c1_755, %c2_756, %c0_757], %1085 {strides = array<i32>} : memref<3x4x128xf32, #tpu.memory_space<vmem>>, vector<1x1x128xf32>,
    %1086 = arith.index_cast %1080 : i32 to index
    %c0_758 = arith.constant 0 : index
    %1087 = vector.load %arg16[%1086, %c0_758] : memref<33x32xf32, #tpu.memory_space<vmem>>, vector<1x32xf32>
    %c1_759 = arith.constant 1 : index
    %c2_760 = arith.constant 2 : index
    %c0_761 = arith.constant 0 : index
    %1088 = vector.load %arg18[%c1_759, %c2_760, %c0_761] : memref<3x4x32xf32, #tpu.memory_space<vmem>>, vector<1x1x32xf32>
    %1089 = vector.shape_cast %1088 : vector<1x1x32xf32> to vector<1x32xf32>
    %1090 = vector.shape_cast %1087 : vector<1x32xf32> to vector<1x1x32xf32>
    tpu.vector_store %arg18[%c1_759, %c2_760, %c0_761], %1090 {strides = array<i32>} : memref<3x4x32xf32, #tpu.memory_space<vmem>>, vector<1x1x32xf32>,
    %c82 = arith.constant 82 : index
    %1091 = memref.load %arg1[%c82] : memref<96xi32, #tpu.memory_space<smem>>
    %1092 = arith.index_cast %1091 : i32 to index
    %c0_762 = arith.constant 0 : index
    %1093 = vector.load %arg15[%1092, %c0_762] : memref<33x128xf32, #tpu.memory_space<vmem>>, vector<1x128xf32>
    %c1_763 = arith.constant 1 : index
    %c3_764 = arith.constant 3 : index
    %c0_765 = arith.constant 0 : index
    %1094 = vector.load %arg17[%c1_763, %c3_764, %c0_765] : memref<3x4x128xf32, #tpu.memory_space<vmem>>, vector<1x1x128xf32>
    %1095 = vector.shape_cast %1094 : vector<1x1x128xf32> to vector<1x128xf32>
    %1096 = vector.shape_cast %1093 : vector<1x128xf32> to vector<1x1x128xf32>
    tpu.vector_store %arg17[%c1_763, %c3_764, %c0_765], %1096 {strides = array<i32>} : memref<3x4x128xf32, #tpu.memory_space<vmem>>, vector<1x1x128xf32>,
    %1097 = arith.index_cast %1091 : i32 to index
    %c0_766 = arith.constant 0 : index
    %1098 = vector.load %arg16[%1097, %c0_766] : memref<33x32xf32, #tpu.memory_space<vmem>>, vector<1x32xf32>
    %c1_767 = arith.constant 1 : index
    %c3_768 = arith.constant 3 : index
    %c0_769 = arith.constant 0 : index
    %1099 = vector.load %arg18[%c1_767, %c3_768, %c0_769] : memref<3x4x32xf32, #tpu.memory_space<vmem>>, vector<1x1x32xf32>
    %1100 = vector.shape_cast %1099 : vector<1x1x32xf32> to vector<1x32xf32>
    %1101 = vector.shape_cast %1098 : vector<1x32xf32> to vector<1x1x32xf32>
    tpu.vector_store %arg18[%c1_767, %c3_768, %c0_769], %1101 {strides = array<i32>} : memref<3x4x32xf32, #tpu.memory_space<vmem>>, vector<1x1x32xf32>,
    %c74 = arith.constant 74 : index
    %1102 = memref.load %arg1[%c74] : memref<96xi32, #tpu.memory_space<smem>>
    %1103 = arith.index_cast %1102 : i32 to index
    %c0_770 = arith.constant 0 : index
    %1104 = vector.load %arg15[%1103, %c0_770] : memref<33x128xf32, #tpu.memory_space<vmem>>, vector<1x128xf32>
    %c2_771 = arith.constant 2 : index
    %c0_772 = arith.constant 0 : index
    %c0_773 = arith.constant 0 : index
    %1105 = vector.load %arg17[%c2_771, %c0_772, %c0_773] : memref<3x4x128xf32, #tpu.memory_space<vmem>>, vector<1x1x128xf32>
    %1106 = vector.shape_cast %1105 : vector<1x1x128xf32> to vector<1x128xf32>
    %1107 = vector.shape_cast %1104 : vector<1x128xf32> to vector<1x1x128xf32>
    tpu.vector_store %arg17[%c2_771, %c0_772, %c0_773], %1107 {strides = array<i32>} : memref<3x4x128xf32, #tpu.memory_space<vmem>>, vector<1x1x128xf32>,
    %1108 = arith.index_cast %1102 : i32 to index
    %c0_774 = arith.constant 0 : index
    %1109 = vector.load %arg16[%1108, %c0_774] : memref<33x32xf32, #tpu.memory_space<vmem>>, vector<1x32xf32>
    %c2_775 = arith.constant 2 : index
    %c0_776 = arith.constant 0 : index
    %c0_777 = arith.constant 0 : index
    %1110 = vector.load %arg18[%c2_775, %c0_776, %c0_777] : memref<3x4x32xf32, #tpu.memory_space<vmem>>, vector<1x1x32xf32>
    %1111 = vector.shape_cast %1110 : vector<1x1x32xf32> to vector<1x32xf32>
    %1112 = vector.shape_cast %1109 : vector<1x32xf32> to vector<1x1x32xf32>
    tpu.vector_store %arg18[%c2_775, %c0_776, %c0_777], %1112 {strides = array<i32>} : memref<3x4x32xf32, #tpu.memory_space<vmem>>, vector<1x1x32xf32>,
    %c77 = arith.constant 77 : index
    %1113 = memref.load %arg1[%c77] : memref<96xi32, #tpu.memory_space<smem>>
    %1114 = arith.index_cast %1113 : i32 to index
    %c0_778 = arith.constant 0 : index
    %1115 = vector.load %arg15[%1114, %c0_778] : memref<33x128xf32, #tpu.memory_space<vmem>>, vector<1x128xf32>
    %c2_779 = arith.constant 2 : index
    %c1_780 = arith.constant 1 : index
    %c0_781 = arith.constant 0 : index
    %1116 = vector.load %arg17[%c2_779, %c1_780, %c0_781] : memref<3x4x128xf32, #tpu.memory_space<vmem>>, vector<1x1x128xf32>
    %1117 = vector.shape_cast %1116 : vector<1x1x128xf32> to vector<1x128xf32>
    %1118 = vector.shape_cast %1115 : vector<1x128xf32> to vector<1x1x128xf32>
    tpu.vector_store %arg17[%c2_779, %c1_780, %c0_781], %1118 {strides = array<i32>} : memref<3x4x128xf32, #tpu.memory_space<vmem>>, vector<1x1x128xf32>,
    %1119 = arith.index_cast %1113 : i32 to index
    %c0_782 = arith.constant 0 : index
    %1120 = vector.load %arg16[%1119, %c0_782] : memref<33x32xf32, #tpu.memory_space<vmem>>, vector<1x32xf32>
    %c2_783 = arith.constant 2 : index
    %c1_784 = arith.constant 1 : index
    %c0_785 = arith.constant 0 : index
    %1121 = vector.load %arg18[%c2_783, %c1_784, %c0_785] : memref<3x4x32xf32, #tpu.memory_space<vmem>>, vector<1x1x32xf32>
    %1122 = vector.shape_cast %1121 : vector<1x1x32xf32> to vector<1x32xf32>
    %1123 = vector.shape_cast %1120 : vector<1x32xf32> to vector<1x1x32xf32>
    tpu.vector_store %arg18[%c2_783, %c1_784, %c0_785], %1123 {strides = array<i32>} : memref<3x4x32xf32, #tpu.memory_space<vmem>>, vector<1x1x32xf32>,
    %c80 = arith.constant 80 : index
    %1124 = memref.load %arg1[%c80] : memref<96xi32, #tpu.memory_space<smem>>
    %1125 = arith.index_cast %1124 : i32 to index
    %c0_786 = arith.constant 0 : index
    %1126 = vector.load %arg15[%1125, %c0_786] : memref<33x128xf32, #tpu.memory_space<vmem>>, vector<1x128xf32>
    %c2_787 = arith.constant 2 : index
    %c2_788 = arith.constant 2 : index
    %c0_789 = arith.constant 0 : index
    %1127 = vector.load %arg17[%c2_787, %c2_788, %c0_789] : memref<3x4x128xf32, #tpu.memory_space<vmem>>, vector<1x1x128xf32>
    %1128 = vector.shape_cast %1127 : vector<1x1x128xf32> to vector<1x128xf32>
    %1129 = vector.shape_cast %1126 : vector<1x128xf32> to vector<1x1x128xf32>
    tpu.vector_store %arg17[%c2_787, %c2_788, %c0_789], %1129 {strides = array<i32>} : memref<3x4x128xf32, #tpu.memory_space<vmem>>, vector<1x1x128xf32>,
    %1130 = arith.index_cast %1124 : i32 to index
    %c0_790 = arith.constant 0 : index
    %1131 = vector.load %arg16[%1130, %c0_790] : memref<33x32xf32, #tpu.memory_space<vmem>>, vector<1x32xf32>
    %c2_791 = arith.constant 2 : index
    %c2_792 = arith.constant 2 : index
    %c0_793 = arith.constant 0 : index
    %1132 = vector.load %arg18[%c2_791, %c2_792, %c0_793] : memref<3x4x32xf32, #tpu.memory_space<vmem>>, vector<1x1x32xf32>
    %1133 = vector.shape_cast %1132 : vector<1x1x32xf32> to vector<1x32xf32>
    %1134 = vector.shape_cast %1131 : vector<1x32xf32> to vector<1x1x32xf32>
    tpu.vector_store %arg18[%c2_791, %c2_792, %c0_793], %1134 {strides = array<i32>} : memref<3x4x32xf32, #tpu.memory_space<vmem>>, vector<1x1x32xf32>,
    %c83 = arith.constant 83 : index
    %1135 = memref.load %arg1[%c83] : memref<96xi32, #tpu.memory_space<smem>>
    %1136 = arith.index_cast %1135 : i32 to index
    %c0_794 = arith.constant 0 : index
    %1137 = vector.load %arg15[%1136, %c0_794] : memref<33x128xf32, #tpu.memory_space<vmem>>, vector<1x128xf32>
    %c2_795 = arith.constant 2 : index
    %c3_796 = arith.constant 3 : index
    %c0_797 = arith.constant 0 : index
    %1138 = vector.load %arg17[%c2_795, %c3_796, %c0_797] : memref<3x4x128xf32, #tpu.memory_space<vmem>>, vector<1x1x128xf32>
    %1139 = vector.shape_cast %1138 : vector<1x1x128xf32> to vector<1x128xf32>
    %1140 = vector.shape_cast %1137 : vector<1x128xf32> to vector<1x1x128xf32>
    tpu.vector_store %arg17[%c2_795, %c3_796, %c0_797], %1140 {strides = array<i32>} : memref<3x4x128xf32, #tpu.memory_space<vmem>>, vector<1x1x128xf32>,
    %1141 = arith.index_cast %1135 : i32 to index
    %c0_798 = arith.constant 0 : index
    %1142 = vector.load %arg16[%1141, %c0_798] : memref<33x32xf32, #tpu.memory_space<vmem>>, vector<1x32xf32>
    %c2_799 = arith.constant 2 : index
    %c3_800 = arith.constant 3 : index
    %c0_801 = arith.constant 0 : index
    %1143 = vector.load %arg18[%c2_799, %c3_800, %c0_801] : memref<3x4x32xf32, #tpu.memory_space<vmem>>, vector<1x1x32xf32>
    %1144 = vector.shape_cast %1143 : vector<1x1x32xf32> to vector<1x32xf32>
    %1145 = vector.shape_cast %1142 : vector<1x32xf32> to vector<1x1x32xf32>
    tpu.vector_store %arg18[%c2_799, %c3_800, %c0_801], %1145 {strides = array<i32>} : memref<3x4x32xf32, #tpu.memory_space<vmem>>, vector<1x1x32xf32>,
    %c0_802 = arith.constant 0 : index
    %c0_803 = arith.constant 0 : index
    %c0_804 = arith.constant 0 : index
    %1146 = vector.load %arg17[%c0_802, %c0_803, %c0_804] : memref<3x4x128xf32, #tpu.memory_space<vmem>>, vector<3x4x128xf32>
    %c0_805 = arith.constant 0 : index
    %c0_806 = arith.constant 0 : index
    %c0_807 = arith.constant 0 : index
    %1147 = vector.load %arg18[%c0_805, %c0_806, %c0_807] : memref<3x4x32xf32, #tpu.memory_space<vmem>>, vector<3x4x32xf32>
    %c24_808 = arith.constant 24 : index
    %c0_809 = arith.constant 0 : index
    %1148 = vector.load %arg14[%c24_808, %c0_809] : memref<32x128xf32, #tpu.memory_space<vmem>>, vector<4x128xf32>
    %1149 = vector.extract_strided_slice %1148 {offsets = [0, 96], sizes = [4, 32], strides = [1, 1]} : vector<4x128xf32> to vector<4x32xf32>
    %1150 = vector.extract_strided_slice %1146 {offsets = [0, 0, 96], sizes = [3, 4, 32], strides = [1, 1, 1]} : vector<3x4x128xf32> to vector<3x4x32xf32>
    %1151 = vector.shape_cast %1149 : vector<4x32xf32> to vector<1x4x32xf32>
    %1152 = vector.broadcast %1151 : vector<1x4x32xf32> to vector<3x4x32xf32>
    %1153 = arith.addf %1150, %1152 : vector<3x4x32xf32>
    %1154 = arith.negf %1153 : vector<3x4x32xf32>
    %1155 = math.exp %1154 : vector<3x4x32xf32>
    %cst_810 = arith.constant 1.000000e+00 : f32
    %1156 = vector.broadcast %cst_810 : f32 to vector<3x4x32xf32>
    %1157 = arith.addf %1156, %1155 : vector<3x4x32xf32>
    %1158 = arith.divf %1156, %1157 : vector<3x4x32xf32>
    %1159 = arith.mulf %1158, %1147 : vector<3x4x32xf32>
    %cst_811 = arith.constant dense<0.000000e+00> : vector<4x32xf32>
    %1160 = vector.multi_reduction <add>, %1159, %cst_811 [0] : vector<3x4x32xf32> to vector<4x32xf32>
    %1161 = vector.extract_strided_slice %1146 {offsets = [0, 0, 0], sizes = [3, 4, 96], strides = [1, 1, 1]} : vector<3x4x128xf32> to vector<3x4x96xf32>
    %cst_812 = arith.constant dense<0.000000e+00> : vector<4x96xf32>
    %1162 = vector.multi_reduction <add>, %1161, %cst_812 [0] : vector<3x4x96xf32> to vector<4x96xf32>
    %1163 = vector.extract_strided_slice %1148 {offsets = [0, 0], sizes = [4, 96], strides = [1, 1]} : vector<4x128xf32> to vector<4x96xf32>
    %1164 = arith.addf %1163, %1162 : vector<4x96xf32>
    %1165 = arith.negf %1164 : vector<4x96xf32>
    %1166 = math.exp %1165 : vector<4x96xf32>
    %cst_813 = arith.constant 1.000000e+00 : f32
    %1167 = vector.broadcast %cst_813 : f32 to vector<4x96xf32>
    %1168 = arith.addf %1167, %1166 : vector<4x96xf32>
    %1169 = arith.divf %1167, %1168 : vector<4x96xf32>
    %1170 = vector.extract_strided_slice %1169 {offsets = [0, 0], sizes = [4, 32], strides = [1, 1]} : vector<4x96xf32> to vector<4x32xf32>
    %1171 = vector.extract_strided_slice %1169 {offsets = [0, 32], sizes = [4, 32], strides = [1, 1]} : vector<4x96xf32> to vector<4x32xf32>
    %1172 = vector.extract_strided_slice %1169 {offsets = [0, 64], sizes = [4, 32], strides = [1, 1]} : vector<4x96xf32> to vector<4x32xf32>
    %1173 = arith.mulf %1170, %1172 : vector<4x32xf32>
    %1174 = arith.addf %1173, %1160 : vector<4x32xf32>
    %1175 = math.tanh %1174 : vector<4x32xf32>
    %1176 = arith.mulf %1171, %1175 : vector<4x32xf32>
    %c24_814 = arith.constant 24 : index
    %c0_815 = arith.constant 0 : index
    %1177 = vector.load %arg10[%c24_814, %c0_815] : memref<32x32xf32, #tpu.memory_space<vmem>>, vector<4x32xf32>
    tpu.vector_store %arg10[%c24_814, %c0_815], %1176 {strides = array<i32>} : memref<32x32xf32, #tpu.memory_space<vmem>>, vector<4x32xf32>,
    %c24_816 = arith.constant 24 : index
    %c0_817 = arith.constant 0 : index
    %1178 = vector.load %arg16[%c24_816, %c0_817] : memref<33x32xf32, #tpu.memory_space<vmem>>, vector<4x32xf32>
    tpu.vector_store %arg16[%c24_816, %c0_817], %1174 {strides = array<i32>} : memref<33x32xf32, #tpu.memory_space<vmem>>, vector<4x32xf32>,
    %cst_818 = arith.constant dense<0.000000e+00> : vector<4x128xf32>
    %1179 = tpu.matmul %1176, %0, %cst_818 {dimension_numbers = #tpu.dot_dimension_numbers<[1], [0], [0], [1], [0, 0, 1, 1], [], []>} : vector<4x32xf32>, vector<32x128xf32>, vector<4x128xf32> -> vector<4x128xf32>
    %c24_819 = arith.constant 24 : index
    %c0_820 = arith.constant 0 : index
    %1180 = vector.load %arg15[%c24_819, %c0_820] : memref<33x128xf32, #tpu.memory_space<vmem>>, vector<4x128xf32>
    tpu.vector_store %arg15[%c24_819, %c0_820], %1179 {strides = array<i32>} : memref<33x128xf32, #tpu.memory_space<vmem>>, vector<4x128xf32>,
    %c84 = arith.constant 84 : index
    %1181 = memref.load %arg1[%c84] : memref<96xi32, #tpu.memory_space<smem>>
    %1182 = arith.index_cast %1181 : i32 to index
    %c0_821 = arith.constant 0 : index
    %1183 = vector.load %arg15[%1182, %c0_821] : memref<33x128xf32, #tpu.memory_space<vmem>>, vector<1x128xf32>
    %c0_822 = arith.constant 0 : index
    %c0_823 = arith.constant 0 : index
    %c0_824 = arith.constant 0 : index
    %1184 = vector.load %arg17[%c0_822, %c0_823, %c0_824] : memref<3x4x128xf32, #tpu.memory_space<vmem>>, vector<1x1x128xf32>
    %1185 = vector.shape_cast %1184 : vector<1x1x128xf32> to vector<1x128xf32>
    %1186 = vector.shape_cast %1183 : vector<1x128xf32> to vector<1x1x128xf32>
    tpu.vector_store %arg17[%c0_822, %c0_823, %c0_824], %1186 {strides = array<i32>} : memref<3x4x128xf32, #tpu.memory_space<vmem>>, vector<1x1x128xf32>,
    %1187 = arith.index_cast %1181 : i32 to index
    %c0_825 = arith.constant 0 : index
    %1188 = vector.load %arg16[%1187, %c0_825] : memref<33x32xf32, #tpu.memory_space<vmem>>, vector<1x32xf32>
    %c0_826 = arith.constant 0 : index
    %c0_827 = arith.constant 0 : index
    %c0_828 = arith.constant 0 : index
    %1189 = vector.load %arg18[%c0_826, %c0_827, %c0_828] : memref<3x4x32xf32, #tpu.memory_space<vmem>>, vector<1x1x32xf32>
    %1190 = vector.shape_cast %1189 : vector<1x1x32xf32> to vector<1x32xf32>
    %1191 = vector.shape_cast %1188 : vector<1x32xf32> to vector<1x1x32xf32>
    tpu.vector_store %arg18[%c0_826, %c0_827, %c0_828], %1191 {strides = array<i32>} : memref<3x4x32xf32, #tpu.memory_space<vmem>>, vector<1x1x32xf32>,
    %c87 = arith.constant 87 : index
    %1192 = memref.load %arg1[%c87] : memref<96xi32, #tpu.memory_space<smem>>
    %1193 = arith.index_cast %1192 : i32 to index
    %c0_829 = arith.constant 0 : index
    %1194 = vector.load %arg15[%1193, %c0_829] : memref<33x128xf32, #tpu.memory_space<vmem>>, vector<1x128xf32>
    %c0_830 = arith.constant 0 : index
    %c1_831 = arith.constant 1 : index
    %c0_832 = arith.constant 0 : index
    %1195 = vector.load %arg17[%c0_830, %c1_831, %c0_832] : memref<3x4x128xf32, #tpu.memory_space<vmem>>, vector<1x1x128xf32>
    %1196 = vector.shape_cast %1195 : vector<1x1x128xf32> to vector<1x128xf32>
    %1197 = vector.shape_cast %1194 : vector<1x128xf32> to vector<1x1x128xf32>
    tpu.vector_store %arg17[%c0_830, %c1_831, %c0_832], %1197 {strides = array<i32>} : memref<3x4x128xf32, #tpu.memory_space<vmem>>, vector<1x1x128xf32>,
    %1198 = arith.index_cast %1192 : i32 to index
    %c0_833 = arith.constant 0 : index
    %1199 = vector.load %arg16[%1198, %c0_833] : memref<33x32xf32, #tpu.memory_space<vmem>>, vector<1x32xf32>
    %c0_834 = arith.constant 0 : index
    %c1_835 = arith.constant 1 : index
    %c0_836 = arith.constant 0 : index
    %1200 = vector.load %arg18[%c0_834, %c1_835, %c0_836] : memref<3x4x32xf32, #tpu.memory_space<vmem>>, vector<1x1x32xf32>
    %1201 = vector.shape_cast %1200 : vector<1x1x32xf32> to vector<1x32xf32>
    %1202 = vector.shape_cast %1199 : vector<1x32xf32> to vector<1x1x32xf32>
    tpu.vector_store %arg18[%c0_834, %c1_835, %c0_836], %1202 {strides = array<i32>} : memref<3x4x32xf32, #tpu.memory_space<vmem>>, vector<1x1x32xf32>,
    %c90 = arith.constant 90 : index
    %1203 = memref.load %arg1[%c90] : memref<96xi32, #tpu.memory_space<smem>>
    %1204 = arith.index_cast %1203 : i32 to index
    %c0_837 = arith.constant 0 : index
    %1205 = vector.load %arg15[%1204, %c0_837] : memref<33x128xf32, #tpu.memory_space<vmem>>, vector<1x128xf32>
    %c0_838 = arith.constant 0 : index
    %c2_839 = arith.constant 2 : index
    %c0_840 = arith.constant 0 : index
    %1206 = vector.load %arg17[%c0_838, %c2_839, %c0_840] : memref<3x4x128xf32, #tpu.memory_space<vmem>>, vector<1x1x128xf32>
    %1207 = vector.shape_cast %1206 : vector<1x1x128xf32> to vector<1x128xf32>
    %1208 = vector.shape_cast %1205 : vector<1x128xf32> to vector<1x1x128xf32>
    tpu.vector_store %arg17[%c0_838, %c2_839, %c0_840], %1208 {strides = array<i32>} : memref<3x4x128xf32, #tpu.memory_space<vmem>>, vector<1x1x128xf32>,
    %1209 = arith.index_cast %1203 : i32 to index
    %c0_841 = arith.constant 0 : index
    %1210 = vector.load %arg16[%1209, %c0_841] : memref<33x32xf32, #tpu.memory_space<vmem>>, vector<1x32xf32>
    %c0_842 = arith.constant 0 : index
    %c2_843 = arith.constant 2 : index
    %c0_844 = arith.constant 0 : index
    %1211 = vector.load %arg18[%c0_842, %c2_843, %c0_844] : memref<3x4x32xf32, #tpu.memory_space<vmem>>, vector<1x1x32xf32>
    %1212 = vector.shape_cast %1211 : vector<1x1x32xf32> to vector<1x32xf32>
    %1213 = vector.shape_cast %1210 : vector<1x32xf32> to vector<1x1x32xf32>
    tpu.vector_store %arg18[%c0_842, %c2_843, %c0_844], %1213 {strides = array<i32>} : memref<3x4x32xf32, #tpu.memory_space<vmem>>, vector<1x1x32xf32>,
    %c93 = arith.constant 93 : index
    %1214 = memref.load %arg1[%c93] : memref<96xi32, #tpu.memory_space<smem>>
    %1215 = arith.index_cast %1214 : i32 to index
    %c0_845 = arith.constant 0 : index
    %1216 = vector.load %arg15[%1215, %c0_845] : memref<33x128xf32, #tpu.memory_space<vmem>>, vector<1x128xf32>
    %c0_846 = arith.constant 0 : index
    %c3_847 = arith.constant 3 : index
    %c0_848 = arith.constant 0 : index
    %1217 = vector.load %arg17[%c0_846, %c3_847, %c0_848] : memref<3x4x128xf32, #tpu.memory_space<vmem>>, vector<1x1x128xf32>
    %1218 = vector.shape_cast %1217 : vector<1x1x128xf32> to vector<1x128xf32>
    %1219 = vector.shape_cast %1216 : vector<1x128xf32> to vector<1x1x128xf32>
    tpu.vector_store %arg17[%c0_846, %c3_847, %c0_848], %1219 {strides = array<i32>} : memref<3x4x128xf32, #tpu.memory_space<vmem>>, vector<1x1x128xf32>,
    %1220 = arith.index_cast %1214 : i32 to index
    %c0_849 = arith.constant 0 : index
    %1221 = vector.load %arg16[%1220, %c0_849] : memref<33x32xf32, #tpu.memory_space<vmem>>, vector<1x32xf32>
    %c0_850 = arith.constant 0 : index
    %c3_851 = arith.constant 3 : index
    %c0_852 = arith.constant 0 : index
    %1222 = vector.load %arg18[%c0_850, %c3_851, %c0_852] : memref<3x4x32xf32, #tpu.memory_space<vmem>>, vector<1x1x32xf32>
    %1223 = vector.shape_cast %1222 : vector<1x1x32xf32> to vector<1x32xf32>
    %1224 = vector.shape_cast %1221 : vector<1x32xf32> to vector<1x1x32xf32>
    tpu.vector_store %arg18[%c0_850, %c3_851, %c0_852], %1224 {strides = array<i32>} : memref<3x4x32xf32, #tpu.memory_space<vmem>>, vector<1x1x32xf32>,
    %c85 = arith.constant 85 : index
    %1225 = memref.load %arg1[%c85] : memref<96xi32, #tpu.memory_space<smem>>
    %1226 = arith.index_cast %1225 : i32 to index
    %c0_853 = arith.constant 0 : index
    %1227 = vector.load %arg15[%1226, %c0_853] : memref<33x128xf32, #tpu.memory_space<vmem>>, vector<1x128xf32>
    %c1_854 = arith.constant 1 : index
    %c0_855 = arith.constant 0 : index
    %c0_856 = arith.constant 0 : index
    %1228 = vector.load %arg17[%c1_854, %c0_855, %c0_856] : memref<3x4x128xf32, #tpu.memory_space<vmem>>, vector<1x1x128xf32>
    %1229 = vector.shape_cast %1228 : vector<1x1x128xf32> to vector<1x128xf32>
    %1230 = vector.shape_cast %1227 : vector<1x128xf32> to vector<1x1x128xf32>
    tpu.vector_store %arg17[%c1_854, %c0_855, %c0_856], %1230 {strides = array<i32>} : memref<3x4x128xf32, #tpu.memory_space<vmem>>, vector<1x1x128xf32>,
    %1231 = arith.index_cast %1225 : i32 to index
    %c0_857 = arith.constant 0 : index
    %1232 = vector.load %arg16[%1231, %c0_857] : memref<33x32xf32, #tpu.memory_space<vmem>>, vector<1x32xf32>
    %c1_858 = arith.constant 1 : index
    %c0_859 = arith.constant 0 : index
    %c0_860 = arith.constant 0 : index
    %1233 = vector.load %arg18[%c1_858, %c0_859, %c0_860] : memref<3x4x32xf32, #tpu.memory_space<vmem>>, vector<1x1x32xf32>
    %1234 = vector.shape_cast %1233 : vector<1x1x32xf32> to vector<1x32xf32>
    %1235 = vector.shape_cast %1232 : vector<1x32xf32> to vector<1x1x32xf32>
    tpu.vector_store %arg18[%c1_858, %c0_859, %c0_860], %1235 {strides = array<i32>} : memref<3x4x32xf32, #tpu.memory_space<vmem>>, vector<1x1x32xf32>,
    %c88 = arith.constant 88 : index
    %1236 = memref.load %arg1[%c88] : memref<96xi32, #tpu.memory_space<smem>>
    %1237 = arith.index_cast %1236 : i32 to index
    %c0_861 = arith.constant 0 : index
    %1238 = vector.load %arg15[%1237, %c0_861] : memref<33x128xf32, #tpu.memory_space<vmem>>, vector<1x128xf32>
    %c1_862 = arith.constant 1 : index
    %c1_863 = arith.constant 1 : index
    %c0_864 = arith.constant 0 : index
    %1239 = vector.load %arg17[%c1_862, %c1_863, %c0_864] : memref<3x4x128xf32, #tpu.memory_space<vmem>>, vector<1x1x128xf32>
    %1240 = vector.shape_cast %1239 : vector<1x1x128xf32> to vector<1x128xf32>
    %1241 = vector.shape_cast %1238 : vector<1x128xf32> to vector<1x1x128xf32>
    tpu.vector_store %arg17[%c1_862, %c1_863, %c0_864], %1241 {strides = array<i32>} : memref<3x4x128xf32, #tpu.memory_space<vmem>>, vector<1x1x128xf32>,
    %1242 = arith.index_cast %1236 : i32 to index
    %c0_865 = arith.constant 0 : index
    %1243 = vector.load %arg16[%1242, %c0_865] : memref<33x32xf32, #tpu.memory_space<vmem>>, vector<1x32xf32>
    %c1_866 = arith.constant 1 : index
    %c1_867 = arith.constant 1 : index
    %c0_868 = arith.constant 0 : index
    %1244 = vector.load %arg18[%c1_866, %c1_867, %c0_868] : memref<3x4x32xf32, #tpu.memory_space<vmem>>, vector<1x1x32xf32>
    %1245 = vector.shape_cast %1244 : vector<1x1x32xf32> to vector<1x32xf32>
    %1246 = vector.shape_cast %1243 : vector<1x32xf32> to vector<1x1x32xf32>
    tpu.vector_store %arg18[%c1_866, %c1_867, %c0_868], %1246 {strides = array<i32>} : memref<3x4x32xf32, #tpu.memory_space<vmem>>, vector<1x1x32xf32>,
    %c91 = arith.constant 91 : index
    %1247 = memref.load %arg1[%c91] : memref<96xi32, #tpu.memory_space<smem>>
    %1248 = arith.index_cast %1247 : i32 to index
    %c0_869 = arith.constant 0 : index
    %1249 = vector.load %arg15[%1248, %c0_869] : memref<33x128xf32, #tpu.memory_space<vmem>>, vector<1x128xf32>
    %c1_870 = arith.constant 1 : index
    %c2_871 = arith.constant 2 : index
    %c0_872 = arith.constant 0 : index
    %1250 = vector.load %arg17[%c1_870, %c2_871, %c0_872] : memref<3x4x128xf32, #tpu.memory_space<vmem>>, vector<1x1x128xf32>
    %1251 = vector.shape_cast %1250 : vector<1x1x128xf32> to vector<1x128xf32>
    %1252 = vector.shape_cast %1249 : vector<1x128xf32> to vector<1x1x128xf32>
    tpu.vector_store %arg17[%c1_870, %c2_871, %c0_872], %1252 {strides = array<i32>} : memref<3x4x128xf32, #tpu.memory_space<vmem>>, vector<1x1x128xf32>,
    %1253 = arith.index_cast %1247 : i32 to index
    %c0_873 = arith.constant 0 : index
    %1254 = vector.load %arg16[%1253, %c0_873] : memref<33x32xf32, #tpu.memory_space<vmem>>, vector<1x32xf32>
    %c1_874 = arith.constant 1 : index
    %c2_875 = arith.constant 2 : index
    %c0_876 = arith.constant 0 : index
    %1255 = vector.load %arg18[%c1_874, %c2_875, %c0_876] : memref<3x4x32xf32, #tpu.memory_space<vmem>>, vector<1x1x32xf32>
    %1256 = vector.shape_cast %1255 : vector<1x1x32xf32> to vector<1x32xf32>
    %1257 = vector.shape_cast %1254 : vector<1x32xf32> to vector<1x1x32xf32>
    tpu.vector_store %arg18[%c1_874, %c2_875, %c0_876], %1257 {strides = array<i32>} : memref<3x4x32xf32, #tpu.memory_space<vmem>>, vector<1x1x32xf32>,
    %c94 = arith.constant 94 : index
    %1258 = memref.load %arg1[%c94] : memref<96xi32, #tpu.memory_space<smem>>
    %1259 = arith.index_cast %1258 : i32 to index
    %c0_877 = arith.constant 0 : index
    %1260 = vector.load %arg15[%1259, %c0_877] : memref<33x128xf32, #tpu.memory_space<vmem>>, vector<1x128xf32>
    %c1_878 = arith.constant 1 : index
    %c3_879 = arith.constant 3 : index
    %c0_880 = arith.constant 0 : index
    %1261 = vector.load %arg17[%c1_878, %c3_879, %c0_880] : memref<3x4x128xf32, #tpu.memory_space<vmem>>, vector<1x1x128xf32>
    %1262 = vector.shape_cast %1261 : vector<1x1x128xf32> to vector<1x128xf32>
    %1263 = vector.shape_cast %1260 : vector<1x128xf32> to vector<1x1x128xf32>
    tpu.vector_store %arg17[%c1_878, %c3_879, %c0_880], %1263 {strides = array<i32>} : memref<3x4x128xf32, #tpu.memory_space<vmem>>, vector<1x1x128xf32>,
    %1264 = arith.index_cast %1258 : i32 to index
    %c0_881 = arith.constant 0 : index
    %1265 = vector.load %arg16[%1264, %c0_881] : memref<33x32xf32, #tpu.memory_space<vmem>>, vector<1x32xf32>
    %c1_882 = arith.constant 1 : index
    %c3_883 = arith.constant 3 : index
    %c0_884 = arith.constant 0 : index
    %1266 = vector.load %arg18[%c1_882, %c3_883, %c0_884] : memref<3x4x32xf32, #tpu.memory_space<vmem>>, vector<1x1x32xf32>
    %1267 = vector.shape_cast %1266 : vector<1x1x32xf32> to vector<1x32xf32>
    %1268 = vector.shape_cast %1265 : vector<1x32xf32> to vector<1x1x32xf32>
    tpu.vector_store %arg18[%c1_882, %c3_883, %c0_884], %1268 {strides = array<i32>} : memref<3x4x32xf32, #tpu.memory_space<vmem>>, vector<1x1x32xf32>,
    %c86 = arith.constant 86 : index
    %1269 = memref.load %arg1[%c86] : memref<96xi32, #tpu.memory_space<smem>>
    %1270 = arith.index_cast %1269 : i32 to index
    %c0_885 = arith.constant 0 : index
    %1271 = vector.load %arg15[%1270, %c0_885] : memref<33x128xf32, #tpu.memory_space<vmem>>, vector<1x128xf32>
    %c2_886 = arith.constant 2 : index
    %c0_887 = arith.constant 0 : index
    %c0_888 = arith.constant 0 : index
    %1272 = vector.load %arg17[%c2_886, %c0_887, %c0_888] : memref<3x4x128xf32, #tpu.memory_space<vmem>>, vector<1x1x128xf32>
    %1273 = vector.shape_cast %1272 : vector<1x1x128xf32> to vector<1x128xf32>
    %1274 = vector.shape_cast %1271 : vector<1x128xf32> to vector<1x1x128xf32>
    tpu.vector_store %arg17[%c2_886, %c0_887, %c0_888], %1274 {strides = array<i32>} : memref<3x4x128xf32, #tpu.memory_space<vmem>>, vector<1x1x128xf32>,
    %1275 = arith.index_cast %1269 : i32 to index
    %c0_889 = arith.constant 0 : index
    %1276 = vector.load %arg16[%1275, %c0_889] : memref<33x32xf32, #tpu.memory_space<vmem>>, vector<1x32xf32>
    %c2_890 = arith.constant 2 : index
    %c0_891 = arith.constant 0 : index
    %c0_892 = arith.constant 0 : index
    %1277 = vector.load %arg18[%c2_890, %c0_891, %c0_892] : memref<3x4x32xf32, #tpu.memory_space<vmem>>, vector<1x1x32xf32>
    %1278 = vector.shape_cast %1277 : vector<1x1x32xf32> to vector<1x32xf32>
    %1279 = vector.shape_cast %1276 : vector<1x32xf32> to vector<1x1x32xf32>
    tpu.vector_store %arg18[%c2_890, %c0_891, %c0_892], %1279 {strides = array<i32>} : memref<3x4x32xf32, #tpu.memory_space<vmem>>, vector<1x1x32xf32>,
    %c89 = arith.constant 89 : index
    %1280 = memref.load %arg1[%c89] : memref<96xi32, #tpu.memory_space<smem>>
    %1281 = arith.index_cast %1280 : i32 to index
    %c0_893 = arith.constant 0 : index
    %1282 = vector.load %arg15[%1281, %c0_893] : memref<33x128xf32, #tpu.memory_space<vmem>>, vector<1x128xf32>
    %c2_894 = arith.constant 2 : index
    %c1_895 = arith.constant 1 : index
    %c0_896 = arith.constant 0 : index
    %1283 = vector.load %arg17[%c2_894, %c1_895, %c0_896] : memref<3x4x128xf32, #tpu.memory_space<vmem>>, vector<1x1x128xf32>
    %1284 = vector.shape_cast %1283 : vector<1x1x128xf32> to vector<1x128xf32>
    %1285 = vector.shape_cast %1282 : vector<1x128xf32> to vector<1x1x128xf32>
    tpu.vector_store %arg17[%c2_894, %c1_895, %c0_896], %1285 {strides = array<i32>} : memref<3x4x128xf32, #tpu.memory_space<vmem>>, vector<1x1x128xf32>,
    %1286 = arith.index_cast %1280 : i32 to index
    %c0_897 = arith.constant 0 : index
    %1287 = vector.load %arg16[%1286, %c0_897] : memref<33x32xf32, #tpu.memory_space<vmem>>, vector<1x32xf32>
    %c2_898 = arith.constant 2 : index
    %c1_899 = arith.constant 1 : index
    %c0_900 = arith.constant 0 : index
    %1288 = vector.load %arg18[%c2_898, %c1_899, %c0_900] : memref<3x4x32xf32, #tpu.memory_space<vmem>>, vector<1x1x32xf32>
    %1289 = vector.shape_cast %1288 : vector<1x1x32xf32> to vector<1x32xf32>
    %1290 = vector.shape_cast %1287 : vector<1x32xf32> to vector<1x1x32xf32>
    tpu.vector_store %arg18[%c2_898, %c1_899, %c0_900], %1290 {strides = array<i32>} : memref<3x4x32xf32, #tpu.memory_space<vmem>>, vector<1x1x32xf32>,
    %c92 = arith.constant 92 : index
    %1291 = memref.load %arg1[%c92] : memref<96xi32, #tpu.memory_space<smem>>
    %1292 = arith.index_cast %1291 : i32 to index
    %c0_901 = arith.constant 0 : index
    %1293 = vector.load %arg15[%1292, %c0_901] : memref<33x128xf32, #tpu.memory_space<vmem>>, vector<1x128xf32>
    %c2_902 = arith.constant 2 : index
    %c2_903 = arith.constant 2 : index
    %c0_904 = arith.constant 0 : index
    %1294 = vector.load %arg17[%c2_902, %c2_903, %c0_904] : memref<3x4x128xf32, #tpu.memory_space<vmem>>, vector<1x1x128xf32>
    %1295 = vector.shape_cast %1294 : vector<1x1x128xf32> to vector<1x128xf32>
    %1296 = vector.shape_cast %1293 : vector<1x128xf32> to vector<1x1x128xf32>
    tpu.vector_store %arg17[%c2_902, %c2_903, %c0_904], %1296 {strides = array<i32>} : memref<3x4x128xf32, #tpu.memory_space<vmem>>, vector<1x1x128xf32>,
    %1297 = arith.index_cast %1291 : i32 to index
    %c0_905 = arith.constant 0 : index
    %1298 = vector.load %arg16[%1297, %c0_905] : memref<33x32xf32, #tpu.memory_space<vmem>>, vector<1x32xf32>
    %c2_906 = arith.constant 2 : index
    %c2_907 = arith.constant 2 : index
    %c0_908 = arith.constant 0 : index
    %1299 = vector.load %arg18[%c2_906, %c2_907, %c0_908] : memref<3x4x32xf32, #tpu.memory_space<vmem>>, vector<1x1x32xf32>
    %1300 = vector.shape_cast %1299 : vector<1x1x32xf32> to vector<1x32xf32>
    %1301 = vector.shape_cast %1298 : vector<1x32xf32> to vector<1x1x32xf32>
    tpu.vector_store %arg18[%c2_906, %c2_907, %c0_908], %1301 {strides = array<i32>} : memref<3x4x32xf32, #tpu.memory_space<vmem>>, vector<1x1x32xf32>,
    %c95 = arith.constant 95 : index
    %1302 = memref.load %arg1[%c95] : memref<96xi32, #tpu.memory_space<smem>>
    %1303 = arith.index_cast %1302 : i32 to index
    %c0_909 = arith.constant 0 : index
    %1304 = vector.load %arg15[%1303, %c0_909] : memref<33x128xf32, #tpu.memory_space<vmem>>, vector<1x128xf32>
    %c2_910 = arith.constant 2 : index
    %c3_911 = arith.constant 3 : index
    %c0_912 = arith.constant 0 : index
    %1305 = vector.load %arg17[%c2_910, %c3_911, %c0_912] : memref<3x4x128xf32, #tpu.memory_space<vmem>>, vector<1x1x128xf32>
    %1306 = vector.shape_cast %1305 : vector<1x1x128xf32> to vector<1x128xf32>
    %1307 = vector.shape_cast %1304 : vector<1x128xf32> to vector<1x1x128xf32>
    tpu.vector_store %arg17[%c2_910, %c3_911, %c0_912], %1307 {strides = array<i32>} : memref<3x4x128xf32, #tpu.memory_space<vmem>>, vector<1x1x128xf32>,
    %1308 = arith.index_cast %1302 : i32 to index
    %c0_913 = arith.constant 0 : index
    %1309 = vector.load %arg16[%1308, %c0_913] : memref<33x32xf32, #tpu.memory_space<vmem>>, vector<1x32xf32>
    %c2_914 = arith.constant 2 : index
    %c3_915 = arith.constant 3 : index
    %c0_916 = arith.constant 0 : index
    %1310 = vector.load %arg18[%c2_914, %c3_915, %c0_916] : memref<3x4x32xf32, #tpu.memory_space<vmem>>, vector<1x1x32xf32>
    %1311 = vector.shape_cast %1310 : vector<1x1x32xf32> to vector<1x32xf32>
    %1312 = vector.shape_cast %1309 : vector<1x32xf32> to vector<1x1x32xf32>
    tpu.vector_store %arg18[%c2_914, %c3_915, %c0_916], %1312 {strides = array<i32>} : memref<3x4x32xf32, #tpu.memory_space<vmem>>, vector<1x1x32xf32>,
    %c0_917 = arith.constant 0 : index
    %c0_918 = arith.constant 0 : index
    %c0_919 = arith.constant 0 : index
    %1313 = vector.load %arg17[%c0_917, %c0_918, %c0_919] : memref<3x4x128xf32, #tpu.memory_space<vmem>>, vector<3x4x128xf32>
    %c0_920 = arith.constant 0 : index
    %c0_921 = arith.constant 0 : index
    %c0_922 = arith.constant 0 : index
    %1314 = vector.load %arg18[%c0_920, %c0_921, %c0_922] : memref<3x4x32xf32, #tpu.memory_space<vmem>>, vector<3x4x32xf32>
    %c28_923 = arith.constant 28 : index
    %c0_924 = arith.constant 0 : index
    %1315 = vector.load %arg14[%c28_923, %c0_924] : memref<32x128xf32, #tpu.memory_space<vmem>>, vector<4x128xf32>
    %1316 = vector.extract_strided_slice %1315 {offsets = [0, 96], sizes = [4, 32], strides = [1, 1]} : vector<4x128xf32> to vector<4x32xf32>
    %1317 = vector.extract_strided_slice %1313 {offsets = [0, 0, 96], sizes = [3, 4, 32], strides = [1, 1, 1]} : vector<3x4x128xf32> to vector<3x4x32xf32>
    %1318 = vector.shape_cast %1316 : vector<4x32xf32> to vector<1x4x32xf32>
    %1319 = vector.broadcast %1318 : vector<1x4x32xf32> to vector<3x4x32xf32>
    %1320 = arith.addf %1317, %1319 : vector<3x4x32xf32>
    %1321 = arith.negf %1320 : vector<3x4x32xf32>
    %1322 = math.exp %1321 : vector<3x4x32xf32>
    %cst_925 = arith.constant 1.000000e+00 : f32
    %1323 = vector.broadcast %cst_925 : f32 to vector<3x4x32xf32>
    %1324 = arith.addf %1323, %1322 : vector<3x4x32xf32>
    %1325 = arith.divf %1323, %1324 : vector<3x4x32xf32>
    %1326 = arith.mulf %1325, %1314 : vector<3x4x32xf32>
    %cst_926 = arith.constant dense<0.000000e+00> : vector<4x32xf32>
    %1327 = vector.multi_reduction <add>, %1326, %cst_926 [0] : vector<3x4x32xf32> to vector<4x32xf32>
    %1328 = vector.extract_strided_slice %1313 {offsets = [0, 0, 0], sizes = [3, 4, 96], strides = [1, 1, 1]} : vector<3x4x128xf32> to vector<3x4x96xf32>
    %cst_927 = arith.constant dense<0.000000e+00> : vector<4x96xf32>
    %1329 = vector.multi_reduction <add>, %1328, %cst_927 [0] : vector<3x4x96xf32> to vector<4x96xf32>
    %1330 = vector.extract_strided_slice %1315 {offsets = [0, 0], sizes = [4, 96], strides = [1, 1]} : vector<4x128xf32> to vector<4x96xf32>
    %1331 = arith.addf %1330, %1329 : vector<4x96xf32>
    %1332 = arith.negf %1331 : vector<4x96xf32>
    %1333 = math.exp %1332 : vector<4x96xf32>
    %cst_928 = arith.constant 1.000000e+00 : f32
    %1334 = vector.broadcast %cst_928 : f32 to vector<4x96xf32>
    %1335 = arith.addf %1334, %1333 : vector<4x96xf32>
    %1336 = arith.divf %1334, %1335 : vector<4x96xf32>
    %1337 = vector.extract_strided_slice %1336 {offsets = [0, 0], sizes = [4, 32], strides = [1, 1]} : vector<4x96xf32> to vector<4x32xf32>
    %1338 = vector.extract_strided_slice %1336 {offsets = [0, 32], sizes = [4, 32], strides = [1, 1]} : vector<4x96xf32> to vector<4x32xf32>
    %1339 = vector.extract_strided_slice %1336 {offsets = [0, 64], sizes = [4, 32], strides = [1, 1]} : vector<4x96xf32> to vector<4x32xf32>
    %1340 = arith.mulf %1337, %1339 : vector<4x32xf32>
    %1341 = arith.addf %1340, %1327 : vector<4x32xf32>
    %1342 = math.tanh %1341 : vector<4x32xf32>
    %1343 = arith.mulf %1338, %1342 : vector<4x32xf32>
    %c28_929 = arith.constant 28 : index
    %c0_930 = arith.constant 0 : index
    %1344 = vector.load %arg10[%c28_929, %c0_930] : memref<32x32xf32, #tpu.memory_space<vmem>>, vector<4x32xf32>
    tpu.vector_store %arg10[%c28_929, %c0_930], %1343 {strides = array<i32>} : memref<32x32xf32, #tpu.memory_space<vmem>>, vector<4x32xf32>,
    %c28_931 = arith.constant 28 : index
    %c0_932 = arith.constant 0 : index
    %1345 = vector.load %arg16[%c28_931, %c0_932] : memref<33x32xf32, #tpu.memory_space<vmem>>, vector<4x32xf32>
    tpu.vector_store %arg16[%c28_931, %c0_932], %1341 {strides = array<i32>} : memref<33x32xf32, #tpu.memory_space<vmem>>, vector<4x32xf32>,
    %cst_933 = arith.constant dense<0.000000e+00> : vector<4x128xf32>
    %1346 = tpu.matmul %1343, %0, %cst_933 {dimension_numbers = #tpu.dot_dimension_numbers<[1], [0], [0], [1], [0, 0, 1, 1], [], []>} : vector<4x32xf32>, vector<32x128xf32>, vector<4x128xf32> -> vector<4x128xf32>
    %c28_934 = arith.constant 28 : index
    %c0_935 = arith.constant 0 : index
    %1347 = vector.load %arg15[%c28_934, %c0_935] : memref<33x128xf32, #tpu.memory_space<vmem>>, vector<4x128xf32>
    tpu.vector_store %arg15[%c28_934, %c0_935], %1346 {strides = array<i32>} : memref<33x128xf32, #tpu.memory_space<vmem>>, vector<4x128xf32>,
    %c0_936 = arith.constant 0 : index
    %c0_937 = arith.constant 0 : index
    %1348 = vector.load %arg11[%c0_936, %c0_937] : memref<4x32xf32, #tpu.memory_space<vmem>>, vector<4x32xf32>
    tpu.vector_store %arg11[%c0_936, %c0_937], %1341 {strides = array<i32>} : memref<4x32xf32, #tpu.memory_space<vmem>>, vector<4x32xf32>,
    %c0_938 = arith.constant 0 : index
    %c0_939 = arith.constant 0 : index
    %1349 = vector.load %arg12[%c0_938, %c0_939] : memref<4x32xf32, #tpu.memory_space<vmem>>, vector<4x32xf32>
    tpu.vector_store %arg12[%c0_938, %c0_939], %1343 {strides = array<i32>} : memref<4x32xf32, #tpu.memory_space<vmem>>, vector<4x32xf32>,
    %1350 = vector.extract_strided_slice %1343 {offsets = [0, 0], sizes = [2, 32], strides = [1, 1]} : vector<4x32xf32> to vector<2x32xf32>
    %1351 = vector.extract_strided_slice %1343 {offsets = [2, 0], sizes = [2, 32], strides = [1, 1]} : vector<4x32xf32> to vector<2x32xf32>
    %1352 = arith.mulf %1350, %1351 : vector<2x32xf32>
    %1353 = arith.subf %1350, %1351 : vector<2x32xf32>
    %1354 = math.absf %1353 : vector<2x32xf32>
    %c0_940 = arith.constant 0 : index
    %c0_941 = arith.constant 0 : index
    %1355 = vector.load %arg6[%c0_940, %c0_941] : memref<64x32xf32, #tpu.memory_space<vmem>>, vector<32x32xf32>
    %cst_942 = arith.constant dense<0.000000e+00> : vector<2x32xf32>
    %1356 = tpu.matmul %1352, %1355, %cst_942 {dimension_numbers = #tpu.dot_dimension_numbers<[1], [0], [0], [1], [0, 0, 1, 1], [], []>} : vector<2x32xf32>, vector<32x32xf32>, vector<2x32xf32> -> vector<2x32xf32>
    %c32_943 = arith.constant 32 : index
    %c0_944 = arith.constant 0 : index
    %1357 = vector.load %arg6[%c32_943, %c0_944] : memref<64x32xf32, #tpu.memory_space<vmem>>, vector<32x32xf32>
    %cst_945 = arith.constant dense<0.000000e+00> : vector<2x32xf32>
    %1358 = tpu.matmul %1354, %1357, %cst_945 {dimension_numbers = #tpu.dot_dimension_numbers<[1], [0], [0], [1], [0, 0, 1, 1], [], []>} : vector<2x32xf32>, vector<32x32xf32>, vector<2x32xf32> -> vector<2x32xf32>
    %1359 = arith.addf %1356, %1358 : vector<2x32xf32>
    %c0_946 = arith.constant 0 : index
    %c0_947 = arith.constant 0 : index
    %1360 = vector.load %arg7[%c0_946, %c0_947] : memref<1x32xf32, #tpu.memory_space<vmem>>, vector<1x32xf32>
    %1361 = vector.broadcast %1360 : vector<1x32xf32> to vector<2x32xf32>
    %1362 = arith.addf %1359, %1361 : vector<2x32xf32>
    %1363 = arith.negf %1362 : vector<2x32xf32>
    %1364 = math.exp %1363 : vector<2x32xf32>
    %cst_948 = arith.constant 1.000000e+00 : f32
    %1365 = vector.broadcast %cst_948 : f32 to vector<2x32xf32>
    %1366 = arith.addf %1365, %1364 : vector<2x32xf32>
    %1367 = arith.divf %1365, %1366 : vector<2x32xf32>
    %c0_949 = arith.constant 0 : index
    %c0_950 = arith.constant 0 : index
    %1368 = vector.load %arg8[%c0_949, %c0_950] : memref<32x1xf32, #tpu.memory_space<vmem>>, vector<32x1xf32>
    %cst_951 = arith.constant dense<0.000000e+00> : vector<2x1xf32>
    %1369 = tpu.matmul %1367, %1368, %cst_951 {dimension_numbers = #tpu.dot_dimension_numbers<[1], [0], [0], [1], [0, 0, 1, 1], [], []>} : vector<2x32xf32>, vector<32x1xf32>, vector<2x1xf32> -> vector<2x1xf32>
    %c0_952 = arith.constant 0 : index
    %c0_953 = arith.constant 0 : index
    %1370 = vector.load %arg9[%c0_952, %c0_953] : memref<1x1xf32, #tpu.memory_space<vmem>>, vector<1x1xf32>
    %1371 = vector.broadcast %1370 : vector<1x1xf32> to vector<2x1xf32>
    %1372 = arith.addf %1369, %1371 : vector<2x1xf32>
    %1373 = arith.negf %1372 : vector<2x1xf32>
    %1374 = math.exp %1373 : vector<2x1xf32>
    %cst_954 = arith.constant 1.000000e+00 : f32
    %1375 = vector.broadcast %cst_954 : f32 to vector<2x1xf32>
    %1376 = arith.addf %1375, %1374 : vector<2x1xf32>
    %1377 = arith.divf %1375, %1376 : vector<2x1xf32>
    %c0_955 = arith.constant 0 : index
    %c0_956 = arith.constant 0 : index
    %1378 = vector.load %arg13[%c0_955, %c0_956] : memref<2x1xf32, #tpu.memory_space<vmem>>, vector<2x1xf32>
    tpu.vector_store %arg13[%c0_955, %c0_956], %1377 {strides = array<i32>} : memref<2x1xf32, #tpu.memory_space<vmem>>, vector<2x1xf32>,
    return
  }
  func.func @transform_0(%arg0: i32, %arg1: memref<96xi32, #tpu.memory_space<smem>>) -> (i32, i32) {
    %c0_i32 = arith.constant 0 : i32
    %c0_i32_0 = arith.constant 0 : i32
    %c0_i32_1 = arith.constant 0 : i32
    return %c0_i32, %c0_i32_0 : i32, i32
  }
  func.func @transform_1(%arg0: i32, %arg1: memref<96xi32, #tpu.memory_space<smem>>) -> (i32, i32) {
    %c0_i32 = arith.constant 0 : i32
    %c0_i32_0 = arith.constant 0 : i32
    %c0_i32_1 = arith.constant 0 : i32
    return %c0_i32, %c0_i32_0 : i32, i32
  }
  func.func @transform_2(%arg0: i32, %arg1: memref<96xi32, #tpu.memory_space<smem>>) -> (i32, i32) {
    %c0_i32 = arith.constant 0 : i32
    %c0_i32_0 = arith.constant 0 : i32
    %c0_i32_1 = arith.constant 0 : i32
    return %c0_i32, %c0_i32_0 : i32, i32
  }
  func.func @transform_3(%arg0: i32, %arg1: memref<96xi32, #tpu.memory_space<smem>>) -> (i32, i32) {
    %c0_i32 = arith.constant 0 : i32
    %c0_i32_0 = arith.constant 0 : i32
    %c0_i32_1 = arith.constant 0 : i32
    return %c0_i32, %c0_i32_0 : i32, i32
  }
  func.func @transform_4(%arg0: i32, %arg1: memref<96xi32, #tpu.memory_space<smem>>) -> (i32, i32) {
    %c0_i32 = arith.constant 0 : i32
    %c0_i32_0 = arith.constant 0 : i32
    %c0_i32_1 = arith.constant 0 : i32
    return %c0_i32, %c0_i32_0 : i32, i32
  }
  func.func @transform_5(%arg0: i32, %arg1: memref<96xi32, #tpu.memory_space<smem>>) -> (i32, i32) {
    %c0_i32 = arith.constant 0 : i32
    %c0_i32_0 = arith.constant 0 : i32
    %c0_i32_1 = arith.constant 0 : i32
    return %c0_i32, %c0_i32_0 : i32, i32
  }
  func.func @transform_6(%arg0: i32, %arg1: memref<96xi32, #tpu.memory_space<smem>>) -> (i32, i32) {
    %c0_i32 = arith.constant 0 : i32
    %c0_i32_0 = arith.constant 0 : i32
    %c0_i32_1 = arith.constant 0 : i32
    return %c0_i32, %c0_i32_0 : i32, i32
  }
  func.func @transform_7(%arg0: i32, %arg1: memref<96xi32, #tpu.memory_space<smem>>) -> (i32, i32) {
    %c0_i32 = arith.constant 0 : i32
    %c0_i32_0 = arith.constant 0 : i32
    %c0_i32_1 = arith.constant 0 : i32
    return %c0_i32, %c0_i32_0 : i32, i32
  }
  func.func @transform_8(%arg0: i32, %arg1: memref<96xi32, #tpu.memory_space<smem>>) -> (i32, i32) {
    %c0_i32 = arith.constant 0 : i32
    %c0_i32_0 = arith.constant 0 : i32
    %c0_i32_1 = arith.constant 0 : i32
    return %c0_i32, %c0_i32_0 : i32, i32
  }
  func.func @transform_9(%arg0: i32, %arg1: memref<96xi32, #tpu.memory_space<smem>>) -> (i32, i32) {
    %c0_i32 = arith.constant 0 : i32
    %c0_i32_0 = arith.constant 0 : i32
    %c0_i32_1 = arith.constant 0 : i32
    return %c0_i32, %c0_i32_0 : i32, i32
  }
  func.func @transform_10(%arg0: i32, %arg1: memref<96xi32, #tpu.memory_space<smem>>) -> (i32, i32) {
    %c0_i32 = arith.constant 0 : i32
    %c0_i32_0 = arith.constant 0 : i32
    %c0_i32_1 = arith.constant 0 : i32
    return %c0_i32, %c0_i32_0 : i32, i32
  }
  func.func @transform_11(%arg0: i32, %arg1: memref<96xi32, #tpu.memory_space<smem>>) -> (i32, i32) {
    %c0_i32 = arith.constant 0 : i32
    %c0_i32_0 = arith.constant 0 : i32
    %c0_i32_1 = arith.constant 0 : i32
    return %c0_i32, %c0_i32_0 : i32, i32
  }
}

</mosaic_0001>

<llo_original>
// kernel: tpu_custom_call.1
$region0: #{tpu_custom_call.1}
  #allocation0 [shape = 'u32[]', space=smem, size = 0x4, offset = 0x4, fixed_abs, tag = 'smem constant byte address 0x4 - core index']
  #allocation1 [shape = 'u32[144,128]{1,0:T(1,128)}', space=vmem, size = 0x12000, scoped, tag = 'internal scratch']
  #allocation2 [shape = 'f32[32,128]{1,0:T(8,128)}', space=vmem, size = 0x4000, scoped, tag = 'scratch operand']
  #allocation3 [shape = 'f32[33,128]{1,0:T(8,128)}', space=vmem, size = 0x5000, scoped, tag = 'scratch operand']
  #allocation4 [shape = 'f32[33,32]{1,0:T(8,128)}', space=vmem, size = 0x5000, scoped, tag = 'scratch operand']
  #allocation5 [shape = 'f32[3,4,128]{2,1,0:T(4,128)}', space=vmem, size = 0x1800, scoped, tag = 'scratch operand']
  #allocation6 [shape = 'f32[3,4,32]{2,1,0:T(4,128)}', space=vmem, size = 0x1800, scoped, tag = 'scratch operand']
  #allocation7 [shape = 's32[1]{0}', space=sflag, size = 0x4, scoped, tag = 'scoped memory for tpu_custom_call.1']
  #allocation8 [shape = 'u8[512]{0}', space=smem, size = 0x200, scoped, tag = 'prefetched SMEM operand 0']
  #allocation9 [shape = 'f32[1,1]{1,0:T(1,128)S(1)}', space=vmem, size = 0x200, scoped, tag = 'scoped memory for tpu_custom_call.1']
  %s0 = inlined_call_operand.vmem [shape: s32[96], index: 0, kind: input, shape index: {}]
  %s1 = inlined_call_operand.vmem [shape: f32[32,32], index: 1, kind: input, shape index: {}]
  %s2 = inlined_call_operand.vmem [shape: f32[32,128], index: 2, kind: input, shape index: {}]
  %s3 = inlined_call_operand.vmem [shape: f32[1,128], index: 3, kind: input, shape index: {}]
  %s4 = inlined_call_operand.vmem [shape: f32[32,128], index: 4, kind: input, shape index: {}]
  %s5 = inlined_call_operand.vmem [shape: f32[64,32], index: 5, kind: input, shape index: {}]
  %s6 = inlined_call_operand.vmem [shape: f32[1,32], index: 6, kind: input, shape index: {}]
  %s7 = inlined_call_operand.vmem [shape: f32[32,1], index: 7, kind: input, shape index: {}]
  %s8 = inlined_call_operand.<no memory space> [shape: f32[1,1], index: 8, kind: input, shape index: {}]
  %s9 = inlined_call_operand.hbm [shape: f32[32,32], index: 9, kind: output, shape index: {0}]
  %s10 = inlined_call_operand.hbm [shape: f32[4,32], index: 10, kind: output, shape index: {1}]
  %s11 = inlined_call_operand.hbm [shape: f32[4,32], index: 11, kind: output, shape index: {2}]
  %s12 = inlined_call_operand.vmem [shape: f32[2,1], index: 12, kind: output, shape index: {3}]
  %13 = xla_tuple %s9, %s10, %s11, %s12
  %s14 = sld [smem:[#allocation0]]
  $region66: #{tpu_custom_call.1} parent=0
    _
  %s16 = ssub.s32 1, %s14
  %s17 = scalar_select 0, %s16, %s14
  %s18 = sshll.u32 %s0, 4
  %s19 = int_to_ptr.vmem [resolvable:$true] %s18
  %21 = dma.vmem_to_smem %s19, 16, [#allocation8], [#allocation7]
  %v22 = vstv %s8
  %23 = vst [vmem:[#allocation9] sm:$0x1] %v22
  %24 = dma.done [#allocation7], 16
  %25 = sfence
  $region1: #{tpu_custom_call.1} parent=0
    #allocation10 [shape = 'u8[16384]{0}', space=vmem, size = 0x4000, scoped, tag = 'output window, operand 0, single buffered']
    #allocation11 [shape = 's32[1]{0}', space=sflag, size = 0x4, scoped, tag = 'scoped memory for tpu_custom_call.1']
    #allocation12 [shape = 'u8[2048]{0}', space=vmem, size = 0x800, scoped, tag = 'output window, operand 1, single buffered']
    #allocation13 [shape = 's32[1]{0}', space=sflag, size = 0x4, scoped, tag = 'scoped memory for tpu_custom_call.1']
    #allocation14 [shape = 'u8[2048]{0}', space=vmem, size = 0x800, scoped, tag = 'output window, operand 2, single buffered']
    %26 = vsyncpa [#allocation11], 0
    %27 = vsyncpa [#allocation13], 0
    // Predicated region
    $region2: #{tpu_custom_call.1} parent=1 // pred_check
      _
    $region3: #{tpu_custom_call.1} parent=1 // pred_check_branch
      %29 = sbr.rel (0) target = $region5
    $region4: #{tpu_custom_call.1} parent=1 // pred_region
      _
    $region5: #{tpu_custom_call.1} parent=1 // pred_fallthru
      _
    // Predicated region
    $region6: #{tpu_custom_call.1} parent=1 // pred_check
      _
    $region7: #{tpu_custom_call.1} parent=1 // pred_check_branch
      %31 = sbr.rel (0) target = $region9
    $region8: #{tpu_custom_call.1} parent=1 // pred_region
      _
    $region9: #{tpu_custom_call.1} parent=1 // pred_fallthru
      _
    // Predicated region
    $region10: #{tpu_custom_call.1} parent=1 // pred_check
      _
    $region11: #{tpu_custom_call.1} parent=1 // pred_check_branch
      %33 = sbr.rel (0) target = $region13
    $region12: #{tpu_custom_call.1} parent=1 // pred_region
      _
    $region13: #{tpu_custom_call.1} parent=1 // pred_fallthru
      _
    // Predicated region
    $region14: #{tpu_custom_call.1} parent=1 // pred_check
      _
    $region15: #{tpu_custom_call.1} parent=1 // pred_check_branch
      %35 = sbr.rel (0) target = $region17
    $region16: #{tpu_custom_call.1} parent=1 // pred_region
      _
    $region17: #{tpu_custom_call.1} parent=1 // pred_fallthru
      _
    // Predicated region
    $region18: #{tpu_custom_call.1} parent=1 // pred_check
      _
    $region19: #{tpu_custom_call.1} parent=1 // pred_check_branch
      %37 = sbr.rel (0) target = $region21
    $region20: #{tpu_custom_call.1} parent=1 // pred_region
      _
    $region21: #{tpu_custom_call.1} parent=1 // pred_fallthru
      _
    // Predicated region
    $region22: #{tpu_custom_call.1} parent=1 // pred_check
      _
    $region23: #{tpu_custom_call.1} parent=1 // pred_check_branch
      %39 = sbr.rel (0) target = $region25
    $region24: #{tpu_custom_call.1} parent=1 // pred_region
      _
    $region25: #{tpu_custom_call.1} parent=1 // pred_fallthru
      _
    // Predicated region
    $region26: #{tpu_custom_call.1} parent=1 // pred_check
      _
    $region27: #{tpu_custom_call.1} parent=1 // pred_check_branch
      %41 = sbr.rel (0) target = $region29
    $region28: #{tpu_custom_call.1} parent=1 // pred_region
      _
    $region29: #{tpu_custom_call.1} parent=1 // pred_fallthru
      _
    // Predicated region
    $region30: #{tpu_custom_call.1} parent=1 // pred_check
      _
    $region31: #{tpu_custom_call.1} parent=1 // pred_check_branch
      %43 = sbr.rel (0) target = $region33
    $region32: #{tpu_custom_call.1} parent=1 // pred_region
      _
    $region33: #{tpu_custom_call.1} parent=1 // pred_fallthru
      _
    %v44 = vld [vmem:[%s4] sm:$0xff]
    %v45 = vld [vmem:[%s4 + $0x8] sm:$0xff]
    %v46 = vld [vmem:[%s4 + $0x10] sm:$0xff]
    %v47 = vld [vmem:[%s4 + $0x18] sm:$0xff]
    %48 = vst [vmem:[#allocation3 + $0x20] sm:$0x1] 0.0
    %vm49 = vcmask 253952
    %50 = vst.msk [vmem:[#allocation4 + $0x20] sm:$0x1] %vm49, 0.0
    %v51 = vld [vmem:[%s1] sm:$0xff]
    %v52 = vld [vmem:[%s1 + $0x8] sm:$0xff]
    %v53 = vld [vmem:[%s1 + $0x10] sm:$0xff]
    %v54 = vld [vmem:[%s1 + $0x18] sm:$0xff]
    %v55 = vld [vmem:[%s2] sm:$0xff]
    %v56 = vld [vmem:[%s2 + $0x8] sm:$0xff]
    %v57 = vld [vmem:[%s2 + $0x10] sm:$0xff]
    %v58 = vld [vmem:[%s2 + $0x18] sm:$0xff]
    %v59 = vld [vmem:[%s3] sm:$0x1]
    %v61 = vlaneseq
    %v62 = vshrl.u32 %v61, 7
    %v63 = vsub.s32 0, %v62
    %v64 = vrot.slane %v59, %v63
    %vm66 = vcmask 261120
    %v68 = vsel %vm66, %v51, 0
    %v71 = vsel %vm66, %v52, 0
    %v74 = vsel %vm66, %v53, 0
    %v77 = vsel %vm66, %v54, 0
    %79 = vmatprep.subr.mxu0 0.0
    %80 = vmatpush1.msra.mxu0 0.0
    %81 = vmatprep.subr.mxu0 0.0
    %82 = vmatpush1.msra.mxu0 0.0
    %83 = vmatprep.subr.mxu0 0.0
    %84 = vmatpush1.msra.mxu0 0.0
    %85 = vmatprep.subr.mxu0 0.0
    %86 = vmatpush1.msra.mxu0 0.0
    %87 = vmatprep.subr.mxu0 0.0
    %88 = vmatpush1.msra.mxu0 0.0
    %89 = vmatprep.subr.mxu0 0.0
    %90 = vmatpush1.msra.mxu0 0.0
    %91 = vmatprep.subr.mxu0 0.0
    %92 = vmatpush1.msra.mxu0 0.0
    %93 = vmatprep.subr.mxu0 0.0
    %94 = vmatpush1.msra.mxu0 0.0
    %95 = vmatprep.subr.mxu0 0.0
    %96 = vmatpush1.msra.mxu0 0.0
    %97 = vmatprep.subr.mxu0 0.0
    %98 = vmatpush1.msra.mxu0 0.0
    %99 = vmatprep.subr.mxu0 0.0
    %100 = vmatpush1.msra.mxu0 0.0
    %101 = vmatprep.subr.mxu0 0.0
    %102 = vmatpush1.msra.mxu0 0.0
    %103 = vmatprep.subr.mxu0 0.0
    %104 = vmatpush1.msra.mxu0 %v58
    %105 = vmatprep.subr.mxu0 0.0
    %106 = vmatpush1.msra.mxu0 %v57
    %107 = vmatprep.subr.mxu0 0.0
    %108 = vmatpush1.msra.mxu0 %v56
    %109 = vmatprep.subr.mxu0 0.0
    %110 = vmatpush1.msra.mxu0 %v55
    %111 = vmatprep.subr.mxu0 0.0
    %112 = vmatpush2.msra.mxu0 0.0
    %113 = vmatprep.subr.mxu0 0.0
    %114 = vmatpush2.msra.mxu0 0.0
    %115 = vmatprep.subr.mxu0 0.0
    %116 = vmatpush2.msra.mxu0 0.0
    %117 = vmatprep.subr.mxu0 0.0
    %118 = vmatpush2.msra.mxu0 0.0
    %119 = vmatprep.subr.mxu0 0.0
    %120 = vmatpush2.msra.mxu0 0.0
    %121 = vmatprep.subr.mxu0 0.0
    %122 = vmatpush2.msra.mxu0 0.0
    %123 = vmatprep.subr.mxu0 0.0
    %124 = vmatpush2.msra.mxu0 0.0
    %125 = vmatprep.subr.mxu0 0.0
    %126 = vmatpush2.msra.mxu0 0.0
    %127 = vmatprep.subr.mxu0 0.0
    %128 = vmatpush2.msra.mxu0 0.0
    %129 = vmatprep.subr.mxu0 0.0
    %130 = vmatpush2.msra.mxu0 0.0
    %131 = vmatprep.subr.mxu0 0.0
    %132 = vmatpush2.msra.mxu0 0.0
    %133 = vmatprep.subr.mxu0 0.0
    %134 = vmatpush2.msra.mxu0 0.0
    %135 = vmatprep.subr.mxu0 0.0
    %136 = vmatpush2.msra.mxu0 0.0
    %137 = vmatprep.subr.mxu0 0.0
    %138 = vmatpush2.msra.mxu0 0.0
    %139 = vmatprep.subr.mxu0 0.0
    %140 = vmatpush2.msra.mxu0 0.0
    %141 = vmatprep.subr.mxu0 0.0
    %142 = vmatpush2.msra.mxu0 0.0
    %143 = vmatprep.mubr.f32.mxu0 0.0
    %144 = vmatmul.mubr.f32.gmra.mxu0 %v68
    %v145 = vpop.f32.mrf.mxu0
    %v146 = vadd.f32 %v64, %v145
    %v147 = vpop.f32.mrf.mxu0
    %148 = vmatprep.mubr.f32.mxu0 0.0
    %149 = vmatmul.mubr.f32.gmra.mxu0 %v71
    %v150 = vpop.f32.mrf.mxu0
    %v151 = vadd.f32 %v64, %v150
    %v152 = vpop.f32.mrf.mxu0
    %153 = vmatprep.mubr.f32.mxu0 0.0
    %154 = vmatmul.mubr.f32.gmra.mxu0 %v74
    %v155 = vpop.f32.mrf.mxu0
    %v156 = vadd.f32 %v64, %v155
    %v157 = vpop.f32.mrf.mxu0
    %158 = vmatprep.mubr.f32.mxu0 0.0
    %159 = vmatmul.mubr.f32.gmra.mxu0 %v77
    %v160 = vpop.f32.mrf.mxu0
    %v161 = vadd.f32 %v64, %v160
    %v162 = vpop.f32.mrf.mxu0
    %163 = vdwg.mxu0
    %164 = vst [vmem:[#allocation2] sm:$0xff] %v146
    %165 = vst [vmem:[#allocation2 + $0x8] sm:$0xff] %v151
    %166 = vst [vmem:[#allocation2 + $0x10] sm:$0xff] %v156
    %167 = vst [vmem:[#allocation2 + $0x18] sm:$0xff] %v161
    %s168 = sld [smem:[#allocation8]]
    %s169 = scalar_lea.vmem [#allocation3], %s168
    %v170 = vld [vmem:[%s169] sm:$0x1]
    %171 = vst [vmem:[#allocation5] sm:$0x1] %v170
    %s172 = scalar_lea.vmem [#allocation4], %s168
    %v173 = vld [vmem:[%s172] sm:$0x1]
    %174 = vst.msk [vmem:[#allocation6] sm:$0x1] %vm49, %v173
    %s175 = sld [smem:[#allocation8 + $0x3]]
    %s176 = scalar_lea.vmem [#allocation3], %s175
    %v177 = vld [vmem:[%s176] sm:$0x1]
    %178 = vst [vmem:[#allocation5 + $0x1] sm:$0x1] %v177
    %s179 = scalar_lea.vmem [#allocation4], %s175
    %v180 = vld [vmem:[%s179] sm:$0x1]
    %181 = vst.msk [vmem:[#allocation6 + $0x1] sm:$0x1] %vm49, %v180
    %s182 = sld [smem:[#allocation8 + $0x6]]
    %s183 = scalar_lea.vmem [#allocation3], %s182
    %v184 = vld [vmem:[%s183] sm:$0x1]
    %185 = vst [vmem:[#allocation5 + $0x2] sm:$0x1] %v184
    %s186 = scalar_lea.vmem [#allocation4], %s182
    %v187 = vld [vmem:[%s186] sm:$0x1]
    %188 = vst.msk [vmem:[#allocation6 + $0x2] sm:$0x1] %vm49, %v187
    %s189 = sld [smem:[#allocation8 + $0x9]]
    %s190 = scalar_lea.vmem [#allocation3], %s189
    %v191 = vld [vmem:[%s190] sm:$0x1]
    %192 = vst [vmem:[#allocation5 + $0x3] sm:$0x1] %v191
    %s193 = scalar_lea.vmem [#allocation4], %s189
    %v194 = vld [vmem:[%s193] sm:$0x1]
    %195 = vst.msk [vmem:[#allocation6 + $0x3] sm:$0x1] %vm49, %v194
    %s196 = sld [smem:[#allocation8 + $0x1]]
    %s197 = scalar_lea.vmem [#allocation3], %s196
    %v198 = vld [vmem:[%s197] sm:$0x1]
    %s199 = scalar_lea.vmem [#allocation5], 4
    %200 = vst [vmem:[%s199] sm:$0x1] %v198
    %s201 = scalar_lea.vmem [#allocation4], %s196
    %v202 = vld [vmem:[%s201] sm:$0x1]
    %s203 = scalar_lea.vmem [#allocation6], 4
    %204 = vst.msk [vmem:[%s203] sm:$0x1] %vm49, %v202
    %s205 = sld [smem:[#allocation8 + $0x4]]
    %s206 = scalar_lea.vmem [#allocation3], %s205
    %v207 = vld [vmem:[%s206] sm:$0x1]
    %208 = vst [vmem:[%s199 + $0x1] sm:$0x1] %v207
    %s209 = scalar_lea.vmem [#allocation4], %s205
    %v210 = vld [vmem:[%s209] sm:$0x1]
    %211 = vst.msk [vmem:[%s203 + $0x1] sm:$0x1] %vm49, %v210
    %s212 = sld [smem:[#allocation8 + $0x7]]
    %s213 = scalar_lea.vmem [#allocation3], %s212
    %v214 = vld [vmem:[%s213] sm:$0x1]
    %215 = vst [vmem:[%s199 + $0x2] sm:$0x1] %v214
    %s216 = scalar_lea.vmem [#allocation4], %s212
    %v217 = vld [vmem:[%s216] sm:$0x1]
    %218 = vst.msk [vmem:[%s203 + $0x2] sm:$0x1] %vm49, %v217
    %s219 = sld [smem:[#allocation8 + $0xa]]
    %s220 = scalar_lea.vmem [#allocation3], %s219
    %v221 = vld [vmem:[%s220] sm:$0x1]
    %222 = vst [vmem:[%s199 + $0x3] sm:$0x1] %v221
    %s223 = scalar_lea.vmem [#allocation4], %s219
    %v224 = vld [vmem:[%s223] sm:$0x1]
    %225 = vst.msk [vmem:[%s203 + $0x3] sm:$0x1] %vm49, %v224
    %s226 = sld [smem:[#allocation8 + $0x2]]
    %s227 = scalar_lea.vmem [#allocation3], %s226
    %v228 = vld [vmem:[%s227] sm:$0x1]
    %s229 = scalar_lea.vmem [#allocation5], 8
    %230 = vst [vmem:[%s229] sm:$0x1] %v228
    %s231 = scalar_lea.vmem [#allocation4], %s226
    %v232 = vld [vmem:[%s231] sm:$0x1]
    %s233 = scalar_lea.vmem [#allocation6], 8
    %234 = vst.msk [vmem:[%s233] sm:$0x1] %vm49, %v232
    %s235 = sld [smem:[#allocation8 + $0x5]]
    %s236 = scalar_lea.vmem [#allocation3], %s235
    %v237 = vld [vmem:[%s236] sm:$0x1]
    %238 = vst [vmem:[%s229 + $0x1] sm:$0x1] %v237
    %s239 = scalar_lea.vmem [#allocation4], %s235
    %v240 = vld [vmem:[%s239] sm:$0x1]
    %241 = vst.msk [vmem:[%s233 + $0x1] sm:$0x1] %vm49, %v240
    %s242 = sld [smem:[#allocation8 + $0x8]]
    %s243 = scalar_lea.vmem [#allocation3], %s242
    %v244 = vld [vmem:[%s243] sm:$0x1]
    %245 = vst [vmem:[%s229 + $0x2] sm:$0x1] %v244
    %s246 = scalar_lea.vmem [#allocation4], %s242
    %v247 = vld [vmem:[%s246] sm:$0x1]
    %248 = vst.msk [vmem:[%s233 + $0x2] sm:$0x1] %vm49, %v247
    %s249 = sld [smem:[#allocation8 + $0xb]]
    %s250 = scalar_lea.vmem [#allocation3], %s249
    %v251 = vld [vmem:[%s250] sm:$0x1]
    %252 = vst [vmem:[%s229 + $0x3] sm:$0x1] %v251
    %s253 = scalar_lea.vmem [#allocation4], %s249
    %v254 = vld [vmem:[%s253] sm:$0x1]
    %255 = vst.msk [vmem:[%s233 + $0x3] sm:$0x1] %vm49, %v254
    %v256 = vld [vmem:[#allocation5] sm:$0xf]
    %v257 = vld [vmem:[#allocation5 + $0x4] sm:$0xf]
    %v258 = vld [vmem:[#allocation5 + $0x8] sm:$0xf]
    %v259 = vld [vmem:[#allocation6] sm:$0xf]
    %v260 = vld [vmem:[#allocation6 + $0x4] sm:$0xf]
    %v261 = vld [vmem:[#allocation6 + $0x8] sm:$0xf]
    %v262 = vld [vmem:[#allocation2] sm:$0xf]
    %v263 = vadd.f32 %v256, %v262
    %v264 = vadd.f32 %v257, %v262
    %v265 = vadd.f32 %v258, %v262
    %v266 = vxor.u32 %v263, 2147483648
    %v267 = vxor.u32 %v264, 2147483648
    %v268 = vxor.u32 %v265, 2147483648
    %v269 = vmul.f32 %v266, 1.442695
    %v270 = vpow.pop %v269
    %v271 = vmul.f32 %v267, 1.442695
    %v272 = vpow.pop %v271
    %v273 = vmul.f32 %v268, 1.442695
    %v274 = vpow.pop %v273
    %v275 = vadd.f32 %v270, 1.0
    %v276 = vadd.f32 %v272, 1.0
    %v277 = vadd.f32 %v274, 1.0
    %v278 = vrcp.pop %v275
    %v279 = vmul.f32 1.0, %v278
    %v280 = vrcp.pop %v276
    %v281 = vmul.f32 1.0, %v280
    %v282 = vrcp.pop %v277
    %v283 = vmul.f32 1.0, %v282
    %287 = vrot.lane.b32.xlu0 %v259, 96
    %v288 = vpop.permute.xlu0 %287
    %289 = vrot.lane.b32.xlu0 %v260, 96
    %v290 = vpop.permute.xlu0 %289
    %291 = vrot.lane.b32.xlu0 %v261, 96
    %v292 = vpop.permute.xlu0 %291
    %v296 = vmul.f32 %v279, %v288
    %v297 = vmul.f32 %v281, %v290
    %v298 = vmul.f32 %v283, %v292
    %vm299 = vcmask 1044224
    %v300 = vsel %vm299, %v296, 0.0
    %v301 = vsel %vm299, %v297, 0.0
    %v302 = vadd.f32 %v300, %v301
    %v303 = vsel %vm299, %v298, 0.0
    %v304 = vadd.f32 %v302, %v303
    %vm305 = vcmask 781312
    %v306 = vsel %vm305, %v256, 0.0
    %v307 = vsel %vm305, %v257, 0.0
    %v308 = vadd.f32 %v306, %v307
    %v309 = vsel %vm305, %v258, 0.0
    %v310 = vadd.f32 %v308, %v309
    %v311 = vadd.f32 %v262, %v310
    %v312 = vxor.u32 %v311, 2147483648
    %v313 = vmul.f32 %v312, 1.442695
    %v314 = vpow.pop %v313
    %v315 = vadd.f32 %v314, 1.0
    %v316 = vrcp.pop %v315
    %v317 = vmul.f32 1.0, %v316
    %319 = vrot.lane.b32.xlu0 %v317, 64
    %v320 = vpop.permute.xlu0 %319
    %v322 = vmul.f32 %v317, %v320
    %324 = vrot.lane.b32.xlu0 %v304, 32
    %v325 = vpop.permute.xlu0 %324
    %v327 = vadd.f32 %v322, %v325
    %v328 = vtanh.pop %v327
    %330 = vrot.lane.b32.xlu0 %v328, 32
    %v331 = vpop.permute.xlu0 %330
    %v333 = vmul.f32 %v317, %v331
    %335 = vrot.lane.b32.xlu0 %v333, 96
    %v336 = vpop.permute.xlu0 %335
    %vm338 = vcmask 257024
    %339 = vst.msk [vmem:[#allocation10] sm:$0xf] %vm338, %v336
    %340 = vst.msk [vmem:[#allocation4] sm:$0xf] %vm338, %v327
    %v341 = vsel %vm66, %v336, 0
    %343 = vmatprep.subr.mxu0 0.0
    %344 = vmatpush1.msra.mxu0 0.0
    %345 = vmatprep.subr.mxu0 0.0
    %346 = vmatpush1.msra.mxu0 0.0
    %347 = vmatprep.subr.mxu0 0.0
    %348 = vmatpush1.msra.mxu0 0.0
    %349 = vmatprep.subr.mxu0 0.0
    %350 = vmatpush1.msra.mxu0 0.0
    %351 = vmatprep.subr.mxu0 0.0
    %352 = vmatpush1.msra.mxu0 0.0
    %353 = vmatprep.subr.mxu0 0.0
    %354 = vmatpush1.msra.mxu0 0.0
    %355 = vmatprep.subr.mxu0 0.0
    %356 = vmatpush1.msra.mxu0 0.0
    %357 = vmatprep.subr.mxu0 0.0
    %358 = vmatpush1.msra.mxu0 0.0
    %359 = vmatprep.subr.mxu0 0.0
    %360 = vmatpush1.msra.mxu0 0.0
    %361 = vmatprep.subr.mxu0 0.0
    %362 = vmatpush1.msra.mxu0 0.0
    %363 = vmatprep.subr.mxu0 0.0
    %364 = vmatpush1.msra.mxu0 0.0
    %365 = vmatprep.subr.mxu0 0.0
    %366 = vmatpush1.msra.mxu0 0.0
    %367 = vmatprep.subr.mxu0 0.0
    %368 = vmatpush1.msra.mxu0 %v47
    %369 = vmatprep.subr.mxu0 0.0
    %370 = vmatpush1.msra.mxu0 %v46
    %371 = vmatprep.subr.mxu0 0.0
    %372 = vmatpush1.msra.mxu0 %v45
    %373 = vmatprep.subr.mxu0 0.0
    %374 = vmatpush1.msra.mxu0 %v44
    %375 = vmatprep.subr.mxu0 0.0
    %376 = vmatpush2.msra.mxu0 0.0
    %377 = vmatprep.subr.mxu0 0.0
    %378 = vmatpush2.msra.mxu0 0.0
    %379 = vmatprep.subr.mxu0 0.0
    %380 = vmatpush2.msra.mxu0 0.0
    %381 = vmatprep.subr.mxu0 0.0
    %382 = vmatpush2.msra.mxu0 0.0
    %383 = vmatprep.subr.mxu0 0.0
    %384 = vmatpush2.msra.mxu0 0.0
    %385 = vmatprep.subr.mxu0 0.0
    %386 = vmatpush2.msra.mxu0 0.0
    %387 = vmatprep.subr.mxu0 0.0
    %388 = vmatpush2.msra.mxu0 0.0
    %389 = vmatprep.subr.mxu0 0.0
    %390 = vmatpush2.msra.mxu0 0.0
    %391 = vmatprep.subr.mxu0 0.0
    %392 = vmatpush2.msra.mxu0 0.0
    %393 = vmatprep.subr.mxu0 0.0
    %394 = vmatpush2.msra.mxu0 0.0
    %395 = vmatprep.subr.mxu0 0.0
    %396 = vmatpush2.msra.mxu0 0.0
    %397 = vmatprep.subr.mxu0 0.0
    %398 = vmatpush2.msra.mxu0 0.0
    %399 = vmatprep.subr.mxu0 0.0
    %400 = vmatpush2.msra.mxu0 0.0
    %401 = vmatprep.subr.mxu0 0.0
    %402 = vmatpush2.msra.mxu0 0.0
    %403 = vmatprep.subr.mxu0 0.0
    %404 = vmatpush2.msra.mxu0 0.0
    %405 = vmatprep.subr.mxu0 0.0
    %406 = vmatpush2.msra.mxu0 0.0
    %407 = vmatprep.mubr.f32.mxu0 0.0
    %408 = vmatmul.mubr.f32.gmra.mxu0 %v341
    %v409 = vpop.f32.mrf.mxu0
    %v410 = vadd.f32 0.0, %v409
    %v411 = vpop.f32.mrf.mxu0
    %412 = vdwg.mxu0
    %413 = vst [vmem:[#allocation3] sm:$0xf] %v410
    %s414 = sld [smem:[#allocation8 + $0xc]]
    %s415 = scalar_lea.vmem [#allocation3], %s414
    %v416 = vld [vmem:[%s415] sm:$0x1]
    %417 = vst [vmem:[#allocation5] sm:$0x1] %v416
    %s418 = scalar_lea.vmem [#allocation4], %s414
    %v419 = vld [vmem:[%s418] sm:$0x1]
    %420 = vst.msk [vmem:[#allocation6] sm:$0x1] %vm49, %v419
    %s421 = sld [smem:[#allocation8 + $0xf]]
    %s422 = scalar_lea.vmem [#allocation3], %s421
    %v423 = vld [vmem:[%s422] sm:$0x1]
    %424 = vst [vmem:[#allocation5 + $0x1] sm:$0x1] %v423
    %s425 = scalar_lea.vmem [#allocation4], %s421
    %v426 = vld [vmem:[%s425] sm:$0x1]
    %427 = vst.msk [vmem:[#allocation6 + $0x1] sm:$0x1] %vm49, %v426
    %s428 = sld [smem:[#allocation8 + $0x12]]
    %s429 = scalar_lea.vmem [#allocation3], %s428
    %v430 = vld [vmem:[%s429] sm:$0x1]
    %431 = vst [vmem:[#allocation5 + $0x2] sm:$0x1] %v430
    %s432 = scalar_lea.vmem [#allocation4], %s428
    %v433 = vld [vmem:[%s432] sm:$0x1]
    %434 = vst.msk [vmem:[#allocation6 + $0x2] sm:$0x1] %vm49, %v433
    %s435 = sld [smem:[#allocation8 + $0x15]]
    %s436 = scalar_lea.vmem [#allocation3], %s435
    %v437 = vld [vmem:[%s436] sm:$0x1]
    %438 = vst [vmem:[#allocation5 + $0x3] sm:$0x1] %v437
    %s439 = scalar_lea.vmem [#allocation4], %s435
    %v440 = vld [vmem:[%s439] sm:$0x1]
    %441 = vst.msk [vmem:[#allocation6 + $0x3] sm:$0x1] %vm49, %v440
    %s442 = sld [smem:[#allocation8 + $0xd]]
    %s443 = scalar_lea.vmem [#allocation3], %s442
    %v444 = vld [vmem:[%s443] sm:$0x1]
    %445 = vst [vmem:[%s199] sm:$0x1] %v444
    %s446 = scalar_lea.vmem [#allocation4], %s442
    %v447 = vld [vmem:[%s446] sm:$0x1]
    %448 = vst.msk [vmem:[%s203] sm:$0x1] %vm49, %v447
    %s449 = sld [smem:[#allocation8 + $0x10]]
    %s450 = scalar_lea.vmem [#allocation3], %s449
    %v451 = vld [vmem:[%s450] sm:$0x1]
    %452 = vst [vmem:[%s199 + $0x1] sm:$0x1] %v451
    %s453 = scalar_lea.vmem [#allocation4], %s449
    %v454 = vld [vmem:[%s453] sm:$0x1]
    %455 = vst.msk [vmem:[%s203 + $0x1] sm:$0x1] %vm49, %v454
    %s456 = sld [smem:[#allocation8 + $0x13]]
    %s457 = scalar_lea.vmem [#allocation3], %s456
    %v458 = vld [vmem:[%s457] sm:$0x1]
    %459 = vst [vmem:[%s199 + $0x2] sm:$0x1] %v458
    %s460 = scalar_lea.vmem [#allocation4], %s456
    %v461 = vld [vmem:[%s460] sm:$0x1]
    %462 = vst.msk [vmem:[%s203 + $0x2] sm:$0x1] %vm49, %v461
    %s463 = sld [smem:[#allocation8 + $0x16]]
    %s464 = scalar_lea.vmem [#allocation3], %s463
    %v465 = vld [vmem:[%s464] sm:$0x1]
    %466 = vst [vmem:[%s199 + $0x3] sm:$0x1] %v465
    %s467 = scalar_lea.vmem [#allocation4], %s463
    %v468 = vld [vmem:[%s467] sm:$0x1]
    %469 = vst.msk [vmem:[%s203 + $0x3] sm:$0x1] %vm49, %v468
    %s470 = sld [smem:[#allocation8 + $0xe]]
    %s471 = scalar_lea.vmem [#allocation3], %s470
    %v472 = vld [vmem:[%s471] sm:$0x1]
    %473 = vst [vmem:[%s229] sm:$0x1] %v472
    %s474 = scalar_lea.vmem [#allocation4], %s470
    %v475 = vld [vmem:[%s474] sm:$0x1]
    %476 = vst.msk [vmem:[%s233] sm:$0x1] %vm49, %v475
    %s477 = sld [smem:[#allocation8 + $0x11]]
    %s478 = scalar_lea.vmem [#allocation3], %s477
    %v479 = vld [vmem:[%s478] sm:$0x1]
    %480 = vst [vmem:[%s229 + $0x1] sm:$0x1] %v479
    %s481 = scalar_lea.vmem [#allocation4], %s477
    %v482 = vld [vmem:[%s481] sm:$0x1]
    %483 = vst.msk [vmem:[%s233 + $0x1] sm:$0x1] %vm49, %v482
    %s484 = sld [smem:[#allocation8 + $0x14]]
    %s485 = scalar_lea.vmem [#allocation3], %s484
    %v486 = vld [vmem:[%s485] sm:$0x1]
    %487 = vst [vmem:[%s229 + $0x2] sm:$0x1] %v486
    %s488 = scalar_lea.vmem [#allocation4], %s484
    %v489 = vld [vmem:[%s488] sm:$0x1]
    %490 = vst.msk [vmem:[%s233 + $0x2] sm:$0x1] %vm49, %v489
    %s491 = sld [smem:[#allocation8 + $0x17]]
    %s492 = scalar_lea.vmem [#allocation3], %s491
    %v493 = vld [vmem:[%s492] sm:$0x1]
    %494 = vst [vmem:[%s229 + $0x3] sm:$0x1] %v493
    %s495 = scalar_lea.vmem [#allocation4], %s491
    %v496 = vld [vmem:[%s495] sm:$0x1]
    %497 = vst.msk [vmem:[%s233 + $0x3] sm:$0x1] %vm49, %v496
    %v498 = vld [vmem:[#allocation5] sm:$0xf]
    %v499 = vld [vmem:[#allocation5 + $0x4] sm:$0xf]
    %v500 = vld [vmem:[#allocation5 + $0x8] sm:$0xf]
    %v501 = vld [vmem:[#allocation6] sm:$0xf]
    %v502 = vld [vmem:[#allocation6 + $0x4] sm:$0xf]
    %v503 = vld [vmem:[#allocation6 + $0x8] sm:$0xf]
    %v504 = vld [vmem:[#allocation2 + $0x4] sm:$0xf]
    %v505 = vadd.f32 %v498, %v504
    %v506 = vadd.f32 %v499, %v504
    %v507 = vadd.f32 %v500, %v504
    %v508 = vxor.u32 %v505, 2147483648
    %v509 = vxor.u32 %v506, 2147483648
    %v510 = vxor.u32 %v507, 2147483648
    %v511 = vmul.f32 %v508, 1.442695
    %v512 = vpow.pop %v511
    %v513 = vmul.f32 %v509, 1.442695
    %v514 = vpow.pop %v513
    %v515 = vmul.f32 %v510, 1.442695
    %v516 = vpow.pop %v515
    %v517 = vadd.f32 %v512, 1.0
    %v518 = vadd.f32 %v514, 1.0
    %v519 = vadd.f32 %v516, 1.0
    %v520 = vrcp.pop %v517
    %v521 = vmul.f32 1.0, %v520
    %v522 = vrcp.pop %v518
    %v523 = vmul.f32 1.0, %v522
    %v524 = vrcp.pop %v519
    %v525 = vmul.f32 1.0, %v524
    %529 = vrot.lane.b32.xlu0 %v501, 96
    %v530 = vpop.permute.xlu0 %529
    %531 = vrot.lane.b32.xlu0 %v502, 96
    %v532 = vpop.permute.xlu0 %531
    %533 = vrot.lane.b32.xlu0 %v503, 96
    %v534 = vpop.permute.xlu0 %533
    %v538 = vmul.f32 %v521, %v530
    %v539 = vmul.f32 %v523, %v532
    %v540 = vmul.f32 %v525, %v534
    %v541 = vsel %vm299, %v538, 0.0
    %v542 = vsel %vm299, %v539, 0.0
    %v543 = vadd.f32 %v541, %v542
    %v544 = vsel %vm299, %v540, 0.0
    %v545 = vadd.f32 %v543, %v544
    %v546 = vsel %vm305, %v498, 0.0
    %v547 = vsel %vm305, %v499, 0.0
    %v548 = vadd.f32 %v546, %v547
    %v549 = vsel %vm305, %v500, 0.0
    %v550 = vadd.f32 %v548, %v549
    %v551 = vadd.f32 %v504, %v550
    %v552 = vxor.u32 %v551, 2147483648
    %v553 = vmul.f32 %v552, 1.442695
    %v554 = vpow.pop %v553
    %v555 = vadd.f32 %v554, 1.0
    %v556 = vrcp.pop %v555
    %v557 = vmul.f32 1.0, %v556
    %559 = vrot.lane.b32.xlu0 %v557, 64
    %v560 = vpop.permute.xlu0 %559
    %v562 = vmul.f32 %v557, %v560
    %564 = vrot.lane.b32.xlu0 %v545, 32
    %v565 = vpop.permute.xlu0 %564
    %v567 = vadd.f32 %v562, %v565
    %v568 = vtanh.pop %v567
    %570 = vrot.lane.b32.xlu0 %v568, 32
    %v571 = vpop.permute.xlu0 %570
    %v573 = vmul.f32 %v557, %v571
    %575 = vrot.lane.b32.xlu0 %v573, 96
    %v576 = vpop.permute.xlu0 %575
    %578 = vst.msk [vmem:[#allocation10 + $0x4] sm:$0xf] %vm338, %v576
    %579 = vst.msk [vmem:[#allocation4 + $0x4] sm:$0xf] %vm338, %v567
    %v580 = vsel %vm66, %v576, 0
    %582 = vmatprep.subr.mxu0 0.0
    %583 = vmatpush1.msra.mxu0 0.0
    %584 = vmatprep.subr.mxu0 0.0
    %585 = vmatpush1.msra.mxu0 0.0
    %586 = vmatprep.subr.mxu0 0.0
    %587 = vmatpush1.msra.mxu0 0.0
    %588 = vmatprep.subr.mxu0 0.0
    %589 = vmatpush1.msra.mxu0 0.0
    %590 = vmatprep.subr.mxu0 0.0
    %591 = vmatpush1.msra.mxu0 0.0
    %592 = vmatprep.subr.mxu0 0.0
    %593 = vmatpush1.msra.mxu0 0.0
    %594 = vmatprep.subr.mxu0 0.0
    %595 = vmatpush1.msra.mxu0 0.0
    %596 = vmatprep.subr.mxu0 0.0
    %597 = vmatpush1.msra.mxu0 0.0
    %598 = vmatprep.subr.mxu0 0.0
    %599 = vmatpush1.msra.mxu0 0.0
    %600 = vmatprep.subr.mxu0 0.0
    %601 = vmatpush1.msra.mxu0 0.0
    %602 = vmatprep.subr.mxu0 0.0
    %603 = vmatpush1.msra.mxu0 0.0
    %604 = vmatprep.subr.mxu0 0.0
    %605 = vmatpush1.msra.mxu0 0.0
    %606 = vmatprep.subr.mxu0 0.0
    %607 = vmatpush1.msra.mxu0 %v47
    %608 = vmatprep.subr.mxu0 0.0
    %609 = vmatpush1.msra.mxu0 %v46
    %610 = vmatprep.subr.mxu0 0.0
    %611 = vmatpush1.msra.mxu0 %v45
    %612 = vmatprep.subr.mxu0 0.0
    %613 = vmatpush1.msra.mxu0 %v44
    %614 = vmatprep.subr.mxu0 0.0
    %615 = vmatpush2.msra.mxu0 0.0
    %616 = vmatprep.subr.mxu0 0.0
    %617 = vmatpush2.msra.mxu0 0.0
    %618 = vmatprep.subr.mxu0 0.0
    %619 = vmatpush2.msra.mxu0 0.0
    %620 = vmatprep.subr.mxu0 0.0
    %621 = vmatpush2.msra.mxu0 0.0
    %622 = vmatprep.subr.mxu0 0.0
    %623 = vmatpush2.msra.mxu0 0.0
    %624 = vmatprep.subr.mxu0 0.0
    %625 = vmatpush2.msra.mxu0 0.0
    %626 = vmatprep.subr.mxu0 0.0
    %627 = vmatpush2.msra.mxu0 0.0
    %628 = vmatprep.subr.mxu0 0.0
    %629 = vmatpush2.msra.mxu0 0.0
    %630 = vmatprep.subr.mxu0 0.0
    %631 = vmatpush2.msra.mxu0 0.0
    %632 = vmatprep.subr.mxu0 0.0
    %633 = vmatpush2.msra.mxu0 0.0
    %634 = vmatprep.subr.mxu0 0.0
    %635 = vmatpush2.msra.mxu0 0.0
    %636 = vmatprep.subr.mxu0 0.0
    %637 = vmatpush2.msra.mxu0 0.0
    %638 = vmatprep.subr.mxu0 0.0
    %639 = vmatpush2.msra.mxu0 0.0
    %640 = vmatprep.subr.mxu0 0.0
    %641 = vmatpush2.msra.mxu0 0.0
    %642 = vmatprep.subr.mxu0 0.0
    %643 = vmatpush2.msra.mxu0 0.0
    %644 = vmatprep.subr.mxu0 0.0
    %645 = vmatpush2.msra.mxu0 0.0
    %646 = vmatprep.mubr.f32.mxu0 0.0
    %647 = vmatmul.mubr.f32.gmra.mxu0 %v580
    %v648 = vpop.f32.mrf.mxu0
    %v649 = vadd.f32 0.0, %v648
    %v650 = vpop.f32.mrf.mxu0
    %651 = vdwg.mxu0
    %652 = vst [vmem:[#allocation3 + $0x4] sm:$0xf] %v649
    %s653 = sld [smem:[#allocation8 + $0x18]]
    %s654 = scalar_lea.vmem [#allocation3], %s653
    %v655 = vld [vmem:[%s654] sm:$0x1]
    %656 = vst [vmem:[#allocation5] sm:$0x1] %v655
    %s657 = scalar_lea.vmem [#allocation4], %s653
    %v658 = vld [vmem:[%s657] sm:$0x1]
    %659 = vst.msk [vmem:[#allocation6] sm:$0x1] %vm49, %v658
    %s660 = sld [smem:[#allocation8 + $0x1b]]
    %s661 = scalar_lea.vmem [#allocation3], %s660
    %v662 = vld [vmem:[%s661] sm:$0x1]
    %663 = vst [vmem:[#allocation5 + $0x1] sm:$0x1] %v662
    %s664 = scalar_lea.vmem [#allocation4], %s660
    %v665 = vld [vmem:[%s664] sm:$0x1]
    %666 = vst.msk [vmem:[#allocation6 + $0x1] sm:$0x1] %vm49, %v665
    %s667 = sld [smem:[#allocation8 + $0x1e]]
    %s668 = scalar_lea.vmem [#allocation3], %s667
    %v669 = vld [vmem:[%s668] sm:$0x1]
    %670 = vst [vmem:[#allocation5 + $0x2] sm:$0x1] %v669
    %s671 = scalar_lea.vmem [#allocation4], %s667
    %v672 = vld [vmem:[%s671] sm:$0x1]
    %673 = vst.msk [vmem:[#allocation6 + $0x2] sm:$0x1] %vm49, %v672
    %s674 = sld [smem:[#allocation8 + $0x21]]
    %s675 = scalar_lea.vmem [#allocation3], %s674
    %v676 = vld [vmem:[%s675] sm:$0x1]
    %677 = vst [vmem:[#allocation5 + $0x3] sm:$0x1] %v676
    %s678 = scalar_lea.vmem [#allocation4], %s674
    %v679 = vld [vmem:[%s678] sm:$0x1]
    %680 = vst.msk [vmem:[#allocation6 + $0x3] sm:$0x1] %vm49, %v679
    %s681 = sld [smem:[#allocation8 + $0x19]]
    %s682 = scalar_lea.vmem [#allocation3], %s681
    %v683 = vld [vmem:[%s682] sm:$0x1]
    %684 = vst [vmem:[%s199] sm:$0x1] %v683
    %s685 = scalar_lea.vmem [#allocation4], %s681
    %v686 = vld [vmem:[%s685] sm:$0x1]
    %687 = vst.msk [vmem:[%s203] sm:$0x1] %vm49, %v686
    %s688 = sld [smem:[#allocation8 + $0x1c]]
    %s689 = scalar_lea.vmem [#allocation3], %s688
    %v690 = vld [vmem:[%s689] sm:$0x1]
    %691 = vst [vmem:[%s199 + $0x1] sm:$0x1] %v690
    %s692 = scalar_lea.vmem [#allocation4], %s688
    %v693 = vld [vmem:[%s692] sm:$0x1]
    %694 = vst.msk [vmem:[%s203 + $0x1] sm:$0x1] %vm49, %v693
    %s695 = sld [smem:[#allocation8 + $0x1f]]
    %s696 = scalar_lea.vmem [#allocation3], %s695
    %v697 = vld [vmem:[%s696] sm:$0x1]
    %698 = vst [vmem:[%s199 + $0x2] sm:$0x1] %v697
    %s699 = scalar_lea.vmem [#allocation4], %s695
    %v700 = vld [vmem:[%s699] sm:$0x1]
    %701 = vst.msk [vmem:[%s203 + $0x2] sm:$0x1] %vm49, %v700
    %s702 = sld [smem:[#allocation8 + $0x22]]
    %s703 = scalar_lea.vmem [#allocation3], %s702
    %v704 = vld [vmem:[%s703] sm:$0x1]
    %705 = vst [vmem:[%s199 + $0x3] sm:$0x1] %v704
    %s706 = scalar_lea.vmem [#allocation4], %s702
    %v707 = vld [vmem:[%s706] sm:$0x1]
    %708 = vst.msk [vmem:[%s203 + $0x3] sm:$0x1] %vm49, %v707
    %s709 = sld [smem:[#allocation8 + $0x1a]]
    %s710 = scalar_lea.vmem [#allocation3], %s709
    %v711 = vld [vmem:[%s710] sm:$0x1]
    %712 = vst [vmem:[%s229] sm:$0x1] %v711
    %s713 = scalar_lea.vmem [#allocation4], %s709
    %v714 = vld [vmem:[%s713] sm:$0x1]
    %715 = vst.msk [vmem:[%s233] sm:$0x1] %vm49, %v714
    %s716 = sld [smem:[#allocation8 + $0x1d]]
    %s717 = scalar_lea.vmem [#allocation3], %s716
    %v718 = vld [vmem:[%s717] sm:$0x1]
    %719 = vst [vmem:[%s229 + $0x1] sm:$0x1] %v718
    %s720 = scalar_lea.vmem [#allocation4], %s716
    %v721 = vld [vmem:[%s720] sm:$0x1]
    %722 = vst.msk [vmem:[%s233 + $0x1] sm:$0x1] %vm49, %v721
    %s723 = sld [smem:[#allocation8 + $0x20]]
    %s724 = scalar_lea.vmem [#allocation3], %s723
    %v725 = vld [vmem:[%s724] sm:$0x1]
    %726 = vst [vmem:[%s229 + $0x2] sm:$0x1] %v725
    %s727 = scalar_lea.vmem [#allocation4], %s723
    %v728 = vld [vmem:[%s727] sm:$0x1]
    %729 = vst.msk [vmem:[%s233 + $0x2] sm:$0x1] %vm49, %v728
    %s730 = sld [smem:[#allocation8 + $0x23]]
    %s731 = scalar_lea.vmem [#allocation3], %s730
    %v732 = vld [vmem:[%s731] sm:$0x1]
    %733 = vst [vmem:[%s229 + $0x3] sm:$0x1] %v732
    %s734 = scalar_lea.vmem [#allocation4], %s730
    %v735 = vld [vmem:[%s734] sm:$0x1]
    %736 = vst.msk [vmem:[%s233 + $0x3] sm:$0x1] %vm49, %v735
    %v737 = vld [vmem:[#allocation5] sm:$0xf]
    %v738 = vld [vmem:[#allocation5 + $0x4] sm:$0xf]
    %v739 = vld [vmem:[#allocation5 + $0x8] sm:$0xf]
    %v740 = vld [vmem:[#allocation6] sm:$0xf]
    %v741 = vld [vmem:[#allocation6 + $0x4] sm:$0xf]
    %v742 = vld [vmem:[#allocation6 + $0x8] sm:$0xf]
    %v743 = vld [vmem:[#allocation2 + $0x8] sm:$0xf]
    %v744 = vadd.f32 %v737, %v743
    %v745 = vadd.f32 %v738, %v743
    %v746 = vadd.f32 %v739, %v743
    %v747 = vxor.u32 %v744, 2147483648
    %v748 = vxor.u32 %v745, 2147483648
    %v749 = vxor.u32 %v746, 2147483648
    %v750 = vmul.f32 %v747, 1.442695
    %v751 = vpow.pop %v750
    %v752 = vmul.f32 %v748, 1.442695
    %v753 = vpow.pop %v752
    %v754 = vmul.f32 %v749, 1.442695
    %v755 = vpow.pop %v754
    %v756 = vadd.f32 %v751, 1.0
    %v757 = vadd.f32 %v753, 1.0
    %v758 = vadd.f32 %v755, 1.0
    %v759 = vrcp.pop %v756
    %v760 = vmul.f32 1.0, %v759
    %v761 = vrcp.pop %v757
    %v762 = vmul.f32 1.0, %v761
    %v763 = vrcp.pop %v758
    %v764 = vmul.f32 1.0, %v763
    %768 = vrot.lane.b32.xlu0 %v740, 96
    %v769 = vpop.permute.xlu0 %768
    %770 = vrot.lane.b32.xlu0 %v741, 96
    %v771 = vpop.permute.xlu0 %770
    %772 = vrot.lane.b32.xlu0 %v742, 96
    %v773 = vpop.permute.xlu0 %772
    %v777 = vmul.f32 %v760, %v769
    %v778 = vmul.f32 %v762, %v771
    %v779 = vmul.f32 %v764, %v773
    %v780 = vsel %vm299, %v777, 0.0
    %v781 = vsel %vm299, %v778, 0.0
    %v782 = vadd.f32 %v780, %v781
    %v783 = vsel %vm299, %v779, 0.0
    %v784 = vadd.f32 %v782, %v783
    %v785 = vsel %vm305, %v737, 0.0
    %v786 = vsel %vm305, %v738, 0.0
    %v787 = vadd.f32 %v785, %v786
    %v788 = vsel %vm305, %v739, 0.0
    %v789 = vadd.f32 %v787, %v788
    %v790 = vadd.f32 %v743, %v789
    %v791 = vxor.u32 %v790, 2147483648
    %v792 = vmul.f32 %v791, 1.442695
    %v793 = vpow.pop %v792
    %v794 = vadd.f32 %v793, 1.0
    %v795 = vrcp.pop %v794
    %v796 = vmul.f32 1.0, %v795
    %798 = vrot.lane.b32.xlu0 %v796, 64
    %v799 = vpop.permute.xlu0 %798
    %v801 = vmul.f32 %v796, %v799
    %803 = vrot.lane.b32.xlu0 %v784, 32
    %v804 = vpop.permute.xlu0 %803
    %v806 = vadd.f32 %v801, %v804
    %v807 = vtanh.pop %v806
    %809 = vrot.lane.b32.xlu0 %v807, 32
    %v810 = vpop.permute.xlu0 %809
    %v812 = vmul.f32 %v796, %v810
    %814 = vrot.lane.b32.xlu0 %v812, 96
    %v815 = vpop.permute.xlu0 %814
    %817 = vst.msk [vmem:[#allocation10 + $0x8] sm:$0xf] %vm338, %v815
    %818 = vst.msk [vmem:[#allocation4 + $0x8] sm:$0xf] %vm338, %v806
    %v819 = vsel %vm66, %v815, 0
    %821 = vmatprep.subr.mxu0 0.0
    %822 = vmatpush1.msra.mxu0 0.0
    %823 = vmatprep.subr.mxu0 0.0
    %824 = vmatpush1.msra.mxu0 0.0
    %825 = vmatprep.subr.mxu0 0.0
    %826 = vmatpush1.msra.mxu0 0.0
    %827 = vmatprep.subr.mxu0 0.0
    %828 = vmatpush1.msra.mxu0 0.0
    %829 = vmatprep.subr.mxu0 0.0
    %830 = vmatpush1.msra.mxu0 0.0
    %831 = vmatprep.subr.mxu0 0.0
    %832 = vmatpush1.msra.mxu0 0.0
    %833 = vmatprep.subr.mxu0 0.0
    %834 = vmatpush1.msra.mxu0 0.0
    %835 = vmatprep.subr.mxu0 0.0
    %836 = vmatpush1.msra.mxu0 0.0
    %837 = vmatprep.subr.mxu0 0.0
    %838 = vmatpush1.msra.mxu0 0.0
    %839 = vmatprep.subr.mxu0 0.0
    %840 = vmatpush1.msra.mxu0 0.0
    %841 = vmatprep.subr.mxu0 0.0
    %842 = vmatpush1.msra.mxu0 0.0
    %843 = vmatprep.subr.mxu0 0.0
    %844 = vmatpush1.msra.mxu0 0.0
    %845 = vmatprep.subr.mxu0 0.0
    %846 = vmatpush1.msra.mxu0 %v47
    %847 = vmatprep.subr.mxu0 0.0
    %848 = vmatpush1.msra.mxu0 %v46
    %849 = vmatprep.subr.mxu0 0.0
    %850 = vmatpush1.msra.mxu0 %v45
    %851 = vmatprep.subr.mxu0 0.0
    %852 = vmatpush1.msra.mxu0 %v44
    %853 = vmatprep.subr.mxu0 0.0
    %854 = vmatpush2.msra.mxu0 0.0
    %855 = vmatprep.subr.mxu0 0.0
    %856 = vmatpush2.msra.mxu0 0.0
    %857 = vmatprep.subr.mxu0 0.0
    %858 = vmatpush2.msra.mxu0 0.0
    %859 = vmatprep.subr.mxu0 0.0
    %860 = vmatpush2.msra.mxu0 0.0
    %861 = vmatprep.subr.mxu0 0.0
    %862 = vmatpush2.msra.mxu0 0.0
    %863 = vmatprep.subr.mxu0 0.0
    %864 = vmatpush2.msra.mxu0 0.0
    %865 = vmatprep.subr.mxu0 0.0
    %866 = vmatpush2.msra.mxu0 0.0
    %867 = vmatprep.subr.mxu0 0.0
    %868 = vmatpush2.msra.mxu0 0.0
    %869 = vmatprep.subr.mxu0 0.0
    %870 = vmatpush2.msra.mxu0 0.0
    %871 = vmatprep.subr.mxu0 0.0
    %872 = vmatpush2.msra.mxu0 0.0
    %873 = vmatprep.subr.mxu0 0.0
    %874 = vmatpush2.msra.mxu0 0.0
    %875 = vmatprep.subr.mxu0 0.0
    %876 = vmatpush2.msra.mxu0 0.0
    %877 = vmatprep.subr.mxu0 0.0
    %878 = vmatpush2.msra.mxu0 0.0
    %879 = vmatprep.subr.mxu0 0.0
    %880 = vmatpush2.msra.mxu0 0.0
    %881 = vmatprep.subr.mxu0 0.0
    %882 = vmatpush2.msra.mxu0 0.0
    %883 = vmatprep.subr.mxu0 0.0
    %884 = vmatpush2.msra.mxu0 0.0
    %885 = vmatprep.mubr.f32.mxu0 0.0
    %886 = vmatmul.mubr.f32.gmra.mxu0 %v819
    %v887 = vpop.f32.mrf.mxu0
    %v888 = vadd.f32 0.0, %v887
    %v889 = vpop.f32.mrf.mxu0
    %890 = vdwg.mxu0
    %891 = vst [vmem:[#allocation3 + $0x8] sm:$0xf] %v888
    %s892 = sld [smem:[#allocation8 + $0x24]]
    %s893 = scalar_lea.vmem [#allocation3], %s892
    %v894 = vld [vmem:[%s893] sm:$0x1]
    %895 = vst [vmem:[#allocation5] sm:$0x1] %v894
    %s896 = scalar_lea.vmem [#allocation4], %s892
    %v897 = vld [vmem:[%s896] sm:$0x1]
    %898 = vst.msk [vmem:[#allocation6] sm:$0x1] %vm49, %v897
    %s899 = sld [smem:[#allocation8 + $0x27]]
    %s900 = scalar_lea.vmem [#allocation3], %s899
    %v901 = vld [vmem:[%s900] sm:$0x1]
    %902 = vst [vmem:[#allocation5 + $0x1] sm:$0x1] %v901
    %s903 = scalar_lea.vmem [#allocation4], %s899
    %v904 = vld [vmem:[%s903] sm:$0x1]
    %905 = vst.msk [vmem:[#allocation6 + $0x1] sm:$0x1] %vm49, %v904
    %s906 = sld [smem:[#allocation8 + $0x2a]]
    %s907 = scalar_lea.vmem [#allocation3], %s906
    %v908 = vld [vmem:[%s907] sm:$0x1]
    %909 = vst [vmem:[#allocation5 + $0x2] sm:$0x1] %v908
    %s910 = scalar_lea.vmem [#allocation4], %s906
    %v911 = vld [vmem:[%s910] sm:$0x1]
    %912 = vst.msk [vmem:[#allocation6 + $0x2] sm:$0x1] %vm49, %v911
    %s913 = sld [smem:[#allocation8 + $0x2d]]
    %s914 = scalar_lea.vmem [#allocation3], %s913
    %v915 = vld [vmem:[%s914] sm:$0x1]
    %916 = vst [vmem:[#allocation5 + $0x3] sm:$0x1] %v915
    %s917 = scalar_lea.vmem [#allocation4], %s913
    %v918 = vld [vmem:[%s917] sm:$0x1]
    %919 = vst.msk [vmem:[#allocation6 + $0x3] sm:$0x1] %vm49, %v918
    %s920 = sld [smem:[#allocation8 + $0x25]]
    %s921 = scalar_lea.vmem [#allocation3], %s920
    %v922 = vld [vmem:[%s921] sm:$0x1]
    %923 = vst [vmem:[%s199] sm:$0x1] %v922
    %s924 = scalar_lea.vmem [#allocation4], %s920
    %v925 = vld [vmem:[%s924] sm:$0x1]
    %926 = vst.msk [vmem:[%s203] sm:$0x1] %vm49, %v925
    %s927 = sld [smem:[#allocation8 + $0x28]]
    %s928 = scalar_lea.vmem [#allocation3], %s927
    %v929 = vld [vmem:[%s928] sm:$0x1]
    %930 = vst [vmem:[%s199 + $0x1] sm:$0x1] %v929
    %s931 = scalar_lea.vmem [#allocation4], %s927
    %v932 = vld [vmem:[%s931] sm:$0x1]
    %933 = vst.msk [vmem:[%s203 + $0x1] sm:$0x1] %vm49, %v932
    %s934 = sld [smem:[#allocation8 + $0x2b]]
    %s935 = scalar_lea.vmem [#allocation3], %s934
    %v936 = vld [vmem:[%s935] sm:$0x1]
    %937 = vst [vmem:[%s199 + $0x2] sm:$0x1] %v936
    %s938 = scalar_lea.vmem [#allocation4], %s934
    %v939 = vld [vmem:[%s938] sm:$0x1]
    %940 = vst.msk [vmem:[%s203 + $0x2] sm:$0x1] %vm49, %v939
    %s941 = sld [smem:[#allocation8 + $0x2e]]
    %s942 = scalar_lea.vmem [#allocation3], %s941
    %v943 = vld [vmem:[%s942] sm:$0x1]
    %944 = vst [vmem:[%s199 + $0x3] sm:$0x1] %v943
    %s945 = scalar_lea.vmem [#allocation4], %s941
    %v946 = vld [vmem:[%s945] sm:$0x1]
    %947 = vst.msk [vmem:[%s203 + $0x3] sm:$0x1] %vm49, %v946
    %s948 = sld [smem:[#allocation8 + $0x26]]
    %s949 = scalar_lea.vmem [#allocation3], %s948
    %v950 = vld [vmem:[%s949] sm:$0x1]
    %951 = vst [vmem:[%s229] sm:$0x1] %v950
    %s952 = scalar_lea.vmem [#allocation4], %s948
    %v953 = vld [vmem:[%s952] sm:$0x1]
    %954 = vst.msk [vmem:[%s233] sm:$0x1] %vm49, %v953
    %s955 = sld [smem:[#allocation8 + $0x29]]
    %s956 = scalar_lea.vmem [#allocation3], %s955
    %v957 = vld [vmem:[%s956] sm:$0x1]
    %958 = vst [vmem:[%s229 + $0x1] sm:$0x1] %v957
    %s959 = scalar_lea.vmem [#allocation4], %s955
    %v960 = vld [vmem:[%s959] sm:$0x1]
    %961 = vst.msk [vmem:[%s233 + $0x1] sm:$0x1] %vm49, %v960
    %s962 = sld [smem:[#allocation8 + $0x2c]]
    %s963 = scalar_lea.vmem [#allocation3], %s962
    %v964 = vld [vmem:[%s963] sm:$0x1]
    %965 = vst [vmem:[%s229 + $0x2] sm:$0x1] %v964
    %s966 = scalar_lea.vmem [#allocation4], %s962
    %v967 = vld [vmem:[%s966] sm:$0x1]
    %968 = vst.msk [vmem:[%s233 + $0x2] sm:$0x1] %vm49, %v967
    %s969 = sld [smem:[#allocation8 + $0x2f]]
    %s970 = scalar_lea.vmem [#allocation3], %s969
    %v971 = vld [vmem:[%s970] sm:$0x1]
    %972 = vst [vmem:[%s229 + $0x3] sm:$0x1] %v971
    %s973 = scalar_lea.vmem [#allocation4], %s969
    %v974 = vld [vmem:[%s973] sm:$0x1]
    %975 = vst.msk [vmem:[%s233 + $0x3] sm:$0x1] %vm49, %v974
    %v976 = vld [vmem:[#allocation5] sm:$0xf]
    %v977 = vld [vmem:[#allocation5 + $0x4] sm:$0xf]
    %v978 = vld [vmem:[#allocation5 + $0x8] sm:$0xf]
    %v979 = vld [vmem:[#allocation6] sm:$0xf]
    %v980 = vld [vmem:[#allocation6 + $0x4] sm:$0xf]
    %v981 = vld [vmem:[#allocation6 + $0x8] sm:$0xf]
    %v982 = vld [vmem:[#allocation2 + $0xc] sm:$0xf]
    %v983 = vadd.f32 %v976, %v982
    %v984 = vadd.f32 %v977, %v982
    %v985 = vadd.f32 %v978, %v982
    %v986 = vxor.u32 %v983, 2147483648
    %v987 = vxor.u32 %v984, 2147483648
    %v988 = vxor.u32 %v985, 2147483648
    %v989 = vmul.f32 %v986, 1.442695
    %v990 = vpow.pop %v989
    %v991 = vmul.f32 %v987, 1.442695
    %v992 = vpow.pop %v991
    %v993 = vmul.f32 %v988, 1.442695
    %v994 = vpow.pop %v993
    %v995 = vadd.f32 %v990, 1.0
    %v996 = vadd.f32 %v992, 1.0
    %v997 = vadd.f32 %v994, 1.0
    %v998 = vrcp.pop %v995
    %v999 = vmul.f32 1.0, %v998
    %v1000 = vrcp.pop %v996
    %v1001 = vmul.f32 1.0, %v1000
    %v1002 = vrcp.pop %v997
    %v1003 = vmul.f32 1.0, %v1002
    %1007 = vrot.lane.b32.xlu0 %v979, 96
    %v1008 = vpop.permute.xlu0 %1007
    %1009 = vrot.lane.b32.xlu0 %v980, 96
    %v1010 = vpop.permute.xlu0 %1009
    %1011 = vrot.lane.b32.xlu0 %v981, 96
    %v1012 = vpop.permute.xlu0 %1011
    %v1016 = vmul.f32 %v999, %v1008
    %v1017 = vmul.f32 %v1001, %v1010
    %v1018 = vmul.f32 %v1003, %v1012
    %v1019 = vsel %vm299, %v1016, 0.0
    %v1020 = vsel %vm299, %v1017, 0.0
    %v1021 = vadd.f32 %v1019, %v1020
    %v1022 = vsel %vm299, %v1018, 0.0
    %v1023 = vadd.f32 %v1021, %v1022
    %v1024 = vsel %vm305, %v976, 0.0
    %v1025 = vsel %vm305, %v977, 0.0
    %v1026 = vadd.f32 %v1024, %v1025
    %v1027 = vsel %vm305, %v978, 0.0
    %v1028 = vadd.f32 %v1026, %v1027
    %v1029 = vadd.f32 %v982, %v1028
    %v1030 = vxor.u32 %v1029, 2147483648
    %v1031 = vmul.f32 %v1030, 1.442695
    %v1032 = vpow.pop %v1031
    %v1033 = vadd.f32 %v1032, 1.0
    %v1034 = vrcp.pop %v1033
    %v1035 = vmul.f32 1.0, %v1034
    %1037 = vrot.lane.b32.xlu0 %v1035, 64
    %v1038 = vpop.permute.xlu0 %1037
    %v1040 = vmul.f32 %v1035, %v1038
    %1042 = vrot.lane.b32.xlu0 %v1023, 32
    %v1043 = vpop.permute.xlu0 %1042
    %v1045 = vadd.f32 %v1040, %v1043
    %v1046 = vtanh.pop %v1045
    %1048 = vrot.lane.b32.xlu0 %v1046, 32
    %v1049 = vpop.permute.xlu0 %1048
    %v1051 = vmul.f32 %v1035, %v1049
    %1053 = vrot.lane.b32.xlu0 %v1051, 96
    %v1054 = vpop.permute.xlu0 %1053
    %1056 = vst.msk [vmem:[#allocation10 + $0xc] sm:$0xf] %vm338, %v1054
    %1057 = vst.msk [vmem:[#allocation4 + $0xc] sm:$0xf] %vm338, %v1045
    %v1058 = vsel %vm66, %v1054, 0
    %1060 = vmatprep.subr.mxu0 0.0
    %1061 = vmatpush1.msra.mxu0 0.0
    %1062 = vmatprep.subr.mxu0 0.0
    %1063 = vmatpush1.msra.mxu0 0.0
    %1064 = vmatprep.subr.mxu0 0.0
    %1065 = vmatpush1.msra.mxu0 0.0
    %1066 = vmatprep.subr.mxu0 0.0
    %1067 = vmatpush1.msra.mxu0 0.0
    %1068 = vmatprep.subr.mxu0 0.0
    %1069 = vmatpush1.msra.mxu0 0.0
    %1070 = vmatprep.subr.mxu0 0.0
    %1071 = vmatpush1.msra.mxu0 0.0
    %1072 = vmatprep.subr.mxu0 0.0
    %1073 = vmatpush1.msra.mxu0 0.0
    %1074 = vmatprep.subr.mxu0 0.0
    %1075 = vmatpush1.msra.mxu0 0.0
    %1076 = vmatprep.subr.mxu0 0.0
    %1077 = vmatpush1.msra.mxu0 0.0
    %1078 = vmatprep.subr.mxu0 0.0
    %1079 = vmatpush1.msra.mxu0 0.0
    %1080 = vmatprep.subr.mxu0 0.0
    %1081 = vmatpush1.msra.mxu0 0.0
    %1082 = vmatprep.subr.mxu0 0.0
    %1083 = vmatpush1.msra.mxu0 0.0
    %1084 = vmatprep.subr.mxu0 0.0
    %1085 = vmatpush1.msra.mxu0 %v47
    %1086 = vmatprep.subr.mxu0 0.0
    %1087 = vmatpush1.msra.mxu0 %v46
    %1088 = vmatprep.subr.mxu0 0.0
    %1089 = vmatpush1.msra.mxu0 %v45
    %1090 = vmatprep.subr.mxu0 0.0
    %1091 = vmatpush1.msra.mxu0 %v44
    %1092 = vmatprep.subr.mxu0 0.0
    %1093 = vmatpush2.msra.mxu0 0.0
    %1094 = vmatprep.subr.mxu0 0.0
    %1095 = vmatpush2.msra.mxu0 0.0
    %1096 = vmatprep.subr.mxu0 0.0
    %1097 = vmatpush2.msra.mxu0 0.0
    %1098 = vmatprep.subr.mxu0 0.0
    %1099 = vmatpush2.msra.mxu0 0.0
    %1100 = vmatprep.subr.mxu0 0.0
    %1101 = vmatpush2.msra.mxu0 0.0
    %1102 = vmatprep.subr.mxu0 0.0
    %1103 = vmatpush2.msra.mxu0 0.0
    %1104 = vmatprep.subr.mxu0 0.0
    %1105 = vmatpush2.msra.mxu0 0.0
    %1106 = vmatprep.subr.mxu0 0.0
    %1107 = vmatpush2.msra.mxu0 0.0
    %1108 = vmatprep.subr.mxu0 0.0
    %1109 = vmatpush2.msra.mxu0 0.0
    %1110 = vmatprep.subr.mxu0 0.0
    %1111 = vmatpush2.msra.mxu0 0.0
    %1112 = vmatprep.subr.mxu0 0.0
    %1113 = vmatpush2.msra.mxu0 0.0
    %1114 = vmatprep.subr.mxu0 0.0
    %1115 = vmatpush2.msra.mxu0 0.0
    %1116 = vmatprep.subr.mxu0 0.0
    %1117 = vmatpush2.msra.mxu0 0.0
    %1118 = vmatprep.subr.mxu0 0.0
    %1119 = vmatpush2.msra.mxu0 0.0
    %1120 = vmatprep.subr.mxu0 0.0
    %1121 = vmatpush2.msra.mxu0 0.0
    %1122 = vmatprep.subr.mxu0 0.0
    %1123 = vmatpush2.msra.mxu0 0.0
    %1124 = vmatprep.mubr.f32.mxu0 0.0
    %1125 = vmatmul.mubr.f32.gmra.mxu0 %v1058
    %v1126 = vpop.f32.mrf.mxu0
    %v1127 = vadd.f32 0.0, %v1126
    %v1128 = vpop.f32.mrf.mxu0
    %1129 = vdwg.mxu0
    %1130 = vst [vmem:[#allocation3 + $0xc] sm:$0xf] %v1127
    %s1131 = sld [smem:[#allocation8 + $0x30]]
    %s1132 = scalar_lea.vmem [#allocation3], %s1131
    %v1133 = vld [vmem:[%s1132] sm:$0x1]
    %1134 = vst [vmem:[#allocation5] sm:$0x1] %v1133
    %s1135 = scalar_lea.vmem [#allocation4], %s1131
    %v1136 = vld [vmem:[%s1135] sm:$0x1]
    %1137 = vst.msk [vmem:[#allocation6] sm:$0x1] %vm49, %v1136
    %s1138 = sld [smem:[#allocation8 + $0x33]]
    %s1139 = scalar_lea.vmem [#allocation3], %s1138
    %v1140 = vld [vmem:[%s1139] sm:$0x1]
    %1141 = vst [vmem:[#allocation5 + $0x1] sm:$0x1] %v1140
    %s1142 = scalar_lea.vmem [#allocation4], %s1138
    %v1143 = vld [vmem:[%s1142] sm:$0x1]
    %1144 = vst.msk [vmem:[#allocation6 + $0x1] sm:$0x1] %vm49, %v1143
    %s1145 = sld [smem:[#allocation8 + $0x36]]
    %s1146 = scalar_lea.vmem [#allocation3], %s1145
    %v1147 = vld [vmem:[%s1146] sm:$0x1]
    %1148 = vst [vmem:[#allocation5 + $0x2] sm:$0x1] %v1147
    %s1149 = scalar_lea.vmem [#allocation4], %s1145
    %v1150 = vld [vmem:[%s1149] sm:$0x1]
    %1151 = vst.msk [vmem:[#allocation6 + $0x2] sm:$0x1] %vm49, %v1150
    %s1152 = sld [smem:[#allocation8 + $0x39]]
    %s1153 = scalar_lea.vmem [#allocation3], %s1152
    %v1154 = vld [vmem:[%s1153] sm:$0x1]
    %1155 = vst [vmem:[#allocation5 + $0x3] sm:$0x1] %v1154
    %s1156 = scalar_lea.vmem [#allocation4], %s1152
    %v1157 = vld [vmem:[%s1156] sm:$0x1]
    %1158 = vst.msk [vmem:[#allocation6 + $0x3] sm:$0x1] %vm49, %v1157
    %s1159 = sld [smem:[#allocation8 + $0x31]]
    %s1160 = scalar_lea.vmem [#allocation3], %s1159
    %v1161 = vld [vmem:[%s1160] sm:$0x1]
    %1162 = vst [vmem:[%s199] sm:$0x1] %v1161
    %s1163 = scalar_lea.vmem [#allocation4], %s1159
    %v1164 = vld [vmem:[%s1163] sm:$0x1]
    %1165 = vst.msk [vmem:[%s203] sm:$0x1] %vm49, %v1164
    %s1166 = sld [smem:[#allocation8 + $0x34]]
    %s1167 = scalar_lea.vmem [#allocation3], %s1166
    %v1168 = vld [vmem:[%s1167] sm:$0x1]
    %1169 = vst [vmem:[%s199 + $0x1] sm:$0x1] %v1168
    %s1170 = scalar_lea.vmem [#allocation4], %s1166
    %v1171 = vld [vmem:[%s1170] sm:$0x1]
    %1172 = vst.msk [vmem:[%s203 + $0x1] sm:$0x1] %vm49, %v1171
    %s1173 = sld [smem:[#allocation8 + $0x37]]
    %s1174 = scalar_lea.vmem [#allocation3], %s1173
    %v1175 = vld [vmem:[%s1174] sm:$0x1]
    %1176 = vst [vmem:[%s199 + $0x2] sm:$0x1] %v1175
    %s1177 = scalar_lea.vmem [#allocation4], %s1173
    %v1178 = vld [vmem:[%s1177] sm:$0x1]
    %1179 = vst.msk [vmem:[%s203 + $0x2] sm:$0x1] %vm49, %v1178
    %s1180 = sld [smem:[#allocation8 + $0x3a]]
    %s1181 = scalar_lea.vmem [#allocation3], %s1180
    %v1182 = vld [vmem:[%s1181] sm:$0x1]
    %1183 = vst [vmem:[%s199 + $0x3] sm:$0x1] %v1182
    %s1184 = scalar_lea.vmem [#allocation4], %s1180
    %v1185 = vld [vmem:[%s1184] sm:$0x1]
    %1186 = vst.msk [vmem:[%s203 + $0x3] sm:$0x1] %vm49, %v1185
    %s1187 = sld [smem:[#allocation8 + $0x32]]
    %s1188 = scalar_lea.vmem [#allocation3], %s1187
    %v1189 = vld [vmem:[%s1188] sm:$0x1]
    %1190 = vst [vmem:[%s229] sm:$0x1] %v1189
    %s1191 = scalar_lea.vmem [#allocation4], %s1187
    %v1192 = vld [vmem:[%s1191] sm:$0x1]
    %1193 = vst.msk [vmem:[%s233] sm:$0x1] %vm49, %v1192
    %s1194 = sld [smem:[#allocation8 + $0x35]]
    %s1195 = scalar_lea.vmem [#allocation3], %s1194
    %v1196 = vld [vmem:[%s1195] sm:$0x1]
    %1197 = vst [vmem:[%s229 + $0x1] sm:$0x1] %v1196
    %s1198 = scalar_lea.vmem [#allocation4], %s1194
    %v1199 = vld [vmem:[%s1198] sm:$0x1]
    %1200 = vst.msk [vmem:[%s233 + $0x1] sm:$0x1] %vm49, %v1199
    %s1201 = sld [smem:[#allocation8 + $0x38]]
    %s1202 = scalar_lea.vmem [#allocation3], %s1201
    %v1203 = vld [vmem:[%s1202] sm:$0x1]
    %1204 = vst [vmem:[%s229 + $0x2] sm:$0x1] %v1203
    %s1205 = scalar_lea.vmem [#allocation4], %s1201
    %v1206 = vld [vmem:[%s1205] sm:$0x1]
    %1207 = vst.msk [vmem:[%s233 + $0x2] sm:$0x1] %vm49, %v1206
    %s1208 = sld [smem:[#allocation8 + $0x3b]]
    %s1209 = scalar_lea.vmem [#allocation3], %s1208
    %v1210 = vld [vmem:[%s1209] sm:$0x1]
    %1211 = vst [vmem:[%s229 + $0x3] sm:$0x1] %v1210
    %s1212 = scalar_lea.vmem [#allocation4], %s1208
    %v1213 = vld [vmem:[%s1212] sm:$0x1]
    %1214 = vst.msk [vmem:[%s233 + $0x3] sm:$0x1] %vm49, %v1213
    %v1215 = vld [vmem:[#allocation5] sm:$0xf]
    %v1216 = vld [vmem:[#allocation5 + $0x4] sm:$0xf]
    %v1217 = vld [vmem:[#allocation5 + $0x8] sm:$0xf]
    %v1218 = vld [vmem:[#allocation6] sm:$0xf]
    %v1219 = vld [vmem:[#allocation6 + $0x4] sm:$0xf]
    %v1220 = vld [vmem:[#allocation6 + $0x8] sm:$0xf]
    %v1221 = vld [vmem:[#allocation2 + $0x10] sm:$0xf]
    %v1222 = vadd.f32 %v1215, %v1221
    %v1223 = vadd.f32 %v1216, %v1221
    %v1224 = vadd.f32 %v1217, %v1221
    %v1225 = vxor.u32 %v1222, 2147483648
    %v1226 = vxor.u32 %v1223, 2147483648
    %v1227 = vxor.u32 %v1224, 2147483648
    %v1228 = vmul.f32 %v1225, 1.442695
    %v1229 = vpow.pop %v1228
    %v1230 = vmul.f32 %v1226, 1.442695
    %v1231 = vpow.pop %v1230
    %v1232 = vmul.f32 %v1227, 1.442695
    %v1233 = vpow.pop %v1232
    %v1234 = vadd.f32 %v1229, 1.0
    %v1235 = vadd.f32 %v1231, 1.0
    %v1236 = vadd.f32 %v1233, 1.0
    %v1237 = vrcp.pop %v1234
    %v1238 = vmul.f32 1.0, %v1237
    %v1239 = vrcp.pop %v1235
    %v1240 = vmul.f32 1.0, %v1239
    %v1241 = vrcp.pop %v1236
    %v1242 = vmul.f32 1.0, %v1241
    %1246 = vrot.lane.b32.xlu0 %v1218, 96
    %v1247 = vpop.permute.xlu0 %1246
    %1248 = vrot.lane.b32.xlu0 %v1219, 96
    %v1249 = vpop.permute.xlu0 %1248
    %1250 = vrot.lane.b32.xlu0 %v1220, 96
    %v1251 = vpop.permute.xlu0 %1250
    %v1255 = vmul.f32 %v1238, %v1247
    %v1256 = vmul.f32 %v1240, %v1249
    %v1257 = vmul.f32 %v1242, %v1251
    %v1258 = vsel %vm299, %v1255, 0.0
    %v1259 = vsel %vm299, %v1256, 0.0
    %v1260 = vadd.f32 %v1258, %v1259
    %v1261 = vsel %vm299, %v1257, 0.0
    %v1262 = vadd.f32 %v1260, %v1261
    %v1263 = vsel %vm305, %v1215, 0.0
    %v1264 = vsel %vm305, %v1216, 0.0
    %v1265 = vadd.f32 %v1263, %v1264
    %v1266 = vsel %vm305, %v1217, 0.0
    %v1267 = vadd.f32 %v1265, %v1266
    %v1268 = vadd.f32 %v1221, %v1267
    %v1269 = vxor.u32 %v1268, 2147483648
    %v1270 = vmul.f32 %v1269, 1.442695
    %v1271 = vpow.pop %v1270
    %v1272 = vadd.f32 %v1271, 1.0
    %v1273 = vrcp.pop %v1272
    %v1274 = vmul.f32 1.0, %v1273
    %1276 = vrot.lane.b32.xlu0 %v1274, 64
    %v1277 = vpop.permute.xlu0 %1276
    %v1279 = vmul.f32 %v1274, %v1277
    %1281 = vrot.lane.b32.xlu0 %v1262, 32
    %v1282 = vpop.permute.xlu0 %1281
    %v1284 = vadd.f32 %v1279, %v1282
    %v1285 = vtanh.pop %v1284
    %1287 = vrot.lane.b32.xlu0 %v1285, 32
    %v1288 = vpop.permute.xlu0 %1287
    %v1290 = vmul.f32 %v1274, %v1288
    %1292 = vrot.lane.b32.xlu0 %v1290, 96
    %v1293 = vpop.permute.xlu0 %1292
    %1295 = vst.msk [vmem:[#allocation10 + $0x10] sm:$0xf] %vm338, %v1293
    %1296 = vst.msk [vmem:[#allocation4 + $0x10] sm:$0xf] %vm338, %v1284
    %v1297 = vsel %vm66, %v1293, 0
    %1299 = vmatprep.subr.mxu0 0.0
    %1300 = vmatpush1.msra.mxu0 0.0
    %1301 = vmatprep.subr.mxu0 0.0
    %1302 = vmatpush1.msra.mxu0 0.0
    %1303 = vmatprep.subr.mxu0 0.0
    %1304 = vmatpush1.msra.mxu0 0.0
    %1305 = vmatprep.subr.mxu0 0.0
    %1306 = vmatpush1.msra.mxu0 0.0
    %1307 = vmatprep.subr.mxu0 0.0
    %1308 = vmatpush1.msra.mxu0 0.0
    %1309 = vmatprep.subr.mxu0 0.0
    %1310 = vmatpush1.msra.mxu0 0.0
    %1311 = vmatprep.subr.mxu0 0.0
    %1312 = vmatpush1.msra.mxu0 0.0
    %1313 = vmatprep.subr.mxu0 0.0
    %1314 = vmatpush1.msra.mxu0 0.0
    %1315 = vmatprep.subr.mxu0 0.0
    %1316 = vmatpush1.msra.mxu0 0.0
    %1317 = vmatprep.subr.mxu0 0.0
    %1318 = vmatpush1.msra.mxu0 0.0
    %1319 = vmatprep.subr.mxu0 0.0
    %1320 = vmatpush1.msra.mxu0 0.0
    %1321 = vmatprep.subr.mxu0 0.0
    %1322 = vmatpush1.msra.mxu0 0.0
    %1323 = vmatprep.subr.mxu0 0.0
    %1324 = vmatpush1.msra.mxu0 %v47
    %1325 = vmatprep.subr.mxu0 0.0
    %1326 = vmatpush1.msra.mxu0 %v46
    %1327 = vmatprep.subr.mxu0 0.0
    %1328 = vmatpush1.msra.mxu0 %v45
    %1329 = vmatprep.subr.mxu0 0.0
    %1330 = vmatpush1.msra.mxu0 %v44
    %1331 = vmatprep.subr.mxu0 0.0
    %1332 = vmatpush2.msra.mxu0 0.0
    %1333 = vmatprep.subr.mxu0 0.0
    %1334 = vmatpush2.msra.mxu0 0.0
    %1335 = vmatprep.subr.mxu0 0.0
    %1336 = vmatpush2.msra.mxu0 0.0
    %1337 = vmatprep.subr.mxu0 0.0
    %1338 = vmatpush2.msra.mxu0 0.0
    %1339 = vmatprep.subr.mxu0 0.0
    %1340 = vmatpush2.msra.mxu0 0.0
    %1341 = vmatprep.subr.mxu0 0.0
    %1342 = vmatpush2.msra.mxu0 0.0
    %1343 = vmatprep.subr.mxu0 0.0
    %1344 = vmatpush2.msra.mxu0 0.0
    %1345 = vmatprep.subr.mxu0 0.0
    %1346 = vmatpush2.msra.mxu0 0.0
    %1347 = vmatprep.subr.mxu0 0.0
    %1348 = vmatpush2.msra.mxu0 0.0
    %1349 = vmatprep.subr.mxu0 0.0
    %1350 = vmatpush2.msra.mxu0 0.0
    %1351 = vmatprep.subr.mxu0 0.0
    %1352 = vmatpush2.msra.mxu0 0.0
    %1353 = vmatprep.subr.mxu0 0.0
    %1354 = vmatpush2.msra.mxu0 0.0
    %1355 = vmatprep.subr.mxu0 0.0
    %1356 = vmatpush2.msra.mxu0 0.0
    %1357 = vmatprep.subr.mxu0 0.0
    %1358 = vmatpush2.msra.mxu0 0.0
    %1359 = vmatprep.subr.mxu0 0.0
    %1360 = vmatpush2.msra.mxu0 0.0
    %1361 = vmatprep.subr.mxu0 0.0
    %1362 = vmatpush2.msra.mxu0 0.0
    %1363 = vmatprep.mubr.f32.mxu0 0.0
    %1364 = vmatmul.mubr.f32.gmra.mxu0 %v1297
    %v1365 = vpop.f32.mrf.mxu0
    %v1366 = vadd.f32 0.0, %v1365
    %v1367 = vpop.f32.mrf.mxu0
    %1368 = vdwg.mxu0
    %1369 = vst [vmem:[#allocation3 + $0x10] sm:$0xf] %v1366
    %s1370 = sld [smem:[#allocation8 + $0x3c]]
    %s1371 = scalar_lea.vmem [#allocation3], %s1370
    %v1372 = vld [vmem:[%s1371] sm:$0x1]
    %1373 = vst [vmem:[#allocation5] sm:$0x1] %v1372
    %s1374 = scalar_lea.vmem [#allocation4], %s1370
    %v1375 = vld [vmem:[%s1374] sm:$0x1]
    %1376 = vst.msk [vmem:[#allocation6] sm:$0x1] %vm49, %v1375
    %s1377 = sld [smem:[#allocation8 + $0x3f]]
    %s1378 = scalar_lea.vmem [#allocation3], %s1377
    %v1379 = vld [vmem:[%s1378] sm:$0x1]
    %1380 = vst [vmem:[#allocation5 + $0x1] sm:$0x1] %v1379
    %s1381 = scalar_lea.vmem [#allocation4], %s1377
    %v1382 = vld [vmem:[%s1381] sm:$0x1]
    %1383 = vst.msk [vmem:[#allocation6 + $0x1] sm:$0x1] %vm49, %v1382
    %s1384 = sld [smem:[#allocation8 + $0x42]]
    %s1385 = scalar_lea.vmem [#allocation3], %s1384
    %v1386 = vld [vmem:[%s1385] sm:$0x1]
    %1387 = vst [vmem:[#allocation5 + $0x2] sm:$0x1] %v1386
    %s1388 = scalar_lea.vmem [#allocation4], %s1384
    %v1389 = vld [vmem:[%s1388] sm:$0x1]
    %1390 = vst.msk [vmem:[#allocation6 + $0x2] sm:$0x1] %vm49, %v1389
    %s1391 = sld [smem:[#allocation8 + $0x45]]
    %s1392 = scalar_lea.vmem [#allocation3], %s1391
    %v1393 = vld [vmem:[%s1392] sm:$0x1]
    %1394 = vst [vmem:[#allocation5 + $0x3] sm:$0x1] %v1393
    %s1395 = scalar_lea.vmem [#allocation4], %s1391
    %v1396 = vld [vmem:[%s1395] sm:$0x1]
    %1397 = vst.msk [vmem:[#allocation6 + $0x3] sm:$0x1] %vm49, %v1396
    %s1398 = sld [smem:[#allocation8 + $0x3d]]
    %s1399 = scalar_lea.vmem [#allocation3], %s1398
    %v1400 = vld [vmem:[%s1399] sm:$0x1]
    %1401 = vst [vmem:[%s199] sm:$0x1] %v1400
    %s1402 = scalar_lea.vmem [#allocation4], %s1398
    %v1403 = vld [vmem:[%s1402] sm:$0x1]
    %1404 = vst.msk [vmem:[%s203] sm:$0x1] %vm49, %v1403
    %s1405 = sld [smem:[#allocation8 + $0x40]]
    %s1406 = scalar_lea.vmem [#allocation3], %s1405
    %v1407 = vld [vmem:[%s1406] sm:$0x1]
    %1408 = vst [vmem:[%s199 + $0x1] sm:$0x1] %v1407
    %s1409 = scalar_lea.vmem [#allocation4], %s1405
    %v1410 = vld [vmem:[%s1409] sm:$0x1]
    %1411 = vst.msk [vmem:[%s203 + $0x1] sm:$0x1] %vm49, %v1410
    %s1412 = sld [smem:[#allocation8 + $0x43]]
    %s1413 = scalar_lea.vmem [#allocation3], %s1412
    %v1414 = vld [vmem:[%s1413] sm:$0x1]
    %1415 = vst [vmem:[%s199 + $0x2] sm:$0x1] %v1414
    %s1416 = scalar_lea.vmem [#allocation4], %s1412
    %v1417 = vld [vmem:[%s1416] sm:$0x1]
    %1418 = vst.msk [vmem:[%s203 + $0x2] sm:$0x1] %vm49, %v1417
    %s1419 = sld [smem:[#allocation8 + $0x46]]
    %s1420 = scalar_lea.vmem [#allocation3], %s1419
    %v1421 = vld [vmem:[%s1420] sm:$0x1]
    %1422 = vst [vmem:[%s199 + $0x3] sm:$0x1] %v1421
    %s1423 = scalar_lea.vmem [#allocation4], %s1419
    %v1424 = vld [vmem:[%s1423] sm:$0x1]
    %1425 = vst.msk [vmem:[%s203 + $0x3] sm:$0x1] %vm49, %v1424
    %s1426 = sld [smem:[#allocation8 + $0x3e]]
    %s1427 = scalar_lea.vmem [#allocation3], %s1426
    %v1428 = vld [vmem:[%s1427] sm:$0x1]
    %1429 = vst [vmem:[%s229] sm:$0x1] %v1428
    %s1430 = scalar_lea.vmem [#allocation4], %s1426
    %v1431 = vld [vmem:[%s1430] sm:$0x1]
    %1432 = vst.msk [vmem:[%s233] sm:$0x1] %vm49, %v1431
    %s1433 = sld [smem:[#allocation8 + $0x41]]
    %s1434 = scalar_lea.vmem [#allocation3], %s1433
    %v1435 = vld [vmem:[%s1434] sm:$0x1]
    %1436 = vst [vmem:[%s229 + $0x1] sm:$0x1] %v1435
    %s1437 = scalar_lea.vmem [#allocation4], %s1433
    %v1438 = vld [vmem:[%s1437] sm:$0x1]
    %1439 = vst.msk [vmem:[%s233 + $0x1] sm:$0x1] %vm49, %v1438
    %s1440 = sld [smem:[#allocation8 + $0x44]]
    %s1441 = scalar_lea.vmem [#allocation3], %s1440
    %v1442 = vld [vmem:[%s1441] sm:$0x1]
    %1443 = vst [vmem:[%s229 + $0x2] sm:$0x1] %v1442
    %s1444 = scalar_lea.vmem [#allocation4], %s1440
    %v1445 = vld [vmem:[%s1444] sm:$0x1]
    %1446 = vst.msk [vmem:[%s233 + $0x2] sm:$0x1] %vm49, %v1445
    %s1447 = sld [smem:[#allocation8 + $0x47]]
    %s1448 = scalar_lea.vmem [#allocation3], %s1447
    %v1449 = vld [vmem:[%s1448] sm:$0x1]
    %1450 = vst [vmem:[%s229 + $0x3] sm:$0x1] %v1449
    %s1451 = scalar_lea.vmem [#allocation4], %s1447
    %v1452 = vld [vmem:[%s1451] sm:$0x1]
    %1453 = vst.msk [vmem:[%s233 + $0x3] sm:$0x1] %vm49, %v1452
    %v1454 = vld [vmem:[#allocation5] sm:$0xf]
    %v1455 = vld [vmem:[#allocation5 + $0x4] sm:$0xf]
    %v1456 = vld [vmem:[#allocation5 + $0x8] sm:$0xf]
    %v1457 = vld [vmem:[#allocation6] sm:$0xf]
    %v1458 = vld [vmem:[#allocation6 + $0x4] sm:$0xf]
    %v1459 = vld [vmem:[#allocation6 + $0x8] sm:$0xf]
    %v1460 = vld [vmem:[#allocation2 + $0x14] sm:$0xf]
    %v1461 = vadd.f32 %v1454, %v1460
    %v1462 = vadd.f32 %v1455, %v1460
    %v1463 = vadd.f32 %v1456, %v1460
    %v1464 = vxor.u32 %v1461, 2147483648
    %v1465 = vxor.u32 %v1462, 2147483648
    %v1466 = vxor.u32 %v1463, 2147483648
    %v1467 = vmul.f32 %v1464, 1.442695
    %v1468 = vpow.pop %v1467
    %v1469 = vmul.f32 %v1465, 1.442695
    %v1470 = vpow.pop %v1469
    %v1471 = vmul.f32 %v1466, 1.442695
    %v1472 = vpow.pop %v1471
    %v1473 = vadd.f32 %v1468, 1.0
    %v1474 = vadd.f32 %v1470, 1.0
    %v1475 = vadd.f32 %v1472, 1.0
    %v1476 = vrcp.pop %v1473
    %v1477 = vmul.f32 1.0, %v1476
    %v1478 = vrcp.pop %v1474
    %v1479 = vmul.f32 1.0, %v1478
    %v1480 = vrcp.pop %v1475
    %v1481 = vmul.f32 1.0, %v1480
    %1485 = vrot.lane.b32.xlu0 %v1457, 96
    %v1486 = vpop.permute.xlu0 %1485
    %1487 = vrot.lane.b32.xlu0 %v1458, 96
    %v1488 = vpop.permute.xlu0 %1487
    %1489 = vrot.lane.b32.xlu0 %v1459, 96
    %v1490 = vpop.permute.xlu0 %1489
    %v1494 = vmul.f32 %v1477, %v1486
    %v1495 = vmul.f32 %v1479, %v1488
    %v1496 = vmul.f32 %v1481, %v1490
    %v1497 = vsel %vm299, %v1494, 0.0
    %v1498 = vsel %vm299, %v1495, 0.0
    %v1499 = vadd.f32 %v1497, %v1498
    %v1500 = vsel %vm299, %v1496, 0.0
    %v1501 = vadd.f32 %v1499, %v1500
    %v1502 = vsel %vm305, %v1454, 0.0
    %v1503 = vsel %vm305, %v1455, 0.0
    %v1504 = vadd.f32 %v1502, %v1503
    %v1505 = vsel %vm305, %v1456, 0.0
    %v1506 = vadd.f32 %v1504, %v1505
    %v1507 = vadd.f32 %v1460, %v1506
    %v1508 = vxor.u32 %v1507, 2147483648
    %v1509 = vmul.f32 %v1508, 1.442695
    %v1510 = vpow.pop %v1509
    %v1511 = vadd.f32 %v1510, 1.0
    %v1512 = vrcp.pop %v1511
    %v1513 = vmul.f32 1.0, %v1512
    %1515 = vrot.lane.b32.xlu0 %v1513, 64
    %v1516 = vpop.permute.xlu0 %1515
    %v1518 = vmul.f32 %v1513, %v1516
    %1520 = vrot.lane.b32.xlu0 %v1501, 32
    %v1521 = vpop.permute.xlu0 %1520
    %v1523 = vadd.f32 %v1518, %v1521
    %v1524 = vtanh.pop %v1523
    %1526 = vrot.lane.b32.xlu0 %v1524, 32
    %v1527 = vpop.permute.xlu0 %1526
    %v1529 = vmul.f32 %v1513, %v1527
    %1531 = vrot.lane.b32.xlu0 %v1529, 96
    %v1532 = vpop.permute.xlu0 %1531
    %1534 = vst.msk [vmem:[#allocation10 + $0x14] sm:$0xf] %vm338, %v1532
    %1535 = vst.msk [vmem:[#allocation4 + $0x14] sm:$0xf] %vm338, %v1523
    %v1536 = vsel %vm66, %v1532, 0
    %1538 = vmatprep.subr.mxu0 0.0
    %1539 = vmatpush1.msra.mxu0 0.0
    %1540 = vmatprep.subr.mxu0 0.0
    %1541 = vmatpush1.msra.mxu0 0.0
    %1542 = vmatprep.subr.mxu0 0.0
    %1543 = vmatpush1.msra.mxu0 0.0
    %1544 = vmatprep.subr.mxu0 0.0
    %1545 = vmatpush1.msra.mxu0 0.0
    %1546 = vmatprep.subr.mxu0 0.0
    %1547 = vmatpush1.msra.mxu0 0.0
    %1548 = vmatprep.subr.mxu0 0.0
    %1549 = vmatpush1.msra.mxu0 0.0
    %1550 = vmatprep.subr.mxu0 0.0
    %1551 = vmatpush1.msra.mxu0 0.0
    %1552 = vmatprep.subr.mxu0 0.0
    %1553 = vmatpush1.msra.mxu0 0.0
    %1554 = vmatprep.subr.mxu0 0.0
    %1555 = vmatpush1.msra.mxu0 0.0
    %1556 = vmatprep.subr.mxu0 0.0
    %1557 = vmatpush1.msra.mxu0 0.0
    %1558 = vmatprep.subr.mxu0 0.0
    %1559 = vmatpush1.msra.mxu0 0.0
    %1560 = vmatprep.subr.mxu0 0.0
    %1561 = vmatpush1.msra.mxu0 0.0
    %1562 = vmatprep.subr.mxu0 0.0
    %1563 = vmatpush1.msra.mxu0 %v47
    %1564 = vmatprep.subr.mxu0 0.0
    %1565 = vmatpush1.msra.mxu0 %v46
    %1566 = vmatprep.subr.mxu0 0.0
    %1567 = vmatpush1.msra.mxu0 %v45
    %1568 = vmatprep.subr.mxu0 0.0
    %1569 = vmatpush1.msra.mxu0 %v44
    %1570 = vmatprep.subr.mxu0 0.0
    %1571 = vmatpush2.msra.mxu0 0.0
    %1572 = vmatprep.subr.mxu0 0.0
    %1573 = vmatpush2.msra.mxu0 0.0
    %1574 = vmatprep.subr.mxu0 0.0
    %1575 = vmatpush2.msra.mxu0 0.0
    %1576 = vmatprep.subr.mxu0 0.0
    %1577 = vmatpush2.msra.mxu0 0.0
    %1578 = vmatprep.subr.mxu0 0.0
    %1579 = vmatpush2.msra.mxu0 0.0
    %1580 = vmatprep.subr.mxu0 0.0
    %1581 = vmatpush2.msra.mxu0 0.0
    %1582 = vmatprep.subr.mxu0 0.0
    %1583 = vmatpush2.msra.mxu0 0.0
    %1584 = vmatprep.subr.mxu0 0.0
    %1585 = vmatpush2.msra.mxu0 0.0
    %1586 = vmatprep.subr.mxu0 0.0
    %1587 = vmatpush2.msra.mxu0 0.0
    %1588 = vmatprep.subr.mxu0 0.0
    %1589 = vmatpush2.msra.mxu0 0.0
    %1590 = vmatprep.subr.mxu0 0.0
    %1591 = vmatpush2.msra.mxu0 0.0
    %1592 = vmatprep.subr.mxu0 0.0
    %1593 = vmatpush2.msra.mxu0 0.0
    %1594 = vmatprep.subr.mxu0 0.0
    %1595 = vmatpush2.msra.mxu0 0.0
    %1596 = vmatprep.subr.mxu0 0.0
    %1597 = vmatpush2.msra.mxu0 0.0
    %1598 = vmatprep.subr.mxu0 0.0
    %1599 = vmatpush2.msra.mxu0 0.0
    %1600 = vmatprep.subr.mxu0 0.0
    %1601 = vmatpush2.msra.mxu0 0.0
    %1602 = vmatprep.mubr.f32.mxu0 0.0
    %1603 = vmatmul.mubr.f32.gmra.mxu0 %v1536
    %v1604 = vpop.f32.mrf.mxu0
    %v1605 = vadd.f32 0.0, %v1604
    %v1606 = vpop.f32.mrf.mxu0
    %1607 = vdwg.mxu0
    %1608 = vst [vmem:[#allocation3 + $0x14] sm:$0xf] %v1605
    %s1609 = sld [smem:[#allocation8 + $0x48]]
    %s1610 = scalar_lea.vmem [#allocation3], %s1609
    %v1611 = vld [vmem:[%s1610] sm:$0x1]
    %1612 = vst [vmem:[#allocation5] sm:$0x1] %v1611
    %s1613 = scalar_lea.vmem [#allocation4], %s1609
    %v1614 = vld [vmem:[%s1613] sm:$0x1]
    %1615 = vst.msk [vmem:[#allocation6] sm:$0x1] %vm49, %v1614
    %s1616 = sld [smem:[#allocation8 + $0x4b]]
    %s1617 = scalar_lea.vmem [#allocation3], %s1616
    %v1618 = vld [vmem:[%s1617] sm:$0x1]
    %1619 = vst [vmem:[#allocation5 + $0x1] sm:$0x1] %v1618
    %s1620 = scalar_lea.vmem [#allocation4], %s1616
    %v1621 = vld [vmem:[%s1620] sm:$0x1]
    %1622 = vst.msk [vmem:[#allocation6 + $0x1] sm:$0x1] %vm49, %v1621
    %s1623 = sld [smem:[#allocation8 + $0x4e]]
    %s1624 = scalar_lea.vmem [#allocation3], %s1623
    %v1625 = vld [vmem:[%s1624] sm:$0x1]
    %1626 = vst [vmem:[#allocation5 + $0x2] sm:$0x1] %v1625
    %s1627 = scalar_lea.vmem [#allocation4], %s1623
    %v1628 = vld [vmem:[%s1627] sm:$0x1]
    %1629 = vst.msk [vmem:[#allocation6 + $0x2] sm:$0x1] %vm49, %v1628
    %s1630 = sld [smem:[#allocation8 + $0x51]]
    %s1631 = scalar_lea.vmem [#allocation3], %s1630
    %v1632 = vld [vmem:[%s1631] sm:$0x1]
    %1633 = vst [vmem:[#allocation5 + $0x3] sm:$0x1] %v1632
    %s1634 = scalar_lea.vmem [#allocation4], %s1630
    %v1635 = vld [vmem:[%s1634] sm:$0x1]
    %1636 = vst.msk [vmem:[#allocation6 + $0x3] sm:$0x1] %vm49, %v1635
    %s1637 = sld [smem:[#allocation8 + $0x49]]
    %s1638 = scalar_lea.vmem [#allocation3], %s1637
    %v1639 = vld [vmem:[%s1638] sm:$0x1]
    %1640 = vst [vmem:[%s199] sm:$0x1] %v1639
    %s1641 = scalar_lea.vmem [#allocation4], %s1637
    %v1642 = vld [vmem:[%s1641] sm:$0x1]
    %1643 = vst.msk [vmem:[%s203] sm:$0x1] %vm49, %v1642
    %s1644 = sld [smem:[#allocation8 + $0x4c]]
    %s1645 = scalar_lea.vmem [#allocation3], %s1644
    %v1646 = vld [vmem:[%s1645] sm:$0x1]
    %1647 = vst [vmem:[%s199 + $0x1] sm:$0x1] %v1646
    %s1648 = scalar_lea.vmem [#allocation4], %s1644
    %v1649 = vld [vmem:[%s1648] sm:$0x1]
    %1650 = vst.msk [vmem:[%s203 + $0x1] sm:$0x1] %vm49, %v1649
    %s1651 = sld [smem:[#allocation8 + $0x4f]]
    %s1652 = scalar_lea.vmem [#allocation3], %s1651
    %v1653 = vld [vmem:[%s1652] sm:$0x1]
    %1654 = vst [vmem:[%s199 + $0x2] sm:$0x1] %v1653
    %s1655 = scalar_lea.vmem [#allocation4], %s1651
    %v1656 = vld [vmem:[%s1655] sm:$0x1]
    %1657 = vst.msk [vmem:[%s203 + $0x2] sm:$0x1] %vm49, %v1656
    %s1658 = sld [smem:[#allocation8 + $0x52]]
    %s1659 = scalar_lea.vmem [#allocation3], %s1658
    %v1660 = vld [vmem:[%s1659] sm:$0x1]
    %1661 = vst [vmem:[%s199 + $0x3] sm:$0x1] %v1660
    %s1662 = scalar_lea.vmem [#allocation4], %s1658
    %v1663 = vld [vmem:[%s1662] sm:$0x1]
    %1664 = vst.msk [vmem:[%s203 + $0x3] sm:$0x1] %vm49, %v1663
    %s1665 = sld [smem:[#allocation8 + $0x4a]]
    %s1666 = scalar_lea.vmem [#allocation3], %s1665
    %v1667 = vld [vmem:[%s1666] sm:$0x1]
    %1668 = vst [vmem:[%s229] sm:$0x1] %v1667
    %s1669 = scalar_lea.vmem [#allocation4], %s1665
    %v1670 = vld [vmem:[%s1669] sm:$0x1]
    %1671 = vst.msk [vmem:[%s233] sm:$0x1] %vm49, %v1670
    %s1672 = sld [smem:[#allocation8 + $0x4d]]
    %s1673 = scalar_lea.vmem [#allocation3], %s1672
    %v1674 = vld [vmem:[%s1673] sm:$0x1]
    %1675 = vst [vmem:[%s229 + $0x1] sm:$0x1] %v1674
    %s1676 = scalar_lea.vmem [#allocation4], %s1672
    %v1677 = vld [vmem:[%s1676] sm:$0x1]
    %1678 = vst.msk [vmem:[%s233 + $0x1] sm:$0x1] %vm49, %v1677
    %s1679 = sld [smem:[#allocation8 + $0x50]]
    %s1680 = scalar_lea.vmem [#allocation3], %s1679
    %v1681 = vld [vmem:[%s1680] sm:$0x1]
    %1682 = vst [vmem:[%s229 + $0x2] sm:$0x1] %v1681
    %s1683 = scalar_lea.vmem [#allocation4], %s1679
    %v1684 = vld [vmem:[%s1683] sm:$0x1]
    %1685 = vst.msk [vmem:[%s233 + $0x2] sm:$0x1] %vm49, %v1684
    %s1686 = sld [smem:[#allocation8 + $0x53]]
    %s1687 = scalar_lea.vmem [#allocation3], %s1686
    %v1688 = vld [vmem:[%s1687] sm:$0x1]
    %1689 = vst [vmem:[%s229 + $0x3] sm:$0x1] %v1688
    %s1690 = scalar_lea.vmem [#allocation4], %s1686
    %v1691 = vld [vmem:[%s1690] sm:$0x1]
    %1692 = vst.msk [vmem:[%s233 + $0x3] sm:$0x1] %vm49, %v1691
    %v1693 = vld [vmem:[#allocation5] sm:$0xf]
    %v1694 = vld [vmem:[#allocation5 + $0x4] sm:$0xf]
    %v1695 = vld [vmem:[#allocation5 + $0x8] sm:$0xf]
    %v1696 = vld [vmem:[#allocation6] sm:$0xf]
    %v1697 = vld [vmem:[#allocation6 + $0x4] sm:$0xf]
    %v1698 = vld [vmem:[#allocation6 + $0x8] sm:$0xf]
    %v1699 = vld [vmem:[#allocation2 + $0x18] sm:$0xf]
    %v1700 = vadd.f32 %v1693, %v1699
    %v1701 = vadd.f32 %v1694, %v1699
    %v1702 = vadd.f32 %v1695, %v1699
    %v1703 = vxor.u32 %v1700, 2147483648
    %v1704 = vxor.u32 %v1701, 2147483648
    %v1705 = vxor.u32 %v1702, 2147483648
    %v1706 = vmul.f32 %v1703, 1.442695
    %v1707 = vpow.pop %v1706
    %v1708 = vmul.f32 %v1704, 1.442695
    %v1709 = vpow.pop %v1708
    %v1710 = vmul.f32 %v1705, 1.442695
    %v1711 = vpow.pop %v1710
    %v1712 = vadd.f32 %v1707, 1.0
    %v1713 = vadd.f32 %v1709, 1.0
    %v1714 = vadd.f32 %v1711, 1.0
    %v1715 = vrcp.pop %v1712
    %v1716 = vmul.f32 1.0, %v1715
    %v1717 = vrcp.pop %v1713
    %v1718 = vmul.f32 1.0, %v1717
    %v1719 = vrcp.pop %v1714
    %v1720 = vmul.f32 1.0, %v1719
    %1724 = vrot.lane.b32.xlu0 %v1696, 96
    %v1725 = vpop.permute.xlu0 %1724
    %1726 = vrot.lane.b32.xlu0 %v1697, 96
    %v1727 = vpop.permute.xlu0 %1726
    %1728 = vrot.lane.b32.xlu0 %v1698, 96
    %v1729 = vpop.permute.xlu0 %1728
    %v1733 = vmul.f32 %v1716, %v1725
    %v1734 = vmul.f32 %v1718, %v1727
    %v1735 = vmul.f32 %v1720, %v1729
    %v1736 = vsel %vm299, %v1733, 0.0
    %v1737 = vsel %vm299, %v1734, 0.0
    %v1738 = vadd.f32 %v1736, %v1737
    %v1739 = vsel %vm299, %v1735, 0.0
    %v1740 = vadd.f32 %v1738, %v1739
    %v1741 = vsel %vm305, %v1693, 0.0
    %v1742 = vsel %vm305, %v1694, 0.0
    %v1743 = vadd.f32 %v1741, %v1742
    %v1744 = vsel %vm305, %v1695, 0.0
    %v1745 = vadd.f32 %v1743, %v1744
    %v1746 = vadd.f32 %v1699, %v1745
    %v1747 = vxor.u32 %v1746, 2147483648
    %v1748 = vmul.f32 %v1747, 1.442695
    %v1749 = vpow.pop %v1748
    %v1750 = vadd.f32 %v1749, 1.0
    %v1751 = vrcp.pop %v1750
    %v1752 = vmul.f32 1.0, %v1751
    %1754 = vrot.lane.b32.xlu0 %v1752, 64
    %v1755 = vpop.permute.xlu0 %1754
    %v1757 = vmul.f32 %v1752, %v1755
    %1759 = vrot.lane.b32.xlu0 %v1740, 32
    %v1760 = vpop.permute.xlu0 %1759
    %v1762 = vadd.f32 %v1757, %v1760
    %v1763 = vtanh.pop %v1762
    %1765 = vrot.lane.b32.xlu0 %v1763, 32
    %v1766 = vpop.permute.xlu0 %1765
    %v1768 = vmul.f32 %v1752, %v1766
    %1770 = vrot.lane.b32.xlu0 %v1768, 96
    %v1771 = vpop.permute.xlu0 %1770
    %1773 = vst.msk [vmem:[#allocation10 + $0x18] sm:$0xf] %vm338, %v1771
    %1774 = vst.msk [vmem:[#allocation4 + $0x18] sm:$0xf] %vm338, %v1762
    %v1775 = vsel %vm66, %v1771, 0
    %1777 = vmatprep.subr.mxu0 0.0
    %1778 = vmatpush1.msra.mxu0 0.0
    %1779 = vmatprep.subr.mxu0 0.0
    %1780 = vmatpush1.msra.mxu0 0.0
    %1781 = vmatprep.subr.mxu0 0.0
    %1782 = vmatpush1.msra.mxu0 0.0
    %1783 = vmatprep.subr.mxu0 0.0
    %1784 = vmatpush1.msra.mxu0 0.0
    %1785 = vmatprep.subr.mxu0 0.0
    %1786 = vmatpush1.msra.mxu0 0.0
    %1787 = vmatprep.subr.mxu0 0.0
    %1788 = vmatpush1.msra.mxu0 0.0
    %1789 = vmatprep.subr.mxu0 0.0
    %1790 = vmatpush1.msra.mxu0 0.0
    %1791 = vmatprep.subr.mxu0 0.0
    %1792 = vmatpush1.msra.mxu0 0.0
    %1793 = vmatprep.subr.mxu0 0.0
    %1794 = vmatpush1.msra.mxu0 0.0
    %1795 = vmatprep.subr.mxu0 0.0
    %1796 = vmatpush1.msra.mxu0 0.0
    %1797 = vmatprep.subr.mxu0 0.0
    %1798 = vmatpush1.msra.mxu0 0.0
    %1799 = vmatprep.subr.mxu0 0.0
    %1800 = vmatpush1.msra.mxu0 0.0
    %1801 = vmatprep.subr.mxu0 0.0
    %1802 = vmatpush1.msra.mxu0 %v47
    %1803 = vmatprep.subr.mxu0 0.0
    %1804 = vmatpush1.msra.mxu0 %v46
    %1805 = vmatprep.subr.mxu0 0.0
    %1806 = vmatpush1.msra.mxu0 %v45
    %1807 = vmatprep.subr.mxu0 0.0
    %1808 = vmatpush1.msra.mxu0 %v44
    %1809 = vmatprep.subr.mxu0 0.0
    %1810 = vmatpush2.msra.mxu0 0.0
    %1811 = vmatprep.subr.mxu0 0.0
    %1812 = vmatpush2.msra.mxu0 0.0
    %1813 = vmatprep.subr.mxu0 0.0
    %1814 = vmatpush2.msra.mxu0 0.0
    %1815 = vmatprep.subr.mxu0 0.0
    %1816 = vmatpush2.msra.mxu0 0.0
    %1817 = vmatprep.subr.mxu0 0.0
    %1818 = vmatpush2.msra.mxu0 0.0
    %1819 = vmatprep.subr.mxu0 0.0
    %1820 = vmatpush2.msra.mxu0 0.0
    %1821 = vmatprep.subr.mxu0 0.0
    %1822 = vmatpush2.msra.mxu0 0.0
    %1823 = vmatprep.subr.mxu0 0.0
    %1824 = vmatpush2.msra.mxu0 0.0
    %1825 = vmatprep.subr.mxu0 0.0
    %1826 = vmatpush2.msra.mxu0 0.0
    %1827 = vmatprep.subr.mxu0 0.0
    %1828 = vmatpush2.msra.mxu0 0.0
    %1829 = vmatprep.subr.mxu0 0.0
    %1830 = vmatpush2.msra.mxu0 0.0
    %1831 = vmatprep.subr.mxu0 0.0
    %1832 = vmatpush2.msra.mxu0 0.0
    %1833 = vmatprep.subr.mxu0 0.0
    %1834 = vmatpush2.msra.mxu0 0.0
    %1835 = vmatprep.subr.mxu0 0.0
    %1836 = vmatpush2.msra.mxu0 0.0
    %1837 = vmatprep.subr.mxu0 0.0
    %1838 = vmatpush2.msra.mxu0 0.0
    %1839 = vmatprep.subr.mxu0 0.0
    %1840 = vmatpush2.msra.mxu0 0.0
    %1841 = vmatprep.mubr.f32.mxu0 0.0
    %1842 = vmatmul.mubr.f32.gmra.mxu0 %v1775
    %v1843 = vpop.f32.mrf.mxu0
    %v1844 = vadd.f32 0.0, %v1843
    %v1845 = vpop.f32.mrf.mxu0
    %1846 = vdwg.mxu0
    %1847 = vst [vmem:[#allocation3 + $0x18] sm:$0xf] %v1844
    %s1848 = sld [smem:[#allocation8 + $0x54]]
    %s1849 = scalar_lea.vmem [#allocation3], %s1848
    %v1850 = vld [vmem:[%s1849] sm:$0x1]
    %1851 = vst [vmem:[#allocation5] sm:$0x1] %v1850
    %s1852 = scalar_lea.vmem [#allocation4], %s1848
    %v1853 = vld [vmem:[%s1852] sm:$0x1]
    %1854 = vst.msk [vmem:[#allocation6] sm:$0x1] %vm49, %v1853
    %s1855 = sld [smem:[#allocation8 + $0x57]]
    %s1856 = scalar_lea.vmem [#allocation3], %s1855
    %v1857 = vld [vmem:[%s1856] sm:$0x1]
    %1858 = vst [vmem:[#allocation5 + $0x1] sm:$0x1] %v1857
    %s1859 = scalar_lea.vmem [#allocation4], %s1855
    %v1860 = vld [vmem:[%s1859] sm:$0x1]
    %1861 = vst.msk [vmem:[#allocation6 + $0x1] sm:$0x1] %vm49, %v1860
    %s1862 = sld [smem:[#allocation8 + $0x5a]]
    %s1863 = scalar_lea.vmem [#allocation3], %s1862
    %v1864 = vld [vmem:[%s1863] sm:$0x1]
    %1865 = vst [vmem:[#allocation5 + $0x2] sm:$0x1] %v1864
    %s1866 = scalar_lea.vmem [#allocation4], %s1862
    %v1867 = vld [vmem:[%s1866] sm:$0x1]
    %1868 = vst.msk [vmem:[#allocation6 + $0x2] sm:$0x1] %vm49, %v1867
    %s1869 = sld [smem:[#allocation8 + $0x5d]]
    %s1870 = scalar_lea.vmem [#allocation3], %s1869
    %v1871 = vld [vmem:[%s1870] sm:$0x1]
    %1872 = vst [vmem:[#allocation5 + $0x3] sm:$0x1] %v1871
    %s1873 = scalar_lea.vmem [#allocation4], %s1869
    %v1874 = vld [vmem:[%s1873] sm:$0x1]
    %1875 = vst.msk [vmem:[#allocation6 + $0x3] sm:$0x1] %vm49, %v1874
    %s1876 = sld [smem:[#allocation8 + $0x55]]
    %s1877 = scalar_lea.vmem [#allocation3], %s1876
    %v1878 = vld [vmem:[%s1877] sm:$0x1]
    %1879 = vst [vmem:[%s199] sm:$0x1] %v1878
    %s1880 = scalar_lea.vmem [#allocation4], %s1876
    %v1881 = vld [vmem:[%s1880] sm:$0x1]
    %1882 = vst.msk [vmem:[%s203] sm:$0x1] %vm49, %v1881
    %s1883 = sld [smem:[#allocation8 + $0x58]]
    %s1884 = scalar_lea.vmem [#allocation3], %s1883
    %v1885 = vld [vmem:[%s1884] sm:$0x1]
    %1886 = vst [vmem:[%s199 + $0x1] sm:$0x1] %v1885
    %s1887 = scalar_lea.vmem [#allocation4], %s1883
    %v1888 = vld [vmem:[%s1887] sm:$0x1]
    %1889 = vst.msk [vmem:[%s203 + $0x1] sm:$0x1] %vm49, %v1888
    %s1890 = sld [smem:[#allocation8 + $0x5b]]
    %s1891 = scalar_lea.vmem [#allocation3], %s1890
    %v1892 = vld [vmem:[%s1891] sm:$0x1]
    %1893 = vst [vmem:[%s199 + $0x2] sm:$0x1] %v1892
    %s1894 = scalar_lea.vmem [#allocation4], %s1890
    %v1895 = vld [vmem:[%s1894] sm:$0x1]
    %1896 = vst.msk [vmem:[%s203 + $0x2] sm:$0x1] %vm49, %v1895
    %s1897 = sld [smem:[#allocation8 + $0x5e]]
    %s1898 = scalar_lea.vmem [#allocation3], %s1897
    %v1899 = vld [vmem:[%s1898] sm:$0x1]
    %1900 = vst [vmem:[%s199 + $0x3] sm:$0x1] %v1899
    %s1901 = scalar_lea.vmem [#allocation4], %s1897
    %v1902 = vld [vmem:[%s1901] sm:$0x1]
    %1903 = vst.msk [vmem:[%s203 + $0x3] sm:$0x1] %vm49, %v1902
    %s1904 = sld [smem:[#allocation8 + $0x56]]
    %s1905 = scalar_lea.vmem [#allocation3], %s1904
    %v1906 = vld [vmem:[%s1905] sm:$0x1]
    %1907 = vst [vmem:[%s229] sm:$0x1] %v1906
    %s1908 = scalar_lea.vmem [#allocation4], %s1904
    %v1909 = vld [vmem:[%s1908] sm:$0x1]
    %1910 = vst.msk [vmem:[%s233] sm:$0x1] %vm49, %v1909
    %s1911 = sld [smem:[#allocation8 + $0x59]]
    %s1912 = scalar_lea.vmem [#allocation3], %s1911
    %v1913 = vld [vmem:[%s1912] sm:$0x1]
    %1914 = vst [vmem:[%s229 + $0x1] sm:$0x1] %v1913
    %s1915 = scalar_lea.vmem [#allocation4], %s1911
    %v1916 = vld [vmem:[%s1915] sm:$0x1]
    %1917 = vst.msk [vmem:[%s233 + $0x1] sm:$0x1] %vm49, %v1916
    %s1918 = sld [smem:[#allocation8 + $0x5c]]
    %s1919 = scalar_lea.vmem [#allocation3], %s1918
    %v1920 = vld [vmem:[%s1919] sm:$0x1]
    %1921 = vst [vmem:[%s229 + $0x2] sm:$0x1] %v1920
    %s1922 = scalar_lea.vmem [#allocation4], %s1918
    %v1923 = vld [vmem:[%s1922] sm:$0x1]
    %1924 = vst.msk [vmem:[%s233 + $0x2] sm:$0x1] %vm49, %v1923
    %s1925 = sld [smem:[#allocation8 + $0x5f]]
    %s1926 = scalar_lea.vmem [#allocation3], %s1925
    %v1927 = vld [vmem:[%s1926] sm:$0x1]
    %1928 = vst [vmem:[%s229 + $0x3] sm:$0x1] %v1927
    %s1929 = scalar_lea.vmem [#allocation4], %s1925
    %v1930 = vld [vmem:[%s1929] sm:$0x1]
    %1931 = vst.msk [vmem:[%s233 + $0x3] sm:$0x1] %vm49, %v1930
    %v1932 = vld [vmem:[#allocation5] sm:$0xf]
    %v1933 = vld [vmem:[#allocation5 + $0x4] sm:$0xf]
    %v1934 = vld [vmem:[#allocation5 + $0x8] sm:$0xf]
    %v1935 = vld [vmem:[#allocation6] sm:$0xf]
    %v1936 = vld [vmem:[#allocation6 + $0x4] sm:$0xf]
    %v1937 = vld [vmem:[#allocation6 + $0x8] sm:$0xf]
    %v1938 = vld [vmem:[#allocation2 + $0x1c] sm:$0xf]
    %v1939 = vadd.f32 %v1932, %v1938
    %v1940 = vadd.f32 %v1933, %v1938
    %v1941 = vadd.f32 %v1934, %v1938
    %v1942 = vxor.u32 %v1939, 2147483648
    %v1943 = vxor.u32 %v1940, 2147483648
    %v1944 = vxor.u32 %v1941, 2147483648
    %v1945 = vmul.f32 %v1942, 1.442695
    %v1946 = vpow.pop %v1945
    %v1947 = vmul.f32 %v1943, 1.442695
    %v1948 = vpow.pop %v1947
    %v1949 = vmul.f32 %v1944, 1.442695
    %v1950 = vpow.pop %v1949
    %v1951 = vadd.f32 %v1946, 1.0
    %v1952 = vadd.f32 %v1948, 1.0
    %v1953 = vadd.f32 %v1950, 1.0
    %v1954 = vrcp.pop %v1951
    %v1955 = vmul.f32 1.0, %v1954
    %v1956 = vrcp.pop %v1952
    %v1957 = vmul.f32 1.0, %v1956
    %v1958 = vrcp.pop %v1953
    %v1959 = vmul.f32 1.0, %v1958
    %1963 = vrot.lane.b32.xlu0 %v1935, 96
    %v1964 = vpop.permute.xlu0 %1963
    %1965 = vrot.lane.b32.xlu0 %v1936, 96
    %v1966 = vpop.permute.xlu0 %1965
    %1967 = vrot.lane.b32.xlu0 %v1937, 96
    %v1968 = vpop.permute.xlu0 %1967
    %v1972 = vmul.f32 %v1955, %v1964
    %v1973 = vmul.f32 %v1957, %v1966
    %v1974 = vmul.f32 %v1959, %v1968
    %v1975 = vsel %vm299, %v1972, 0.0
    %v1976 = vsel %vm299, %v1973, 0.0
    %v1977 = vadd.f32 %v1975, %v1976
    %v1978 = vsel %vm299, %v1974, 0.0
    %v1979 = vadd.f32 %v1977, %v1978
    %v1980 = vsel %vm305, %v1932, 0.0
    %v1981 = vsel %vm305, %v1933, 0.0
    %v1982 = vadd.f32 %v1980, %v1981
    %v1983 = vsel %vm305, %v1934, 0.0
    %v1984 = vadd.f32 %v1982, %v1983
    %v1985 = vadd.f32 %v1938, %v1984
    %v1986 = vxor.u32 %v1985, 2147483648
    %v1987 = vmul.f32 %v1986, 1.442695
    %v1988 = vpow.pop %v1987
    %v1989 = vadd.f32 %v1988, 1.0
    %v1990 = vrcp.pop %v1989
    %v1991 = vmul.f32 1.0, %v1990
    %1993 = vrot.lane.b32.xlu0 %v1991, 64
    %v1994 = vpop.permute.xlu0 %1993
    %v1996 = vmul.f32 %v1991, %v1994
    %1998 = vrot.lane.b32.xlu0 %v1979, 32
    %v1999 = vpop.permute.xlu0 %1998
    %v2001 = vadd.f32 %v1996, %v1999
    %v2002 = vtanh.pop %v2001
    %2004 = vrot.lane.b32.xlu0 %v2002, 32
    %v2005 = vpop.permute.xlu0 %2004
    %v2007 = vmul.f32 %v1991, %v2005
    %2009 = vrot.lane.b32.xlu0 %v2007, 96
    %v2010 = vpop.permute.xlu0 %2009
    %2012 = vst.msk [vmem:[#allocation10 + $0x1c] sm:$0xf] %vm338, %v2010
    %2013 = vst.msk [vmem:[#allocation4 + $0x1c] sm:$0xf] %vm338, %v2001
    %v2014 = vsel %vm66, %v2010, 0
    %2016 = vmatprep.subr.mxu0 0.0
    %2017 = vmatpush1.msra.mxu0 0.0
    %2018 = vmatprep.subr.mxu0 0.0
    %2019 = vmatpush1.msra.mxu0 0.0
    %2020 = vmatprep.subr.mxu0 0.0
    %2021 = vmatpush1.msra.mxu0 0.0
    %2022 = vmatprep.subr.mxu0 0.0
    %2023 = vmatpush1.msra.mxu0 0.0
    %2024 = vmatprep.subr.mxu0 0.0
    %2025 = vmatpush1.msra.mxu0 0.0
    %2026 = vmatprep.subr.mxu0 0.0
    %2027 = vmatpush1.msra.mxu0 0.0
    %2028 = vmatprep.subr.mxu0 0.0
    %2029 = vmatpush1.msra.mxu0 0.0
    %2030 = vmatprep.subr.mxu0 0.0
    %2031 = vmatpush1.msra.mxu0 0.0
    %2032 = vmatprep.subr.mxu0 0.0
    %2033 = vmatpush1.msra.mxu0 0.0
    %2034 = vmatprep.subr.mxu0 0.0
    %2035 = vmatpush1.msra.mxu0 0.0
    %2036 = vmatprep.subr.mxu0 0.0
    %2037 = vmatpush1.msra.mxu0 0.0
    %2038 = vmatprep.subr.mxu0 0.0
    %2039 = vmatpush1.msra.mxu0 0.0
    %2040 = vmatprep.subr.mxu0 0.0
    %2041 = vmatpush1.msra.mxu0 %v47
    %2042 = vmatprep.subr.mxu0 0.0
    %2043 = vmatpush1.msra.mxu0 %v46
    %2044 = vmatprep.subr.mxu0 0.0
    %2045 = vmatpush1.msra.mxu0 %v45
    %2046 = vmatprep.subr.mxu0 0.0
    %2047 = vmatpush1.msra.mxu0 %v44
    %2048 = vmatprep.subr.mxu0 0.0
    %2049 = vmatpush2.msra.mxu0 0.0
    %2050 = vmatprep.subr.mxu0 0.0
    %2051 = vmatpush2.msra.mxu0 0.0
    %2052 = vmatprep.subr.mxu0 0.0
    %2053 = vmatpush2.msra.mxu0 0.0
    %2054 = vmatprep.subr.mxu0 0.0
    %2055 = vmatpush2.msra.mxu0 0.0
    %2056 = vmatprep.subr.mxu0 0.0
    %2057 = vmatpush2.msra.mxu0 0.0
    %2058 = vmatprep.subr.mxu0 0.0
    %2059 = vmatpush2.msra.mxu0 0.0
    %2060 = vmatprep.subr.mxu0 0.0
    %2061 = vmatpush2.msra.mxu0 0.0
    %2062 = vmatprep.subr.mxu0 0.0
    %2063 = vmatpush2.msra.mxu0 0.0
    %2064 = vmatprep.subr.mxu0 0.0
    %2065 = vmatpush2.msra.mxu0 0.0
    %2066 = vmatprep.subr.mxu0 0.0
    %2067 = vmatpush2.msra.mxu0 0.0
    %2068 = vmatprep.subr.mxu0 0.0
    %2069 = vmatpush2.msra.mxu0 0.0
    %2070 = vmatprep.subr.mxu0 0.0
    %2071 = vmatpush2.msra.mxu0 0.0
    %2072 = vmatprep.subr.mxu0 0.0
    %2073 = vmatpush2.msra.mxu0 0.0
    %2074 = vmatprep.subr.mxu0 0.0
    %2075 = vmatpush2.msra.mxu0 0.0
    %2076 = vmatprep.subr.mxu0 0.0
    %2077 = vmatpush2.msra.mxu0 0.0
    %2078 = vmatprep.subr.mxu0 0.0
    %2079 = vmatpush2.msra.mxu0 0.0
    %2080 = vmatprep.mubr.f32.mxu0 0.0
    %2081 = vmatmul.mubr.f32.gmra.mxu0 %v2014
    %v2082 = vpop.f32.mrf.mxu0
    %v2083 = vadd.f32 0.0, %v2082
    %v2084 = vpop.f32.mrf.mxu0
    %2085 = vdwg.mxu0
    %2086 = vst [vmem:[#allocation3 + $0x1c] sm:$0xf] %v2083
    %2087 = vst.msk [vmem:[#allocation12] sm:$0xf] %vm338, %v2001
    %2088 = vst.msk [vmem:[#allocation14] sm:$0xf] %vm338, %v2010
    %v2089 = vrot.slane %v2007, 2
    %v2091 = vmul.f32 %v2007, %v2089
    %v2092 = vsub.f32 %v2007, %v2089
    %v2093 = vand.u32 2147483647, %v2092
    %v2094 = vld [vmem:[%s5] sm:$0xff]
    %v2095 = vld [vmem:[%s5 + $0x8] sm:$0xff]
    %v2096 = vld [vmem:[%s5 + $0x10] sm:$0xff]
    %v2097 = vld [vmem:[%s5 + $0x18] sm:$0xff]
    %v2098 = vld [vmem:[%s5 + $0x20] sm:$0xff]
    %v2099 = vld [vmem:[%s5 + $0x28] sm:$0xff]
    %v2100 = vld [vmem:[%s5 + $0x30] sm:$0xff]
    %v2101 = vld [vmem:[%s5 + $0x38] sm:$0xff]
    %2103 = vrot.lane.b32.xlu0 %v2093, 96
    %v2104 = vpop.permute.xlu0 %2103
    %v2105 = vsel %vm66, %v2104, 0
    %2107 = vmatprep.subr.mxu0 0.0
    %2108 = vmatpush1.msra.mxu0 0.0
    %2109 = vmatprep.subr.mxu0 0.0
    %2110 = vmatpush1.msra.mxu0 0.0
    %2111 = vmatprep.subr.mxu0 0.0
    %2112 = vmatpush1.msra.mxu0 0.0
    %2113 = vmatprep.subr.mxu0 0.0
    %2114 = vmatpush1.msra.mxu0 0.0
    %2115 = vmatprep.subr.mxu0 0.0
    %2116 = vmatpush1.msra.mxu0 0.0
    %2117 = vmatprep.subr.mxu0 0.0
    %2118 = vmatpush1.msra.mxu0 0.0
    %2119 = vmatprep.subr.mxu0 0.0
    %2120 = vmatpush1.msra.mxu0 0.0
    %2121 = vmatprep.subr.mxu0 0.0
    %2122 = vmatpush1.msra.mxu0 0.0
    %2123 = vmatprep.subr.mxu0 0.0
    %2124 = vmatpush1.msra.mxu0 0.0
    %2125 = vmatprep.subr.mxu0 0.0
    %2126 = vmatpush1.msra.mxu0 0.0
    %2127 = vmatprep.subr.mxu0 0.0
    %2128 = vmatpush1.msra.mxu0 0.0
    %2129 = vmatprep.subr.mxu0 0.0
    %2130 = vmatpush1.msra.mxu0 0.0
    %2131 = vmatprep.subr.mxu0 0.0
    %2132 = vmatpush1.msra.mxu0 %v2101
    %2133 = vmatprep.subr.mxu0 0.0
    %2134 = vmatpush1.msra.mxu0 %v2100
    %2135 = vmatprep.subr.mxu0 0.0
    %2136 = vmatpush1.msra.mxu0 %v2099
    %2137 = vmatprep.subr.mxu0 0.0
    %2138 = vmatpush1.msra.mxu0 %v2098
    %2139 = vmatprep.subr.mxu0 0.0
    %2140 = vmatpush2.msra.mxu0 0.0
    %2141 = vmatprep.subr.mxu0 0.0
    %2142 = vmatpush2.msra.mxu0 0.0
    %2143 = vmatprep.subr.mxu0 0.0
    %2144 = vmatpush2.msra.mxu0 0.0
    %2145 = vmatprep.subr.mxu0 0.0
    %2146 = vmatpush2.msra.mxu0 0.0
    %2147 = vmatprep.subr.mxu0 0.0
    %2148 = vmatpush2.msra.mxu0 0.0
    %2149 = vmatprep.subr.mxu0 0.0
    %2150 = vmatpush2.msra.mxu0 0.0
    %2151 = vmatprep.subr.mxu0 0.0
    %2152 = vmatpush2.msra.mxu0 0.0
    %2153 = vmatprep.subr.mxu0 0.0
    %2154 = vmatpush2.msra.mxu0 0.0
    %2155 = vmatprep.subr.mxu0 0.0
    %2156 = vmatpush2.msra.mxu0 0.0
    %2157 = vmatprep.subr.mxu0 0.0
    %2158 = vmatpush2.msra.mxu0 0.0
    %2159 = vmatprep.subr.mxu0 0.0
    %2160 = vmatpush2.msra.mxu0 0.0
    %2161 = vmatprep.subr.mxu0 0.0
    %2162 = vmatpush2.msra.mxu0 0.0
    %2163 = vmatprep.subr.mxu0 0.0
    %2164 = vmatpush2.msra.mxu0 0.0
    %2165 = vmatprep.subr.mxu0 0.0
    %2166 = vmatpush2.msra.mxu0 0.0
    %2167 = vmatprep.subr.mxu0 0.0
    %2168 = vmatpush2.msra.mxu0 0.0
    %2169 = vmatprep.subr.mxu0 0.0
    %2170 = vmatpush2.msra.mxu0 0.0
    %2171 = vmatprep.mubr.f32.mxu0 0.0
    %2172 = vmatmul.mubr.f32.gmra.mxu0 %v2105
    %v2173 = vpop.f32.mrf.mxu0
    %v2174 = vadd.f32 0.0, %v2173
    %v2175 = vpop.f32.mrf.mxu0
    %2176 = vdwg.mxu0
    %2178 = vrot.lane.b32.xlu0 %v2091, 96
    %v2179 = vpop.permute.xlu0 %2178
    %v2180 = vsel %vm66, %v2179, 0
    %2182 = vmatprep.subr.mxu0 0.0
    %2183 = vmatpush1.msra.mxu0 0.0
    %2184 = vmatprep.subr.mxu0 0.0
    %2185 = vmatpush1.msra.mxu0 0.0
    %2186 = vmatprep.subr.mxu0 0.0
    %2187 = vmatpush1.msra.mxu0 0.0
    %2188 = vmatprep.subr.mxu0 0.0
    %2189 = vmatpush1.msra.mxu0 0.0
    %2190 = vmatprep.subr.mxu0 0.0
    %2191 = vmatpush1.msra.mxu0 0.0
    %2192 = vmatprep.subr.mxu0 0.0
    %2193 = vmatpush1.msra.mxu0 0.0
    %2194 = vmatprep.subr.mxu0 0.0
    %2195 = vmatpush1.msra.mxu0 0.0
    %2196 = vmatprep.subr.mxu0 0.0
    %2197 = vmatpush1.msra.mxu0 0.0
    %2198 = vmatprep.subr.mxu0 0.0
    %2199 = vmatpush1.msra.mxu0 0.0
    %2200 = vmatprep.subr.mxu0 0.0
    %2201 = vmatpush1.msra.mxu0 0.0
    %2202 = vmatprep.subr.mxu0 0.0
    %2203 = vmatpush1.msra.mxu0 0.0
    %2204 = vmatprep.subr.mxu0 0.0
    %2205 = vmatpush1.msra.mxu0 0.0
    %2206 = vmatprep.subr.mxu0 0.0
    %2207 = vmatpush1.msra.mxu0 %v2097
    %2208 = vmatprep.subr.mxu0 0.0
    %2209 = vmatpush1.msra.mxu0 %v2096
    %2210 = vmatprep.subr.mxu0 0.0
    %2211 = vmatpush1.msra.mxu0 %v2095
    %2212 = vmatprep.subr.mxu0 0.0
    %2213 = vmatpush1.msra.mxu0 %v2094
    %2214 = vmatprep.subr.mxu0 0.0
    %2215 = vmatpush2.msra.mxu0 0.0
    %2216 = vmatprep.subr.mxu0 0.0
    %2217 = vmatpush2.msra.mxu0 0.0
    %2218 = vmatprep.subr.mxu0 0.0
    %2219 = vmatpush2.msra.mxu0 0.0
    %2220 = vmatprep.subr.mxu0 0.0
    %2221 = vmatpush2.msra.mxu0 0.0
    %2222 = vmatprep.subr.mxu0 0.0
    %2223 = vmatpush2.msra.mxu0 0.0
    %2224 = vmatprep.subr.mxu0 0.0
    %2225 = vmatpush2.msra.mxu0 0.0
    %2226 = vmatprep.subr.mxu0 0.0
    %2227 = vmatpush2.msra.mxu0 0.0
    %2228 = vmatprep.subr.mxu0 0.0
    %2229 = vmatpush2.msra.mxu0 0.0
    %2230 = vmatprep.subr.mxu0 0.0
    %2231 = vmatpush2.msra.mxu0 0.0
    %2232 = vmatprep.subr.mxu0 0.0
    %2233 = vmatpush2.msra.mxu0 0.0
    %2234 = vmatprep.subr.mxu0 0.0
    %2235 = vmatpush2.msra.mxu0 0.0
    %2236 = vmatprep.subr.mxu0 0.0
    %2237 = vmatpush2.msra.mxu0 0.0
    %2238 = vmatprep.subr.mxu0 0.0
    %2239 = vmatpush2.msra.mxu0 0.0
    %2240 = vmatprep.subr.mxu0 0.0
    %2241 = vmatpush2.msra.mxu0 0.0
    %2242 = vmatprep.subr.mxu0 0.0
    %2243 = vmatpush2.msra.mxu0 0.0
    %2244 = vmatprep.subr.mxu0 0.0
    %2245 = vmatpush2.msra.mxu0 0.0
    %2246 = vmatprep.mubr.f32.mxu0 0.0
    %2247 = vmatmul.mubr.f32.gmra.mxu0 %v2180
    %v2248 = vpop.f32.mrf.mxu0
    %v2249 = vadd.f32 %v2174, %v2248
    %v2250 = vpop.f32.mrf.mxu0
    %2251 = vdwg.mxu0
    %v2252 = vld [vmem:[%s6] sm:$0x1]
    %v2254 = vlaneseq
    %v2255 = vshrl.u32 %v2254, 7
    %v2256 = vsub.s32 0, %v2255
    %v2257 = vrot.slane %v2252, %v2256
    %v2259 = vadd.f32 %v2249, %v2257
    %v2260 = vxor.u32 %v2259, 2147483648
    %v2261 = vmul.f32 %v2260, 1.442695
    %v2262 = vpow.pop %v2261
    %v2263 = vadd.f32 %v2262, 1.0
    %v2264 = vrcp.pop %v2263
    %v2265 = vmul.f32 1.0, %v2264
    %v2266 = vld [vmem:[%s7] sm:$0xff]
    %v2267 = vld [vmem:[%s7 + $0x8] sm:$0xff]
    %v2268 = vld [vmem:[%s7 + $0x10] sm:$0xff]
    %v2269 = vld [vmem:[%s7 + $0x18] sm:$0xff]
    %v2270 = vld [vmem:[#allocation9] sm:$0x1]
    %v2272 = vlaneseq
    %v2273 = vshrl.u32 %v2272, 7
    %v2274 = vsub.s32 0, %v2273
    %v2275 = vrot.slane %v2270, %v2274
    %v2278 = vsel %vm66, %v2265, 0
    %2280 = vmatprep.subr.mxu0 0.0
    %2281 = vmatpush1.msra.mxu0 0.0
    %2282 = vmatprep.subr.mxu0 0.0
    %2283 = vmatpush1.msra.mxu0 0.0
    %2284 = vmatprep.subr.mxu0 0.0
    %2285 = vmatpush1.msra.mxu0 0.0
    %2286 = vmatprep.subr.mxu0 0.0
    %2287 = vmatpush1.msra.mxu0 0.0
    %2288 = vmatprep.subr.mxu0 0.0
    %2289 = vmatpush1.msra.mxu0 0.0
    %2290 = vmatprep.subr.mxu0 0.0
    %2291 = vmatpush1.msra.mxu0 0.0
    %2292 = vmatprep.subr.mxu0 0.0
    %2293 = vmatpush1.msra.mxu0 0.0
    %2294 = vmatprep.subr.mxu0 0.0
    %2295 = vmatpush1.msra.mxu0 0.0
    %2296 = vmatprep.subr.mxu0 0.0
    %2297 = vmatpush1.msra.mxu0 0.0
    %2298 = vmatprep.subr.mxu0 0.0
    %2299 = vmatpush1.msra.mxu0 0.0
    %2300 = vmatprep.subr.mxu0 0.0
    %2301 = vmatpush1.msra.mxu0 0.0
    %2302 = vmatprep.subr.mxu0 0.0
    %2303 = vmatpush1.msra.mxu0 0.0
    %2304 = vmatprep.subr.mxu0 0.0
    %2305 = vmatpush1.msra.mxu0 %v2269
    %2306 = vmatprep.subr.mxu0 0.0
    %2307 = vmatpush1.msra.mxu0 %v2268
    %2308 = vmatprep.subr.mxu0 0.0
    %2309 = vmatpush1.msra.mxu0 %v2267
    %2310 = vmatprep.subr.mxu0 0.0
    %2311 = vmatpush1.msra.mxu0 %v2266
    %2312 = vmatprep.subr.mxu0 0.0
    %2313 = vmatpush2.msra.mxu0 0.0
    %2314 = vmatprep.subr.mxu0 0.0
    %2315 = vmatpush2.msra.mxu0 0.0
    %2316 = vmatprep.subr.mxu0 0.0
    %2317 = vmatpush2.msra.mxu0 0.0
    %2318 = vmatprep.subr.mxu0 0.0
    %2319 = vmatpush2.msra.mxu0 0.0
    %2320 = vmatprep.subr.mxu0 0.0
    %2321 = vmatpush2.msra.mxu0 0.0
    %2322 = vmatprep.subr.mxu0 0.0
    %2323 = vmatpush2.msra.mxu0 0.0
    %2324 = vmatprep.subr.mxu0 0.0
    %2325 = vmatpush2.msra.mxu0 0.0
    %2326 = vmatprep.subr.mxu0 0.0
    %2327 = vmatpush2.msra.mxu0 0.0
    %2328 = vmatprep.subr.mxu0 0.0
    %2329 = vmatpush2.msra.mxu0 0.0
    %2330 = vmatprep.subr.mxu0 0.0
    %2331 = vmatpush2.msra.mxu0 0.0
    %2332 = vmatprep.subr.mxu0 0.0
    %2333 = vmatpush2.msra.mxu0 0.0
    %2334 = vmatprep.subr.mxu0 0.0
    %2335 = vmatpush2.msra.mxu0 0.0
    %2336 = vmatprep.subr.mxu0 0.0
    %2337 = vmatpush2.msra.mxu0 0.0
    %2338 = vmatprep.subr.mxu0 0.0
    %2339 = vmatpush2.msra.mxu0 0.0
    %2340 = vmatprep.subr.mxu0 0.0
    %2341 = vmatpush2.msra.mxu0 0.0
    %2342 = vmatprep.subr.mxu0 0.0
    %2343 = vmatpush2.msra.mxu0 0.0
    %2344 = vmatprep.mubr.f32.mxu0 0.0
    %2345 = vmatmul.mubr.f32.gmra.mxu0 %v2278
    %v2346 = vpop.f32.mrf.mxu0
    %v2347 = vadd.f32 %v2275, %v2346
    %v2348 = vpop.f32.mrf.mxu0
    %2349 = vdwg.mxu0
    %v2350 = vxor.u32 %v2347, 2147483648
    %v2351 = vmul.f32 %v2350, 1.442695
    %v2352 = vpow.pop %v2351
    %v2353 = vadd.f32 %v2352, 1.0
    %v2354 = vrcp.pop %v2353
    %v2355 = vmul.f32 1.0, %v2354
    %vm2356 = vcmask 1024
    %2357 = vst.msk [vmem:[%s12] sm:$0x3] %vm2356, %v2355
    // Predicated region
    $region34: #{tpu_custom_call.1} parent=1 // pred_check
      _
    $region35: #{tpu_custom_call.1} parent=1 // pred_check_branch
      %2359 = sbr.rel (0) target = $region37
    $region36: #{tpu_custom_call.1} parent=1 // pred_region
      %s2361 = ssub.s32 512, 512
      %2362 = vsyncadd [#allocation11], %s2361
      %s2363 = sshll.u32 [#allocation10], 4
      %s2364 = int_to_ptr.vmem [resolvable:$true] %s2363
      %2369 = dma.vmem_to_hbm [thread:$0]  %s2364, 512, %s9, [#allocation11], 128, 128, 8
    $region37: #{tpu_custom_call.1} parent=1 // pred_fallthru
      _
    // Predicated region
    $region38: #{tpu_custom_call.1} parent=1 // pred_check
      _
    $region39: #{tpu_custom_call.1} parent=1 // pred_check_branch
      %2371 = sbr.rel (0) target = $region41
    $region40: #{tpu_custom_call.1} parent=1 // pred_region
      %s2373 = ssub.s32 64, 64
      %2374 = vsyncadd [#allocation13], %s2373
      %s2376 = sshll.u32 [#allocation12], 4
      %s2377 = int_to_ptr.vmem [resolvable:$true] %s2376
      %2379 = dma.vmem_to_hbm [thread:$0]  %s2377, 64, %s10, [#allocation13]
    $region41: #{tpu_custom_call.1} parent=1 // pred_fallthru
      _
    // Predicated region
    $region42: #{tpu_custom_call.1} parent=1 // pred_check
      _
    $region43: #{tpu_custom_call.1} parent=1 // pred_check_branch
      %2381 = sbr.rel (0) target = $region45
    $region44: #{tpu_custom_call.1} parent=1 // pred_region
      %s2383 = ssub.s32 64, 64
      %2384 = vsyncadd [#allocation13], %s2383
      %s2386 = sshll.u32 [#allocation14], 4
      %s2387 = int_to_ptr.vmem [resolvable:$true] %s2386
      %2389 = dma.vmem_to_hbm [thread:$0]  %s2387, 64, %s11, [#allocation13]
    $region45: #{tpu_custom_call.1} parent=1 // pred_fallthru
      _
    // Predicated region
    $region46: #{tpu_custom_call.1} parent=1 // pred_check
      _
    $region47: #{tpu_custom_call.1} parent=1 // pred_check_branch
      %2391 = sbr.rel (0) target = $region49
    $region48: #{tpu_custom_call.1} parent=1 // pred_region
      _
    $region49: #{tpu_custom_call.1} parent=1 // pred_fallthru
      _
    // Predicated region
    $region50: #{tpu_custom_call.1} parent=1 // pred_check
      _
    $region51: #{tpu_custom_call.1} parent=1 // pred_check_branch
      %2393 = sbr.rel (0) target = $region53
    $region52: #{tpu_custom_call.1} parent=1 // pred_region
      %2394 = dma.done [#allocation11], 512
    $region53: #{tpu_custom_call.1} parent=1 // pred_fallthru
      _
    // Predicated region
    $region54: #{tpu_custom_call.1} parent=1 // pred_check
      _
    $region55: #{tpu_custom_call.1} parent=1 // pred_check_branch
      %2396 = sbr.rel (0) target = $region57
    $region56: #{tpu_custom_call.1} parent=1 // pred_region
      %2397 = dma.done [#allocation13], 64
    $region57: #{tpu_custom_call.1} parent=1 // pred_fallthru
      _
    // Predicated region
    $region58: #{tpu_custom_call.1} parent=1 // pred_check
      _
    $region59: #{tpu_custom_call.1} parent=1 // pred_check_branch
      %2399 = sbr.rel (0) target = $region61
    $region60: #{tpu_custom_call.1} parent=1 // pred_region
      %2400 = dma.done [#allocation13], 64
    $region61: #{tpu_custom_call.1} parent=1 // pred_fallthru
      _
    // Predicated region
    $region62: #{tpu_custom_call.1} parent=1 // pred_check
      _
    $region63: #{tpu_custom_call.1} parent=1 // pred_check_branch
      %2402 = sbr.rel (0) target = $region65
    $region64: #{tpu_custom_call.1} parent=1 // pred_region
      _
    $region65: #{tpu_custom_call.1} parent=1 // pred_fallthru
      _
    %2403 = vsyncpa [#allocation11], 1
    %2404 = vsyncpa [#allocation13], 1

</llo_original>
